<compile_context>
chip_gen: v5e
topology: v5e:2x2
jax: 0.10.0
libtpu: 0.0.40
codegen_flags: <defaults>
</compile_context>

<pallas_src>
import numpy as np
import jax
import jax.numpy as jnp
from jax.experimental import pallas as pl
from jax.experimental.pallas import tpu as pltpu

# ---------------- configuration (small, deterministic) ----------------
N_CLASS = 8          # category one-hot size (label)
C1, C2 = 32, 64      # encoder hidden widths
CF = 128             # per-point feature dim   (feat)
CG = 128             # global feature dim      (g_feat)
H, D = 64, 64        # decoder hidden / attention dims
N_STEPS = 3          # "Eigen3steps"
RADIUS = 0.5
XYZ_PAD = 8          # xyz carried as (Ns, 8); lanes 3: are zero  (was 128)
LANE = 128
W_DTYPE = jnp.bfloat16   # packed-weight storage dtype (halves prologue DMA)


# ---------------- packed-weight layout (row bands 8-aligned, lane width 128) ----------------
def _round8(r):
    return ((r + 7) // 8) * 8


def _make_layout(entries):
    offs, r = {}, 0
    for name, rows, cols in entries:
        offs[name] = (r, rows, cols)
        r += _round8(rows)
    return offs, r


_ENC_ENTRIES = [
    ("w1", 3, C1), ("b1", 1, C1),
    ("w2", C1, C2), ("b2", 1, C2),
    ("w3", C2, CF), ("b3", 1, CF),
    ("wg", CF, CG), ("wl", N_CLASS, CG), ("bg", 1, CG),
]
ENC_OFFS, ENC_ROWS = _make_layout(_ENC_ENTRIES)

_DEC_ENTRIES = [
    ("wh", XYZ_PAD, H), ("bh", 1, H),          # wh rows 3: are zero (xyz is 8-padded)
    ("wgm", CG, H), ("bgm", 1, H),             # bgm stores (bgm + 1)  -> h*gamma + beta
    ("wbt", CG, H), ("bbt", 1, H),
    ("wq", H, 2 * D),                          # [wq/sqrt(D) | 0] -> 128-wide, no slicing
    ("wkv", CF, 2 * D),                        # [wk | wv]        -> fused K/V projection
    ("wo1", H, H),
    ("wo2", 2 * D, H), ("bo", 1, H),           # rows 0:D zero -> selects the V half of attn@[k|v]
    ("wd", H, XYZ_PAD), ("bd", 1, XYZ_PAD),    # cols 3: zero -> delta stays xyz-padded
]
DEC_OFFS, DEC_ROWS = _make_layout(_DEC_ENTRIES)


# ---------------- glue: sphere point generation (get_spherepoints) ----------------
def get_spherepoints(num_points, radius):
    """Deterministic Fibonacci sphere, (num_points, 3) float32."""
    idx = np.arange(num_points, dtype=np.float64) + 0.5
    phi = np.arccos(1.0 - 2.0 * idx / num_points)
    theta = np.pi * (1.0 + 5.0 ** 0.5) * idx
    x = np.cos(theta) * np.sin(phi)
    y = np.sin(theta) * np.sin(phi)
    z = np.cos(phi)
    return (radius * np.stack([x, y, z], axis=-1)).astype(np.float32)


# ---------------- parameters (created at natural shapes, packed once, bf16) ----------------
def _pack(entries, offs, total_rows, tensors):
    # Starts from zeros: every pad row/lane outside the declared windows is
    # guaranteed exactly zero (the zero-padding algebra below depends on it).
    buf = jnp.zeros((total_rows, LANE), W_DTYPE)
    for name, rows, cols in entries:
        r0, _, _ = offs[name]
        buf = buf.at[r0:r0 + rows, 0:cols].set(tensors[name].astype(W_DTYPE))
    return buf


def init_params(key):
    keys = jax.random.split(key, 40)
    ki = iter(keys)

    def w(shape, fan_in, scale=1.0):
        return (jax.random.normal(next(ki), shape, dtype=jnp.float32)
                * (scale / np.sqrt(fan_in))).astype(jnp.float32)

    z = lambda shape: jnp.zeros(shape, jnp.float32)

    # ----- encoder (PointsEncoder_pointwise): 3 -> C1 -> C2 -> CF point-wise convs -----
    enc = {
        "w1": w((3, C1), 3),     "b1": z((1, C1)),
        "w2": w((C1, C2), C1),   "b2": z((1, C2)),
        "w3": w((C2, CF), C2),   "b3": z((1, CF)),
        "wg": w((CF, CG), CF),   "wl": w((N_CLASS, CG), N_CLASS), "bg": z((1, CG)),
    }
    enc_w = _pack(_ENC_ENTRIES, ENC_OFFS, ENC_ROWS, enc)

    # ----- decoder (SP_DecoderEigen3steps): 3 stacked deformation steps -----
    inv_sqrt_d = np.float32(1.0 / np.sqrt(D))
    dec_steps = []
    for _s in range(N_STEPS):
        wh = w((3, H), 3)
        wq = w((H, D), H) * inv_sqrt_d            # fold 1/sqrt(D) into wq at pack time
        wk, wv = w((CF, D), CF), w((CF, D), CF)
        wo1, wo2 = w((H, H), H), w((D, H), D)
        wd = w((H, 3), H, scale=0.1)
        step = {
            "wh": jnp.zeros((XYZ_PAD, H), jnp.float32).at[0:3].set(wh),
            "bh": z((1, H)),
            "wgm": w((CG, H), CG),
            "bgm": jnp.ones((1, H), jnp.float32),  # bgm + 1 baked in (bgm init is 0)
            "wbt": w((CG, H), CG), "bbt": z((1, H)),
            "wq": jnp.zeros((H, 2 * D), jnp.float32).at[:, 0:D].set(wq),
            "wkv": jnp.concatenate([wk, wv], axis=1),
            "wo1": wo1,
            "wo2": jnp.zeros((2 * D, H), jnp.float32).at[D:].set(wo2),
            "bo": z((1, H)),
            "wd": jnp.zeros((H, XYZ_PAD), jnp.float32).at[:, 0:3].set(wd),
            "bd": z((1, XYZ_PAD)),
        }
        dec_steps.append(_pack(_DEC_ENTRIES, DEC_OFFS, DEC_ROWS, step))
    dec_w = jnp.concatenate(dec_steps, axis=0)      # (N_STEPS*DEC_ROWS, 128) bf16

    return {"enc_w": enc_w, "dec_w": dec_w}


# ---------------- fused encoder + 3-step decoder kernel (per-batch grid step) ----------------
def _ld(ref, offs, name, base=0):
    """Static window load of a packed (bf16) weight band, cast once to f32."""
    r0, rows, cols = offs[name]
    return ref[base + r0: base + r0 + rows, 0:cols].astype(jnp.float32)


def fused_kernel(pts_ref, lab_ref, sph_ref, encw_ref, decw_ref, out_ref):
    f32 = jnp.float32
    bf16 = jnp.bfloat16
    ew = lambda n: _ld(encw_ref, ENC_OFFS, n)

    # ----- encoder: per-point MLP + global max-pool fused with the class label -----
    x = pts_ref[0]                                                        # (N, 3)
    h1 = jnp.maximum(jnp.dot(x, ew("w1"), preferred_element_type=f32) + ew("b1"), 0.0)
    h2 = jnp.maximum(jnp.dot(h1, ew("w2"), preferred_element_type=f32) + ew("b2"), 0.0)
    feat = jnp.dot(h2, ew("w3"), preferred_element_type=f32) + ew("b3")   # (N, CF)
    gmax = jnp.max(feat, axis=0, keepdims=True)                           # (1, CF)
    lab = lab_ref[0]                                                      # (1, N_CLASS)
    g = jnp.maximum(jnp.dot(gmax, ew("wg"), preferred_element_type=f32)
                    + jnp.dot(lab, ew("wl"), preferred_element_type=f32)
                    + ew("bg"), 0.0)                                      # (1, CG)

    # ----- decoder: 3 deformation steps on the (8-lane padded) sphere coords -----
    xyz = sph_ref[...]                                                    # (Ns, 8), cols 3: zero

    for s in range(N_STEPS):                                              # static unroll
        base = s * DEC_ROWS
        dw = lambda n, _b=base: _ld(decw_ref, DEC_OFFS, n, _b)

        # point-wise MLP on current coords (zero wh rows 3: mask the pad lanes)
        h = jnp.maximum(jnp.dot(xyz, dw("wh"), preferred_element_type=f32) + dw("bh"), 0.0)
        # global-feature modulation (AdaIN-style); the "+1" lives in bgm already
        gamma = jnp.dot(g, dw("wgm"), preferred_element_type=f32) + dw("bgm")
        beta = jnp.dot(g, dw("wbt"), preferred_element_type=f32) + dw("bbt")
        h = h * gamma + beta                                              # (Ns, H)

        # cross attention: sphere queries attend to per-point input features.
        # q is [q | 0] (already /sqrt(D)) and kv is [k | v] so neither logits
        # nor ctx need slicing.
        q = jnp.dot(h, dw("wq"), preferred_element_type=f32)              # (Ns, 2D), cols D: = 0
        kv = jnp.dot(feat, dw("wkv"), preferred_element_type=f32)         # (N, 2D)  = [k | v]
        kv_b = kv.astype(bf16)
        logits = jnp.einsum("qd,kd->qk", q.astype(bf16), kv_b,
                            preferred_element_type=f32)                   # (Ns, N) = q @ k.T
        m = jnp.max(logits, axis=-1, keepdims=True)
        p = jnp.exp(logits - m)
        attn = p * pl.reciprocal(jnp.sum(p, axis=-1, keepdims=True), approx=True)
        cv = jnp.dot(attn.astype(bf16), kv_b,
                     preferred_element_type=f32)                          # (Ns, 2D), cols D: = ctx

        # predict per-point displacement and flow the sphere points
        u = jnp.tanh(jnp.dot(h, dw("wo1"), preferred_element_type=f32)
                     + jnp.dot(cv, dw("wo2"), preferred_element_type=f32)  # wo2 picks the ctx half
                     + dw("bo"))
        delta = jnp.dot(u, dw("wd"), preferred_element_type=f32) + dw("bd")  # (Ns, 8), cols 3: = 0
        xyz = xyz + delta

    # lane-dense epilogue: (Ns, 8) -> (3, Ns) via a tiny NT matmul against an
    # iota-built identity selector (same proven q@k^T pattern; avoids a
    # narrow-lane XLU transpose and keeps the output lane-dense).
    rows = jax.lax.broadcasted_iota(jnp.int32, (XYZ_PAD, XYZ_PAD), 0)
    cols = jax.lax.broadcasted_iota(jnp.int32, (XYZ_PAD, XYZ_PAD), 1)
    sel = (rows == cols).astype(f32)                                      # (8, 8) identity
    xyz_t = jnp.einsum("cd,nd->cn", sel, xyz, preferred_element_type=f32)  # (8, Ns) = xyz^T
    out_ref[0] = xyz_t[0:3, :]                                            # (3, Ns)


# ---------------- ModelStep1.forward ----------------
def model_step1_forward(points_b3n, label, params, radius=RADIUS, n_sphere=256,
                        sphere_xyz=None):
    """points_b3n: (B, 3, N) like PyTorch Conv1d input; label: (B, N_CLASS) one-hot.
    Returns decoded cloud (B, 3, n_sphere), matching the PyTorch output layout."""
    B, _, N = points_b3n.shape
    # tiny NCW -> NWC transpose; fuses under jit (kernel keeps channels-last layout)
    points_bnc = jnp.transpose(points_b3n, (0, 2, 1))
    label3 = label.reshape(B, 1, N_CLASS).astype(jnp.float32)

    if sphere_xyz is None:
        sph3 = get_spherepoints(n_sphere, radius)                         # np (Ns, 3)
        Ns = sph3.shape[0]
        sph_np = np.zeros((Ns, XYZ_PAD), np.float32)
        sph_np[:, :3] = sph3
        sph = jnp.asarray(sph_np)
    else:
        sph3 = jnp.asarray(sphere_xyz, jnp.float32)
        Ns = sph3.shape[0]
        sph = jnp.zeros((Ns, XYZ_PAD), jnp.float32).at[:, 0:3].set(sph3)
    assert Ns % 8 == 0, "number of sphere points must be a multiple of 8"

    out = pl.pallas_call(
        fused_kernel,
        grid=(B,),
        in_specs=[
            pl.BlockSpec((1, N, 3), lambda b: (b, 0, 0)),                 # points (per batch)
            pl.BlockSpec((1, 1, N_CLASS), lambda b: (b, 0, 0)),           # label  (per batch)
            pl.BlockSpec((Ns, XYZ_PAD), lambda b: (0, 0)),                # padded sphere (shared)
            pl.BlockSpec((ENC_ROWS, LANE), lambda b: (0, 0)),             # packed encoder weights (bf16)
            pl.BlockSpec((N_STEPS * DEC_ROWS, LANE), lambda b: (0, 0)),   # packed decoder weights (bf16)
        ],
        out_specs=pl.BlockSpec((1, 3, Ns), lambda b: (b, 0, 0)),          # lane-dense output
        out_shape=jax.ShapeDtypeStruct((B, 3, Ns), jnp.float32),
        compiler_params=pltpu.CompilerParams(dimension_semantics=("parallel",)),
    )(points_bnc, label3, sph, params["enc_w"], params["dec_w"])
    return out


if __name__ == "__main__":
    B, N_IN, N_SPHERE = 2, 128, 256
    key = jax.random.PRNGKey(0)
    kp, kx, kl = jax.random.split(key, 3)

    params = init_params(kp)
    points = jax.random.normal(kx, (B, 3, N_IN), dtype=jnp.float32)       # NCW point cloud
    label_idx = jax.random.randint(kl, (B,), 0, N_CLASS)
    label = jax.nn.one_hot(label_idx, N_CLASS, dtype=jnp.float32)

    fwd = jax.jit(model_step1_forward, static_argnames=("radius", "n_sphere"))
    out = fwd(points, label, params, radius=RADIUS, n_sphere=N_SPHERE)
    out = jax.block_until_ready(out)

    assert out.shape == (B, 3, N_SPHERE), out.shape
    assert bool(jnp.all(jnp.isfinite(out)))
    print("KERNEL_OK")
</pallas_src>

<mosaic_0001>
module attributes {stable_mosaic.version = 11 : i64} {
  func.func @fused_kernel(%arg0: i32, %arg1: memref<1x128x3xf32, #tpu.memory_space<vmem>>, %arg2: memref<1x1x8xf32, #tpu.memory_space<vmem>>, %arg3: memref<256x8xf32, #tpu.memory_space<vmem>>, %arg4: memref<272x128xbf16, #tpu.memory_space<vmem>>, %arg5: memref<2256x128xbf16, #tpu.memory_space<vmem>>, %arg6: memref<1x3x256xf32, #tpu.memory_space<vmem>>) attributes {dimension_semantics = [#tpu.dimension_semantics<parallel>], iteration_bounds = array<i64: 2>, scalar_prefetch = 0 : i64, scratch_operands = 0 : i64, tpu.core_type = #tpu.core_type<tc>, window_params = [{transform_indices = @transform_0, window_bounds = array<i64: 1, 128, 3>}, {transform_indices = @transform_1, window_bounds = array<i64: 1, 1, 8>}, {pipeline_mode = #tpu.pipeline_mode<synchronous>, transform_indices = @transform_2, window_bounds = array<i64: 256, 8>}, {pipeline_mode = #tpu.pipeline_mode<synchronous>, transform_indices = @transform_3, window_bounds = array<i64: 272, 128>}, {pipeline_mode = #tpu.pipeline_mode<synchronous>, transform_indices = @transform_4, window_bounds = array<i64: 2256, 128>}, {transform_indices = @transform_5, window_bounds = array<i64: 1, 3, 256>}]} {
    %c0 = arith.constant 0 : index
    %c0_0 = arith.constant 0 : index
    %c0_1 = arith.constant 0 : index
    %0 = vector.load %arg1[%c0, %c0_0, %c0_1] : memref<1x128x3xf32, #tpu.memory_space<vmem>>, vector<1x128x3xf32>
    %1 = vector.shape_cast %0 : vector<1x128x3xf32> to vector<128x3xf32>
    %c0_2 = arith.constant 0 : index
    %c0_3 = arith.constant 0 : index
    %2 = vector.load %arg4[%c0_2, %c0_3] : memref<272x128xbf16, #tpu.memory_space<vmem>>, vector<3x32xbf16>
    %3 = arith.extf %2 : vector<3x32xbf16> to vector<3x32xf32>
    %cst = arith.constant dense<0.000000e+00> : vector<128x32xf32>
    %4 = tpu.matmul %1, %3, %cst {dimension_numbers = #tpu.dot_dimension_numbers<[1], [0], [0], [1], [0, 0, 1, 1], [], []>} : vector<128x3xf32>, vector<3x32xf32>, vector<128x32xf32> -> vector<128x32xf32>
    %c8 = arith.constant 8 : index
    %c0_4 = arith.constant 0 : index
    %5 = vector.load %arg4[%c8, %c0_4] : memref<272x128xbf16, #tpu.memory_space<vmem>>, vector<1x32xbf16>
    %6 = arith.extf %5 : vector<1x32xbf16> to vector<1x32xf32>
    %7 = vector.broadcast %6 : vector<1x32xf32> to vector<128x32xf32>
    %8 = arith.addf %4, %7 : vector<128x32xf32>
    %cst_5 = arith.constant 0.000000e+00 : f32
    %9 = vector.broadcast %cst_5 : f32 to vector<128x32xf32>
    %10 = arith.maximumf %8, %9 : vector<128x32xf32>
    %c16 = arith.constant 16 : index
    %c0_6 = arith.constant 0 : index
    %11 = vector.load %arg4[%c16, %c0_6] : memref<272x128xbf16, #tpu.memory_space<vmem>>, vector<32x64xbf16>
    %12 = arith.extf %11 : vector<32x64xbf16> to vector<32x64xf32>
    %cst_7 = arith.constant dense<0.000000e+00> : vector<128x64xf32>
    %13 = tpu.matmul %10, %12, %cst_7 {dimension_numbers = #tpu.dot_dimension_numbers<[1], [0], [0], [1], [0, 0, 1, 1], [], []>} : vector<128x32xf32>, vector<32x64xf32>, vector<128x64xf32> -> vector<128x64xf32>
    %c48 = arith.constant 48 : index
    %c0_8 = arith.constant 0 : index
    %14 = vector.load %arg4[%c48, %c0_8] : memref<272x128xbf16, #tpu.memory_space<vmem>>, vector<1x64xbf16>
    %15 = arith.extf %14 : vector<1x64xbf16> to vector<1x64xf32>
    %16 = vector.broadcast %15 : vector<1x64xf32> to vector<128x64xf32>
    %17 = arith.addf %13, %16 : vector<128x64xf32>
    %cst_9 = arith.constant 0.000000e+00 : f32
    %18 = vector.broadcast %cst_9 : f32 to vector<128x64xf32>
    %19 = arith.maximumf %17, %18 : vector<128x64xf32>
    %c56 = arith.constant 56 : index
    %c0_10 = arith.constant 0 : index
    %20 = vector.load %arg4[%c56, %c0_10] : memref<272x128xbf16, #tpu.memory_space<vmem>>, vector<64x128xbf16>
    %21 = arith.extf %20 : vector<64x128xbf16> to vector<64x128xf32>
    %cst_11 = arith.constant dense<0.000000e+00> : vector<128x128xf32>
    %22 = tpu.matmul %19, %21, %cst_11 {dimension_numbers = #tpu.dot_dimension_numbers<[1], [0], [0], [1], [0, 0, 1, 1], [], []>} : vector<128x64xf32>, vector<64x128xf32>, vector<128x128xf32> -> vector<128x128xf32>
    %c120 = arith.constant 120 : index
    %c0_12 = arith.constant 0 : index
    %23 = vector.load %arg4[%c120, %c0_12] : memref<272x128xbf16, #tpu.memory_space<vmem>>, vector<1x128xbf16>
    %24 = arith.extf %23 : vector<1x128xbf16> to vector<1x128xf32>
    %25 = vector.broadcast %24 : vector<1x128xf32> to vector<128x128xf32>
    %26 = arith.addf %22, %25 : vector<128x128xf32>
    %cst_13 = arith.constant dense<0xFF800000> : vector<128xf32>
    %27 = vector.multi_reduction <maximumf>, %26, %cst_13 [0] : vector<128x128xf32> to vector<128xf32>
    %28 = vector.shape_cast %27 : vector<128xf32> to vector<1x128xf32>
    %c0_14 = arith.constant 0 : index
    %c0_15 = arith.constant 0 : index
    %c0_16 = arith.constant 0 : index
    %29 = vector.load %arg2[%c0_14, %c0_15, %c0_16] : memref<1x1x8xf32, #tpu.memory_space<vmem>>, vector<1x1x8xf32>
    %30 = vector.shape_cast %29 : vector<1x1x8xf32> to vector<1x8xf32>
    %c128 = arith.constant 128 : index
    %c0_17 = arith.constant 0 : index
    %31 = vector.load %arg4[%c128, %c0_17] : memref<272x128xbf16, #tpu.memory_space<vmem>>, vector<128x128xbf16>
    %32 = arith.extf %31 : vector<128x128xbf16> to vector<128x128xf32>
    %cst_18 = arith.constant dense<0.000000e+00> : vector<1x128xf32>
    %33 = tpu.matmul %28, %32, %cst_18 {dimension_numbers = #tpu.dot_dimension_numbers<[1], [0], [0], [1], [0, 0, 1, 1], [], []>} : vector<1x128xf32>, vector<128x128xf32>, vector<1x128xf32> -> vector<1x128xf32>
    %c256 = arith.constant 256 : index
    %c0_19 = arith.constant 0 : index
    %34 = vector.load %arg4[%c256, %c0_19] : memref<272x128xbf16, #tpu.memory_space<vmem>>, vector<8x128xbf16>
    %35 = arith.extf %34 : vector<8x128xbf16> to vector<8x128xf32>
    %cst_20 = arith.constant dense<0.000000e+00> : vector<1x128xf32>
    %36 = tpu.matmul %30, %35, %cst_20 {dimension_numbers = #tpu.dot_dimension_numbers<[1], [0], [0], [1], [0, 0, 1, 1], [], []>} : vector<1x8xf32>, vector<8x128xf32>, vector<1x128xf32> -> vector<1x128xf32>
    %37 = arith.addf %33, %36 : vector<1x128xf32>
    %c264 = arith.constant 264 : index
    %c0_21 = arith.constant 0 : index
    %38 = vector.load %arg4[%c264, %c0_21] : memref<272x128xbf16, #tpu.memory_space<vmem>>, vector<1x128xbf16>
    %39 = arith.extf %38 : vector<1x128xbf16> to vector<1x128xf32>
    %40 = arith.addf %37, %39 : vector<1x128xf32>
    %cst_22 = arith.constant 0.000000e+00 : f32
    %41 = vector.broadcast %cst_22 : f32 to vector<1x128xf32>
    %42 = arith.maximumf %40, %41 : vector<1x128xf32>
    %c0_23 = arith.constant 0 : index
    %c0_24 = arith.constant 0 : index
    %43 = vector.load %arg3[%c0_23, %c0_24] : memref<256x8xf32, #tpu.memory_space<vmem>>, vector<256x8xf32>
    %c0_25 = arith.constant 0 : index
    %c0_26 = arith.constant 0 : index
    %44 = vector.load %arg5[%c0_25, %c0_26] : memref<2256x128xbf16, #tpu.memory_space<vmem>>, vector<8x64xbf16>
    %45 = arith.extf %44 : vector<8x64xbf16> to vector<8x64xf32>
    %cst_27 = arith.constant dense<0.000000e+00> : vector<256x64xf32>
    %46 = tpu.matmul %43, %45, %cst_27 {dimension_numbers = #tpu.dot_dimension_numbers<[1], [0], [0], [1], [0, 0, 1, 1], [], []>} : vector<256x8xf32>, vector<8x64xf32>, vector<256x64xf32> -> vector<256x64xf32>
    %c8_28 = arith.constant 8 : index
    %c0_29 = arith.constant 0 : index
    %47 = vector.load %arg5[%c8_28, %c0_29] : memref<2256x128xbf16, #tpu.memory_space<vmem>>, vector<1x64xbf16>
    %48 = arith.extf %47 : vector<1x64xbf16> to vector<1x64xf32>
    %49 = vector.broadcast %48 : vector<1x64xf32> to vector<256x64xf32>
    %50 = arith.addf %46, %49 : vector<256x64xf32>
    %cst_30 = arith.constant 0.000000e+00 : f32
    %51 = vector.broadcast %cst_30 : f32 to vector<256x64xf32>
    %52 = arith.maximumf %50, %51 : vector<256x64xf32>
    %c16_31 = arith.constant 16 : index
    %c0_32 = arith.constant 0 : index
    %53 = vector.load %arg5[%c16_31, %c0_32] : memref<2256x128xbf16, #tpu.memory_space<vmem>>, vector<128x64xbf16>
    %54 = arith.extf %53 : vector<128x64xbf16> to vector<128x64xf32>
    %cst_33 = arith.constant dense<0.000000e+00> : vector<1x64xf32>
    %55 = tpu.matmul %42, %54, %cst_33 {dimension_numbers = #tpu.dot_dimension_numbers<[1], [0], [0], [1], [0, 0, 1, 1], [], []>} : vector<1x128xf32>, vector<128x64xf32>, vector<1x64xf32> -> vector<1x64xf32>
    %c144 = arith.constant 144 : index
    %c0_34 = arith.constant 0 : index
    %56 = vector.load %arg5[%c144, %c0_34] : memref<2256x128xbf16, #tpu.memory_space<vmem>>, vector<1x64xbf16>
    %57 = arith.extf %56 : vector<1x64xbf16> to vector<1x64xf32>
    %58 = arith.addf %55, %57 : vector<1x64xf32>
    %c152 = arith.constant 152 : index
    %c0_35 = arith.constant 0 : index
    %59 = vector.load %arg5[%c152, %c0_35] : memref<2256x128xbf16, #tpu.memory_space<vmem>>, vector<128x64xbf16>
    %60 = arith.extf %59 : vector<128x64xbf16> to vector<128x64xf32>
    %cst_36 = arith.constant dense<0.000000e+00> : vector<1x64xf32>
    %61 = tpu.matmul %42, %60, %cst_36 {dimension_numbers = #tpu.dot_dimension_numbers<[1], [0], [0], [1], [0, 0, 1, 1], [], []>} : vector<1x128xf32>, vector<128x64xf32>, vector<1x64xf32> -> vector<1x64xf32>
    %c280 = arith.constant 280 : index
    %c0_37 = arith.constant 0 : index
    %62 = vector.load %arg5[%c280, %c0_37] : memref<2256x128xbf16, #tpu.memory_space<vmem>>, vector<1x64xbf16>
    %63 = arith.extf %62 : vector<1x64xbf16> to vector<1x64xf32>
    %64 = arith.addf %61, %63 : vector<1x64xf32>
    %65 = vector.broadcast %58 : vector<1x64xf32> to vector<256x64xf32>
    %66 = arith.mulf %52, %65 : vector<256x64xf32>
    %67 = vector.broadcast %64 : vector<1x64xf32> to vector<256x64xf32>
    %68 = arith.addf %66, %67 : vector<256x64xf32>
    %c288 = arith.constant 288 : index
    %c0_38 = arith.constant 0 : index
    %69 = vector.load %arg5[%c288, %c0_38] : memref<2256x128xbf16, #tpu.memory_space<vmem>>, vector<64x128xbf16>
    %70 = arith.extf %69 : vector<64x128xbf16> to vector<64x128xf32>
    %cst_39 = arith.constant dense<0.000000e+00> : vector<256x128xf32>
    %71 = tpu.matmul %68, %70, %cst_39 {dimension_numbers = #tpu.dot_dimension_numbers<[1], [0], [0], [1], [0, 0, 1, 1], [], []>} : vector<256x64xf32>, vector<64x128xf32>, vector<256x128xf32> -> vector<256x128xf32>
    %c352 = arith.constant 352 : index
    %c0_40 = arith.constant 0 : index
    %72 = vector.load %arg5[%c352, %c0_40] : memref<2256x128xbf16, #tpu.memory_space<vmem>>, vector<128x128xbf16>
    %73 = arith.extf %72 : vector<128x128xbf16> to vector<128x128xf32>
    %cst_41 = arith.constant dense<0.000000e+00> : vector<128x128xf32>
    %74 = tpu.matmul %26, %73, %cst_41 {dimension_numbers = #tpu.dot_dimension_numbers<[1], [0], [0], [1], [0, 0, 1, 1], [], []>} : vector<128x128xf32>, vector<128x128xf32>, vector<128x128xf32> -> vector<128x128xf32>
    %75 = arith.truncf %74 : vector<128x128xf32> to vector<128x128xbf16>
    %76 = arith.truncf %71 : vector<256x128xf32> to vector<256x128xbf16>
    "tpu.trace_start"() <{level = 10 : i32, message = "qd,kd->qk"}> : () -> ()
    %cst_42 = arith.constant dense<0.000000e+00> : vector<256x128xf32>
    %77 = tpu.matmul %76, %75, %cst_42 {dimension_numbers = #tpu.dot_dimension_numbers<[1], [1], [0], [0], [0, 0, 1, 0], [], []>} : vector<256x128xbf16>, vector<128x128xbf16>, vector<256x128xf32> -> vector<256x128xf32>
    "tpu.trace_stop"() : () -> ()
    %cst_43 = arith.constant dense<0xFF800000> : vector<256xf32>
    %78 = vector.multi_reduction <maximumf>, %77, %cst_43 [1] : vector<256x128xf32> to vector<256xf32>
    %79 = vector.shape_cast %78 : vector<256xf32> to vector<256x1xf32>
    %80 = vector.broadcast %79 : vector<256x1xf32> to vector<256x128xf32>
    %81 = arith.subf %77, %80 : vector<256x128xf32>
    %82 = math.exp %81 : vector<256x128xf32>
    %cst_44 = arith.constant dense<0.000000e+00> : vector<256xf32>
    %83 = vector.multi_reduction <add>, %82, %cst_44 [1] : vector<256x128xf32> to vector<256xf32>
    %84 = vector.shape_cast %83 : vector<256xf32> to vector<256x1xf32>
    %85 = tpu.reciprocal %84 {approx = true} : vector<256x1xf32> -> vector<256x1xf32>
    %86 = vector.broadcast %85 : vector<256x1xf32> to vector<256x128xf32>
    %87 = arith.mulf %82, %86 : vector<256x128xf32>
    %88 = arith.truncf %87 : vector<256x128xf32> to vector<256x128xbf16>
    %cst_45 = arith.constant dense<0.000000e+00> : vector<256x128xf32>
    %89 = tpu.matmul %88, %75, %cst_45 {dimension_numbers = #tpu.dot_dimension_numbers<[1], [0], [0], [1], [0, 0, 1, 1], [], []>} : vector<256x128xbf16>, vector<128x128xbf16>, vector<256x128xf32> -> vector<256x128xf32>
    %c480 = arith.constant 480 : index
    %c0_46 = arith.constant 0 : index
    %90 = vector.load %arg5[%c480, %c0_46] : memref<2256x128xbf16, #tpu.memory_space<vmem>>, vector<64x64xbf16>
    %91 = arith.extf %90 : vector<64x64xbf16> to vector<64x64xf32>
    %cst_47 = arith.constant dense<0.000000e+00> : vector<256x64xf32>
    %92 = tpu.matmul %68, %91, %cst_47 {dimension_numbers = #tpu.dot_dimension_numbers<[1], [0], [0], [1], [0, 0, 1, 1], [], []>} : vector<256x64xf32>, vector<64x64xf32>, vector<256x64xf32> -> vector<256x64xf32>
    %c544 = arith.constant 544 : index
    %c0_48 = arith.constant 0 : index
    %93 = vector.load %arg5[%c544, %c0_48] : memref<2256x128xbf16, #tpu.memory_space<vmem>>, vector<128x64xbf16>
    %94 = arith.extf %93 : vector<128x64xbf16> to vector<128x64xf32>
    %cst_49 = arith.constant dense<0.000000e+00> : vector<256x64xf32>
    %95 = tpu.matmul %89, %94, %cst_49 {dimension_numbers = #tpu.dot_dimension_numbers<[1], [0], [0], [1], [0, 0, 1, 1], [], []>} : vector<256x128xf32>, vector<128x64xf32>, vector<256x64xf32> -> vector<256x64xf32>
    %96 = arith.addf %92, %95 : vector<256x64xf32>
    %c672 = arith.constant 672 : index
    %c0_50 = arith.constant 0 : index
    %97 = vector.load %arg5[%c672, %c0_50] : memref<2256x128xbf16, #tpu.memory_space<vmem>>, vector<1x64xbf16>
    %98 = arith.extf %97 : vector<1x64xbf16> to vector<1x64xf32>
    %99 = vector.broadcast %98 : vector<1x64xf32> to vector<256x64xf32>
    %100 = arith.addf %96, %99 : vector<256x64xf32>
    %101 = math.tanh %100 : vector<256x64xf32>
    %c680 = arith.constant 680 : index
    %c0_51 = arith.constant 0 : index
    %102 = vector.load %arg5[%c680, %c0_51] : memref<2256x128xbf16, #tpu.memory_space<vmem>>, vector<64x8xbf16>
    %103 = arith.extf %102 : vector<64x8xbf16> to vector<64x8xf32>
    %cst_52 = arith.constant dense<0.000000e+00> : vector<256x8xf32>
    %104 = tpu.matmul %101, %103, %cst_52 {dimension_numbers = #tpu.dot_dimension_numbers<[1], [0], [0], [1], [0, 0, 1, 1], [], []>} : vector<256x64xf32>, vector<64x8xf32>, vector<256x8xf32> -> vector<256x8xf32>
    %c744 = arith.constant 744 : index
    %c0_53 = arith.constant 0 : index
    %105 = vector.load %arg5[%c744, %c0_53] : memref<2256x128xbf16, #tpu.memory_space<vmem>>, vector<1x8xbf16>
    %106 = arith.extf %105 : vector<1x8xbf16> to vector<1x8xf32>
    %107 = vector.broadcast %106 : vector<1x8xf32> to vector<256x8xf32>
    %108 = arith.addf %104, %107 : vector<256x8xf32>
    %109 = arith.addf %43, %108 : vector<256x8xf32>
    %c752 = arith.constant 752 : index
    %c0_54 = arith.constant 0 : index
    %110 = vector.load %arg5[%c752, %c0_54] : memref<2256x128xbf16, #tpu.memory_space<vmem>>, vector<8x64xbf16>
    %111 = arith.extf %110 : vector<8x64xbf16> to vector<8x64xf32>
    %cst_55 = arith.constant dense<0.000000e+00> : vector<256x64xf32>
    %112 = tpu.matmul %109, %111, %cst_55 {dimension_numbers = #tpu.dot_dimension_numbers<[1], [0], [0], [1], [0, 0, 1, 1], [], []>} : vector<256x8xf32>, vector<8x64xf32>, vector<256x64xf32> -> vector<256x64xf32>
    %c760 = arith.constant 760 : index
    %c0_56 = arith.constant 0 : index
    %113 = vector.load %arg5[%c760, %c0_56] : memref<2256x128xbf16, #tpu.memory_space<vmem>>, vector<1x64xbf16>
    %114 = arith.extf %113 : vector<1x64xbf16> to vector<1x64xf32>
    %115 = vector.broadcast %114 : vector<1x64xf32> to vector<256x64xf32>
    %116 = arith.addf %112, %115 : vector<256x64xf32>
    %cst_57 = arith.constant 0.000000e+00 : f32
    %117 = vector.broadcast %cst_57 : f32 to vector<256x64xf32>
    %118 = arith.maximumf %116, %117 : vector<256x64xf32>
    %c768 = arith.constant 768 : index
    %c0_58 = arith.constant 0 : index
    %119 = vector.load %arg5[%c768, %c0_58] : memref<2256x128xbf16, #tpu.memory_space<vmem>>, vector<128x64xbf16>
    %120 = arith.extf %119 : vector<128x64xbf16> to vector<128x64xf32>
    %cst_59 = arith.constant dense<0.000000e+00> : vector<1x64xf32>
    %121 = tpu.matmul %42, %120, %cst_59 {dimension_numbers = #tpu.dot_dimension_numbers<[1], [0], [0], [1], [0, 0, 1, 1], [], []>} : vector<1x128xf32>, vector<128x64xf32>, vector<1x64xf32> -> vector<1x64xf32>
    %c896 = arith.constant 896 : index
    %c0_60 = arith.constant 0 : index
    %122 = vector.load %arg5[%c896, %c0_60] : memref<2256x128xbf16, #tpu.memory_space<vmem>>, vector<1x64xbf16>
    %123 = arith.extf %122 : vector<1x64xbf16> to vector<1x64xf32>
    %124 = arith.addf %121, %123 : vector<1x64xf32>
    %c904 = arith.constant 904 : index
    %c0_61 = arith.constant 0 : index
    %125 = vector.load %arg5[%c904, %c0_61] : memref<2256x128xbf16, #tpu.memory_space<vmem>>, vector<128x64xbf16>
    %126 = arith.extf %125 : vector<128x64xbf16> to vector<128x64xf32>
    %cst_62 = arith.constant dense<0.000000e+00> : vector<1x64xf32>
    %127 = tpu.matmul %42, %126, %cst_62 {dimension_numbers = #tpu.dot_dimension_numbers<[1], [0], [0], [1], [0, 0, 1, 1], [], []>} : vector<1x128xf32>, vector<128x64xf32>, vector<1x64xf32> -> vector<1x64xf32>
    %c1032 = arith.constant 1032 : index
    %c0_63 = arith.constant 0 : index
    %128 = vector.load %arg5[%c1032, %c0_63] : memref<2256x128xbf16, #tpu.memory_space<vmem>>, vector<1x64xbf16>
    %129 = arith.extf %128 : vector<1x64xbf16> to vector<1x64xf32>
    %130 = arith.addf %127, %129 : vector<1x64xf32>
    %131 = vector.broadcast %124 : vector<1x64xf32> to vector<256x64xf32>
    %132 = arith.mulf %118, %131 : vector<256x64xf32>
    %133 = vector.broadcast %130 : vector<1x64xf32> to vector<256x64xf32>
    %134 = arith.addf %132, %133 : vector<256x64xf32>
    %c1040 = arith.constant 1040 : index
    %c0_64 = arith.constant 0 : index
    %135 = vector.load %arg5[%c1040, %c0_64] : memref<2256x128xbf16, #tpu.memory_space<vmem>>, vector<64x128xbf16>
    %136 = arith.extf %135 : vector<64x128xbf16> to vector<64x128xf32>
    %cst_65 = arith.constant dense<0.000000e+00> : vector<256x128xf32>
    %137 = tpu.matmul %134, %136, %cst_65 {dimension_numbers = #tpu.dot_dimension_numbers<[1], [0], [0], [1], [0, 0, 1, 1], [], []>} : vector<256x64xf32>, vector<64x128xf32>, vector<256x128xf32> -> vector<256x128xf32>
    %c1104 = arith.constant 1104 : index
    %c0_66 = arith.constant 0 : index
    %138 = vector.load %arg5[%c1104, %c0_66] : memref<2256x128xbf16, #tpu.memory_space<vmem>>, vector<128x128xbf16>
    %139 = arith.extf %138 : vector<128x128xbf16> to vector<128x128xf32>
    %cst_67 = arith.constant dense<0.000000e+00> : vector<128x128xf32>
    %140 = tpu.matmul %26, %139, %cst_67 {dimension_numbers = #tpu.dot_dimension_numbers<[1], [0], [0], [1], [0, 0, 1, 1], [], []>} : vector<128x128xf32>, vector<128x128xf32>, vector<128x128xf32> -> vector<128x128xf32>
    %141 = arith.truncf %140 : vector<128x128xf32> to vector<128x128xbf16>
    %142 = arith.truncf %137 : vector<256x128xf32> to vector<256x128xbf16>
    "tpu.trace_start"() <{level = 10 : i32, message = "qd,kd->qk"}> : () -> ()
    %cst_68 = arith.constant dense<0.000000e+00> : vector<256x128xf32>
    %143 = tpu.matmul %142, %141, %cst_68 {dimension_numbers = #tpu.dot_dimension_numbers<[1], [1], [0], [0], [0, 0, 1, 0], [], []>} : vector<256x128xbf16>, vector<128x128xbf16>, vector<256x128xf32> -> vector<256x128xf32>
    "tpu.trace_stop"() : () -> ()
    %cst_69 = arith.constant dense<0xFF800000> : vector<256xf32>
    %144 = vector.multi_reduction <maximumf>, %143, %cst_69 [1] : vector<256x128xf32> to vector<256xf32>
    %145 = vector.shape_cast %144 : vector<256xf32> to vector<256x1xf32>
    %146 = vector.broadcast %145 : vector<256x1xf32> to vector<256x128xf32>
    %147 = arith.subf %143, %146 : vector<256x128xf32>
    %148 = math.exp %147 : vector<256x128xf32>
    %cst_70 = arith.constant dense<0.000000e+00> : vector<256xf32>
    %149 = vector.multi_reduction <add>, %148, %cst_70 [1] : vector<256x128xf32> to vector<256xf32>
    %150 = vector.shape_cast %149 : vector<256xf32> to vector<256x1xf32>
    %151 = tpu.reciprocal %150 {approx = true} : vector<256x1xf32> -> vector<256x1xf32>
    %152 = vector.broadcast %151 : vector<256x1xf32> to vector<256x128xf32>
    %153 = arith.mulf %148, %152 : vector<256x128xf32>
    %154 = arith.truncf %153 : vector<256x128xf32> to vector<256x128xbf16>
    %cst_71 = arith.constant dense<0.000000e+00> : vector<256x128xf32>
    %155 = tpu.matmul %154, %141, %cst_71 {dimension_numbers = #tpu.dot_dimension_numbers<[1], [0], [0], [1], [0, 0, 1, 1], [], []>} : vector<256x128xbf16>, vector<128x128xbf16>, vector<256x128xf32> -> vector<256x128xf32>
    %c1232 = arith.constant 1232 : index
    %c0_72 = arith.constant 0 : index
    %156 = vector.load %arg5[%c1232, %c0_72] : memref<2256x128xbf16, #tpu.memory_space<vmem>>, vector<64x64xbf16>
    %157 = arith.extf %156 : vector<64x64xbf16> to vector<64x64xf32>
    %cst_73 = arith.constant dense<0.000000e+00> : vector<256x64xf32>
    %158 = tpu.matmul %134, %157, %cst_73 {dimension_numbers = #tpu.dot_dimension_numbers<[1], [0], [0], [1], [0, 0, 1, 1], [], []>} : vector<256x64xf32>, vector<64x64xf32>, vector<256x64xf32> -> vector<256x64xf32>
    %c1296 = arith.constant 1296 : index
    %c0_74 = arith.constant 0 : index
    %159 = vector.load %arg5[%c1296, %c0_74] : memref<2256x128xbf16, #tpu.memory_space<vmem>>, vector<128x64xbf16>
    %160 = arith.extf %159 : vector<128x64xbf16> to vector<128x64xf32>
    %cst_75 = arith.constant dense<0.000000e+00> : vector<256x64xf32>
    %161 = tpu.matmul %155, %160, %cst_75 {dimension_numbers = #tpu.dot_dimension_numbers<[1], [0], [0], [1], [0, 0, 1, 1], [], []>} : vector<256x128xf32>, vector<128x64xf32>, vector<256x64xf32> -> vector<256x64xf32>
    %162 = arith.addf %158, %161 : vector<256x64xf32>
    %c1424 = arith.constant 1424 : index
    %c0_76 = arith.constant 0 : index
    %163 = vector.load %arg5[%c1424, %c0_76] : memref<2256x128xbf16, #tpu.memory_space<vmem>>, vector<1x64xbf16>
    %164 = arith.extf %163 : vector<1x64xbf16> to vector<1x64xf32>
    %165 = vector.broadcast %164 : vector<1x64xf32> to vector<256x64xf32>
    %166 = arith.addf %162, %165 : vector<256x64xf32>
    %167 = math.tanh %166 : vector<256x64xf32>
    %c1432 = arith.constant 1432 : index
    %c0_77 = arith.constant 0 : index
    %168 = vector.load %arg5[%c1432, %c0_77] : memref<2256x128xbf16, #tpu.memory_space<vmem>>, vector<64x8xbf16>
    %169 = arith.extf %168 : vector<64x8xbf16> to vector<64x8xf32>
    %cst_78 = arith.constant dense<0.000000e+00> : vector<256x8xf32>
    %170 = tpu.matmul %167, %169, %cst_78 {dimension_numbers = #tpu.dot_dimension_numbers<[1], [0], [0], [1], [0, 0, 1, 1], [], []>} : vector<256x64xf32>, vector<64x8xf32>, vector<256x8xf32> -> vector<256x8xf32>
    %c1496 = arith.constant 1496 : index
    %c0_79 = arith.constant 0 : index
    %171 = vector.load %arg5[%c1496, %c0_79] : memref<2256x128xbf16, #tpu.memory_space<vmem>>, vector<1x8xbf16>
    %172 = arith.extf %171 : vector<1x8xbf16> to vector<1x8xf32>
    %173 = vector.broadcast %172 : vector<1x8xf32> to vector<256x8xf32>
    %174 = arith.addf %170, %173 : vector<256x8xf32>
    %175 = arith.addf %109, %174 : vector<256x8xf32>
    %c1504 = arith.constant 1504 : index
    %c0_80 = arith.constant 0 : index
    %176 = vector.load %arg5[%c1504, %c0_80] : memref<2256x128xbf16, #tpu.memory_space<vmem>>, vector<8x64xbf16>
    %177 = arith.extf %176 : vector<8x64xbf16> to vector<8x64xf32>
    %cst_81 = arith.constant dense<0.000000e+00> : vector<256x64xf32>
    %178 = tpu.matmul %175, %177, %cst_81 {dimension_numbers = #tpu.dot_dimension_numbers<[1], [0], [0], [1], [0, 0, 1, 1], [], []>} : vector<256x8xf32>, vector<8x64xf32>, vector<256x64xf32> -> vector<256x64xf32>
    %c1512 = arith.constant 1512 : index
    %c0_82 = arith.constant 0 : index
    %179 = vector.load %arg5[%c1512, %c0_82] : memref<2256x128xbf16, #tpu.memory_space<vmem>>, vector<1x64xbf16>
    %180 = arith.extf %179 : vector<1x64xbf16> to vector<1x64xf32>
    %181 = vector.broadcast %180 : vector<1x64xf32> to vector<256x64xf32>
    %182 = arith.addf %178, %181 : vector<256x64xf32>
    %cst_83 = arith.constant 0.000000e+00 : f32
    %183 = vector.broadcast %cst_83 : f32 to vector<256x64xf32>
    %184 = arith.maximumf %182, %183 : vector<256x64xf32>
    %c1520 = arith.constant 1520 : index
    %c0_84 = arith.constant 0 : index
    %185 = vector.load %arg5[%c1520, %c0_84] : memref<2256x128xbf16, #tpu.memory_space<vmem>>, vector<128x64xbf16>
    %186 = arith.extf %185 : vector<128x64xbf16> to vector<128x64xf32>
    %cst_85 = arith.constant dense<0.000000e+00> : vector<1x64xf32>
    %187 = tpu.matmul %42, %186, %cst_85 {dimension_numbers = #tpu.dot_dimension_numbers<[1], [0], [0], [1], [0, 0, 1, 1], [], []>} : vector<1x128xf32>, vector<128x64xf32>, vector<1x64xf32> -> vector<1x64xf32>
    %c1648 = arith.constant 1648 : index
    %c0_86 = arith.constant 0 : index
    %188 = vector.load %arg5[%c1648, %c0_86] : memref<2256x128xbf16, #tpu.memory_space<vmem>>, vector<1x64xbf16>
    %189 = arith.extf %188 : vector<1x64xbf16> to vector<1x64xf32>
    %190 = arith.addf %187, %189 : vector<1x64xf32>
    %c1656 = arith.constant 1656 : index
    %c0_87 = arith.constant 0 : index
    %191 = vector.load %arg5[%c1656, %c0_87] : memref<2256x128xbf16, #tpu.memory_space<vmem>>, vector<128x64xbf16>
    %192 = arith.extf %191 : vector<128x64xbf16> to vector<128x64xf32>
    %cst_88 = arith.constant dense<0.000000e+00> : vector<1x64xf32>
    %193 = tpu.matmul %42, %192, %cst_88 {dimension_numbers = #tpu.dot_dimension_numbers<[1], [0], [0], [1], [0, 0, 1, 1], [], []>} : vector<1x128xf32>, vector<128x64xf32>, vector<1x64xf32> -> vector<1x64xf32>
    %c1784 = arith.constant 1784 : index
    %c0_89 = arith.constant 0 : index
    %194 = vector.load %arg5[%c1784, %c0_89] : memref<2256x128xbf16, #tpu.memory_space<vmem>>, vector<1x64xbf16>
    %195 = arith.extf %194 : vector<1x64xbf16> to vector<1x64xf32>
    %196 = arith.addf %193, %195 : vector<1x64xf32>
    %197 = vector.broadcast %190 : vector<1x64xf32> to vector<256x64xf32>
    %198 = arith.mulf %184, %197 : vector<256x64xf32>
    %199 = vector.broadcast %196 : vector<1x64xf32> to vector<256x64xf32>
    %200 = arith.addf %198, %199 : vector<256x64xf32>
    %c1792 = arith.constant 1792 : index
    %c0_90 = arith.constant 0 : index
    %201 = vector.load %arg5[%c1792, %c0_90] : memref<2256x128xbf16, #tpu.memory_space<vmem>>, vector<64x128xbf16>
    %202 = arith.extf %201 : vector<64x128xbf16> to vector<64x128xf32>
    %cst_91 = arith.constant dense<0.000000e+00> : vector<256x128xf32>
    %203 = tpu.matmul %200, %202, %cst_91 {dimension_numbers = #tpu.dot_dimension_numbers<[1], [0], [0], [1], [0, 0, 1, 1], [], []>} : vector<256x64xf32>, vector<64x128xf32>, vector<256x128xf32> -> vector<256x128xf32>
    %c1856 = arith.constant 1856 : index
    %c0_92 = arith.constant 0 : index
    %204 = vector.load %arg5[%c1856, %c0_92] : memref<2256x128xbf16, #tpu.memory_space<vmem>>, vector<128x128xbf16>
    %205 = arith.extf %204 : vector<128x128xbf16> to vector<128x128xf32>
    %cst_93 = arith.constant dense<0.000000e+00> : vector<128x128xf32>
    %206 = tpu.matmul %26, %205, %cst_93 {dimension_numbers = #tpu.dot_dimension_numbers<[1], [0], [0], [1], [0, 0, 1, 1], [], []>} : vector<128x128xf32>, vector<128x128xf32>, vector<128x128xf32> -> vector<128x128xf32>
    %207 = arith.truncf %206 : vector<128x128xf32> to vector<128x128xbf16>
    %208 = arith.truncf %203 : vector<256x128xf32> to vector<256x128xbf16>
    "tpu.trace_start"() <{level = 10 : i32, message = "qd,kd->qk"}> : () -> ()
    %cst_94 = arith.constant dense<0.000000e+00> : vector<256x128xf32>
    %209 = tpu.matmul %208, %207, %cst_94 {dimension_numbers = #tpu.dot_dimension_numbers<[1], [1], [0], [0], [0, 0, 1, 0], [], []>} : vector<256x128xbf16>, vector<128x128xbf16>, vector<256x128xf32> -> vector<256x128xf32>
    "tpu.trace_stop"() : () -> ()
    %cst_95 = arith.constant dense<0xFF800000> : vector<256xf32>
    %210 = vector.multi_reduction <maximumf>, %209, %cst_95 [1] : vector<256x128xf32> to vector<256xf32>
    %211 = vector.shape_cast %210 : vector<256xf32> to vector<256x1xf32>
    %212 = vector.broadcast %211 : vector<256x1xf32> to vector<256x128xf32>
    %213 = arith.subf %209, %212 : vector<256x128xf32>
    %214 = math.exp %213 : vector<256x128xf32>
    %cst_96 = arith.constant dense<0.000000e+00> : vector<256xf32>
    %215 = vector.multi_reduction <add>, %214, %cst_96 [1] : vector<256x128xf32> to vector<256xf32>
    %216 = vector.shape_cast %215 : vector<256xf32> to vector<256x1xf32>
    %217 = tpu.reciprocal %216 {approx = true} : vector<256x1xf32> -> vector<256x1xf32>
    %218 = vector.broadcast %217 : vector<256x1xf32> to vector<256x128xf32>
    %219 = arith.mulf %214, %218 : vector<256x128xf32>
    %220 = arith.truncf %219 : vector<256x128xf32> to vector<256x128xbf16>
    %cst_97 = arith.constant dense<0.000000e+00> : vector<256x128xf32>
    %221 = tpu.matmul %220, %207, %cst_97 {dimension_numbers = #tpu.dot_dimension_numbers<[1], [0], [0], [1], [0, 0, 1, 1], [], []>} : vector<256x128xbf16>, vector<128x128xbf16>, vector<256x128xf32> -> vector<256x128xf32>
    %c1984 = arith.constant 1984 : index
    %c0_98 = arith.constant 0 : index
    %222 = vector.load %arg5[%c1984, %c0_98] : memref<2256x128xbf16, #tpu.memory_space<vmem>>, vector<64x64xbf16>
    %223 = arith.extf %222 : vector<64x64xbf16> to vector<64x64xf32>
    %cst_99 = arith.constant dense<0.000000e+00> : vector<256x64xf32>
    %224 = tpu.matmul %200, %223, %cst_99 {dimension_numbers = #tpu.dot_dimension_numbers<[1], [0], [0], [1], [0, 0, 1, 1], [], []>} : vector<256x64xf32>, vector<64x64xf32>, vector<256x64xf32> -> vector<256x64xf32>
    %c2048 = arith.constant 2048 : index
    %c0_100 = arith.constant 0 : index
    %225 = vector.load %arg5[%c2048, %c0_100] : memref<2256x128xbf16, #tpu.memory_space<vmem>>, vector<128x64xbf16>
    %226 = arith.extf %225 : vector<128x64xbf16> to vector<128x64xf32>
    %cst_101 = arith.constant dense<0.000000e+00> : vector<256x64xf32>
    %227 = tpu.matmul %221, %226, %cst_101 {dimension_numbers = #tpu.dot_dimension_numbers<[1], [0], [0], [1], [0, 0, 1, 1], [], []>} : vector<256x128xf32>, vector<128x64xf32>, vector<256x64xf32> -> vector<256x64xf32>
    %228 = arith.addf %224, %227 : vector<256x64xf32>
    %c2176 = arith.constant 2176 : index
    %c0_102 = arith.constant 0 : index
    %229 = vector.load %arg5[%c2176, %c0_102] : memref<2256x128xbf16, #tpu.memory_space<vmem>>, vector<1x64xbf16>
    %230 = arith.extf %229 : vector<1x64xbf16> to vector<1x64xf32>
    %231 = vector.broadcast %230 : vector<1x64xf32> to vector<256x64xf32>
    %232 = arith.addf %228, %231 : vector<256x64xf32>
    %233 = math.tanh %232 : vector<256x64xf32>
    %c2184 = arith.constant 2184 : index
    %c0_103 = arith.constant 0 : index
    %234 = vector.load %arg5[%c2184, %c0_103] : memref<2256x128xbf16, #tpu.memory_space<vmem>>, vector<64x8xbf16>
    %235 = arith.extf %234 : vector<64x8xbf16> to vector<64x8xf32>
    %cst_104 = arith.constant dense<0.000000e+00> : vector<256x8xf32>
    %236 = tpu.matmul %233, %235, %cst_104 {dimension_numbers = #tpu.dot_dimension_numbers<[1], [0], [0], [1], [0, 0, 1, 1], [], []>} : vector<256x64xf32>, vector<64x8xf32>, vector<256x8xf32> -> vector<256x8xf32>
    %c2248 = arith.constant 2248 : index
    %c0_105 = arith.constant 0 : index
    %237 = vector.load %arg5[%c2248, %c0_105] : memref<2256x128xbf16, #tpu.memory_space<vmem>>, vector<1x8xbf16>
    %238 = arith.extf %237 : vector<1x8xbf16> to vector<1x8xf32>
    %239 = vector.broadcast %238 : vector<1x8xf32> to vector<256x8xf32>
    %240 = arith.addf %236, %239 : vector<256x8xf32>
    %241 = arith.addf %175, %240 : vector<256x8xf32>
    %242 = tpu.iota {dimensions = array<i32: 0>} : vector<8x8xi32>
    %243 = tpu.iota {dimensions = array<i32: 1>} : vector<8x8xi32>
    %244 = arith.cmpi eq, %242, %243 : vector<8x8xi32>
    %245 = arith.extui %244 : vector<8x8xi1> to vector<8x8xi32>
    %246 = arith.sitofp %245 : vector<8x8xi32> to vector<8x8xf32>
    "tpu.trace_start"() <{level = 10 : i32, message = "cd,nd->cn"}> : () -> ()
    %cst_106 = arith.constant dense<0.000000e+00> : vector<8x256xf32>
    %247 = tpu.matmul %246, %241, %cst_106 {dimension_numbers = #tpu.dot_dimension_numbers<[1], [1], [0], [0], [0, 0, 1, 0], [], []>} : vector<8x8xf32>, vector<256x8xf32>, vector<8x256xf32> -> vector<8x256xf32>
    "tpu.trace_stop"() : () -> ()
    %248 = vector.extract_strided_slice %247 {offsets = [0, 0], sizes = [3, 256], strides = [1, 1]} : vector<8x256xf32> to vector<3x256xf32>
    %c0_107 = arith.constant 0 : index
    %c0_108 = arith.constant 0 : index
    %c0_109 = arith.constant 0 : index
    %249 = vector.load %arg6[%c0_107, %c0_108, %c0_109] : memref<1x3x256xf32, #tpu.memory_space<vmem>>, vector<1x3x256xf32>
    %250 = vector.shape_cast %249 : vector<1x3x256xf32> to vector<3x256xf32>
    %251 = vector.shape_cast %248 : vector<3x256xf32> to vector<1x3x256xf32>
    tpu.vector_store %arg6[%c0_107, %c0_108, %c0_109], %251 {strides = array<i32>} : memref<1x3x256xf32, #tpu.memory_space<vmem>>, vector<1x3x256xf32>,
    return
  }
  func.func @transform_0(%arg0: i32) -> (i32, i32, i32) {
    %c0_i32 = arith.constant 0 : i32
    %c0_i32_0 = arith.constant 0 : i32
    %c0_i32_1 = arith.constant 0 : i32
    return %arg0, %c0_i32, %c0_i32_0 : i32, i32, i32
  }
  func.func @transform_1(%arg0: i32) -> (i32, i32, i32) {
    %c0_i32 = arith.constant 0 : i32
    %c0_i32_0 = arith.constant 0 : i32
    %c0_i32_1 = arith.constant 0 : i32
    return %arg0, %c0_i32, %c0_i32_0 : i32, i32, i32
  }
  func.func @transform_2(%arg0: i32) -> (i32, i32) {
    %c0_i32 = arith.constant 0 : i32
    %c0_i32_0 = arith.constant 0 : i32
    %c0_i32_1 = arith.constant 0 : i32
    return %c0_i32, %c0_i32_0 : i32, i32
  }
  func.func @transform_3(%arg0: i32) -> (i32, i32) {
    %c0_i32 = arith.constant 0 : i32
    %c0_i32_0 = arith.constant 0 : i32
    %c0_i32_1 = arith.constant 0 : i32
    return %c0_i32, %c0_i32_0 : i32, i32
  }
  func.func @transform_4(%arg0: i32) -> (i32, i32) {
    %c0_i32 = arith.constant 0 : i32
    %c0_i32_0 = arith.constant 0 : i32
    %c0_i32_1 = arith.constant 0 : i32
    return %c0_i32, %c0_i32_0 : i32, i32
  }
  func.func @transform_5(%arg0: i32) -> (i32, i32, i32) {
    %c0_i32 = arith.constant 0 : i32
    %c0_i32_0 = arith.constant 0 : i32
    %c0_i32_1 = arith.constant 0 : i32
    return %arg0, %c0_i32, %c0_i32_0 : i32, i32, i32
  }
}

</mosaic_0001>

<llo_original>
// kernel: model_step1_forward.1
$region0: #{model_step1_forward.1}
  #allocation0 [shape = 'u32[]', space=smem, size = 0x4, offset = 0x4, fixed_abs, tag = 'smem constant byte address 0x4 - core index']
  #allocation1 [shape = 'u32[72,128]{1,0:T(1,128)}', space=vmem, size = 0x9000, scoped, tag = 'internal scratch']
  %s0 = inlined_call_operand.vmem [shape: f32[2,128,3], index: 0, kind: input, shape index: {}]
  %s1 = inlined_call_operand.vmem [shape: f32[2,1,8], index: 1, kind: input, shape index: {}]
  %s2 = inlined_call_operand.vmem [shape: f32[256,8], index: 2, kind: input, shape index: {}]
  %s3 = inlined_call_operand.hbm [shape: bf16[272,128], index: 3, kind: input, shape index: {}]
  %s4 = inlined_call_operand.hbm [shape: bf16[2256,128], index: 4, kind: input, shape index: {}]
  %s5 = inlined_call_operand.vmem [shape: f32[2,3,256], index: 5, kind: output, shape index: {}]
  %s6 = sld [smem:[#allocation0]]
  $region61: #{model_step1_forward.1} parent=0
    _
  %s8 = ssub.s32 1, %s6
  %s9 = scalar_select 0, %s8, %s6
  $region1: #{model_step1_forward.1} parent=0
    #allocation2 [shape = 'u8[69632]{0}', space=vmem, size = 0x11000, scoped, tag = 'input window, operand 3, single buffered']
    #allocation3 [shape = 's32[2]{0}', space=sflag, size = 0x8, scoped, tag = 'scoped memory for model_step1_forward.1']
    #allocation4 [shape = 'u8[577536]{0}', space=vmem, size = 0x8d000, scoped, tag = 'input window, operand 4, single buffered']
    #allocation5 [shape = 's32[1]{0}', space=sflag, size = 0x4, scoped, tag = 'scoped memory for model_step1_forward.1']
    %10 = vsyncpa [#allocation3], 0
    %11 = vsyncpa [#allocation5], 0
    loop: start=0, step=1, limit=4
    $region2: #{model_step1_forward.1} parent=1 // loop_pre_header
      _
    $region3: #{model_step1_forward.1} parent=1 // loop_header
      %s13 = sphi 0, %s17
      %p14 = scmp.ge.s32.totalorder %s13, 4
      %s23 = sphi 0, %s25
      %s26 = sphi 0, %s23
      %s27 = sphi 0, %s26
      %s43 = sphi 0, %s27
      %s49 = sphi 0, %s51
      %s52 = sphi 0, %s49
      %s53 = sphi 0, %s52
      %s69 = sphi 0, %s53
      %s73 = sphi 0, %s73
      %s75 = sphi 0, %s73
      %s76 = sphi 0, %s75
      %s90 = sphi 0, %s76
      %s94 = sphi 0, %s94
      %s96 = sphi 0, %s94
      %s97 = sphi 0, %s96
      %s111 = sphi 0, %s97
      %s115 = sphi 0, %s115
      %s117 = sphi 0, %s115
      %s118 = sphi 0, %s117
      %s132 = sphi 0, %s118
      %s138 = sphi 0, %s140
      %s141 = sphi 0, %s138
      %s142 = sphi 0, %s141
      %s158 = sphi 0, %s142
    $region4: #{model_step1_forward.1} parent=1 // loop_header_branch
      %16 = sbr.rel (%p14) target = $region8
    $region5: #{model_step1_forward.1} parent=1 // loop_body
      %s18 = ssub.s32 %s13, 1
      %s19 = ssub.s32 %s13, 2
      %s20 = sadd.s32 %s13, 1
      %s21 = ssub.s32 %s13, %s20
      %p22 = scmp.eq.s32.totalorder %s21, 0
      %s24 = sadd.s32 %s23, 1
      %s25 = scalar_select %p22, %s23, %s24
      %p28 = pneg %p22
      %p29 = scmp.eq.s32.totalorder %s13, 1
      %p30 = por %p28, %p29
      %p31 = scmp.ne.s32.totalorder %s23, %s26
      %p32 = scmp.eq.s32.totalorder %s13, 0
      %p33 = por %p31, %p32
      %p34 = scmp.ne.s32.totalorder %s23, %s26
      %p35 = scmp.eq.s32.totalorder %s18, 1
      %p36 = por %p34, %p35
      %p37 = scmp.ne.s32.totalorder %s26, %s27
      %p38 = scmp.eq.s32.totalorder %s18, 0
      %p39 = por %p37, %p38
      %p40 = scmp.ne.s32.totalorder %s26, %s27
      %p41 = scmp.eq.s32.totalorder %s19, 1
      %p42 = por %p40, %p41
      %p44 = scmp.ne.s32.totalorder %s27, %s43
      %p45 = scmp.eq.s32.totalorder %s19, 0
      %p46 = por %p44, %p45
      %s47 = ssub.s32 %s13, %s20
      %p48 = scmp.eq.s32.totalorder %s47, 0
      %s50 = sadd.s32 %s49, 1
      %s51 = scalar_select %p48, %s49, %s50
      %p54 = pneg %p48
      %p55 = scmp.eq.s32.totalorder %s13, 1
      %p56 = por %p54, %p55
      %p57 = scmp.ne.s32.totalorder %s49, %s52
      %p58 = scmp.eq.s32.totalorder %s13, 0
      %p59 = por %p57, %p58
      %p60 = scmp.ne.s32.totalorder %s49, %s52
      %p61 = scmp.eq.s32.totalorder %s18, 1
      %p62 = por %p60, %p61
      %p63 = scmp.ne.s32.totalorder %s52, %s53
      %p64 = scmp.eq.s32.totalorder %s18, 0
      %p65 = por %p63, %p64
      %p66 = scmp.ne.s32.totalorder %s52, %s53
      %p67 = scmp.eq.s32.totalorder %s19, 1
      %p68 = por %p66, %p67
      %p70 = scmp.ne.s32.totalorder %s53, %s69
      %p71 = scmp.eq.s32.totalorder %s19, 0
      %p72 = por %p70, %p71
      %s74 = sadd.s32 %s73, 1
      %p77 = scmp.eq.s32.totalorder %s13, 1
      %p78 = scmp.ne.s32.totalorder %s73, %s75
      %p79 = scmp.eq.s32.totalorder %s13, 0
      %p80 = por %p78, %p79
      %p81 = scmp.ne.s32.totalorder %s73, %s75
      %p82 = scmp.eq.s32.totalorder %s18, 1
      %p83 = por %p81, %p82
      %p84 = scmp.ne.s32.totalorder %s75, %s76
      %p85 = scmp.eq.s32.totalorder %s18, 0
      %p86 = por %p84, %p85
      %p87 = scmp.ne.s32.totalorder %s75, %s76
      %p88 = scmp.eq.s32.totalorder %s19, 1
      %p89 = por %p87, %p88
      %p91 = scmp.ne.s32.totalorder %s76, %s90
      %p92 = scmp.eq.s32.totalorder %s19, 0
      %p93 = por %p91, %p92
      %s95 = sadd.s32 %s94, 1
      %p98 = scmp.eq.s32.totalorder %s13, 1
      %p99 = scmp.ne.s32.totalorder %s94, %s96
      %p100 = scmp.eq.s32.totalorder %s13, 0
      %p101 = por %p99, %p100
      %p102 = scmp.ne.s32.totalorder %s94, %s96
      %p103 = scmp.eq.s32.totalorder %s18, 1
      %p104 = por %p102, %p103
      %p105 = scmp.ne.s32.totalorder %s96, %s97
      %p106 = scmp.eq.s32.totalorder %s18, 0
      %p107 = por %p105, %p106
      %p108 = scmp.ne.s32.totalorder %s96, %s97
      %p109 = scmp.eq.s32.totalorder %s19, 1
      %p110 = por %p108, %p109
      %p112 = scmp.ne.s32.totalorder %s97, %s111
      %p113 = scmp.eq.s32.totalorder %s19, 0
      %p114 = por %p112, %p113
      %s116 = sadd.s32 %s115, 1
      %p119 = scmp.eq.s32.totalorder %s13, 1
      %p120 = scmp.ne.s32.totalorder %s115, %s117
      %p121 = scmp.eq.s32.totalorder %s13, 0
      %p122 = por %p120, %p121
      %p123 = scmp.ne.s32.totalorder %s115, %s117
      %p124 = scmp.eq.s32.totalorder %s18, 1
      %p125 = por %p123, %p124
      %p126 = scmp.ne.s32.totalorder %s117, %s118
      %p127 = scmp.eq.s32.totalorder %s18, 0
      %p128 = por %p126, %p127
      %p129 = scmp.ne.s32.totalorder %s117, %s118
      %p130 = scmp.eq.s32.totalorder %s19, 1
      %p131 = por %p129, %p130
      %p133 = scmp.ne.s32.totalorder %s118, %s132
      %p134 = scmp.eq.s32.totalorder %s19, 0
      %p135 = por %p133, %p134
      %s136 = ssub.s32 %s13, %s20
      %p137 = scmp.eq.s32.totalorder %s136, 0
      %s139 = sadd.s32 %s138, 1
      %s140 = scalar_select %p137, %s138, %s139
      %p143 = pneg %p137
      %p144 = scmp.eq.s32.totalorder %s13, 1
      %p145 = por %p143, %p144
      %p146 = scmp.ne.s32.totalorder %s138, %s141
      %p147 = scmp.eq.s32.totalorder %s13, 0
      %p148 = por %p146, %p147
      %p149 = scmp.ne.s32.totalorder %s138, %s141
      %p150 = scmp.eq.s32.totalorder %s18, 1
      %p151 = por %p149, %p150
      %p152 = scmp.ne.s32.totalorder %s141, %s142
      %p153 = scmp.eq.s32.totalorder %s18, 0
      %p154 = por %p152, %p153
      %p155 = scmp.ne.s32.totalorder %s141, %s142
      %p156 = scmp.eq.s32.totalorder %s19, 1
      %p157 = por %p155, %p156
      %p159 = scmp.ne.s32.totalorder %s142, %s158
      %p160 = scmp.eq.s32.totalorder %s19, 0
      %p161 = por %p159, %p160
      %p162 = scmp.le.s32.totalorder 1, %s13
      %p163 = scmp.lt.s32.totalorder %s13, 3
      %p164 = pnand %p162, %p163
      %p165 = pneg %p164
      // Predicated region
      $region9: #{model_step1_forward.1} parent=5 // pred_check
        _
      $region10: #{model_step1_forward.1} parent=5 // pred_check_branch
        %167 = sbr.rel (%p164) target = $region12
      $region11: #{model_step1_forward.1} parent=5 // pred_region
        %s168 = ssub.s32 %s13, 1
        // Predicated region
        $region13: #{model_step1_forward.1} parent=11 // pred_check
          %p169 = pneg %p86
        $region14: #{model_step1_forward.1} parent=11 // pred_check_branch
          %171 = sbr.rel (%p169) target = $region16
        $region15: #{model_step1_forward.1} parent=11 // pred_region
          _
        $region16: #{model_step1_forward.1} parent=11 // pred_fallthru
          _
        // Predicated region
        $region17: #{model_step1_forward.1} parent=11 // pred_check
          %p172 = pneg %p107
        $region18: #{model_step1_forward.1} parent=11 // pred_check_branch
          %174 = sbr.rel (%p172) target = $region20
        $region19: #{model_step1_forward.1} parent=11 // pred_region
          %176 = vsyncadd [#allocation3], 0
          %s177 = sshll.u32 %s3, 4
          %s178 = int_to_ptr.hbm [resolvable:$true] %s177
          %s179 = sshll.u32 [#allocation2], 4
          %s180 = int_to_ptr.vmem [resolvable:$true] %s179
          %185 = dma.hbm_to_vmem [thread:$0]  %s178, 2176, %s180, [#allocation3], 64, 64, 4
        $region20: #{model_step1_forward.1} parent=11 // pred_fallthru
          _
        // Predicated region
        $region21: #{model_step1_forward.1} parent=11 // pred_check
          %p186 = pneg %p128
        $region22: #{model_step1_forward.1} parent=11 // pred_check_branch
          %188 = sbr.rel (%p186) target = $region24
        $region23: #{model_step1_forward.1} parent=11 // pred_region
          %190 = vsyncadd [#allocation5], 0
          %s191 = sshll.u32 %s4, 4
          %s192 = int_to_ptr.hbm [resolvable:$true] %s191
          %s193 = sshll.u32 [#allocation4], 4
          %s194 = int_to_ptr.vmem [resolvable:$true] %s193
          %199 = dma.hbm_to_vmem [thread:$0]  %s192, 18048, %s194, [#allocation5], 64, 64, 4
        $region24: #{model_step1_forward.1} parent=11 // pred_fallthru
          _
      $region12: #{model_step1_forward.1} parent=5 // pred_fallthru
        _
      %p200 = scmp.lt.s32.totalorder %s13, 2
      // Predicated region
      $region25: #{model_step1_forward.1} parent=5 // pred_check
        %p201 = pneg %p200
      $region26: #{model_step1_forward.1} parent=5 // pred_check_branch
        %203 = sbr.rel (%p201) target = $region28
      $region27: #{model_step1_forward.1} parent=5 // pred_region
        // Predicated region
        $region29: #{model_step1_forward.1} parent=27 // pred_check
          %p204 = pneg %p33
        $region30: #{model_step1_forward.1} parent=27 // pred_check_branch
          %206 = sbr.rel (%p204) target = $region32
        $region31: #{model_step1_forward.1} parent=27 // pred_region
          %p207 = scmp.lt.s32.totalorder %s13, 1
          %s208 = scalar_select %p207, %s13, 1
          %s209 = smul.addr %s208, 16
          %s210 = smul.addr %s209, 8
          %s211 = scalar_lea.vmem %s0, %s210
        $region32: #{model_step1_forward.1} parent=27 // pred_fallthru
          _
        // Predicated region
        $region33: #{model_step1_forward.1} parent=27 // pred_check
          %p212 = pneg %p59
        $region34: #{model_step1_forward.1} parent=27 // pred_check_branch
          %214 = sbr.rel (%p212) target = $region36
        $region35: #{model_step1_forward.1} parent=27 // pred_region
          %p215 = scmp.lt.s32.totalorder %s13, 1
          %s216 = scalar_select %p215, %s13, 1
          %s217 = scalar_lea.vmem %s1, %s216
        $region36: #{model_step1_forward.1} parent=27 // pred_fallthru
          _
      $region28: #{model_step1_forward.1} parent=5 // pred_fallthru
        _
      %p218 = scmp.le.s32.totalorder 1, %s13
      %p219 = scmp.lt.s32.totalorder %s13, 3
      %p220 = pnand %p218, %p219
      %p221 = pneg %p220
      // Predicated region
      $region37: #{model_step1_forward.1} parent=5 // pred_check
        _
      $region38: #{model_step1_forward.1} parent=5 // pred_check_branch
        %223 = sbr.rel (%p220) target = $region40
      $region39: #{model_step1_forward.1} parent=5 // pred_region
        %s224 = ssub.s32 %s13, 1
        // Predicated region
        $region41: #{model_step1_forward.1} parent=39 // pred_check
          %p225 = pneg %p107
        $region42: #{model_step1_forward.1} parent=39 // pred_check_branch
          %227 = sbr.rel (%p225) target = $region44
        $region43: #{model_step1_forward.1} parent=39 // pred_region
          %229 = dma.done [#allocation3], 2176
        $region44: #{model_step1_forward.1} parent=39 // pred_fallthru
          _
        // Predicated region
        $region45: #{model_step1_forward.1} parent=39 // pred_check
          %p230 = pneg %p128
        $region46: #{model_step1_forward.1} parent=39 // pred_check_branch
          %232 = sbr.rel (%p230) target = $region48
        $region47: #{model_step1_forward.1} parent=39 // pred_region
          %234 = dma.done [#allocation5], 18048
        $region48: #{model_step1_forward.1} parent=39 // pred_fallthru
          _
        %p235 = scmp.lt.s32.totalorder %s18, 1
        %s236 = scalar_select %p235, %s18, 1
        %s237 = smul.addr %s236, 16
        %s238 = smul.addr %s237, 8
        %s239 = scalar_lea.vmem %s0, %s238
        %p240 = pneg %p39
        %p241 = pneg %p36
        %p242 = scmp.lt.s32.totalorder %s18, 1
        %s243 = scalar_select %p242, %s18, 1
        %s244 = scalar_lea.vmem %s1, %s243
        %p245 = pneg %p65
        %p246 = pneg %p62
        %p247 = pneg %p86
        %p248 = pneg %p83
        %p249 = pneg %p107
        %p250 = pneg %p104
        %p251 = pneg %p128
        %p252 = pneg %p125
        %p253 = pneg %p154
        %p254 = pneg %p151
        %p255 = scmp.lt.s32.totalorder %s18, 1
        %s256 = scalar_select %p255, %s18, 1
        %s257 = smul.addr %s256, 2
        %s258 = smul.addr %s257, 4
        %s259 = scalar_lea.vmem %s5, %s258
        %p260 = scmp.lt.s32.totalorder %s18, 1
        %s261 = scalar_select %p260, %s18, 1
        %s262 = smul.addr %s261, 16
        %s263 = smul.addr %s262, 8
        %s264 = scalar_lea.vmem %s0, %s263
        %p265 = scmp.lt.s32.totalorder %s18, 1
        %s266 = scalar_select %p265, %s18, 1
        %s267 = scalar_lea.vmem %s1, %s266
        %p268 = scmp.lt.s32.totalorder %s18, 1
        %s269 = scalar_select %p268, %s18, 1
        %s270 = smul.addr %s269, 2
        %s271 = smul.addr %s270, 4
        %s272 = scalar_lea.vmem %s5, %s271
        %v273 = vld [vmem:[%s264] sm:$0xff]
        %v274 = vld [vmem:[%s264 + $0x8] sm:$0xff]
        %v275 = vld [vmem:[%s264 + $0x10] sm:$0xff]
        %v276 = vld [vmem:[%s264 + $0x18] sm:$0xff]
        %v277 = vld [vmem:[%s264 + $0x20] sm:$0xff]
        %v278 = vld [vmem:[%s264 + $0x28] sm:$0xff]
        %v279 = vld [vmem:[%s264 + $0x30] sm:$0xff]
        %v280 = vld [vmem:[%s264 + $0x38] sm:$0xff]
        %v281 = vld [vmem:[%s264 + $0x40] sm:$0xff]
        %v282 = vld [vmem:[%s264 + $0x48] sm:$0xff]
        %v283 = vld [vmem:[%s264 + $0x50] sm:$0xff]
        %v284 = vld [vmem:[%s264 + $0x58] sm:$0xff]
        %v285 = vld [vmem:[%s264 + $0x60] sm:$0xff]
        %v286 = vld [vmem:[%s264 + $0x68] sm:$0xff]
        %v287 = vld [vmem:[%s264 + $0x70] sm:$0xff]
        %v288 = vld [vmem:[%s264 + $0x78] sm:$0xff]
        %v289 = vld [vmem:[#allocation2] sm:$0x3]
        %v290 = vunpack.c.l.bf16 %v289
        %v291 = vld [vmem:[#allocation2 + $0x4] sm:$0x1]
        %v292 = vunpack.c.l.bf16 %v291
        %v293 = vperm.slane %v292, 0
        %vm294 = vcmask 23552
        %v296 = vsel %vm294, %v273, 0
        %v299 = vsel %vm294, %v274, 0
        %v302 = vsel %vm294, %v275, 0
        %v305 = vsel %vm294, %v276, 0
        %v308 = vsel %vm294, %v277, 0
        %v311 = vsel %vm294, %v278, 0
        %v314 = vsel %vm294, %v279, 0
        %v317 = vsel %vm294, %v280, 0
        %v320 = vsel %vm294, %v281, 0
        %v323 = vsel %vm294, %v282, 0
        %v326 = vsel %vm294, %v283, 0
        %v329 = vsel %vm294, %v284, 0
        %v332 = vsel %vm294, %v285, 0
        %v335 = vsel %vm294, %v286, 0
        %v338 = vsel %vm294, %v287, 0
        %v341 = vsel %vm294, %v288, 0
        %vm343 = vcmask 1042432
        %v345 = vsel %vm343, %v290, 0
        %347 = vmatpush.msra.mxu0 0.0
        %348 = vmatpush.msra.mxu0 0.0
        %349 = vmatpush.msra.mxu0 0.0
        %350 = vmatpush.msra.mxu0 0.0
        %351 = vmatpush.msra.mxu0 0.0
        %352 = vmatpush.msra.mxu0 0.0
        %353 = vmatpush.msra.mxu0 0.0
        %354 = vmatpush.msra.mxu0 0.0
        %355 = vmatpush.msra.mxu0 0.0
        %356 = vmatpush.msra.mxu0 0.0
        %357 = vmatpush.msra.mxu0 0.0
        %358 = vmatpush.msra.mxu0 0.0
        %359 = vmatpush.msra.mxu0 0.0
        %360 = vmatpush.msra.mxu0 0.0
        %361 = vmatpush.msra.mxu0 0.0
        %362 = vmatpush.msra.mxu0 %v345
        %363 = vmatmul.f32.gmra.mxu0 %v296
        %v364 = vpop.f32.mrf.mxu0
        %v365 = vadd.f32 %v293, %v364
        %366 = vmatmul.f32.gmra.mxu0 %v299
        %v367 = vpop.f32.mrf.mxu0
        %v368 = vadd.f32 %v293, %v367
        %369 = vmatmul.f32.gmra.mxu0 %v302
        %v370 = vpop.f32.mrf.mxu0
        %v371 = vadd.f32 %v293, %v370
        %372 = vmatmul.f32.gmra.mxu0 %v305
        %v373 = vpop.f32.mrf.mxu0
        %v374 = vadd.f32 %v293, %v373
        %375 = vmatmul.f32.gmra.mxu0 %v308
        %v376 = vpop.f32.mrf.mxu0
        %v377 = vadd.f32 %v293, %v376
        %378 = vmatmul.f32.gmra.mxu0 %v311
        %v379 = vpop.f32.mrf.mxu0
        %v380 = vadd.f32 %v293, %v379
        %381 = vmatmul.f32.gmra.mxu0 %v314
        %v382 = vpop.f32.mrf.mxu0
        %v383 = vadd.f32 %v293, %v382
        %384 = vmatmul.f32.gmra.mxu0 %v317
        %v385 = vpop.f32.mrf.mxu0
        %v386 = vadd.f32 %v293, %v385
        %387 = vmatmul.f32.gmra.mxu0 %v320
        %v388 = vpop.f32.mrf.mxu0
        %v389 = vadd.f32 %v293, %v388
        %390 = vmatmul.f32.gmra.mxu0 %v323
        %v391 = vpop.f32.mrf.mxu0
        %v392 = vadd.f32 %v293, %v391
        %393 = vmatmul.f32.gmra.mxu0 %v326
        %v394 = vpop.f32.mrf.mxu0
        %v395 = vadd.f32 %v293, %v394
        %396 = vmatmul.f32.gmra.mxu0 %v329
        %v397 = vpop.f32.mrf.mxu0
        %v398 = vadd.f32 %v293, %v397
        %399 = vmatmul.f32.gmra.mxu0 %v332
        %v400 = vpop.f32.mrf.mxu0
        %v401 = vadd.f32 %v293, %v400
        %402 = vmatmul.f32.gmra.mxu0 %v335
        %v403 = vpop.f32.mrf.mxu0
        %v404 = vadd.f32 %v293, %v403
        %405 = vmatmul.f32.gmra.mxu0 %v338
        %v406 = vpop.f32.mrf.mxu0
        %v407 = vadd.f32 %v293, %v406
        %408 = vmatmul.f32.gmra.mxu0 %v341
        %v409 = vpop.f32.mrf.mxu0
        %v410 = vadd.f32 %v293, %v409
        %411 = vdwg.mxu0
        %v412 = vmax.f32 %v365, 0.0
        %v413 = vmax.f32 %v368, 0.0
        %v414 = vmax.f32 %v371, 0.0
        %v415 = vmax.f32 %v374, 0.0
        %v416 = vmax.f32 %v377, 0.0
        %v417 = vmax.f32 %v380, 0.0
        %v418 = vmax.f32 %v383, 0.0
        %v419 = vmax.f32 %v386, 0.0
        %v420 = vmax.f32 %v389, 0.0
        %v421 = vmax.f32 %v392, 0.0
        %v422 = vmax.f32 %v395, 0.0
        %v423 = vmax.f32 %v398, 0.0
        %v424 = vmax.f32 %v401, 0.0
        %v425 = vmax.f32 %v404, 0.0
        %v426 = vmax.f32 %v407, 0.0
        %v427 = vmax.f32 %v410, 0.0
        %v428 = vld [vmem:[#allocation2 + $0x8] sm:$0xf]
        %v429 = vld [vmem:[#allocation2 + $0xc] sm:$0xf]
        %v430 = vld [vmem:[#allocation2 + $0x10] sm:$0xf]
        %v431 = vld [vmem:[#allocation2 + $0x14] sm:$0xf]
        %v432 = vunpack.c.l.bf16 %v428
        %v433 = vunpack.c.l.bf16 %v429
        %v434 = vunpack.c.l.bf16 %v430
        %v435 = vunpack.c.l.bf16 %v431
        %v436 = vld [vmem:[#allocation2 + $0x18] sm:$0x1]
        %v437 = vunpack.c.l.bf16 %v436
        %v438 = vperm.slane %v437, 0
        %vm439 = vcmask 261120
        %v441 = vsel %vm439, %v412, 0
        %v444 = vsel %vm439, %v413, 0
        %v447 = vsel %vm439, %v414, 0
        %v450 = vsel %vm439, %v415, 0
        %v453 = vsel %vm439, %v416, 0
        %v456 = vsel %vm439, %v417, 0
        %v459 = vsel %vm439, %v418, 0
        %v462 = vsel %vm439, %v419, 0
        %v465 = vsel %vm439, %v420, 0
        %v468 = vsel %vm439, %v421, 0
        %v471 = vsel %vm439, %v422, 0
        %v474 = vsel %vm439, %v423, 0
        %v477 = vsel %vm439, %v424, 0
        %v480 = vsel %vm439, %v425, 0
        %v483 = vsel %vm439, %v426, 0
        %v486 = vsel %vm439, %v427, 0
        %488 = vmatpush.msra.mxu0 0.0
        %489 = vmatpush.msra.mxu0 0.0
        %490 = vmatpush.msra.mxu0 0.0
        %491 = vmatpush.msra.mxu0 0.0
        %492 = vmatpush.msra.mxu0 0.0
        %493 = vmatpush.msra.mxu0 0.0
        %494 = vmatpush.msra.mxu0 0.0
        %495 = vmatpush.msra.mxu0 0.0
        %496 = vmatpush.msra.mxu0 0.0
        %497 = vmatpush.msra.mxu0 0.0
        %498 = vmatpush.msra.mxu0 0.0
        %499 = vmatpush.msra.mxu0 0.0
        %500 = vmatpush.msra.mxu0 %v435
        %501 = vmatpush.msra.mxu0 %v434
        %502 = vmatpush.msra.mxu0 %v433
        %503 = vmatpush.msra.mxu0 %v432
        %504 = vmatmul.f32.gmra.mxu0 %v441
        %v505 = vpop.f32.mrf.mxu0
        %v506 = vadd.f32 %v438, %v505
        %507 = vmatmul.f32.gmra.mxu0 %v444
        %v508 = vpop.f32.mrf.mxu0
        %v509 = vadd.f32 %v438, %v508
        %510 = vmatmul.f32.gmra.mxu0 %v447
        %v511 = vpop.f32.mrf.mxu0
        %v512 = vadd.f32 %v438, %v511
        %513 = vmatmul.f32.gmra.mxu0 %v450
        %v514 = vpop.f32.mrf.mxu0
        %v515 = vadd.f32 %v438, %v514
        %516 = vmatmul.f32.gmra.mxu0 %v453
        %v517 = vpop.f32.mrf.mxu0
        %v518 = vadd.f32 %v438, %v517
        %519 = vmatmul.f32.gmra.mxu0 %v456
        %v520 = vpop.f32.mrf.mxu0
        %v521 = vadd.f32 %v438, %v520
        %522 = vmatmul.f32.gmra.mxu0 %v459
        %v523 = vpop.f32.mrf.mxu0
        %v524 = vadd.f32 %v438, %v523
        %525 = vmatmul.f32.gmra.mxu0 %v462
        %v526 = vpop.f32.mrf.mxu0
        %v527 = vadd.f32 %v438, %v526
        %528 = vmatmul.f32.gmra.mxu0 %v465
        %v529 = vpop.f32.mrf.mxu0
        %v530 = vadd.f32 %v438, %v529
        %531 = vmatmul.f32.gmra.mxu0 %v468
        %v532 = vpop.f32.mrf.mxu0
        %v533 = vadd.f32 %v438, %v532
        %534 = vmatmul.f32.gmra.mxu0 %v471
        %v535 = vpop.f32.mrf.mxu0
        %v536 = vadd.f32 %v438, %v535
        %537 = vmatmul.f32.gmra.mxu0 %v474
        %v538 = vpop.f32.mrf.mxu0
        %v539 = vadd.f32 %v438, %v538
        %540 = vmatmul.f32.gmra.mxu0 %v477
        %v541 = vpop.f32.mrf.mxu0
        %v542 = vadd.f32 %v438, %v541
        %543 = vmatmul.f32.gmra.mxu0 %v480
        %v544 = vpop.f32.mrf.mxu0
        %v545 = vadd.f32 %v438, %v544
        %546 = vmatmul.f32.gmra.mxu0 %v483
        %v547 = vpop.f32.mrf.mxu0
        %v548 = vadd.f32 %v438, %v547
        %549 = vmatmul.f32.gmra.mxu0 %v486
        %v550 = vpop.f32.mrf.mxu0
        %v551 = vadd.f32 %v438, %v550
        %552 = vdwg.mxu0
        %v553 = vmax.f32 %v506, 0.0
        %v554 = vmax.f32 %v509, 0.0
        %v555 = vmax.f32 %v512, 0.0
        %v556 = vmax.f32 %v515, 0.0
        %v557 = vmax.f32 %v518, 0.0
        %v558 = vmax.f32 %v521, 0.0
        %v559 = vmax.f32 %v524, 0.0
        %v560 = vmax.f32 %v527, 0.0
        %v561 = vmax.f32 %v530, 0.0
        %v562 = vmax.f32 %v533, 0.0
        %v563 = vmax.f32 %v536, 0.0
        %v564 = vmax.f32 %v539, 0.0
        %v565 = vmax.f32 %v542, 0.0
        %v566 = vmax.f32 %v545, 0.0
        %v567 = vmax.f32 %v548, 0.0
        %v568 = vmax.f32 %v551, 0.0
        %v569 = vld [vmem:[#allocation2 + $0x1c] sm:$0xf]
        %v570 = vld [vmem:[#allocation2 + $0x20] sm:$0xf]
        %v571 = vld [vmem:[#allocation2 + $0x24] sm:$0xf]
        %v572 = vld [vmem:[#allocation2 + $0x28] sm:$0xf]
        %v573 = vld [vmem:[#allocation2 + $0x2c] sm:$0xf]
        %v574 = vld [vmem:[#allocation2 + $0x30] sm:$0xf]
        %v575 = vld [vmem:[#allocation2 + $0x34] sm:$0xf]
        %v576 = vld [vmem:[#allocation2 + $0x38] sm:$0xf]
        %v577 = vunpack.c.l.bf16 %v569
        %v578 = vunpack.c.l.bf16 %v570
        %v579 = vunpack.c.l.bf16 %v571
        %v580 = vunpack.c.l.bf16 %v572
        %v581 = vunpack.c.l.bf16 %v573
        %v582 = vunpack.c.l.bf16 %v574
        %v583 = vunpack.c.l.bf16 %v575
        %v584 = vunpack.c.l.bf16 %v576
        %v585 = vld [vmem:[#allocation2 + $0x3c] sm:$0x1]
        %v586 = vunpack.c.l.bf16 %v585
        %v587 = vperm.slane %v586, 0
        %vm588 = vcmask 523264
        %v590 = vsel %vm588, %v553, 0
        %v593 = vsel %vm588, %v554, 0
        %v596 = vsel %vm588, %v555, 0
        %v599 = vsel %vm588, %v556, 0
        %v602 = vsel %vm588, %v557, 0
        %v605 = vsel %vm588, %v558, 0
        %v608 = vsel %vm588, %v559, 0
        %v611 = vsel %vm588, %v560, 0
        %v614 = vsel %vm588, %v561, 0
        %v617 = vsel %vm588, %v562, 0
        %v620 = vsel %vm588, %v563, 0
        %v623 = vsel %vm588, %v564, 0
        %v626 = vsel %vm588, %v565, 0
        %v629 = vsel %vm588, %v566, 0
        %v632 = vsel %vm588, %v567, 0
        %v635 = vsel %vm588, %v568, 0
        %637 = vmatpush.msra.mxu0 0.0
        %638 = vmatpush.msra.mxu0 0.0
        %639 = vmatpush.msra.mxu0 0.0
        %640 = vmatpush.msra.mxu0 0.0
        %641 = vmatpush.msra.mxu0 0.0
        %642 = vmatpush.msra.mxu0 0.0
        %643 = vmatpush.msra.mxu0 0.0
        %644 = vmatpush.msra.mxu0 0.0
        %645 = vmatpush.msra.mxu0 %v584
        %646 = vmatpush.msra.mxu0 %v583
        %647 = vmatpush.msra.mxu0 %v582
        %648 = vmatpush.msra.mxu0 %v581
        %649 = vmatpush.msra.mxu0 %v580
        %650 = vmatpush.msra.mxu0 %v579
        %651 = vmatpush.msra.mxu0 %v578
        %652 = vmatpush.msra.mxu0 %v577
        %653 = vmatmul.f32.gmra.mxu0 %v590
        %v654 = vpop.f32.mrf.mxu0
        %v655 = vadd.f32 %v587, %v654
        %656 = vmatmul.f32.gmra.mxu0 %v593
        %v657 = vpop.f32.mrf.mxu0
        %v658 = vadd.f32 %v587, %v657
        %659 = vmatmul.f32.gmra.mxu0 %v596
        %v660 = vpop.f32.mrf.mxu0
        %v661 = vadd.f32 %v587, %v660
        %662 = vmatmul.f32.gmra.mxu0 %v599
        %v663 = vpop.f32.mrf.mxu0
        %v664 = vadd.f32 %v587, %v663
        %665 = vmatmul.f32.gmra.mxu0 %v602
        %v666 = vpop.f32.mrf.mxu0
        %v667 = vadd.f32 %v587, %v666
        %668 = vmatmul.f32.gmra.mxu0 %v605
        %v669 = vpop.f32.mrf.mxu0
        %v670 = vadd.f32 %v587, %v669
        %671 = vmatmul.f32.gmra.mxu0 %v608
        %v672 = vpop.f32.mrf.mxu0
        %v673 = vadd.f32 %v587, %v672
        %674 = vmatmul.f32.gmra.mxu0 %v611
        %v675 = vpop.f32.mrf.mxu0
        %v676 = vadd.f32 %v587, %v675
        %677 = vmatmul.f32.gmra.mxu0 %v614
        %v678 = vpop.f32.mrf.mxu0
        %v679 = vadd.f32 %v587, %v678
        %680 = vmatmul.f32.gmra.mxu0 %v617
        %v681 = vpop.f32.mrf.mxu0
        %v682 = vadd.f32 %v587, %v681
        %683 = vmatmul.f32.gmra.mxu0 %v620
        %v684 = vpop.f32.mrf.mxu0
        %v685 = vadd.f32 %v587, %v684
        %686 = vmatmul.f32.gmra.mxu0 %v623
        %v687 = vpop.f32.mrf.mxu0
        %v688 = vadd.f32 %v587, %v687
        %689 = vmatmul.f32.gmra.mxu0 %v626
        %v690 = vpop.f32.mrf.mxu0
        %v691 = vadd.f32 %v587, %v690
        %692 = vmatmul.f32.gmra.mxu0 %v629
        %v693 = vpop.f32.mrf.mxu0
        %v694 = vadd.f32 %v587, %v693
        %695 = vmatmul.f32.gmra.mxu0 %v632
        %v696 = vpop.f32.mrf.mxu0
        %v697 = vadd.f32 %v587, %v696
        %698 = vmatmul.f32.gmra.mxu0 %v635
        %v699 = vpop.f32.mrf.mxu0
        %v700 = vadd.f32 %v587, %v699
        %701 = vdwg.mxu0
        %v702 = vmax.f32 %v655, %v667
        %v703 = vmax.f32 %v658, %v670
        %v704 = vmax.f32 %v661, %v673
        %v705 = vmax.f32 %v664, %v676
        %v706 = vmax.f32 %v702, %v679
        %v707 = vmax.f32 %v703, %v682
        %v708 = vmax.f32 %v704, %v685
        %v709 = vmax.f32 %v705, %v688
        %v710 = vmax.f32 %v706, %v691
        %v711 = vmax.f32 %v707, %v694
        %v712 = vmax.f32 %v708, %v697
        %v713 = vmax.f32 %v709, %v700
        %v714 = vmax.f32 %v710, %v711
        %v715 = vmax.f32 %v712, %v713
        %v716 = vmax.f32 %v714, %v715
        %v717 = vrot.slane %v716, 4
        %v718 = vmax.f32 %v716, %v717
        %v719 = vrot.slane %v718, 2
        %v720 = vmax.f32 %v718, %v719
        %v721 = vrot.slane %v720, 1
        %v722 = vmax.f32 %v720, %v721
        %v723 = vld [vmem:[%s267] sm:$0x1]
        %v724 = vld [vmem:[#allocation2 + $0x40] sm:$0xf]
        %v725 = vld [vmem:[#allocation2 + $0x44] sm:$0xf]
        %v726 = vld [vmem:[#allocation2 + $0x48] sm:$0xf]
        %v727 = vld [vmem:[#allocation2 + $0x4c] sm:$0xf]
        %v728 = vld [vmem:[#allocation2 + $0x50] sm:$0xf]
        %v729 = vld [vmem:[#allocation2 + $0x54] sm:$0xf]
        %v730 = vld [vmem:[#allocation2 + $0x58] sm:$0xf]
        %v731 = vld [vmem:[#allocation2 + $0x5c] sm:$0xf]
        %v732 = vld [vmem:[#allocation2 + $0x60] sm:$0xf]
        %v733 = vld [vmem:[#allocation2 + $0x64] sm:$0xf]
        %v734 = vld [vmem:[#allocation2 + $0x68] sm:$0xf]
        %v735 = vld [vmem:[#allocation2 + $0x6c] sm:$0xf]
        %v736 = vld [vmem:[#allocation2 + $0x70] sm:$0xf]
        %v737 = vld [vmem:[#allocation2 + $0x74] sm:$0xf]
        %v738 = vld [vmem:[#allocation2 + $0x78] sm:$0xf]
        %v739 = vld [vmem:[#allocation2 + $0x7c] sm:$0xf]
        %v740 = vunpack.c.l.bf16 %v724
        %v741 = vunpack.c.l.bf16 %v725
        %v742 = vunpack.c.l.bf16 %v726
        %v743 = vunpack.c.l.bf16 %v727
        %v744 = vunpack.c.l.bf16 %v728
        %v745 = vunpack.c.l.bf16 %v729
        %v746 = vunpack.c.l.bf16 %v730
        %v747 = vunpack.c.l.bf16 %v731
        %v748 = vunpack.c.l.bf16 %v732
        %v749 = vunpack.c.l.bf16 %v733
        %v750 = vunpack.c.l.bf16 %v734
        %v751 = vunpack.c.l.bf16 %v735
        %v752 = vunpack.c.l.bf16 %v736
        %v753 = vunpack.c.l.bf16 %v737
        %v754 = vunpack.c.l.bf16 %v738
        %v755 = vunpack.c.l.bf16 %v739
        %v756 = vld [vmem:[#allocation2 + $0x80] sm:$0xf]
        %v757 = vunpack.c.l.bf16 %v756
        %vm758 = vcmask 64512
        %v760 = vsel %vm758, %v723, 0
        %762 = vmatpush.msra.mxu0 0.0
        %763 = vmatpush.msra.mxu0 0.0
        %764 = vmatpush.msra.mxu0 0.0
        %765 = vmatpush.msra.mxu0 0.0
        %766 = vmatpush.msra.mxu0 0.0
        %767 = vmatpush.msra.mxu0 0.0
        %768 = vmatpush.msra.mxu0 0.0
        %769 = vmatpush.msra.mxu0 0.0
        %770 = vmatpush.msra.mxu0 0.0
        %771 = vmatpush.msra.mxu0 0.0
        %772 = vmatpush.msra.mxu0 0.0
        %773 = vmatpush.msra.mxu0 0.0
        %774 = vmatpush.msra.mxu0 0.0
        %775 = vmatpush.msra.mxu0 0.0
        %776 = vmatpush.msra.mxu0 0.0
        %777 = vmatpush.msra.mxu0 %v757
        %778 = vmatmul.f32.gmra.mxu0 %v760
        %v779 = vpop.f32.mrf.mxu0
        %v780 = vadd.f32 0.0, %v779
        %781 = vdwg.mxu0
        %782 = vmatpush.msra.mxu0 %v755
        %783 = vmatpush.msra.mxu0 %v754
        %784 = vmatpush.msra.mxu0 %v753
        %785 = vmatpush.msra.mxu0 %v752
        %786 = vmatpush.msra.mxu0 %v751
        %787 = vmatpush.msra.mxu0 %v750
        %788 = vmatpush.msra.mxu0 %v749
        %789 = vmatpush.msra.mxu0 %v748
        %790 = vmatpush.msra.mxu0 %v747
        %791 = vmatpush.msra.mxu0 %v746
        %792 = vmatpush.msra.mxu0 %v745
        %793 = vmatpush.msra.mxu0 %v744
        %794 = vmatpush.msra.mxu0 %v743
        %795 = vmatpush.msra.mxu0 %v742
        %796 = vmatpush.msra.mxu0 %v741
        %797 = vmatpush.msra.mxu0 %v740
        %798 = vmatmul.f32.gmra.mxu0 %v722
        %v799 = vpop.f32.mrf.mxu0
        %v800 = vadd.f32 %v780, %v799
        %801 = vdwg.mxu0
        %v802 = vld [vmem:[#allocation2 + $0x84] sm:$0x1]
        %v803 = vunpack.c.l.bf16 %v802
        %v804 = vadd.f32 %v800, %v803
        %v805 = vmax.f32 %v804, 0.0
        %v806 = vld [vmem:[%s2] sm:$0xff]
        %v807 = vld [vmem:[%s2 + $0x8] sm:$0xff]
        %v808 = vld [vmem:[%s2 + $0x10] sm:$0xff]
        %v809 = vld [vmem:[%s2 + $0x18] sm:$0xff]
        %v810 = vld [vmem:[%s2 + $0x20] sm:$0xff]
        %v811 = vld [vmem:[%s2 + $0x28] sm:$0xff]
        %v812 = vld [vmem:[%s2 + $0x30] sm:$0xff]
        %v813 = vld [vmem:[%s2 + $0x38] sm:$0xff]
        %v814 = vld [vmem:[%s2 + $0x40] sm:$0xff]
        %v815 = vld [vmem:[%s2 + $0x48] sm:$0xff]
        %v816 = vld [vmem:[%s2 + $0x50] sm:$0xff]
        %v817 = vld [vmem:[%s2 + $0x58] sm:$0xff]
        %v818 = vld [vmem:[%s2 + $0x60] sm:$0xff]
        %v819 = vld [vmem:[%s2 + $0x68] sm:$0xff]
        %v820 = vld [vmem:[%s2 + $0x70] sm:$0xff]
        %v821 = vld [vmem:[%s2 + $0x78] sm:$0xff]
        %v822 = vld [vmem:[%s2 + $0x80] sm:$0xff]
        %v823 = vld [vmem:[%s2 + $0x88] sm:$0xff]
        %v824 = vld [vmem:[%s2 + $0x90] sm:$0xff]
        %v825 = vld [vmem:[%s2 + $0x98] sm:$0xff]
        %v826 = vld [vmem:[%s2 + $0xa0] sm:$0xff]
        %v827 = vld [vmem:[%s2 + $0xa8] sm:$0xff]
        %v828 = vld [vmem:[%s2 + $0xb0] sm:$0xff]
        %v829 = vld [vmem:[%s2 + $0xb8] sm:$0xff]
        %v830 = vld [vmem:[%s2 + $0xc0] sm:$0xff]
        %v831 = vld [vmem:[%s2 + $0xc8] sm:$0xff]
        %v832 = vld [vmem:[%s2 + $0xd0] sm:$0xff]
        %v833 = vld [vmem:[%s2 + $0xd8] sm:$0xff]
        %v834 = vld [vmem:[%s2 + $0xe0] sm:$0xff]
        %v835 = vld [vmem:[%s2 + $0xe8] sm:$0xff]
        %v836 = vld [vmem:[%s2 + $0xf0] sm:$0xff]
        %v837 = vld [vmem:[%s2 + $0xf8] sm:$0xff]
        %v838 = vld [vmem:[#allocation4] sm:$0xf]
        %v839 = vunpack.c.l.bf16 %v838
        %v840 = vld [vmem:[#allocation4 + $0x4] sm:$0x1]
        %v841 = vunpack.c.l.bf16 %v840
        %v842 = vperm.slane %v841, 0
        %v844 = vsel %vm758, %v806, 0
        %v847 = vsel %vm758, %v807, 0
        %v850 = vsel %vm758, %v808, 0
        %v853 = vsel %vm758, %v809, 0
        %v856 = vsel %vm758, %v810, 0
        %v859 = vsel %vm758, %v811, 0
        %v862 = vsel %vm758, %v812, 0
        %v865 = vsel %vm758, %v813, 0
        %v868 = vsel %vm758, %v814, 0
        %v871 = vsel %vm758, %v815, 0
        %v874 = vsel %vm758, %v816, 0
        %v877 = vsel %vm758, %v817, 0
        %v880 = vsel %vm758, %v818, 0
        %v883 = vsel %vm758, %v819, 0
        %v886 = vsel %vm758, %v820, 0
        %v889 = vsel %vm758, %v821, 0
        %v892 = vsel %vm758, %v822, 0
        %v895 = vsel %vm758, %v823, 0
        %v898 = vsel %vm758, %v824, 0
        %v901 = vsel %vm758, %v825, 0
        %v904 = vsel %vm758, %v826, 0
        %v907 = vsel %vm758, %v827, 0
        %v910 = vsel %vm758, %v828, 0
        %v913 = vsel %vm758, %v829, 0
        %v916 = vsel %vm758, %v830, 0
        %v919 = vsel %vm758, %v831, 0
        %v922 = vsel %vm758, %v832, 0
        %v925 = vsel %vm758, %v833, 0
        %v928 = vsel %vm758, %v834, 0
        %v931 = vsel %vm758, %v835, 0
        %v934 = vsel %vm758, %v836, 0
        %v937 = vsel %vm758, %v837, 0
        %939 = vmatpush.msra.mxu0 0.0
        %940 = vmatpush.msra.mxu0 0.0
        %941 = vmatpush.msra.mxu0 0.0
        %942 = vmatpush.msra.mxu0 0.0
        %943 = vmatpush.msra.mxu0 0.0
        %944 = vmatpush.msra.mxu0 0.0
        %945 = vmatpush.msra.mxu0 0.0
        %946 = vmatpush.msra.mxu0 0.0
        %947 = vmatpush.msra.mxu0 0.0
        %948 = vmatpush.msra.mxu0 0.0
        %949 = vmatpush.msra.mxu0 0.0
        %950 = vmatpush.msra.mxu0 0.0
        %951 = vmatpush.msra.mxu0 0.0
        %952 = vmatpush.msra.mxu0 0.0
        %953 = vmatpush.msra.mxu0 0.0
        %954 = vmatpush.msra.mxu0 %v839
        %955 = vmatmul.f32.gmra.mxu0 %v844
        %v956 = vpop.f32.mrf.mxu0
        %v957 = vadd.f32 %v842, %v956
        %958 = vmatmul.f32.gmra.mxu0 %v847
        %v959 = vpop.f32.mrf.mxu0
        %v960 = vadd.f32 %v842, %v959
        %961 = vmatmul.f32.gmra.mxu0 %v850
        %v962 = vpop.f32.mrf.mxu0
        %v963 = vadd.f32 %v842, %v962
        %964 = vmatmul.f32.gmra.mxu0 %v853
        %v965 = vpop.f32.mrf.mxu0
        %v966 = vadd.f32 %v842, %v965
        %967 = vmatmul.f32.gmra.mxu0 %v856
        %v968 = vpop.f32.mrf.mxu0
        %v969 = vadd.f32 %v842, %v968
        %970 = vmatmul.f32.gmra.mxu0 %v859
        %v971 = vpop.f32.mrf.mxu0
        %v972 = vadd.f32 %v842, %v971
        %973 = vmatmul.f32.gmra.mxu0 %v862
        %v974 = vpop.f32.mrf.mxu0
        %v975 = vadd.f32 %v842, %v974
        %976 = vmatmul.f32.gmra.mxu0 %v865
        %v977 = vpop.f32.mrf.mxu0
        %v978 = vadd.f32 %v842, %v977
        %979 = vmatmul.f32.gmra.mxu0 %v868
        %v980 = vpop.f32.mrf.mxu0
        %v981 = vadd.f32 %v842, %v980
        %982 = vmatmul.f32.gmra.mxu0 %v871
        %v983 = vpop.f32.mrf.mxu0
        %v984 = vadd.f32 %v842, %v983
        %985 = vmatmul.f32.gmra.mxu0 %v874
        %v986 = vpop.f32.mrf.mxu0
        %v987 = vadd.f32 %v842, %v986
        %988 = vmatmul.f32.gmra.mxu0 %v877
        %v989 = vpop.f32.mrf.mxu0
        %v990 = vadd.f32 %v842, %v989
        %991 = vmatmul.f32.gmra.mxu0 %v880
        %v992 = vpop.f32.mrf.mxu0
        %v993 = vadd.f32 %v842, %v992
        %994 = vmatmul.f32.gmra.mxu0 %v883
        %v995 = vpop.f32.mrf.mxu0
        %v996 = vadd.f32 %v842, %v995
        %997 = vmatmul.f32.gmra.mxu0 %v886
        %v998 = vpop.f32.mrf.mxu0
        %v999 = vadd.f32 %v842, %v998
        %1000 = vmatmul.f32.gmra.mxu0 %v889
        %v1001 = vpop.f32.mrf.mxu0
        %v1002 = vadd.f32 %v842, %v1001
        %1003 = vmatmul.f32.gmra.mxu0 %v892
        %v1004 = vpop.f32.mrf.mxu0
        %v1005 = vadd.f32 %v842, %v1004
        %1006 = vmatmul.f32.gmra.mxu0 %v895
        %v1007 = vpop.f32.mrf.mxu0
        %v1008 = vadd.f32 %v842, %v1007
        %1009 = vmatmul.f32.gmra.mxu0 %v898
        %v1010 = vpop.f32.mrf.mxu0
        %v1011 = vadd.f32 %v842, %v1010
        %1012 = vmatmul.f32.gmra.mxu0 %v901
        %v1013 = vpop.f32.mrf.mxu0
        %v1014 = vadd.f32 %v842, %v1013
        %1015 = vmatmul.f32.gmra.mxu0 %v904
        %v1016 = vpop.f32.mrf.mxu0
        %v1017 = vadd.f32 %v842, %v1016
        %1018 = vmatmul.f32.gmra.mxu0 %v907
        %v1019 = vpop.f32.mrf.mxu0
        %v1020 = vadd.f32 %v842, %v1019
        %1021 = vmatmul.f32.gmra.mxu0 %v910
        %v1022 = vpop.f32.mrf.mxu0
        %v1023 = vadd.f32 %v842, %v1022
        %1024 = vmatmul.f32.gmra.mxu0 %v913
        %v1025 = vpop.f32.mrf.mxu0
        %v1026 = vadd.f32 %v842, %v1025
        %1027 = vmatmul.f32.gmra.mxu0 %v916
        %v1028 = vpop.f32.mrf.mxu0
        %v1029 = vadd.f32 %v842, %v1028
        %1030 = vmatmul.f32.gmra.mxu0 %v919
        %v1031 = vpop.f32.mrf.mxu0
        %v1032 = vadd.f32 %v842, %v1031
        %1033 = vmatmul.f32.gmra.mxu0 %v922
        %v1034 = vpop.f32.mrf.mxu0
        %v1035 = vadd.f32 %v842, %v1034
        %1036 = vmatmul.f32.gmra.mxu0 %v925
        %v1037 = vpop.f32.mrf.mxu0
        %v1038 = vadd.f32 %v842, %v1037
        %1039 = vmatmul.f32.gmra.mxu0 %v928
        %v1040 = vpop.f32.mrf.mxu0
        %v1041 = vadd.f32 %v842, %v1040
        %1042 = vmatmul.f32.gmra.mxu0 %v931
        %v1043 = vpop.f32.mrf.mxu0
        %v1044 = vadd.f32 %v842, %v1043
        %1045 = vmatmul.f32.gmra.mxu0 %v934
        %v1046 = vpop.f32.mrf.mxu0
        %v1047 = vadd.f32 %v842, %v1046
        %1048 = vmatmul.f32.gmra.mxu0 %v937
        %v1049 = vpop.f32.mrf.mxu0
        %v1050 = vadd.f32 %v842, %v1049
        %1051 = vdwg.mxu0
        %v1052 = vmax.f32 %v957, 0.0
        %v1053 = vmax.f32 %v960, 0.0
        %v1054 = vmax.f32 %v963, 0.0
        %v1055 = vmax.f32 %v966, 0.0
        %v1056 = vmax.f32 %v969, 0.0
        %v1057 = vmax.f32 %v972, 0.0
        %v1058 = vmax.f32 %v975, 0.0
        %v1059 = vmax.f32 %v978, 0.0
        %v1060 = vmax.f32 %v981, 0.0
        %v1061 = vmax.f32 %v984, 0.0
        %v1062 = vmax.f32 %v987, 0.0
        %v1063 = vmax.f32 %v990, 0.0
        %v1064 = vmax.f32 %v993, 0.0
        %v1065 = vmax.f32 %v996, 0.0
        %v1066 = vmax.f32 %v999, 0.0
        %v1067 = vmax.f32 %v1002, 0.0
        %v1068 = vmax.f32 %v1005, 0.0
        %v1069 = vmax.f32 %v1008, 0.0
        %v1070 = vmax.f32 %v1011, 0.0
        %v1071 = vmax.f32 %v1014, 0.0
        %v1072 = vmax.f32 %v1017, 0.0
        %v1073 = vmax.f32 %v1020, 0.0
        %v1074 = vmax.f32 %v1023, 0.0
        %v1075 = vmax.f32 %v1026, 0.0
        %v1076 = vmax.f32 %v1029, 0.0
        %v1077 = vmax.f32 %v1032, 0.0
        %v1078 = vmax.f32 %v1035, 0.0
        %v1079 = vmax.f32 %v1038, 0.0
        %v1080 = vmax.f32 %v1041, 0.0
        %v1081 = vmax.f32 %v1044, 0.0
        %v1082 = vmax.f32 %v1047, 0.0
        %v1083 = vmax.f32 %v1050, 0.0
        %v1084 = vld [vmem:[#allocation4 + $0x8] sm:$0xf]
        %v1085 = vld [vmem:[#allocation4 + $0xc] sm:$0xf]
        %v1086 = vld [vmem:[#allocation4 + $0x10] sm:$0xf]
        %v1087 = vld [vmem:[#allocation4 + $0x14] sm:$0xf]
        %v1088 = vld [vmem:[#allocation4 + $0x18] sm:$0xf]
        %v1089 = vld [vmem:[#allocation4 + $0x1c] sm:$0xf]
        %v1090 = vld [vmem:[#allocation4 + $0x20] sm:$0xf]
        %v1091 = vld [vmem:[#allocation4 + $0x24] sm:$0xf]
        %v1092 = vld [vmem:[#allocation4 + $0x28] sm:$0xf]
        %v1093 = vld [vmem:[#allocation4 + $0x2c] sm:$0xf]
        %v1094 = vld [vmem:[#allocation4 + $0x30] sm:$0xf]
        %v1095 = vld [vmem:[#allocation4 + $0x34] sm:$0xf]
        %v1096 = vld [vmem:[#allocation4 + $0x38] sm:$0xf]
        %v1097 = vld [vmem:[#allocation4 + $0x3c] sm:$0xf]
        %v1098 = vld [vmem:[#allocation4 + $0x40] sm:$0xf]
        %v1099 = vld [vmem:[#allocation4 + $0x44] sm:$0xf]
        %v1100 = vunpack.c.l.bf16 %v1084
        %v1101 = vunpack.c.l.bf16 %v1085
        %v1102 = vunpack.c.l.bf16 %v1086
        %v1103 = vunpack.c.l.bf16 %v1087
        %v1104 = vunpack.c.l.bf16 %v1088
        %v1105 = vunpack.c.l.bf16 %v1089
        %v1106 = vunpack.c.l.bf16 %v1090
        %v1107 = vunpack.c.l.bf16 %v1091
        %v1108 = vunpack.c.l.bf16 %v1092
        %v1109 = vunpack.c.l.bf16 %v1093
        %v1110 = vunpack.c.l.bf16 %v1094
        %v1111 = vunpack.c.l.bf16 %v1095
        %v1112 = vunpack.c.l.bf16 %v1096
        %v1113 = vunpack.c.l.bf16 %v1097
        %v1114 = vunpack.c.l.bf16 %v1098
        %v1115 = vunpack.c.l.bf16 %v1099
        %v1116 = vld [vmem:[#allocation4 + $0x48] sm:$0x1]
        %v1117 = vunpack.c.l.bf16 %v1116
        %1118 = vmatpush.msra.mxu0 %v1115
        %1119 = vmatpush.msra.mxu0 %v1114
        %1120 = vmatpush.msra.mxu0 %v1113
        %1121 = vmatpush.msra.mxu0 %v1112
        %1122 = vmatpush.msra.mxu0 %v1111
        %1123 = vmatpush.msra.mxu0 %v1110
        %1124 = vmatpush.msra.mxu0 %v1109
        %1125 = vmatpush.msra.mxu0 %v1108
        %1126 = vmatpush.msra.mxu0 %v1107
        %1127 = vmatpush.msra.mxu0 %v1106
        %1128 = vmatpush.msra.mxu0 %v1105
        %1129 = vmatpush.msra.mxu0 %v1104
        %1130 = vmatpush.msra.mxu0 %v1103
        %1131 = vmatpush.msra.mxu0 %v1102
        %1132 = vmatpush.msra.mxu0 %v1101
        %1133 = vmatpush.msra.mxu0 %v1100
        %1134 = vmatmul.f32.gmra.mxu0 %v805
        %v1135 = vpop.f32.mrf.mxu0
        %v1136 = vadd.f32 %v1117, %v1135
        %1137 = vdwg.mxu0
        %v1138 = vld [vmem:[#allocation4 + $0x4c] sm:$0xf]
        %v1139 = vld [vmem:[#allocation4 + $0x50] sm:$0xf]
        %v1140 = vld [vmem:[#allocation4 + $0x54] sm:$0xf]
        %v1141 = vld [vmem:[#allocation4 + $0x58] sm:$0xf]
        %v1142 = vld [vmem:[#allocation4 + $0x5c] sm:$0xf]
        %v1143 = vld [vmem:[#allocation4 + $0x60] sm:$0xf]
        %v1144 = vld [vmem:[#allocation4 + $0x64] sm:$0xf]
        %v1145 = vld [vmem:[#allocation4 + $0x68] sm:$0xf]
        %v1146 = vld [vmem:[#allocation4 + $0x6c] sm:$0xf]
        %v1147 = vld [vmem:[#allocation4 + $0x70] sm:$0xf]
        %v1148 = vld [vmem:[#allocation4 + $0x74] sm:$0xf]
        %v1149 = vld [vmem:[#allocation4 + $0x78] sm:$0xf]
        %v1150 = vld [vmem:[#allocation4 + $0x7c] sm:$0xf]
        %v1151 = vld [vmem:[#allocation4 + $0x80] sm:$0xf]
        %v1152 = vld [vmem:[#allocation4 + $0x84] sm:$0xf]
        %v1153 = vld [vmem:[#allocation4 + $0x88] sm:$0xf]
        %v1154 = vunpack.c.l.bf16 %v1138
        %v1155 = vunpack.c.l.bf16 %v1139
        %v1156 = vunpack.c.l.bf16 %v1140
        %v1157 = vunpack.c.l.bf16 %v1141
        %v1158 = vunpack.c.l.bf16 %v1142
        %v1159 = vunpack.c.l.bf16 %v1143
        %v1160 = vunpack.c.l.bf16 %v1144
        %v1161 = vunpack.c.l.bf16 %v1145
        %v1162 = vunpack.c.l.bf16 %v1146
        %v1163 = vunpack.c.l.bf16 %v1147
        %v1164 = vunpack.c.l.bf16 %v1148
        %v1165 = vunpack.c.l.bf16 %v1149
        %v1166 = vunpack.c.l.bf16 %v1150
        %v1167 = vunpack.c.l.bf16 %v1151
        %v1168 = vunpack.c.l.bf16 %v1152
        %v1169 = vunpack.c.l.bf16 %v1153
        %v1170 = vld [vmem:[#allocation4 + $0x8c] sm:$0x1]
        %v1171 = vunpack.c.l.bf16 %v1170
        %1172 = vmatpush.msra.mxu0 %v1169
        %1173 = vmatpush.msra.mxu0 %v1168
        %1174 = vmatpush.msra.mxu0 %v1167
        %1175 = vmatpush.msra.mxu0 %v1166
        %1176 = vmatpush.msra.mxu0 %v1165
        %1177 = vmatpush.msra.mxu0 %v1164
        %1178 = vmatpush.msra.mxu0 %v1163
        %1179 = vmatpush.msra.mxu0 %v1162
        %1180 = vmatpush.msra.mxu0 %v1161
        %1181 = vmatpush.msra.mxu0 %v1160
        %1182 = vmatpush.msra.mxu0 %v1159
        %1183 = vmatpush.msra.mxu0 %v1158
        %1184 = vmatpush.msra.mxu0 %v1157
        %1185 = vmatpush.msra.mxu0 %v1156
        %1186 = vmatpush.msra.mxu0 %v1155
        %1187 = vmatpush.msra.mxu0 %v1154
        %1188 = vmatmul.f32.gmra.mxu0 %v805
        %v1189 = vpop.f32.mrf.mxu0
        %v1190 = vadd.f32 %v1171, %v1189
        %1191 = vdwg.mxu0
        %v1192 = vperm.slane %v1136, 0
        %v1193 = vmul.f32 %v1052, %v1192
        %v1194 = vmul.f32 %v1053, %v1192
        %v1195 = vmul.f32 %v1054, %v1192
        %v1196 = vmul.f32 %v1055, %v1192
        %v1197 = vmul.f32 %v1056, %v1192
        %v1198 = vmul.f32 %v1057, %v1192
        %v1199 = vmul.f32 %v1058, %v1192
        %v1200 = vmul.f32 %v1059, %v1192
        %v1201 = vmul.f32 %v1060, %v1192
        %v1202 = vmul.f32 %v1061, %v1192
        %v1203 = vmul.f32 %v1062, %v1192
        %v1204 = vmul.f32 %v1063, %v1192
        %v1205 = vmul.f32 %v1064, %v1192
        %v1206 = vmul.f32 %v1065, %v1192
        %v1207 = vmul.f32 %v1066, %v1192
        %v1208 = vmul.f32 %v1067, %v1192
        %v1209 = vmul.f32 %v1068, %v1192
        %v1210 = vmul.f32 %v1069, %v1192
        %v1211 = vmul.f32 %v1070, %v1192
        %v1212 = vmul.f32 %v1071, %v1192
        %v1213 = vmul.f32 %v1072, %v1192
        %v1214 = vmul.f32 %v1073, %v1192
        %v1215 = vmul.f32 %v1074, %v1192
        %v1216 = vmul.f32 %v1075, %v1192
        %v1217 = vmul.f32 %v1076, %v1192
        %v1218 = vmul.f32 %v1077, %v1192
        %v1219 = vmul.f32 %v1078, %v1192
        %v1220 = vmul.f32 %v1079, %v1192
        %v1221 = vmul.f32 %v1080, %v1192
        %v1222 = vmul.f32 %v1081, %v1192
        %v1223 = vmul.f32 %v1082, %v1192
        %v1224 = vmul.f32 %v1083, %v1192
        %v1225 = vperm.slane %v1190, 0
        %v1226 = vadd.f32 %v1193, %v1225
        %v1227 = vadd.f32 %v1194, %v1225
        %v1228 = vadd.f32 %v1195, %v1225
        %v1229 = vadd.f32 %v1196, %v1225
        %v1230 = vadd.f32 %v1197, %v1225
        %v1231 = vadd.f32 %v1198, %v1225
        %v1232 = vadd.f32 %v1199, %v1225
        %v1233 = vadd.f32 %v1200, %v1225
        %v1234 = vadd.f32 %v1201, %v1225
        %v1235 = vadd.f32 %v1202, %v1225
        %v1236 = vadd.f32 %v1203, %v1225
        %v1237 = vadd.f32 %v1204, %v1225
        %v1238 = vadd.f32 %v1205, %v1225
        %v1239 = vadd.f32 %v1206, %v1225
        %v1240 = vadd.f32 %v1207, %v1225
        %v1241 = vadd.f32 %v1208, %v1225
        %v1242 = vadd.f32 %v1209, %v1225
        %v1243 = vadd.f32 %v1210, %v1225
        %v1244 = vadd.f32 %v1211, %v1225
        %v1245 = vadd.f32 %v1212, %v1225
        %v1246 = vadd.f32 %v1213, %v1225
        %v1247 = vadd.f32 %v1214, %v1225
        %v1248 = vadd.f32 %v1215, %v1225
        %v1249 = vadd.f32 %v1216, %v1225
        %v1250 = vadd.f32 %v1217, %v1225
        %v1251 = vadd.f32 %v1218, %v1225
        %v1252 = vadd.f32 %v1219, %v1225
        %v1253 = vadd.f32 %v1220, %v1225
        %v1254 = vadd.f32 %v1221, %v1225
        %v1255 = vadd.f32 %v1222, %v1225
        %v1256 = vadd.f32 %v1223, %v1225
        %v1257 = vadd.f32 %v1224, %v1225
        %v1258 = vld [vmem:[#allocation4 + $0x90] sm:$0xf]
        %v1259 = vld [vmem:[#allocation4 + $0x94] sm:$0xf]
        %v1260 = vld [vmem:[#allocation4 + $0x98] sm:$0xf]
        %v1261 = vld [vmem:[#allocation4 + $0x9c] sm:$0xf]
        %v1262 = vld [vmem:[#allocation4 + $0xa0] sm:$0xf]
        %v1263 = vld [vmem:[#allocation4 + $0xa4] sm:$0xf]
        %v1264 = vld [vmem:[#allocation4 + $0xa8] sm:$0xf]
        %v1265 = vld [vmem:[#allocation4 + $0xac] sm:$0xf]
        %v1266 = vunpack.c.l.bf16 %v1258
        %v1267 = vunpack.c.l.bf16 %v1259
        %v1268 = vunpack.c.l.bf16 %v1260
        %v1269 = vunpack.c.l.bf16 %v1261
        %v1270 = vunpack.c.l.bf16 %v1262
        %v1271 = vunpack.c.l.bf16 %v1263
        %v1272 = vunpack.c.l.bf16 %v1264
        %v1273 = vunpack.c.l.bf16 %v1265
        %v1275 = vsel %vm588, %v1226, 0
        %v1278 = vsel %vm588, %v1227, 0
        %v1281 = vsel %vm588, %v1228, 0
        %v1284 = vsel %vm588, %v1229, 0
        %v1287 = vsel %vm588, %v1230, 0
        %v1290 = vsel %vm588, %v1231, 0
        %v1293 = vsel %vm588, %v1232, 0
        %v1296 = vsel %vm588, %v1233, 0
        %v1299 = vsel %vm588, %v1234, 0
        %v1302 = vsel %vm588, %v1235, 0
        %v1305 = vsel %vm588, %v1236, 0
        %v1308 = vsel %vm588, %v1237, 0
        %v1311 = vsel %vm588, %v1238, 0
        %v1314 = vsel %vm588, %v1239, 0
        %v1317 = vsel %vm588, %v1240, 0
        %v1320 = vsel %vm588, %v1241, 0
        %v1323 = vsel %vm588, %v1242, 0
        %v1326 = vsel %vm588, %v1243, 0
        %v1329 = vsel %vm588, %v1244, 0
        %v1332 = vsel %vm588, %v1245, 0
        %v1335 = vsel %vm588, %v1246, 0
        %v1338 = vsel %vm588, %v1247, 0
        %v1341 = vsel %vm588, %v1248, 0
        %v1344 = vsel %vm588, %v1249, 0
        %v1347 = vsel %vm588, %v1250, 0
        %v1350 = vsel %vm588, %v1251, 0
        %v1353 = vsel %vm588, %v1252, 0
        %v1356 = vsel %vm588, %v1253, 0
        %v1359 = vsel %vm588, %v1254, 0
        %v1362 = vsel %vm588, %v1255, 0
        %v1365 = vsel %vm588, %v1256, 0
        %v1368 = vsel %vm588, %v1257, 0
        %1370 = vmatpush.msra.mxu0 0.0
        %1371 = vmatpush.msra.mxu0 0.0
        %1372 = vmatpush.msra.mxu0 0.0
        %1373 = vmatpush.msra.mxu0 0.0
        %1374 = vmatpush.msra.mxu0 0.0
        %1375 = vmatpush.msra.mxu0 0.0
        %1376 = vmatpush.msra.mxu0 0.0
        %1377 = vmatpush.msra.mxu0 0.0
        %1378 = vmatpush.msra.mxu0 %v1273
        %1379 = vmatpush.msra.mxu0 %v1272
        %1380 = vmatpush.msra.mxu0 %v1271
        %1381 = vmatpush.msra.mxu0 %v1270
        %1382 = vmatpush.msra.mxu0 %v1269
        %1383 = vmatpush.msra.mxu0 %v1268
        %1384 = vmatpush.msra.mxu0 %v1267
        %1385 = vmatpush.msra.mxu0 %v1266
        %1386 = vmatmul.f32.gmra.mxu0 %v1275
        %v1387 = vpop.f32.mrf.mxu0
        %v1388 = vadd.f32 0.0, %v1387
        %1389 = vmatmul.f32.gmra.mxu0 %v1278
        %v1390 = vpop.f32.mrf.mxu0
        %v1391 = vadd.f32 0.0, %v1390
        %1392 = vmatmul.f32.gmra.mxu0 %v1281
        %v1393 = vpop.f32.mrf.mxu0
        %v1394 = vadd.f32 0.0, %v1393
        %1395 = vmatmul.f32.gmra.mxu0 %v1284
        %v1396 = vpop.f32.mrf.mxu0
        %v1397 = vadd.f32 0.0, %v1396
        %1398 = vmatmul.f32.gmra.mxu0 %v1287
        %v1399 = vpop.f32.mrf.mxu0
        %v1400 = vadd.f32 0.0, %v1399
        %1401 = vmatmul.f32.gmra.mxu0 %v1290
        %v1402 = vpop.f32.mrf.mxu0
        %v1403 = vadd.f32 0.0, %v1402
        %1404 = vmatmul.f32.gmra.mxu0 %v1293
        %v1405 = vpop.f32.mrf.mxu0
        %v1406 = vadd.f32 0.0, %v1405
        %1407 = vmatmul.f32.gmra.mxu0 %v1296
        %v1408 = vpop.f32.mrf.mxu0
        %v1409 = vadd.f32 0.0, %v1408
        %1410 = vmatmul.f32.gmra.mxu0 %v1299
        %v1411 = vpop.f32.mrf.mxu0
        %v1412 = vadd.f32 0.0, %v1411
        %1413 = vmatmul.f32.gmra.mxu0 %v1302
        %v1414 = vpop.f32.mrf.mxu0
        %v1415 = vadd.f32 0.0, %v1414
        %1416 = vmatmul.f32.gmra.mxu0 %v1305
        %v1417 = vpop.f32.mrf.mxu0
        %v1418 = vadd.f32 0.0, %v1417
        %1419 = vmatmul.f32.gmra.mxu0 %v1308
        %v1420 = vpop.f32.mrf.mxu0
        %v1421 = vadd.f32 0.0, %v1420
        %1422 = vmatmul.f32.gmra.mxu0 %v1311
        %v1423 = vpop.f32.mrf.mxu0
        %v1424 = vadd.f32 0.0, %v1423
        %1425 = vmatmul.f32.gmra.mxu0 %v1314
        %v1426 = vpop.f32.mrf.mxu0
        %v1427 = vadd.f32 0.0, %v1426
        %1428 = vmatmul.f32.gmra.mxu0 %v1317
        %v1429 = vpop.f32.mrf.mxu0
        %v1430 = vadd.f32 0.0, %v1429
        %1431 = vmatmul.f32.gmra.mxu0 %v1320
        %v1432 = vpop.f32.mrf.mxu0
        %v1433 = vadd.f32 0.0, %v1432
        %1434 = vmatmul.f32.gmra.mxu0 %v1323
        %v1435 = vpop.f32.mrf.mxu0
        %v1436 = vadd.f32 0.0, %v1435
        %1437 = vmatmul.f32.gmra.mxu0 %v1326
        %v1438 = vpop.f32.mrf.mxu0
        %v1439 = vadd.f32 0.0, %v1438
        %1440 = vmatmul.f32.gmra.mxu0 %v1329
        %v1441 = vpop.f32.mrf.mxu0
        %v1442 = vadd.f32 0.0, %v1441
        %1443 = vmatmul.f32.gmra.mxu0 %v1332
        %v1444 = vpop.f32.mrf.mxu0
        %v1445 = vadd.f32 0.0, %v1444
        %1446 = vmatmul.f32.gmra.mxu0 %v1335
        %v1447 = vpop.f32.mrf.mxu0
        %v1448 = vadd.f32 0.0, %v1447
        %1449 = vmatmul.f32.gmra.mxu0 %v1338
        %v1450 = vpop.f32.mrf.mxu0
        %v1451 = vadd.f32 0.0, %v1450
        %1452 = vmatmul.f32.gmra.mxu0 %v1341
        %v1453 = vpop.f32.mrf.mxu0
        %v1454 = vadd.f32 0.0, %v1453
        %1455 = vmatmul.f32.gmra.mxu0 %v1344
        %v1456 = vpop.f32.mrf.mxu0
        %v1457 = vadd.f32 0.0, %v1456
        %1458 = vmatmul.f32.gmra.mxu0 %v1347
        %v1459 = vpop.f32.mrf.mxu0
        %v1460 = vadd.f32 0.0, %v1459
        %1461 = vmatmul.f32.gmra.mxu0 %v1350
        %v1462 = vpop.f32.mrf.mxu0
        %v1463 = vadd.f32 0.0, %v1462
        %1464 = vmatmul.f32.gmra.mxu0 %v1353
        %v1465 = vpop.f32.mrf.mxu0
        %v1466 = vadd.f32 0.0, %v1465
        %1467 = vmatmul.f32.gmra.mxu0 %v1356
        %v1468 = vpop.f32.mrf.mxu0
        %v1469 = vadd.f32 0.0, %v1468
        %1470 = vmatmul.f32.gmra.mxu0 %v1359
        %v1471 = vpop.f32.mrf.mxu0
        %v1472 = vadd.f32 0.0, %v1471
        %1473 = vmatmul.f32.gmra.mxu0 %v1362
        %v1474 = vpop.f32.mrf.mxu0
        %v1475 = vadd.f32 0.0, %v1474
        %1476 = vmatmul.f32.gmra.mxu0 %v1365
        %v1477 = vpop.f32.mrf.mxu0
        %v1478 = vadd.f32 0.0, %v1477
        %1479 = vmatmul.f32.gmra.mxu0 %v1368
        %v1480 = vpop.f32.mrf.mxu0
        %v1481 = vadd.f32 0.0, %v1480
        %1482 = vdwg.mxu0
        %v1483 = vld [vmem:[#allocation4 + $0xb0] sm:$0xf]
        %v1484 = vld [vmem:[#allocation4 + $0xb4] sm:$0xf]
        %v1485 = vld [vmem:[#allocation4 + $0xb8] sm:$0xf]
        %v1486 = vld [vmem:[#allocation4 + $0xbc] sm:$0xf]
        %v1487 = vld [vmem:[#allocation4 + $0xc0] sm:$0xf]
        %v1488 = vld [vmem:[#allocation4 + $0xc4] sm:$0xf]
        %v1489 = vld [vmem:[#allocation4 + $0xc8] sm:$0xf]
        %v1490 = vld [vmem:[#allocation4 + $0xcc] sm:$0xf]
        %v1491 = vld [vmem:[#allocation4 + $0xd0] sm:$0xf]
        %v1492 = vld [vmem:[#allocation4 + $0xd4] sm:$0xf]
        %v1493 = vld [vmem:[#allocation4 + $0xd8] sm:$0xf]
        %v1494 = vld [vmem:[#allocation4 + $0xdc] sm:$0xf]
        %v1495 = vld [vmem:[#allocation4 + $0xe0] sm:$0xf]
        %v1496 = vld [vmem:[#allocation4 + $0xe4] sm:$0xf]
        %v1497 = vld [vmem:[#allocation4 + $0xe8] sm:$0xf]
        %v1498 = vld [vmem:[#allocation4 + $0xec] sm:$0xf]
        %v1499 = vunpack.c.l.bf16 %v1483
        %v1500 = vunpack.c.l.bf16 %v1484
        %v1501 = vunpack.c.l.bf16 %v1485
        %v1502 = vunpack.c.l.bf16 %v1486
        %v1503 = vunpack.c.l.bf16 %v1487
        %v1504 = vunpack.c.l.bf16 %v1488
        %v1505 = vunpack.c.l.bf16 %v1489
        %v1506 = vunpack.c.l.bf16 %v1490
        %v1507 = vunpack.c.l.bf16 %v1491
        %v1508 = vunpack.c.l.bf16 %v1492
        %v1509 = vunpack.c.l.bf16 %v1493
        %v1510 = vunpack.c.l.bf16 %v1494
        %v1511 = vunpack.c.l.bf16 %v1495
        %v1512 = vunpack.c.l.bf16 %v1496
        %v1513 = vunpack.c.l.bf16 %v1497
        %v1514 = vunpack.c.l.bf16 %v1498
        %1515 = vmatpush.msra.mxu0 %v1514
        %1516 = vmatpush.msra.mxu0 %v1513
        %1517 = vmatpush.msra.mxu0 %v1512
        %1518 = vmatpush.msra.mxu0 %v1511
        %1519 = vmatpush.msra.mxu0 %v1510
        %1520 = vmatpush.msra.mxu0 %v1509
        %1521 = vmatpush.msra.mxu0 %v1508
        %1522 = vmatpush.msra.mxu0 %v1507
        %1523 = vmatpush.msra.mxu0 %v1506
        %1524 = vmatpush.msra.mxu0 %v1505
        %1525 = vmatpush.msra.mxu0 %v1504
        %1526 = vmatpush.msra.mxu0 %v1503
        %1527 = vmatpush.msra.mxu0 %v1502
        %1528 = vmatpush.msra.mxu0 %v1501
        %1529 = vmatpush.msra.mxu0 %v1500
        %1530 = vmatpush.msra.mxu0 %v1499
        %1531 = vmatmul.f32.gmra.mxu0 %v655
        %v1532 = vpop.f32.mrf.mxu0
        %v1533 = vadd.f32 0.0, %v1532
        %1534 = vmatmul.f32.gmra.mxu0 %v658
        %v1535 = vpop.f32.mrf.mxu0
        %v1536 = vadd.f32 0.0, %v1535
        %1537 = vmatmul.f32.gmra.mxu0 %v661
        %v1538 = vpop.f32.mrf.mxu0
        %v1539 = vadd.f32 0.0, %v1538
        %1540 = vmatmul.f32.gmra.mxu0 %v664
        %v1541 = vpop.f32.mrf.mxu0
        %v1542 = vadd.f32 0.0, %v1541
        %1543 = vmatmul.f32.gmra.mxu0 %v667
        %v1544 = vpop.f32.mrf.mxu0
        %v1545 = vadd.f32 0.0, %v1544
        %1546 = vmatmul.f32.gmra.mxu0 %v670
        %v1547 = vpop.f32.mrf.mxu0
        %v1548 = vadd.f32 0.0, %v1547
        %1549 = vmatmul.f32.gmra.mxu0 %v673
        %v1550 = vpop.f32.mrf.mxu0
        %v1551 = vadd.f32 0.0, %v1550
        %1552 = vmatmul.f32.gmra.mxu0 %v676
        %v1553 = vpop.f32.mrf.mxu0
        %v1554 = vadd.f32 0.0, %v1553
        %1555 = vmatmul.f32.gmra.mxu0 %v679
        %v1556 = vpop.f32.mrf.mxu0
        %v1557 = vadd.f32 0.0, %v1556
        %1558 = vmatmul.f32.gmra.mxu0 %v682
        %v1559 = vpop.f32.mrf.mxu0
        %v1560 = vadd.f32 0.0, %v1559
        %1561 = vmatmul.f32.gmra.mxu0 %v685
        %v1562 = vpop.f32.mrf.mxu0
        %v1563 = vadd.f32 0.0, %v1562
        %1564 = vmatmul.f32.gmra.mxu0 %v688
        %v1565 = vpop.f32.mrf.mxu0
        %v1566 = vadd.f32 0.0, %v1565
        %1567 = vmatmul.f32.gmra.mxu0 %v691
        %v1568 = vpop.f32.mrf.mxu0
        %v1569 = vadd.f32 0.0, %v1568
        %1570 = vmatmul.f32.gmra.mxu0 %v694
        %v1571 = vpop.f32.mrf.mxu0
        %v1572 = vadd.f32 0.0, %v1571
        %1573 = vmatmul.f32.gmra.mxu0 %v697
        %v1574 = vpop.f32.mrf.mxu0
        %v1575 = vadd.f32 0.0, %v1574
        %1576 = vmatmul.f32.gmra.mxu0 %v700
        %v1577 = vpop.f32.mrf.mxu0
        %v1578 = vadd.f32 0.0, %v1577
        %1579 = vdwg.mxu0
        %v1580 = vpack.c.bf16 %v1536, %v1533
        %v1581 = vpack.c.bf16 %v1542, %v1539
        %v1582 = vpack.c.bf16 %v1548, %v1545
        %v1583 = vpack.c.bf16 %v1554, %v1551
        %v1584 = vpack.c.bf16 %v1560, %v1557
        %v1585 = vpack.c.bf16 %v1566, %v1563
        %v1586 = vpack.c.bf16 %v1572, %v1569
        %v1587 = vpack.c.bf16 %v1578, %v1575
        %v1588 = vpack.c.bf16 %v1391, %v1388
        %v1589 = vpack.c.bf16 %v1397, %v1394
        %v1590 = vpack.c.bf16 %v1403, %v1400
        %v1591 = vpack.c.bf16 %v1409, %v1406
        %v1592 = vpack.c.bf16 %v1415, %v1412
        %v1593 = vpack.c.bf16 %v1421, %v1418
        %v1594 = vpack.c.bf16 %v1427, %v1424
        %v1595 = vpack.c.bf16 %v1433, %v1430
        %v1596 = vpack.c.bf16 %v1439, %v1436
        %v1597 = vpack.c.bf16 %v1445, %v1442
        %v1598 = vpack.c.bf16 %v1451, %v1448
        %v1599 = vpack.c.bf16 %v1457, %v1454
        %v1600 = vpack.c.bf16 %v1463, %v1460
        %v1601 = vpack.c.bf16 %v1469, %v1466
        %v1602 = vpack.c.bf16 %v1475, %v1472
        %v1603 = vpack.c.bf16 %v1481, %v1478
        %1604 = vmatpush.bf16.xpose.msra.mxu0 %v1587
        %1605 = vmatpush.bf16.xpose.msra.mxu0 %v1586
        %1606 = vmatpush.bf16.xpose.msra.mxu0 %v1585
        %1607 = vmatpush.bf16.xpose.msra.mxu0 %v1584
        %1608 = vmatpush.bf16.xpose.msra.mxu0 %v1583
        %1609 = vmatpush.bf16.xpose.msra.mxu0 %v1582
        %1610 = vmatpush.bf16.xpose.msra.mxu0 %v1581
        %1611 = vmatpush.bf16.xpose.msra.mxu0 %v1580
        %1612 = vmatmul.bf16.gmra.mxu0 %v1588
        %v1613 = vpop.f32.mrf.mxu0
        %v1614 = vadd.f32 0.0, %v1613
        %v1615 = vpop.f32.mrf.mxu0
        %v1616 = vadd.f32 0.0, %v1615
        %1617 = vmatmul.bf16.gmra.mxu0 %v1589
        %v1618 = vpop.f32.mrf.mxu0
        %v1619 = vadd.f32 0.0, %v1618
        %v1620 = vpop.f32.mrf.mxu0
        %v1621 = vadd.f32 0.0, %v1620
        %1622 = vmatmul.bf16.gmra.mxu0 %v1590
        %v1623 = vpop.f32.mrf.mxu0
        %v1624 = vadd.f32 0.0, %v1623
        %v1625 = vpop.f32.mrf.mxu0
        %v1626 = vadd.f32 0.0, %v1625
        %1627 = vmatmul.bf16.gmra.mxu0 %v1591
        %v1628 = vpop.f32.mrf.mxu0
        %v1629 = vadd.f32 0.0, %v1628
        %v1630 = vpop.f32.mrf.mxu0
        %v1631 = vadd.f32 0.0, %v1630
        %1632 = vmatmul.bf16.gmra.mxu0 %v1592
        %v1633 = vpop.f32.mrf.mxu0
        %v1634 = vadd.f32 0.0, %v1633
        %v1635 = vpop.f32.mrf.mxu0
        %v1636 = vadd.f32 0.0, %v1635
        %1637 = vmatmul.bf16.gmra.mxu0 %v1593
        %v1638 = vpop.f32.mrf.mxu0
        %v1639 = vadd.f32 0.0, %v1638
        %v1640 = vpop.f32.mrf.mxu0
        %v1641 = vadd.f32 0.0, %v1640
        %1642 = vmatmul.bf16.gmra.mxu0 %v1594
        %v1643 = vpop.f32.mrf.mxu0
        %v1644 = vadd.f32 0.0, %v1643
        %v1645 = vpop.f32.mrf.mxu0
        %v1646 = vadd.f32 0.0, %v1645
        %1647 = vmatmul.bf16.gmra.mxu0 %v1595
        %v1648 = vpop.f32.mrf.mxu0
        %v1649 = vadd.f32 0.0, %v1648
        %v1650 = vpop.f32.mrf.mxu0
        %v1651 = vadd.f32 0.0, %v1650
        %1652 = vmatmul.bf16.gmra.mxu0 %v1596
        %v1653 = vpop.f32.mrf.mxu0
        %v1654 = vadd.f32 0.0, %v1653
        %v1655 = vpop.f32.mrf.mxu0
        %v1656 = vadd.f32 0.0, %v1655
        %1657 = vmatmul.bf16.gmra.mxu0 %v1597
        %v1658 = vpop.f32.mrf.mxu0
        %v1659 = vadd.f32 0.0, %v1658
        %v1660 = vpop.f32.mrf.mxu0
        %v1661 = vadd.f32 0.0, %v1660
        %1662 = vmatmul.bf16.gmra.mxu0 %v1598
        %v1663 = vpop.f32.mrf.mxu0
        %v1664 = vadd.f32 0.0, %v1663
        %v1665 = vpop.f32.mrf.mxu0
        %v1666 = vadd.f32 0.0, %v1665
        %1667 = vmatmul.bf16.gmra.mxu0 %v1599
        %v1668 = vpop.f32.mrf.mxu0
        %v1669 = vadd.f32 0.0, %v1668
        %v1670 = vpop.f32.mrf.mxu0
        %v1671 = vadd.f32 0.0, %v1670
        %1672 = vmatmul.bf16.gmra.mxu0 %v1600
        %v1673 = vpop.f32.mrf.mxu0
        %v1674 = vadd.f32 0.0, %v1673
        %v1675 = vpop.f32.mrf.mxu0
        %v1676 = vadd.f32 0.0, %v1675
        %1677 = vmatmul.bf16.gmra.mxu0 %v1601
        %v1678 = vpop.f32.mrf.mxu0
        %v1679 = vadd.f32 0.0, %v1678
        %v1680 = vpop.f32.mrf.mxu0
        %v1681 = vadd.f32 0.0, %v1680
        %1682 = vmatmul.bf16.gmra.mxu0 %v1602
        %v1683 = vpop.f32.mrf.mxu0
        %v1684 = vadd.f32 0.0, %v1683
        %v1685 = vpop.f32.mrf.mxu0
        %v1686 = vadd.f32 0.0, %v1685
        %1687 = vmatmul.bf16.gmra.mxu0 %v1603
        %v1688 = vpop.f32.mrf.mxu0
        %v1689 = vadd.f32 0.0, %v1688
        %v1690 = vpop.f32.mrf.mxu0
        %v1691 = vadd.f32 0.0, %v1690
        %1692 = vdwg.mxu0
        %1693 = vmax.xlane.f32.xlu0 %v1614
        %v1694 = vpop.xlane.xlu0 %1693
        %1695 = vmax.xlane.f32.xlu0 %v1616
        %v1696 = vpop.xlane.xlu0 %1695
        %1697 = vmax.xlane.f32.xlu0 %v1619
        %v1698 = vpop.xlane.xlu0 %1697
        %1699 = vmax.xlane.f32.xlu0 %v1621
        %v1700 = vpop.xlane.xlu0 %1699
        %1701 = vmax.xlane.f32.xlu0 %v1624
        %v1702 = vpop.xlane.xlu0 %1701
        %1703 = vmax.xlane.f32.xlu0 %v1626
        %v1704 = vpop.xlane.xlu0 %1703
        %1705 = vmax.xlane.f32.xlu0 %v1629
        %v1706 = vpop.xlane.xlu0 %1705
        %1707 = vmax.xlane.f32.xlu0 %v1631
        %v1708 = vpop.xlane.xlu0 %1707
        %1709 = vmax.xlane.f32.xlu0 %v1634
        %v1710 = vpop.xlane.xlu0 %1709
        %1711 = vmax.xlane.f32.xlu0 %v1636
        %v1712 = vpop.xlane.xlu0 %1711
        %1713 = vmax.xlane.f32.xlu0 %v1639
        %v1714 = vpop.xlane.xlu0 %1713
        %1715 = vmax.xlane.f32.xlu0 %v1641
        %v1716 = vpop.xlane.xlu0 %1715
        %1717 = vmax.xlane.f32.xlu0 %v1644
        %v1718 = vpop.xlane.xlu0 %1717
        %1719 = vmax.xlane.f32.xlu0 %v1646
        %v1720 = vpop.xlane.xlu0 %1719
        %1721 = vmax.xlane.f32.xlu0 %v1649
        %v1722 = vpop.xlane.xlu0 %1721
        %1723 = vmax.xlane.f32.xlu0 %v1651
        %v1724 = vpop.xlane.xlu0 %1723
        %1725 = vmax.xlane.f32.xlu0 %v1654
        %v1726 = vpop.xlane.xlu0 %1725
        %1727 = vmax.xlane.f32.xlu0 %v1656
        %v1728 = vpop.xlane.xlu0 %1727
        %1729 = vmax.xlane.f32.xlu0 %v1659
        %v1730 = vpop.xlane.xlu0 %1729
        %1731 = vmax.xlane.f32.xlu0 %v1661
        %v1732 = vpop.xlane.xlu0 %1731
        %1733 = vmax.xlane.f32.xlu0 %v1664
        %v1734 = vpop.xlane.xlu0 %1733
        %1735 = vmax.xlane.f32.xlu0 %v1666
        %v1736 = vpop.xlane.xlu0 %1735
        %1737 = vmax.xlane.f32.xlu0 %v1669
        %v1738 = vpop.xlane.xlu0 %1737
        %1739 = vmax.xlane.f32.xlu0 %v1671
        %v1740 = vpop.xlane.xlu0 %1739
        %1741 = vmax.xlane.f32.xlu0 %v1674
        %v1742 = vpop.xlane.xlu0 %1741
        %1743 = vmax.xlane.f32.xlu0 %v1676
        %v1744 = vpop.xlane.xlu0 %1743
        %1745 = vmax.xlane.f32.xlu0 %v1679
        %v1746 = vpop.xlane.xlu0 %1745
        %1747 = vmax.xlane.f32.xlu0 %v1681
        %v1748 = vpop.xlane.xlu0 %1747
        %1749 = vmax.xlane.f32.xlu0 %v1684
        %v1750 = vpop.xlane.xlu0 %1749
        %1751 = vmax.xlane.f32.xlu0 %v1686
        %v1752 = vpop.xlane.xlu0 %1751
        %1753 = vmax.xlane.f32.xlu0 %v1689
        %v1754 = vpop.xlane.xlu0 %1753
        %1755 = vmax.xlane.f32.xlu0 %v1691
        %v1756 = vpop.xlane.xlu0 %1755
        %v1757 = vsub.f32 %v1614, %v1694
        %v1758 = vsub.f32 %v1616, %v1696
        %v1759 = vsub.f32 %v1619, %v1698
        %v1760 = vsub.f32 %v1621, %v1700
        %v1761 = vsub.f32 %v1624, %v1702
        %v1762 = vsub.f32 %v1626, %v1704
        %v1763 = vsub.f32 %v1629, %v1706
        %v1764 = vsub.f32 %v1631, %v1708
        %v1765 = vsub.f32 %v1634, %v1710
        %v1766 = vsub.f32 %v1636, %v1712
        %v1767 = vsub.f32 %v1639, %v1714
        %v1768 = vsub.f32 %v1641, %v1716
        %v1769 = vsub.f32 %v1644, %v1718
        %v1770 = vsub.f32 %v1646, %v1720
        %v1771 = vsub.f32 %v1649, %v1722
        %v1772 = vsub.f32 %v1651, %v1724
        %v1773 = vsub.f32 %v1654, %v1726
        %v1774 = vsub.f32 %v1656, %v1728
        %v1775 = vsub.f32 %v1659, %v1730
        %v1776 = vsub.f32 %v1661, %v1732
        %v1777 = vsub.f32 %v1664, %v1734
        %v1778 = vsub.f32 %v1666, %v1736
        %v1779 = vsub.f32 %v1669, %v1738
        %v1780 = vsub.f32 %v1671, %v1740
        %v1781 = vsub.f32 %v1674, %v1742
        %v1782 = vsub.f32 %v1676, %v1744
        %v1783 = vsub.f32 %v1679, %v1746
        %v1784 = vsub.f32 %v1681, %v1748
        %v1785 = vsub.f32 %v1684, %v1750
        %v1786 = vsub.f32 %v1686, %v1752
        %v1787 = vsub.f32 %v1689, %v1754
        %v1788 = vsub.f32 %v1691, %v1756
        %v1789 = vmul.f32 %v1757, 1.442695
        %v1790 = vpow.pop %v1789
        %v1791 = vmul.f32 %v1758, 1.442695
        %v1792 = vpow.pop %v1791
        %v1793 = vmul.f32 %v1759, 1.442695
        %v1794 = vpow.pop %v1793
        %v1795 = vmul.f32 %v1760, 1.442695
        %v1796 = vpow.pop %v1795
        %v1797 = vmul.f32 %v1761, 1.442695
        %v1798 = vpow.pop %v1797
        %v1799 = vmul.f32 %v1762, 1.442695
        %v1800 = vpow.pop %v1799
        %v1801 = vmul.f32 %v1763, 1.442695
        %v1802 = vpow.pop %v1801
        %v1803 = vmul.f32 %v1764, 1.442695
        %v1804 = vpow.pop %v1803
        %v1805 = vmul.f32 %v1765, 1.442695
        %v1806 = vpow.pop %v1805
        %v1807 = vmul.f32 %v1766, 1.442695
        %v1808 = vpow.pop %v1807
        %v1809 = vmul.f32 %v1767, 1.442695
        %v1810 = vpow.pop %v1809
        %v1811 = vmul.f32 %v1768, 1.442695
        %v1812 = vpow.pop %v1811
        %v1813 = vmul.f32 %v1769, 1.442695
        %v1814 = vpow.pop %v1813
        %v1815 = vmul.f32 %v1770, 1.442695
        %v1816 = vpow.pop %v1815
        %v1817 = vmul.f32 %v1771, 1.442695
        %v1818 = vpow.pop %v1817
        %v1819 = vmul.f32 %v1772, 1.442695
        %v1820 = vpow.pop %v1819
        %v1821 = vmul.f32 %v1773, 1.442695
        %v1822 = vpow.pop %v1821
        %v1823 = vmul.f32 %v1774, 1.442695
        %v1824 = vpow.pop %v1823
        %v1825 = vmul.f32 %v1775, 1.442695
        %v1826 = vpow.pop %v1825
        %v1827 = vmul.f32 %v1776, 1.442695
        %v1828 = vpow.pop %v1827
        %v1829 = vmul.f32 %v1777, 1.442695
        %v1830 = vpow.pop %v1829
        %v1831 = vmul.f32 %v1778, 1.442695
        %v1832 = vpow.pop %v1831
        %v1833 = vmul.f32 %v1779, 1.442695
        %v1834 = vpow.pop %v1833
        %v1835 = vmul.f32 %v1780, 1.442695
        %v1836 = vpow.pop %v1835
        %v1837 = vmul.f32 %v1781, 1.442695
        %v1838 = vpow.pop %v1837
        %v1839 = vmul.f32 %v1782, 1.442695
        %v1840 = vpow.pop %v1839
        %v1841 = vmul.f32 %v1783, 1.442695
        %v1842 = vpow.pop %v1841
        %v1843 = vmul.f32 %v1784, 1.442695
        %v1844 = vpow.pop %v1843
        %v1845 = vmul.f32 %v1785, 1.442695
        %v1846 = vpow.pop %v1845
        %v1847 = vmul.f32 %v1786, 1.442695
        %v1848 = vpow.pop %v1847
        %v1849 = vmul.f32 %v1787, 1.442695
        %v1850 = vpow.pop %v1849
        %v1851 = vmul.f32 %v1788, 1.442695
        %v1852 = vpow.pop %v1851
        %1853 = vadd.xlane.f32.xlu0 %v1790
        %v1854 = vpop.xlane.xlu0 %1853
        %1855 = vadd.xlane.f32.xlu0 %v1792
        %v1856 = vpop.xlane.xlu0 %1855
        %1857 = vadd.xlane.f32.xlu0 %v1794
        %v1858 = vpop.xlane.xlu0 %1857
        %1859 = vadd.xlane.f32.xlu0 %v1796
        %v1860 = vpop.xlane.xlu0 %1859
        %1861 = vadd.xlane.f32.xlu0 %v1798
        %v1862 = vpop.xlane.xlu0 %1861
        %1863 = vadd.xlane.f32.xlu0 %v1800
        %v1864 = vpop.xlane.xlu0 %1863
        %1865 = vadd.xlane.f32.xlu0 %v1802
        %v1866 = vpop.xlane.xlu0 %1865
        %1867 = vadd.xlane.f32.xlu0 %v1804
        %v1868 = vpop.xlane.xlu0 %1867
        %1869 = vadd.xlane.f32.xlu0 %v1806
        %v1870 = vpop.xlane.xlu0 %1869
        %1871 = vadd.xlane.f32.xlu0 %v1808
        %v1872 = vpop.xlane.xlu0 %1871
        %1873 = vadd.xlane.f32.xlu0 %v1810
        %v1874 = vpop.xlane.xlu0 %1873
        %1875 = vadd.xlane.f32.xlu0 %v1812
        %v1876 = vpop.xlane.xlu0 %1875
        %1877 = vadd.xlane.f32.xlu0 %v1814
        %v1878 = vpop.xlane.xlu0 %1877
        %1879 = vadd.xlane.f32.xlu0 %v1816
        %v1880 = vpop.xlane.xlu0 %1879
        %1881 = vadd.xlane.f32.xlu0 %v1818
        %v1882 = vpop.xlane.xlu0 %1881
        %1883 = vadd.xlane.f32.xlu0 %v1820
        %v1884 = vpop.xlane.xlu0 %1883
        %1885 = vadd.xlane.f32.xlu0 %v1822
        %v1886 = vpop.xlane.xlu0 %1885
        %1887 = vadd.xlane.f32.xlu0 %v1824
        %v1888 = vpop.xlane.xlu0 %1887
        %1889 = vadd.xlane.f32.xlu0 %v1826
        %v1890 = vpop.xlane.xlu0 %1889
        %1891 = vadd.xlane.f32.xlu0 %v1828
        %v1892 = vpop.xlane.xlu0 %1891
        %1893 = vadd.xlane.f32.xlu0 %v1830
        %v1894 = vpop.xlane.xlu0 %1893
        %1895 = vadd.xlane.f32.xlu0 %v1832
        %v1896 = vpop.xlane.xlu0 %1895
        %1897 = vadd.xlane.f32.xlu0 %v1834
        %v1898 = vpop.xlane.xlu0 %1897
        %1899 = vadd.xlane.f32.xlu0 %v1836
        %v1900 = vpop.xlane.xlu0 %1899
        %1901 = vadd.xlane.f32.xlu0 %v1838
        %v1902 = vpop.xlane.xlu0 %1901
        %1903 = vadd.xlane.f32.xlu0 %v1840
        %v1904 = vpop.xlane.xlu0 %1903
        %1905 = vadd.xlane.f32.xlu0 %v1842
        %v1906 = vpop.xlane.xlu0 %1905
        %1907 = vadd.xlane.f32.xlu0 %v1844
        %v1908 = vpop.xlane.xlu0 %1907
        %1909 = vadd.xlane.f32.xlu0 %v1846
        %v1910 = vpop.xlane.xlu0 %1909
        %1911 = vadd.xlane.f32.xlu0 %v1848
        %v1912 = vpop.xlane.xlu0 %1911
        %1913 = vadd.xlane.f32.xlu0 %v1850
        %v1914 = vpop.xlane.xlu0 %1913
        %1915 = vadd.xlane.f32.xlu0 %v1852
        %v1916 = vpop.xlane.xlu0 %1915
        %v1917 = vrcp.pop %v1854
        %v1918 = vrcp.pop %v1856
        %v1919 = vrcp.pop %v1858
        %v1920 = vrcp.pop %v1860
        %v1921 = vrcp.pop %v1862
        %v1922 = vrcp.pop %v1864
        %v1923 = vrcp.pop %v1866
        %v1924 = vrcp.pop %v1868
        %v1925 = vrcp.pop %v1870
        %v1926 = vrcp.pop %v1872
        %v1927 = vrcp.pop %v1874
        %v1928 = vrcp.pop %v1876
        %v1929 = vrcp.pop %v1878
        %v1930 = vrcp.pop %v1880
        %v1931 = vrcp.pop %v1882
        %v1932 = vrcp.pop %v1884
        %v1933 = vrcp.pop %v1886
        %v1934 = vrcp.pop %v1888
        %v1935 = vrcp.pop %v1890
        %v1936 = vrcp.pop %v1892
        %v1937 = vrcp.pop %v1894
        %v1938 = vrcp.pop %v1896
        %v1939 = vrcp.pop %v1898
        %v1940 = vrcp.pop %v1900
        %v1941 = vrcp.pop %v1902
        %v1942 = vrcp.pop %v1904
        %v1943 = vrcp.pop %v1906
        %v1944 = vrcp.pop %v1908
        %v1945 = vrcp.pop %v1910
        %v1946 = vrcp.pop %v1912
        %v1947 = vrcp.pop %v1914
        %v1948 = vrcp.pop %v1916
        %v1949 = vmul.f32 %v1790, %v1917
        %v1950 = vmul.f32 %v1792, %v1918
        %v1951 = vmul.f32 %v1794, %v1919
        %v1952 = vmul.f32 %v1796, %v1920
        %v1953 = vmul.f32 %v1798, %v1921
        %v1954 = vmul.f32 %v1800, %v1922
        %v1955 = vmul.f32 %v1802, %v1923
        %v1956 = vmul.f32 %v1804, %v1924
        %v1957 = vmul.f32 %v1806, %v1925
        %v1958 = vmul.f32 %v1808, %v1926
        %v1959 = vmul.f32 %v1810, %v1927
        %v1960 = vmul.f32 %v1812, %v1928
        %v1961 = vmul.f32 %v1814, %v1929
        %v1962 = vmul.f32 %v1816, %v1930
        %v1963 = vmul.f32 %v1818, %v1931
        %v1964 = vmul.f32 %v1820, %v1932
        %v1965 = vmul.f32 %v1822, %v1933
        %v1966 = vmul.f32 %v1824, %v1934
        %v1967 = vmul.f32 %v1826, %v1935
        %v1968 = vmul.f32 %v1828, %v1936
        %v1969 = vmul.f32 %v1830, %v1937
        %v1970 = vmul.f32 %v1832, %v1938
        %v1971 = vmul.f32 %v1834, %v1939
        %v1972 = vmul.f32 %v1836, %v1940
        %v1973 = vmul.f32 %v1838, %v1941
        %v1974 = vmul.f32 %v1840, %v1942
        %v1975 = vmul.f32 %v1842, %v1943
        %v1976 = vmul.f32 %v1844, %v1944
        %v1977 = vmul.f32 %v1846, %v1945
        %v1978 = vmul.f32 %v1848, %v1946
        %v1979 = vmul.f32 %v1850, %v1947
        %v1980 = vmul.f32 %v1852, %v1948
        %v1981 = vpack.c.bf16 %v1950, %v1949
        %v1982 = vpack.c.bf16 %v1952, %v1951
        %v1983 = vpack.c.bf16 %v1954, %v1953
        %v1984 = vpack.c.bf16 %v1956, %v1955
        %v1985 = vpack.c.bf16 %v1958, %v1957
        %v1986 = vpack.c.bf16 %v1960, %v1959
        %v1987 = vpack.c.bf16 %v1962, %v1961
        %v1988 = vpack.c.bf16 %v1964, %v1963
        %v1989 = vpack.c.bf16 %v1966, %v1965
        %v1990 = vpack.c.bf16 %v1968, %v1967
        %v1991 = vpack.c.bf16 %v1970, %v1969
        %v1992 = vpack.c.bf16 %v1972, %v1971
        %v1993 = vpack.c.bf16 %v1974, %v1973
        %v1994 = vpack.c.bf16 %v1976, %v1975
        %v1995 = vpack.c.bf16 %v1978, %v1977
        %v1996 = vpack.c.bf16 %v1980, %v1979
        %1997 = vmatpush.bf16.msra.mxu0 %v1587
        %1998 = vmatpush.bf16.msra.mxu0 %v1586
        %1999 = vmatpush.bf16.msra.mxu0 %v1585
        %2000 = vmatpush.bf16.msra.mxu0 %v1584
        %2001 = vmatpush.bf16.msra.mxu0 %v1583
        %2002 = vmatpush.bf16.msra.mxu0 %v1582
        %2003 = vmatpush.bf16.msra.mxu0 %v1581
        %2004 = vmatpush.bf16.msra.mxu0 %v1580
        %2005 = vmatmul.bf16.gmra.mxu0 %v1981
        %v2006 = vpop.f32.mrf.mxu0
        %v2007 = vadd.f32 0.0, %v2006
        %v2008 = vpop.f32.mrf.mxu0
        %v2009 = vadd.f32 0.0, %v2008
        %2010 = vmatmul.bf16.gmra.mxu0 %v1982
        %v2011 = vpop.f32.mrf.mxu0
        %v2012 = vadd.f32 0.0, %v2011
        %v2013 = vpop.f32.mrf.mxu0
        %v2014 = vadd.f32 0.0, %v2013
        %2015 = vmatmul.bf16.gmra.mxu0 %v1983
        %v2016 = vpop.f32.mrf.mxu0
        %v2017 = vadd.f32 0.0, %v2016
        %v2018 = vpop.f32.mrf.mxu0
        %v2019 = vadd.f32 0.0, %v2018
        %2020 = vmatmul.bf16.gmra.mxu0 %v1984
        %v2021 = vpop.f32.mrf.mxu0
        %v2022 = vadd.f32 0.0, %v2021
        %v2023 = vpop.f32.mrf.mxu0
        %v2024 = vadd.f32 0.0, %v2023
        %2025 = vmatmul.bf16.gmra.mxu0 %v1985
        %v2026 = vpop.f32.mrf.mxu0
        %v2027 = vadd.f32 0.0, %v2026
        %v2028 = vpop.f32.mrf.mxu0
        %v2029 = vadd.f32 0.0, %v2028
        %2030 = vmatmul.bf16.gmra.mxu0 %v1986
        %v2031 = vpop.f32.mrf.mxu0
        %v2032 = vadd.f32 0.0, %v2031
        %v2033 = vpop.f32.mrf.mxu0
        %v2034 = vadd.f32 0.0, %v2033
        %2035 = vmatmul.bf16.gmra.mxu0 %v1987
        %v2036 = vpop.f32.mrf.mxu0
        %v2037 = vadd.f32 0.0, %v2036
        %v2038 = vpop.f32.mrf.mxu0
        %v2039 = vadd.f32 0.0, %v2038
        %2040 = vmatmul.bf16.gmra.mxu0 %v1988
        %v2041 = vpop.f32.mrf.mxu0
        %v2042 = vadd.f32 0.0, %v2041
        %v2043 = vpop.f32.mrf.mxu0
        %v2044 = vadd.f32 0.0, %v2043
        %2045 = vmatmul.bf16.gmra.mxu0 %v1989
        %v2046 = vpop.f32.mrf.mxu0
        %v2047 = vadd.f32 0.0, %v2046
        %v2048 = vpop.f32.mrf.mxu0
        %v2049 = vadd.f32 0.0, %v2048
        %2050 = vmatmul.bf16.gmra.mxu0 %v1990
        %v2051 = vpop.f32.mrf.mxu0
        %v2052 = vadd.f32 0.0, %v2051
        %v2053 = vpop.f32.mrf.mxu0
        %v2054 = vadd.f32 0.0, %v2053
        %2055 = vmatmul.bf16.gmra.mxu0 %v1991
        %v2056 = vpop.f32.mrf.mxu0
        %v2057 = vadd.f32 0.0, %v2056
        %v2058 = vpop.f32.mrf.mxu0
        %v2059 = vadd.f32 0.0, %v2058
        %2060 = vmatmul.bf16.gmra.mxu0 %v1992
        %v2061 = vpop.f32.mrf.mxu0
        %v2062 = vadd.f32 0.0, %v2061
        %v2063 = vpop.f32.mrf.mxu0
        %v2064 = vadd.f32 0.0, %v2063
        %2065 = vmatmul.bf16.gmra.mxu0 %v1993
        %v2066 = vpop.f32.mrf.mxu0
        %v2067 = vadd.f32 0.0, %v2066
        %v2068 = vpop.f32.mrf.mxu0
        %v2069 = vadd.f32 0.0, %v2068
        %2070 = vmatmul.bf16.gmra.mxu0 %v1994
        %v2071 = vpop.f32.mrf.mxu0
        %v2072 = vadd.f32 0.0, %v2071
        %v2073 = vpop.f32.mrf.mxu0
        %v2074 = vadd.f32 0.0, %v2073
        %2075 = vmatmul.bf16.gmra.mxu0 %v1995
        %v2076 = vpop.f32.mrf.mxu0
        %v2077 = vadd.f32 0.0, %v2076
        %v2078 = vpop.f32.mrf.mxu0
        %v2079 = vadd.f32 0.0, %v2078
        %2080 = vmatmul.bf16.gmra.mxu0 %v1996
        %v2081 = vpop.f32.mrf.mxu0
        %v2082 = vadd.f32 0.0, %v2081
        %v2083 = vpop.f32.mrf.mxu0
        %v2084 = vadd.f32 0.0, %v2083
        %2085 = vdwg.mxu0
        %v2086 = vld [vmem:[#allocation4 + $0xf0] sm:$0xf]
        %v2087 = vld [vmem:[#allocation4 + $0xf4] sm:$0xf]
        %v2088 = vld [vmem:[#allocation4 + $0xf8] sm:$0xf]
        %v2089 = vld [vmem:[#allocation4 + $0xfc] sm:$0xf]
        %v2090 = vld [vmem:[#allocation4 + $0x100] sm:$0xf]
        %v2091 = vld [vmem:[#allocation4 + $0x104] sm:$0xf]
        %v2092 = vld [vmem:[#allocation4 + $0x108] sm:$0xf]
        %v2093 = vld [vmem:[#allocation4 + $0x10c] sm:$0xf]
        %v2094 = vunpack.c.l.bf16 %v2086
        %v2095 = vunpack.c.l.bf16 %v2087
        %v2096 = vunpack.c.l.bf16 %v2088
        %v2097 = vunpack.c.l.bf16 %v2089
        %v2098 = vunpack.c.l.bf16 %v2090
        %v2099 = vunpack.c.l.bf16 %v2091
        %v2100 = vunpack.c.l.bf16 %v2092
        %v2101 = vunpack.c.l.bf16 %v2093
        %v2102 = vld [vmem:[#allocation4 + $0x110] sm:$0xf]
        %v2103 = vld [vmem:[#allocation4 + $0x114] sm:$0xf]
        %v2104 = vld [vmem:[#allocation4 + $0x118] sm:$0xf]
        %v2105 = vld [vmem:[#allocation4 + $0x11c] sm:$0xf]
        %v2106 = vld [vmem:[#allocation4 + $0x120] sm:$0xf]
        %v2107 = vld [vmem:[#allocation4 + $0x124] sm:$0xf]
        %v2108 = vld [vmem:[#allocation4 + $0x128] sm:$0xf]
        %v2109 = vld [vmem:[#allocation4 + $0x12c] sm:$0xf]
        %v2110 = vld [vmem:[#allocation4 + $0x130] sm:$0xf]
        %v2111 = vld [vmem:[#allocation4 + $0x134] sm:$0xf]
        %v2112 = vld [vmem:[#allocation4 + $0x138] sm:$0xf]
        %v2113 = vld [vmem:[#allocation4 + $0x13c] sm:$0xf]
        %v2114 = vld [vmem:[#allocation4 + $0x140] sm:$0xf]
        %v2115 = vld [vmem:[#allocation4 + $0x144] sm:$0xf]
        %v2116 = vld [vmem:[#allocation4 + $0x148] sm:$0xf]
        %v2117 = vld [vmem:[#allocation4 + $0x14c] sm:$0xf]
        %v2118 = vunpack.c.l.bf16 %v2102
        %v2119 = vunpack.c.l.bf16 %v2103
        %v2120 = vunpack.c.l.bf16 %v2104
        %v2121 = vunpack.c.l.bf16 %v2105
        %v2122 = vunpack.c.l.bf16 %v2106
        %v2123 = vunpack.c.l.bf16 %v2107
        %v2124 = vunpack.c.l.bf16 %v2108
        %v2125 = vunpack.c.l.bf16 %v2109
        %v2126 = vunpack.c.l.bf16 %v2110
        %v2127 = vunpack.c.l.bf16 %v2111
        %v2128 = vunpack.c.l.bf16 %v2112
        %v2129 = vunpack.c.l.bf16 %v2113
        %v2130 = vunpack.c.l.bf16 %v2114
        %v2131 = vunpack.c.l.bf16 %v2115
        %v2132 = vunpack.c.l.bf16 %v2116
        %v2133 = vunpack.c.l.bf16 %v2117
        %2134 = vmatpush.msra.mxu0 %v2133
        %2135 = vmatpush.msra.mxu0 %v2132
        %2136 = vmatpush.msra.mxu0 %v2131
        %2137 = vmatpush.msra.mxu0 %v2130
        %2138 = vmatpush.msra.mxu0 %v2129
        %2139 = vmatpush.msra.mxu0 %v2128
        %2140 = vmatpush.msra.mxu0 %v2127
        %2141 = vmatpush.msra.mxu0 %v2126
        %2142 = vmatpush.msra.mxu0 %v2125
        %2143 = vmatpush.msra.mxu0 %v2124
        %2144 = vmatpush.msra.mxu0 %v2123
        %2145 = vmatpush.msra.mxu0 %v2122
        %2146 = vmatpush.msra.mxu0 %v2121
        %2147 = vmatpush.msra.mxu0 %v2120
        %2148 = vmatpush.msra.mxu0 %v2119
        %2149 = vmatpush.msra.mxu0 %v2118
        %2150 = vmatmul.f32.gmra.mxu0 %v2007
        %v2151 = vpop.f32.mrf.mxu0
        %v2152 = vadd.f32 0.0, %v2151
        %2153 = vmatmul.f32.gmra.mxu0 %v2009
        %v2154 = vpop.f32.mrf.mxu0
        %v2155 = vadd.f32 0.0, %v2154
        %2156 = vmatmul.f32.gmra.mxu0 %v2012
        %v2157 = vpop.f32.mrf.mxu0
        %v2158 = vadd.f32 0.0, %v2157
        %2159 = vmatmul.f32.gmra.mxu0 %v2014
        %v2160 = vpop.f32.mrf.mxu0
        %v2161 = vadd.f32 0.0, %v2160
        %2162 = vmatmul.f32.gmra.mxu0 %v2017
        %v2163 = vpop.f32.mrf.mxu0
        %v2164 = vadd.f32 0.0, %v2163
        %2165 = vmatmul.f32.gmra.mxu0 %v2019
        %v2166 = vpop.f32.mrf.mxu0
        %v2167 = vadd.f32 0.0, %v2166
        %2168 = vmatmul.f32.gmra.mxu0 %v2022
        %v2169 = vpop.f32.mrf.mxu0
        %v2170 = vadd.f32 0.0, %v2169
        %2171 = vmatmul.f32.gmra.mxu0 %v2024
        %v2172 = vpop.f32.mrf.mxu0
        %v2173 = vadd.f32 0.0, %v2172
        %2174 = vmatmul.f32.gmra.mxu0 %v2027
        %v2175 = vpop.f32.mrf.mxu0
        %v2176 = vadd.f32 0.0, %v2175
        %2177 = vmatmul.f32.gmra.mxu0 %v2029
        %v2178 = vpop.f32.mrf.mxu0
        %v2179 = vadd.f32 0.0, %v2178
        %2180 = vmatmul.f32.gmra.mxu0 %v2032
        %v2181 = vpop.f32.mrf.mxu0
        %v2182 = vadd.f32 0.0, %v2181
        %2183 = vmatmul.f32.gmra.mxu0 %v2034
        %v2184 = vpop.f32.mrf.mxu0
        %v2185 = vadd.f32 0.0, %v2184
        %2186 = vmatmul.f32.gmra.mxu0 %v2037
        %v2187 = vpop.f32.mrf.mxu0
        %v2188 = vadd.f32 0.0, %v2187
        %2189 = vmatmul.f32.gmra.mxu0 %v2039
        %v2190 = vpop.f32.mrf.mxu0
        %v2191 = vadd.f32 0.0, %v2190
        %2192 = vmatmul.f32.gmra.mxu0 %v2042
        %v2193 = vpop.f32.mrf.mxu0
        %v2194 = vadd.f32 0.0, %v2193
        %2195 = vmatmul.f32.gmra.mxu0 %v2044
        %v2196 = vpop.f32.mrf.mxu0
        %v2197 = vadd.f32 0.0, %v2196
        %2198 = vmatmul.f32.gmra.mxu0 %v2047
        %v2199 = vpop.f32.mrf.mxu0
        %v2200 = vadd.f32 0.0, %v2199
        %2201 = vmatmul.f32.gmra.mxu0 %v2049
        %v2202 = vpop.f32.mrf.mxu0
        %v2203 = vadd.f32 0.0, %v2202
        %2204 = vmatmul.f32.gmra.mxu0 %v2052
        %v2205 = vpop.f32.mrf.mxu0
        %v2206 = vadd.f32 0.0, %v2205
        %2207 = vmatmul.f32.gmra.mxu0 %v2054
        %v2208 = vpop.f32.mrf.mxu0
        %v2209 = vadd.f32 0.0, %v2208
        %2210 = vmatmul.f32.gmra.mxu0 %v2057
        %v2211 = vpop.f32.mrf.mxu0
        %v2212 = vadd.f32 0.0, %v2211
        %2213 = vmatmul.f32.gmra.mxu0 %v2059
        %v2214 = vpop.f32.mrf.mxu0
        %v2215 = vadd.f32 0.0, %v2214
        %2216 = vmatmul.f32.gmra.mxu0 %v2062
        %v2217 = vpop.f32.mrf.mxu0
        %v2218 = vadd.f32 0.0, %v2217
        %2219 = vmatmul.f32.gmra.mxu0 %v2064
        %v2220 = vpop.f32.mrf.mxu0
        %v2221 = vadd.f32 0.0, %v2220
        %2222 = vmatmul.f32.gmra.mxu0 %v2067
        %v2223 = vpop.f32.mrf.mxu0
        %v2224 = vadd.f32 0.0, %v2223
        %2225 = vmatmul.f32.gmra.mxu0 %v2069
        %v2226 = vpop.f32.mrf.mxu0
        %v2227 = vadd.f32 0.0, %v2226
        %2228 = vmatmul.f32.gmra.mxu0 %v2072
        %v2229 = vpop.f32.mrf.mxu0
        %v2230 = vadd.f32 0.0, %v2229
        %2231 = vmatmul.f32.gmra.mxu0 %v2074
        %v2232 = vpop.f32.mrf.mxu0
        %v2233 = vadd.f32 0.0, %v2232
        %2234 = vmatmul.f32.gmra.mxu0 %v2077
        %v2235 = vpop.f32.mrf.mxu0
        %v2236 = vadd.f32 0.0, %v2235
        %2237 = vmatmul.f32.gmra.mxu0 %v2079
        %v2238 = vpop.f32.mrf.mxu0
        %v2239 = vadd.f32 0.0, %v2238
        %2240 = vmatmul.f32.gmra.mxu0 %v2082
        %v2241 = vpop.f32.mrf.mxu0
        %v2242 = vadd.f32 0.0, %v2241
        %2243 = vmatmul.f32.gmra.mxu0 %v2084
        %v2244 = vpop.f32.mrf.mxu0
        %v2245 = vadd.f32 0.0, %v2244
        %2246 = vdwg.mxu0
        %2247 = vmatpush.msra.mxu0 0.0
        %2248 = vmatpush.msra.mxu0 0.0
        %2249 = vmatpush.msra.mxu0 0.0
        %2250 = vmatpush.msra.mxu0 0.0
        %2251 = vmatpush.msra.mxu0 0.0
        %2252 = vmatpush.msra.mxu0 0.0
        %2253 = vmatpush.msra.mxu0 0.0
        %2254 = vmatpush.msra.mxu0 0.0
        %2255 = vmatpush.msra.mxu0 %v2101
        %2256 = vmatpush.msra.mxu0 %v2100
        %2257 = vmatpush.msra.mxu0 %v2099
        %2258 = vmatpush.msra.mxu0 %v2098
        %2259 = vmatpush.msra.mxu0 %v2097
        %2260 = vmatpush.msra.mxu0 %v2096
        %2261 = vmatpush.msra.mxu0 %v2095
        %2262 = vmatpush.msra.mxu0 %v2094
        %2263 = vmatmul.f32.gmra.mxu0 %v1275
        %v2264 = vpop.f32.mrf.mxu0
        %v2265 = vadd.f32 %v2152, %v2264
        %2266 = vmatmul.f32.gmra.mxu0 %v1278
        %v2267 = vpop.f32.mrf.mxu0
        %v2268 = vadd.f32 %v2155, %v2267
        %2269 = vmatmul.f32.gmra.mxu0 %v1281
        %v2270 = vpop.f32.mrf.mxu0
        %v2271 = vadd.f32 %v2158, %v2270
        %2272 = vmatmul.f32.gmra.mxu0 %v1284
        %v2273 = vpop.f32.mrf.mxu0
        %v2274 = vadd.f32 %v2161, %v2273
        %2275 = vmatmul.f32.gmra.mxu0 %v1287
        %v2276 = vpop.f32.mrf.mxu0
        %v2277 = vadd.f32 %v2164, %v2276
        %2278 = vmatmul.f32.gmra.mxu0 %v1290
        %v2279 = vpop.f32.mrf.mxu0
        %v2280 = vadd.f32 %v2167, %v2279
        %2281 = vmatmul.f32.gmra.mxu0 %v1293
        %v2282 = vpop.f32.mrf.mxu0
        %v2283 = vadd.f32 %v2170, %v2282
        %2284 = vmatmul.f32.gmra.mxu0 %v1296
        %v2285 = vpop.f32.mrf.mxu0
        %v2286 = vadd.f32 %v2173, %v2285
        %2287 = vmatmul.f32.gmra.mxu0 %v1299
        %v2288 = vpop.f32.mrf.mxu0
        %v2289 = vadd.f32 %v2176, %v2288
        %2290 = vmatmul.f32.gmra.mxu0 %v1302
        %v2291 = vpop.f32.mrf.mxu0
        %v2292 = vadd.f32 %v2179, %v2291
        %2293 = vmatmul.f32.gmra.mxu0 %v1305
        %v2294 = vpop.f32.mrf.mxu0
        %v2295 = vadd.f32 %v2182, %v2294
        %2296 = vmatmul.f32.gmra.mxu0 %v1308
        %v2297 = vpop.f32.mrf.mxu0
        %v2298 = vadd.f32 %v2185, %v2297
        %2299 = vmatmul.f32.gmra.mxu0 %v1311
        %v2300 = vpop.f32.mrf.mxu0
        %v2301 = vadd.f32 %v2188, %v2300
        %2302 = vmatmul.f32.gmra.mxu0 %v1314
        %v2303 = vpop.f32.mrf.mxu0
        %v2304 = vadd.f32 %v2191, %v2303
        %2305 = vmatmul.f32.gmra.mxu0 %v1317
        %v2306 = vpop.f32.mrf.mxu0
        %v2307 = vadd.f32 %v2194, %v2306
        %2308 = vmatmul.f32.gmra.mxu0 %v1320
        %v2309 = vpop.f32.mrf.mxu0
        %v2310 = vadd.f32 %v2197, %v2309
        %2311 = vmatmul.f32.gmra.mxu0 %v1323
        %v2312 = vpop.f32.mrf.mxu0
        %v2313 = vadd.f32 %v2200, %v2312
        %2314 = vmatmul.f32.gmra.mxu0 %v1326
        %v2315 = vpop.f32.mrf.mxu0
        %v2316 = vadd.f32 %v2203, %v2315
        %2317 = vmatmul.f32.gmra.mxu0 %v1329
        %v2318 = vpop.f32.mrf.mxu0
        %v2319 = vadd.f32 %v2206, %v2318
        %2320 = vmatmul.f32.gmra.mxu0 %v1332
        %v2321 = vpop.f32.mrf.mxu0
        %v2322 = vadd.f32 %v2209, %v2321
        %2323 = vmatmul.f32.gmra.mxu0 %v1335
        %v2324 = vpop.f32.mrf.mxu0
        %v2325 = vadd.f32 %v2212, %v2324
        %2326 = vmatmul.f32.gmra.mxu0 %v1338
        %v2327 = vpop.f32.mrf.mxu0
        %v2328 = vadd.f32 %v2215, %v2327
        %2329 = vmatmul.f32.gmra.mxu0 %v1341
        %v2330 = vpop.f32.mrf.mxu0
        %v2331 = vadd.f32 %v2218, %v2330
        %2332 = vmatmul.f32.gmra.mxu0 %v1344
        %v2333 = vpop.f32.mrf.mxu0
        %v2334 = vadd.f32 %v2221, %v2333
        %2335 = vmatmul.f32.gmra.mxu0 %v1347
        %v2336 = vpop.f32.mrf.mxu0
        %v2337 = vadd.f32 %v2224, %v2336
        %2338 = vmatmul.f32.gmra.mxu0 %v1350
        %v2339 = vpop.f32.mrf.mxu0
        %v2340 = vadd.f32 %v2227, %v2339
        %2341 = vmatmul.f32.gmra.mxu0 %v1353
        %v2342 = vpop.f32.mrf.mxu0
        %v2343 = vadd.f32 %v2230, %v2342
        %2344 = vmatmul.f32.gmra.mxu0 %v1356
        %v2345 = vpop.f32.mrf.mxu0
        %v2346 = vadd.f32 %v2233, %v2345
        %2347 = vmatmul.f32.gmra.mxu0 %v1359
        %v2348 = vpop.f32.mrf.mxu0
        %v2349 = vadd.f32 %v2236, %v2348
        %2350 = vmatmul.f32.gmra.mxu0 %v1362
        %v2351 = vpop.f32.mrf.mxu0
        %v2352 = vadd.f32 %v2239, %v2351
        %2353 = vmatmul.f32.gmra.mxu0 %v1365
        %v2354 = vpop.f32.mrf.mxu0
        %v2355 = vadd.f32 %v2242, %v2354
        %2356 = vmatmul.f32.gmra.mxu0 %v1368
        %v2357 = vpop.f32.mrf.mxu0
        %v2358 = vadd.f32 %v2245, %v2357
        %2359 = vdwg.mxu0
        %v2360 = vld [vmem:[#allocation4 + $0x150] sm:$0x1]
        %v2361 = vunpack.c.l.bf16 %v2360
        %v2362 = vperm.slane %v2361, 0
        %v2363 = vadd.f32 %v2265, %v2362
        %v2364 = vadd.f32 %v2268, %v2362
        %v2365 = vadd.f32 %v2271, %v2362
        %v2366 = vadd.f32 %v2274, %v2362
        %v2367 = vadd.f32 %v2277, %v2362
        %v2368 = vadd.f32 %v2280, %v2362
        %v2369 = vadd.f32 %v2283, %v2362
        %v2370 = vadd.f32 %v2286, %v2362
        %v2371 = vadd.f32 %v2289, %v2362
        %v2372 = vadd.f32 %v2292, %v2362
        %v2373 = vadd.f32 %v2295, %v2362
        %v2374 = vadd.f32 %v2298, %v2362
        %v2375 = vadd.f32 %v2301, %v2362
        %v2376 = vadd.f32 %v2304, %v2362
        %v2377 = vadd.f32 %v2307, %v2362
        %v2378 = vadd.f32 %v2310, %v2362
        %v2379 = vadd.f32 %v2313, %v2362
        %v2380 = vadd.f32 %v2316, %v2362
        %v2381 = vadd.f32 %v2319, %v2362
        %v2382 = vadd.f32 %v2322, %v2362
        %v2383 = vadd.f32 %v2325, %v2362
        %v2384 = vadd.f32 %v2328, %v2362
        %v2385 = vadd.f32 %v2331, %v2362
        %v2386 = vadd.f32 %v2334, %v2362
        %v2387 = vadd.f32 %v2337, %v2362
        %v2388 = vadd.f32 %v2340, %v2362
        %v2389 = vadd.f32 %v2343, %v2362
        %v2390 = vadd.f32 %v2346, %v2362
        %v2391 = vadd.f32 %v2349, %v2362
        %v2392 = vadd.f32 %v2352, %v2362
        %v2393 = vadd.f32 %v2355, %v2362
        %v2394 = vadd.f32 %v2358, %v2362
        %v2395 = vtanh.pop %v2363
        %v2396 = vtanh.pop %v2364
        %v2397 = vtanh.pop %v2365
        %v2398 = vtanh.pop %v2366
        %v2399 = vtanh.pop %v2367
        %v2400 = vtanh.pop %v2368
        %v2401 = vtanh.pop %v2369
        %v2402 = vtanh.pop %v2370
        %v2403 = vtanh.pop %v2371
        %v2404 = vtanh.pop %v2372
        %v2405 = vtanh.pop %v2373
        %v2406 = vtanh.pop %v2374
        %v2407 = vtanh.pop %v2375
        %v2408 = vtanh.pop %v2376
        %v2409 = vtanh.pop %v2377
        %v2410 = vtanh.pop %v2378
        %v2411 = vtanh.pop %v2379
        %v2412 = vtanh.pop %v2380
        %v2413 = vtanh.pop %v2381
        %v2414 = vtanh.pop %v2382
        %v2415 = vtanh.pop %v2383
        %v2416 = vtanh.pop %v2384
        %v2417 = vtanh.pop %v2385
        %v2418 = vtanh.pop %v2386
        %v2419 = vtanh.pop %v2387
        %v2420 = vtanh.pop %v2388
        %v2421 = vtanh.pop %v2389
        %v2422 = vtanh.pop %v2390
        %v2423 = vtanh.pop %v2391
        %v2424 = vtanh.pop %v2392
        %v2425 = vtanh.pop %v2393
        %v2426 = vtanh.pop %v2394
        %v2427 = vld [vmem:[#allocation4 + $0x154] sm:$0xf]
        %v2428 = vld [vmem:[#allocation4 + $0x158] sm:$0xf]
        %v2429 = vld [vmem:[#allocation4 + $0x15c] sm:$0xf]
        %v2430 = vld [vmem:[#allocation4 + $0x160] sm:$0xf]
        %v2431 = vld [vmem:[#allocation4 + $0x164] sm:$0xf]
        %v2432 = vld [vmem:[#allocation4 + $0x168] sm:$0xf]
        %v2433 = vld [vmem:[#allocation4 + $0x16c] sm:$0xf]
        %v2434 = vld [vmem:[#allocation4 + $0x170] sm:$0xf]
        %v2435 = vunpack.c.l.bf16 %v2427
        %v2436 = vunpack.c.l.bf16 %v2428
        %v2437 = vunpack.c.l.bf16 %v2429
        %v2438 = vunpack.c.l.bf16 %v2430
        %v2439 = vunpack.c.l.bf16 %v2431
        %v2440 = vunpack.c.l.bf16 %v2432
        %v2441 = vunpack.c.l.bf16 %v2433
        %v2442 = vunpack.c.l.bf16 %v2434
        %v2443 = vld [vmem:[#allocation4 + $0x174] sm:$0x1]
        %v2444 = vunpack.c.l.bf16 %v2443
        %v2445 = vperm.slane %v2444, 0
        %v2447 = vsel %vm588, %v2395, 0
        %v2450 = vsel %vm588, %v2396, 0
        %v2453 = vsel %vm588, %v2397, 0
        %v2456 = vsel %vm588, %v2398, 0
        %v2459 = vsel %vm588, %v2399, 0
        %v2462 = vsel %vm588, %v2400, 0
        %v2465 = vsel %vm588, %v2401, 0
        %v2468 = vsel %vm588, %v2402, 0
        %v2471 = vsel %vm588, %v2403, 0
        %v2474 = vsel %vm588, %v2404, 0
        %v2477 = vsel %vm588, %v2405, 0
        %v2480 = vsel %vm588, %v2406, 0
        %v2483 = vsel %vm588, %v2407, 0
        %v2486 = vsel %vm588, %v2408, 0
        %v2489 = vsel %vm588, %v2409, 0
        %v2492 = vsel %vm588, %v2410, 0
        %v2495 = vsel %vm588, %v2411, 0
        %v2498 = vsel %vm588, %v2412, 0
        %v2501 = vsel %vm588, %v2413, 0
        %v2504 = vsel %vm588, %v2414, 0
        %v2507 = vsel %vm588, %v2415, 0
        %v2510 = vsel %vm588, %v2416, 0
        %v2513 = vsel %vm588, %v2417, 0
        %v2516 = vsel %vm588, %v2418, 0
        %v2519 = vsel %vm588, %v2419, 0
        %v2522 = vsel %vm588, %v2420, 0
        %v2525 = vsel %vm588, %v2421, 0
        %v2528 = vsel %vm588, %v2422, 0
        %v2531 = vsel %vm588, %v2423, 0
        %v2534 = vsel %vm588, %v2424, 0
        %v2537 = vsel %vm588, %v2425, 0
        %v2540 = vsel %vm588, %v2426, 0
        %2542 = vmatpush.msra.mxu0 0.0
        %2543 = vmatpush.msra.mxu0 0.0
        %2544 = vmatpush.msra.mxu0 0.0
        %2545 = vmatpush.msra.mxu0 0.0
        %2546 = vmatpush.msra.mxu0 0.0
        %2547 = vmatpush.msra.mxu0 0.0
        %2548 = vmatpush.msra.mxu0 0.0
        %2549 = vmatpush.msra.mxu0 0.0
        %2550 = vmatpush.msra.mxu0 %v2442
        %2551 = vmatpush.msra.mxu0 %v2441
        %2552 = vmatpush.msra.mxu0 %v2440
        %2553 = vmatpush.msra.mxu0 %v2439
        %2554 = vmatpush.msra.mxu0 %v2438
        %2555 = vmatpush.msra.mxu0 %v2437
        %2556 = vmatpush.msra.mxu0 %v2436
        %2557 = vmatpush.msra.mxu0 %v2435
        %2558 = vmatmul.f32.gmra.mxu0 %v2447
        %v2559 = vpop.f32.mrf.mxu0
        %v2560 = vadd.f32 %v2445, %v2559
        %2561 = vmatmul.f32.gmra.mxu0 %v2450
        %v2562 = vpop.f32.mrf.mxu0
        %v2563 = vadd.f32 %v2445, %v2562
        %2564 = vmatmul.f32.gmra.mxu0 %v2453
        %v2565 = vpop.f32.mrf.mxu0
        %v2566 = vadd.f32 %v2445, %v2565
        %2567 = vmatmul.f32.gmra.mxu0 %v2456
        %v2568 = vpop.f32.mrf.mxu0
        %v2569 = vadd.f32 %v2445, %v2568
        %2570 = vmatmul.f32.gmra.mxu0 %v2459
        %v2571 = vpop.f32.mrf.mxu0
        %v2572 = vadd.f32 %v2445, %v2571
        %2573 = vmatmul.f32.gmra.mxu0 %v2462
        %v2574 = vpop.f32.mrf.mxu0
        %v2575 = vadd.f32 %v2445, %v2574
        %2576 = vmatmul.f32.gmra.mxu0 %v2465
        %v2577 = vpop.f32.mrf.mxu0
        %v2578 = vadd.f32 %v2445, %v2577
        %2579 = vmatmul.f32.gmra.mxu0 %v2468
        %v2580 = vpop.f32.mrf.mxu0
        %v2581 = vadd.f32 %v2445, %v2580
        %2582 = vmatmul.f32.gmra.mxu0 %v2471
        %v2583 = vpop.f32.mrf.mxu0
        %v2584 = vadd.f32 %v2445, %v2583
        %2585 = vmatmul.f32.gmra.mxu0 %v2474
        %v2586 = vpop.f32.mrf.mxu0
        %v2587 = vadd.f32 %v2445, %v2586
        %2588 = vmatmul.f32.gmra.mxu0 %v2477
        %v2589 = vpop.f32.mrf.mxu0
        %v2590 = vadd.f32 %v2445, %v2589
        %2591 = vmatmul.f32.gmra.mxu0 %v2480
        %v2592 = vpop.f32.mrf.mxu0
        %v2593 = vadd.f32 %v2445, %v2592
        %2594 = vmatmul.f32.gmra.mxu0 %v2483
        %v2595 = vpop.f32.mrf.mxu0
        %v2596 = vadd.f32 %v2445, %v2595
        %2597 = vmatmul.f32.gmra.mxu0 %v2486
        %v2598 = vpop.f32.mrf.mxu0
        %v2599 = vadd.f32 %v2445, %v2598
        %2600 = vmatmul.f32.gmra.mxu0 %v2489
        %v2601 = vpop.f32.mrf.mxu0
        %v2602 = vadd.f32 %v2445, %v2601
        %2603 = vmatmul.f32.gmra.mxu0 %v2492
        %v2604 = vpop.f32.mrf.mxu0
        %v2605 = vadd.f32 %v2445, %v2604
        %2606 = vmatmul.f32.gmra.mxu0 %v2495
        %v2607 = vpop.f32.mrf.mxu0
        %v2608 = vadd.f32 %v2445, %v2607
        %2609 = vmatmul.f32.gmra.mxu0 %v2498
        %v2610 = vpop.f32.mrf.mxu0
        %v2611 = vadd.f32 %v2445, %v2610
        %2612 = vmatmul.f32.gmra.mxu0 %v2501
        %v2613 = vpop.f32.mrf.mxu0
        %v2614 = vadd.f32 %v2445, %v2613
        %2615 = vmatmul.f32.gmra.mxu0 %v2504
        %v2616 = vpop.f32.mrf.mxu0
        %v2617 = vadd.f32 %v2445, %v2616
        %2618 = vmatmul.f32.gmra.mxu0 %v2507
        %v2619 = vpop.f32.mrf.mxu0
        %v2620 = vadd.f32 %v2445, %v2619
        %2621 = vmatmul.f32.gmra.mxu0 %v2510
        %v2622 = vpop.f32.mrf.mxu0
        %v2623 = vadd.f32 %v2445, %v2622
        %2624 = vmatmul.f32.gmra.mxu0 %v2513
        %v2625 = vpop.f32.mrf.mxu0
        %v2626 = vadd.f32 %v2445, %v2625
        %2627 = vmatmul.f32.gmra.mxu0 %v2516
        %v2628 = vpop.f32.mrf.mxu0
        %v2629 = vadd.f32 %v2445, %v2628
        %2630 = vmatmul.f32.gmra.mxu0 %v2519
        %v2631 = vpop.f32.mrf.mxu0
        %v2632 = vadd.f32 %v2445, %v2631
        %2633 = vmatmul.f32.gmra.mxu0 %v2522
        %v2634 = vpop.f32.mrf.mxu0
        %v2635 = vadd.f32 %v2445, %v2634
        %2636 = vmatmul.f32.gmra.mxu0 %v2525
        %v2637 = vpop.f32.mrf.mxu0
        %v2638 = vadd.f32 %v2445, %v2637
        %2639 = vmatmul.f32.gmra.mxu0 %v2528
        %v2640 = vpop.f32.mrf.mxu0
        %v2641 = vadd.f32 %v2445, %v2640
        %2642 = vmatmul.f32.gmra.mxu0 %v2531
        %v2643 = vpop.f32.mrf.mxu0
        %v2644 = vadd.f32 %v2445, %v2643
        %2645 = vmatmul.f32.gmra.mxu0 %v2534
        %v2646 = vpop.f32.mrf.mxu0
        %v2647 = vadd.f32 %v2445, %v2646
        %2648 = vmatmul.f32.gmra.mxu0 %v2537
        %v2649 = vpop.f32.mrf.mxu0
        %v2650 = vadd.f32 %v2445, %v2649
        %2651 = vmatmul.f32.gmra.mxu0 %v2540
        %v2652 = vpop.f32.mrf.mxu0
        %v2653 = vadd.f32 %v2445, %v2652
        %2654 = vdwg.mxu0
        %v2655 = vadd.f32 %v806, %v2560
        %v2656 = vadd.f32 %v807, %v2563
        %v2657 = vadd.f32 %v808, %v2566
        %v2658 = vadd.f32 %v809, %v2569
        %v2659 = vadd.f32 %v810, %v2572
        %v2660 = vadd.f32 %v811, %v2575
        %v2661 = vadd.f32 %v812, %v2578
        %v2662 = vadd.f32 %v813, %v2581
        %v2663 = vadd.f32 %v814, %v2584
        %v2664 = vadd.f32 %v815, %v2587
        %v2665 = vadd.f32 %v816, %v2590
        %v2666 = vadd.f32 %v817, %v2593
        %v2667 = vadd.f32 %v818, %v2596
        %v2668 = vadd.f32 %v819, %v2599
        %v2669 = vadd.f32 %v820, %v2602
        %v2670 = vadd.f32 %v821, %v2605
        %v2671 = vadd.f32 %v822, %v2608
        %v2672 = vadd.f32 %v823, %v2611
        %v2673 = vadd.f32 %v824, %v2614
        %v2674 = vadd.f32 %v825, %v2617
        %v2675 = vadd.f32 %v826, %v2620
        %v2676 = vadd.f32 %v827, %v2623
        %v2677 = vadd.f32 %v828, %v2626
        %v2678 = vadd.f32 %v829, %v2629
        %v2679 = vadd.f32 %v830, %v2632
        %v2680 = vadd.f32 %v831, %v2635
        %v2681 = vadd.f32 %v832, %v2638
        %v2682 = vadd.f32 %v833, %v2641
        %v2683 = vadd.f32 %v834, %v2644
        %v2684 = vadd.f32 %v835, %v2647
        %v2685 = vadd.f32 %v836, %v2650
        %v2686 = vadd.f32 %v837, %v2653
        %v2687 = vld [vmem:[#allocation4 + $0x178] sm:$0xf]
        %v2688 = vunpack.c.l.bf16 %v2687
        %v2689 = vld [vmem:[#allocation4 + $0x17c] sm:$0x1]
        %v2690 = vunpack.c.l.bf16 %v2689
        %v2691 = vperm.slane %v2690, 0
        %v2693 = vsel %vm758, %v2655, 0
        %v2696 = vsel %vm758, %v2656, 0
        %v2699 = vsel %vm758, %v2657, 0
        %v2702 = vsel %vm758, %v2658, 0
        %v2705 = vsel %vm758, %v2659, 0
        %v2708 = vsel %vm758, %v2660, 0
        %v2711 = vsel %vm758, %v2661, 0
        %v2714 = vsel %vm758, %v2662, 0
        %v2717 = vsel %vm758, %v2663, 0
        %v2720 = vsel %vm758, %v2664, 0
        %v2723 = vsel %vm758, %v2665, 0
        %v2726 = vsel %vm758, %v2666, 0
        %v2729 = vsel %vm758, %v2667, 0
        %v2732 = vsel %vm758, %v2668, 0
        %v2735 = vsel %vm758, %v2669, 0
        %v2738 = vsel %vm758, %v2670, 0
        %v2741 = vsel %vm758, %v2671, 0
        %v2744 = vsel %vm758, %v2672, 0
        %v2747 = vsel %vm758, %v2673, 0
        %v2750 = vsel %vm758, %v2674, 0
        %v2753 = vsel %vm758, %v2675, 0
        %v2756 = vsel %vm758, %v2676, 0
        %v2759 = vsel %vm758, %v2677, 0
        %v2762 = vsel %vm758, %v2678, 0
        %v2765 = vsel %vm758, %v2679, 0
        %v2768 = vsel %vm758, %v2680, 0
        %v2771 = vsel %vm758, %v2681, 0
        %v2774 = vsel %vm758, %v2682, 0
        %v2777 = vsel %vm758, %v2683, 0
        %v2780 = vsel %vm758, %v2684, 0
        %v2783 = vsel %vm758, %v2685, 0
        %v2786 = vsel %vm758, %v2686, 0
        %2788 = vmatpush.msra.mxu0 0.0
        %2789 = vmatpush.msra.mxu0 0.0
        %2790 = vmatpush.msra.mxu0 0.0
        %2791 = vmatpush.msra.mxu0 0.0
        %2792 = vmatpush.msra.mxu0 0.0
        %2793 = vmatpush.msra.mxu0 0.0
        %2794 = vmatpush.msra.mxu0 0.0
        %2795 = vmatpush.msra.mxu0 0.0
        %2796 = vmatpush.msra.mxu0 0.0
        %2797 = vmatpush.msra.mxu0 0.0
        %2798 = vmatpush.msra.mxu0 0.0
        %2799 = vmatpush.msra.mxu0 0.0
        %2800 = vmatpush.msra.mxu0 0.0
        %2801 = vmatpush.msra.mxu0 0.0
        %2802 = vmatpush.msra.mxu0 0.0
        %2803 = vmatpush.msra.mxu0 %v2688
        %2804 = vmatmul.f32.gmra.mxu0 %v2693
        %v2805 = vpop.f32.mrf.mxu0
        %v2806 = vadd.f32 %v2691, %v2805
        %2807 = vmatmul.f32.gmra.mxu0 %v2696
        %v2808 = vpop.f32.mrf.mxu0
        %v2809 = vadd.f32 %v2691, %v2808
        %2810 = vmatmul.f32.gmra.mxu0 %v2699
        %v2811 = vpop.f32.mrf.mxu0
        %v2812 = vadd.f32 %v2691, %v2811
        %2813 = vmatmul.f32.gmra.mxu0 %v2702
        %v2814 = vpop.f32.mrf.mxu0
        %v2815 = vadd.f32 %v2691, %v2814
        %2816 = vmatmul.f32.gmra.mxu0 %v2705
        %v2817 = vpop.f32.mrf.mxu0
        %v2818 = vadd.f32 %v2691, %v2817
        %2819 = vmatmul.f32.gmra.mxu0 %v2708
        %v2820 = vpop.f32.mrf.mxu0
        %v2821 = vadd.f32 %v2691, %v2820
        %2822 = vmatmul.f32.gmra.mxu0 %v2711
        %v2823 = vpop.f32.mrf.mxu0
        %v2824 = vadd.f32 %v2691, %v2823
        %2825 = vmatmul.f32.gmra.mxu0 %v2714
        %v2826 = vpop.f32.mrf.mxu0
        %v2827 = vadd.f32 %v2691, %v2826
        %2828 = vmatmul.f32.gmra.mxu0 %v2717
        %v2829 = vpop.f32.mrf.mxu0
        %v2830 = vadd.f32 %v2691, %v2829
        %2831 = vmatmul.f32.gmra.mxu0 %v2720
        %v2832 = vpop.f32.mrf.mxu0
        %v2833 = vadd.f32 %v2691, %v2832
        %2834 = vmatmul.f32.gmra.mxu0 %v2723
        %v2835 = vpop.f32.mrf.mxu0
        %v2836 = vadd.f32 %v2691, %v2835
        %2837 = vmatmul.f32.gmra.mxu0 %v2726
        %v2838 = vpop.f32.mrf.mxu0
        %v2839 = vadd.f32 %v2691, %v2838
        %2840 = vmatmul.f32.gmra.mxu0 %v2729
        %v2841 = vpop.f32.mrf.mxu0
        %v2842 = vadd.f32 %v2691, %v2841
        %2843 = vmatmul.f32.gmra.mxu0 %v2732
        %v2844 = vpop.f32.mrf.mxu0
        %v2845 = vadd.f32 %v2691, %v2844
        %2846 = vmatmul.f32.gmra.mxu0 %v2735
        %v2847 = vpop.f32.mrf.mxu0
        %v2848 = vadd.f32 %v2691, %v2847
        %2849 = vmatmul.f32.gmra.mxu0 %v2738
        %v2850 = vpop.f32.mrf.mxu0
        %v2851 = vadd.f32 %v2691, %v2850
        %2852 = vmatmul.f32.gmra.mxu0 %v2741
        %v2853 = vpop.f32.mrf.mxu0
        %v2854 = vadd.f32 %v2691, %v2853
        %2855 = vmatmul.f32.gmra.mxu0 %v2744
        %v2856 = vpop.f32.mrf.mxu0
        %v2857 = vadd.f32 %v2691, %v2856
        %2858 = vmatmul.f32.gmra.mxu0 %v2747
        %v2859 = vpop.f32.mrf.mxu0
        %v2860 = vadd.f32 %v2691, %v2859
        %2861 = vmatmul.f32.gmra.mxu0 %v2750
        %v2862 = vpop.f32.mrf.mxu0
        %v2863 = vadd.f32 %v2691, %v2862
        %2864 = vmatmul.f32.gmra.mxu0 %v2753
        %v2865 = vpop.f32.mrf.mxu0
        %v2866 = vadd.f32 %v2691, %v2865
        %2867 = vmatmul.f32.gmra.mxu0 %v2756
        %v2868 = vpop.f32.mrf.mxu0
        %v2869 = vadd.f32 %v2691, %v2868
        %2870 = vmatmul.f32.gmra.mxu0 %v2759
        %v2871 = vpop.f32.mrf.mxu0
        %v2872 = vadd.f32 %v2691, %v2871
        %2873 = vmatmul.f32.gmra.mxu0 %v2762
        %v2874 = vpop.f32.mrf.mxu0
        %v2875 = vadd.f32 %v2691, %v2874
        %2876 = vmatmul.f32.gmra.mxu0 %v2765
        %v2877 = vpop.f32.mrf.mxu0
        %v2878 = vadd.f32 %v2691, %v2877
        %2879 = vmatmul.f32.gmra.mxu0 %v2768
        %v2880 = vpop.f32.mrf.mxu0
        %v2881 = vadd.f32 %v2691, %v2880
        %2882 = vmatmul.f32.gmra.mxu0 %v2771
        %v2883 = vpop.f32.mrf.mxu0
        %v2884 = vadd.f32 %v2691, %v2883
        %2885 = vmatmul.f32.gmra.mxu0 %v2774
        %v2886 = vpop.f32.mrf.mxu0
        %v2887 = vadd.f32 %v2691, %v2886
        %2888 = vmatmul.f32.gmra.mxu0 %v2777
        %v2889 = vpop.f32.mrf.mxu0
        %v2890 = vadd.f32 %v2691, %v2889
        %2891 = vmatmul.f32.gmra.mxu0 %v2780
        %v2892 = vpop.f32.mrf.mxu0
        %v2893 = vadd.f32 %v2691, %v2892
        %2894 = vmatmul.f32.gmra.mxu0 %v2783
        %v2895 = vpop.f32.mrf.mxu0
        %v2896 = vadd.f32 %v2691, %v2895
        %2897 = vmatmul.f32.gmra.mxu0 %v2786
        %v2898 = vpop.f32.mrf.mxu0
        %v2899 = vadd.f32 %v2691, %v2898
        %2900 = vdwg.mxu0
        %v2901 = vmax.f32 %v2806, 0.0
        %v2902 = vmax.f32 %v2809, 0.0
        %v2903 = vmax.f32 %v2812, 0.0
        %v2904 = vmax.f32 %v2815, 0.0
        %v2905 = vmax.f32 %v2818, 0.0
        %v2906 = vmax.f32 %v2821, 0.0
        %v2907 = vmax.f32 %v2824, 0.0
        %v2908 = vmax.f32 %v2827, 0.0
        %v2909 = vmax.f32 %v2830, 0.0
        %v2910 = vmax.f32 %v2833, 0.0
        %v2911 = vmax.f32 %v2836, 0.0
        %v2912 = vmax.f32 %v2839, 0.0
        %v2913 = vmax.f32 %v2842, 0.0
        %v2914 = vmax.f32 %v2845, 0.0
        %v2915 = vmax.f32 %v2848, 0.0
        %v2916 = vmax.f32 %v2851, 0.0
        %v2917 = vmax.f32 %v2854, 0.0
        %v2918 = vmax.f32 %v2857, 0.0
        %v2919 = vmax.f32 %v2860, 0.0
        %v2920 = vmax.f32 %v2863, 0.0
        %v2921 = vmax.f32 %v2866, 0.0
        %v2922 = vmax.f32 %v2869, 0.0
        %v2923 = vmax.f32 %v2872, 0.0
        %v2924 = vmax.f32 %v2875, 0.0
        %v2925 = vmax.f32 %v2878, 0.0
        %v2926 = vmax.f32 %v2881, 0.0
        %v2927 = vmax.f32 %v2884, 0.0
        %v2928 = vmax.f32 %v2887, 0.0
        %v2929 = vmax.f32 %v2890, 0.0
        %v2930 = vmax.f32 %v2893, 0.0
        %v2931 = vmax.f32 %v2896, 0.0
        %v2932 = vmax.f32 %v2899, 0.0
        %v2933 = vld [vmem:[#allocation4 + $0x180] sm:$0xf]
        %v2934 = vld [vmem:[#allocation4 + $0x184] sm:$0xf]
        %v2935 = vld [vmem:[#allocation4 + $0x188] sm:$0xf]
        %v2936 = vld [vmem:[#allocation4 + $0x18c] sm:$0xf]
        %v2937 = vld [vmem:[#allocation4 + $0x190] sm:$0xf]
        %v2938 = vld [vmem:[#allocation4 + $0x194] sm:$0xf]
        %v2939 = vld [vmem:[#allocation4 + $0x198] sm:$0xf]
        %v2940 = vld [vmem:[#allocation4 + $0x19c] sm:$0xf]
        %v2941 = vld [vmem:[#allocation4 + $0x1a0] sm:$0xf]
        %v2942 = vld [vmem:[#allocation4 + $0x1a4] sm:$0xf]
        %v2943 = vld [vmem:[#allocation4 + $0x1a8] sm:$0xf]
        %v2944 = vld [vmem:[#allocation4 + $0x1ac] sm:$0xf]
        %v2945 = vld [vmem:[#allocation4 + $0x1b0] sm:$0xf]
        %v2946 = vld [vmem:[#allocation4 + $0x1b4] sm:$0xf]
        %v2947 = vld [vmem:[#allocation4 + $0x1b8] sm:$0xf]
        %v2948 = vld [vmem:[#allocation4 + $0x1bc] sm:$0xf]
        %v2949 = vunpack.c.l.bf16 %v2933
        %v2950 = vunpack.c.l.bf16 %v2934
        %v2951 = vunpack.c.l.bf16 %v2935
        %v2952 = vunpack.c.l.bf16 %v2936
        %v2953 = vunpack.c.l.bf16 %v2937
        %v2954 = vunpack.c.l.bf16 %v2938
        %v2955 = vunpack.c.l.bf16 %v2939
        %v2956 = vunpack.c.l.bf16 %v2940
        %v2957 = vunpack.c.l.bf16 %v2941
        %v2958 = vunpack.c.l.bf16 %v2942
        %v2959 = vunpack.c.l.bf16 %v2943
        %v2960 = vunpack.c.l.bf16 %v2944
        %v2961 = vunpack.c.l.bf16 %v2945
        %v2962 = vunpack.c.l.bf16 %v2946
        %v2963 = vunpack.c.l.bf16 %v2947
        %v2964 = vunpack.c.l.bf16 %v2948
        %v2965 = vld [vmem:[#allocation4 + $0x1c0] sm:$0x1]
        %v2966 = vunpack.c.l.bf16 %v2965
        %2967 = vmatpush.msra.mxu0 %v2964
        %2968 = vmatpush.msra.mxu0 %v2963
        %2969 = vmatpush.msra.mxu0 %v2962
        %2970 = vmatpush.msra.mxu0 %v2961
        %2971 = vmatpush.msra.mxu0 %v2960
        %2972 = vmatpush.msra.mxu0 %v2959
        %2973 = vmatpush.msra.mxu0 %v2958
        %2974 = vmatpush.msra.mxu0 %v2957
        %2975 = vmatpush.msra.mxu0 %v2956
        %2976 = vmatpush.msra.mxu0 %v2955
        %2977 = vmatpush.msra.mxu0 %v2954
        %2978 = vmatpush.msra.mxu0 %v2953
        %2979 = vmatpush.msra.mxu0 %v2952
        %2980 = vmatpush.msra.mxu0 %v2951
        %2981 = vmatpush.msra.mxu0 %v2950
        %2982 = vmatpush.msra.mxu0 %v2949
        %2983 = vmatmul.f32.gmra.mxu0 %v805
        %v2984 = vpop.f32.mrf.mxu0
        %v2985 = vadd.f32 %v2966, %v2984
        %2986 = vdwg.mxu0
        %v2987 = vld [vmem:[#allocation4 + $0x1c4] sm:$0xf]
        %v2988 = vld [vmem:[#allocation4 + $0x1c8] sm:$0xf]
        %v2989 = vld [vmem:[#allocation4 + $0x1cc] sm:$0xf]
        %v2990 = vld [vmem:[#allocation4 + $0x1d0] sm:$0xf]
        %v2991 = vld [vmem:[#allocation4 + $0x1d4] sm:$0xf]
        %v2992 = vld [vmem:[#allocation4 + $0x1d8] sm:$0xf]
        %v2993 = vld [vmem:[#allocation4 + $0x1dc] sm:$0xf]
        %v2994 = vld [vmem:[#allocation4 + $0x1e0] sm:$0xf]
        %v2995 = vld [vmem:[#allocation4 + $0x1e4] sm:$0xf]
        %v2996 = vld [vmem:[#allocation4 + $0x1e8] sm:$0xf]
        %v2997 = vld [vmem:[#allocation4 + $0x1ec] sm:$0xf]
        %v2998 = vld [vmem:[#allocation4 + $0x1f0] sm:$0xf]
        %v2999 = vld [vmem:[#allocation4 + $0x1f4] sm:$0xf]
        %v3000 = vld [vmem:[#allocation4 + $0x1f8] sm:$0xf]
        %v3001 = vld [vmem:[#allocation4 + $0x1fc] sm:$0xf]
        %v3002 = vld [vmem:[#allocation4 + $0x200] sm:$0xf]
        %v3003 = vunpack.c.l.bf16 %v2987
        %v3004 = vunpack.c.l.bf16 %v2988
        %v3005 = vunpack.c.l.bf16 %v2989
        %v3006 = vunpack.c.l.bf16 %v2990
        %v3007 = vunpack.c.l.bf16 %v2991
        %v3008 = vunpack.c.l.bf16 %v2992
        %v3009 = vunpack.c.l.bf16 %v2993
        %v3010 = vunpack.c.l.bf16 %v2994
        %v3011 = vunpack.c.l.bf16 %v2995
        %v3012 = vunpack.c.l.bf16 %v2996
        %v3013 = vunpack.c.l.bf16 %v2997
        %v3014 = vunpack.c.l.bf16 %v2998
        %v3015 = vunpack.c.l.bf16 %v2999
        %v3016 = vunpack.c.l.bf16 %v3000
        %v3017 = vunpack.c.l.bf16 %v3001
        %v3018 = vunpack.c.l.bf16 %v3002
        %v3019 = vld [vmem:[#allocation4 + $0x204] sm:$0x1]
        %v3020 = vunpack.c.l.bf16 %v3019
        %3021 = vmatpush.msra.mxu0 %v3018
        %3022 = vmatpush.msra.mxu0 %v3017
        %3023 = vmatpush.msra.mxu0 %v3016
        %3024 = vmatpush.msra.mxu0 %v3015
        %3025 = vmatpush.msra.mxu0 %v3014
        %3026 = vmatpush.msra.mxu0 %v3013
        %3027 = vmatpush.msra.mxu0 %v3012
        %3028 = vmatpush.msra.mxu0 %v3011
        %3029 = vmatpush.msra.mxu0 %v3010
        %3030 = vmatpush.msra.mxu0 %v3009
        %3031 = vmatpush.msra.mxu0 %v3008
        %3032 = vmatpush.msra.mxu0 %v3007
        %3033 = vmatpush.msra.mxu0 %v3006
        %3034 = vmatpush.msra.mxu0 %v3005
        %3035 = vmatpush.msra.mxu0 %v3004
        %3036 = vmatpush.msra.mxu0 %v3003
        %3037 = vmatmul.f32.gmra.mxu0 %v805
        %v3038 = vpop.f32.mrf.mxu0
        %v3039 = vadd.f32 %v3020, %v3038
        %3040 = vdwg.mxu0
        %v3041 = vperm.slane %v2985, 0
        %v3042 = vmul.f32 %v2901, %v3041
        %v3043 = vmul.f32 %v2902, %v3041
        %v3044 = vmul.f32 %v2903, %v3041
        %v3045 = vmul.f32 %v2904, %v3041
        %v3046 = vmul.f32 %v2905, %v3041
        %v3047 = vmul.f32 %v2906, %v3041
        %v3048 = vmul.f32 %v2907, %v3041
        %v3049 = vmul.f32 %v2908, %v3041
        %v3050 = vmul.f32 %v2909, %v3041
        %v3051 = vmul.f32 %v2910, %v3041
        %v3052 = vmul.f32 %v2911, %v3041
        %v3053 = vmul.f32 %v2912, %v3041
        %v3054 = vmul.f32 %v2913, %v3041
        %v3055 = vmul.f32 %v2914, %v3041
        %v3056 = vmul.f32 %v2915, %v3041
        %v3057 = vmul.f32 %v2916, %v3041
        %v3058 = vmul.f32 %v2917, %v3041
        %v3059 = vmul.f32 %v2918, %v3041
        %v3060 = vmul.f32 %v2919, %v3041
        %v3061 = vmul.f32 %v2920, %v3041
        %v3062 = vmul.f32 %v2921, %v3041
        %v3063 = vmul.f32 %v2922, %v3041
        %v3064 = vmul.f32 %v2923, %v3041
        %v3065 = vmul.f32 %v2924, %v3041
        %v3066 = vmul.f32 %v2925, %v3041
        %v3067 = vmul.f32 %v2926, %v3041
        %v3068 = vmul.f32 %v2927, %v3041
        %v3069 = vmul.f32 %v2928, %v3041
        %v3070 = vmul.f32 %v2929, %v3041
        %v3071 = vmul.f32 %v2930, %v3041
        %v3072 = vmul.f32 %v2931, %v3041
        %v3073 = vmul.f32 %v2932, %v3041
        %v3074 = vperm.slane %v3039, 0
        %v3075 = vadd.f32 %v3042, %v3074
        %v3076 = vadd.f32 %v3043, %v3074
        %v3077 = vadd.f32 %v3044, %v3074
        %v3078 = vadd.f32 %v3045, %v3074
        %v3079 = vadd.f32 %v3046, %v3074
        %v3080 = vadd.f32 %v3047, %v3074
        %v3081 = vadd.f32 %v3048, %v3074
        %v3082 = vadd.f32 %v3049, %v3074
        %v3083 = vadd.f32 %v3050, %v3074
        %v3084 = vadd.f32 %v3051, %v3074
        %v3085 = vadd.f32 %v3052, %v3074
        %v3086 = vadd.f32 %v3053, %v3074
        %v3087 = vadd.f32 %v3054, %v3074
        %v3088 = vadd.f32 %v3055, %v3074
        %v3089 = vadd.f32 %v3056, %v3074
        %v3090 = vadd.f32 %v3057, %v3074
        %v3091 = vadd.f32 %v3058, %v3074
        %v3092 = vadd.f32 %v3059, %v3074
        %v3093 = vadd.f32 %v3060, %v3074
        %v3094 = vadd.f32 %v3061, %v3074
        %v3095 = vadd.f32 %v3062, %v3074
        %v3096 = vadd.f32 %v3063, %v3074
        %v3097 = vadd.f32 %v3064, %v3074
        %v3098 = vadd.f32 %v3065, %v3074
        %v3099 = vadd.f32 %v3066, %v3074
        %v3100 = vadd.f32 %v3067, %v3074
        %v3101 = vadd.f32 %v3068, %v3074
        %v3102 = vadd.f32 %v3069, %v3074
        %v3103 = vadd.f32 %v3070, %v3074
        %v3104 = vadd.f32 %v3071, %v3074
        %v3105 = vadd.f32 %v3072, %v3074
        %v3106 = vadd.f32 %v3073, %v3074
        %v3107 = vld [vmem:[#allocation4 + $0x208] sm:$0xf]
        %v3108 = vld [vmem:[#allocation4 + $0x20c] sm:$0xf]
        %v3109 = vld [vmem:[#allocation4 + $0x210] sm:$0xf]
        %v3110 = vld [vmem:[#allocation4 + $0x214] sm:$0xf]
        %v3111 = vld [vmem:[#allocation4 + $0x218] sm:$0xf]
        %v3112 = vld [vmem:[#allocation4 + $0x21c] sm:$0xf]
        %v3113 = vld [vmem:[#allocation4 + $0x220] sm:$0xf]
        %v3114 = vld [vmem:[#allocation4 + $0x224] sm:$0xf]
        %v3115 = vunpack.c.l.bf16 %v3107
        %v3116 = vunpack.c.l.bf16 %v3108
        %v3117 = vunpack.c.l.bf16 %v3109
        %v3118 = vunpack.c.l.bf16 %v3110
        %v3119 = vunpack.c.l.bf16 %v3111
        %v3120 = vunpack.c.l.bf16 %v3112
        %v3121 = vunpack.c.l.bf16 %v3113
        %v3122 = vunpack.c.l.bf16 %v3114
        %v3124 = vsel %vm588, %v3075, 0
        %v3127 = vsel %vm588, %v3076, 0
        %v3130 = vsel %vm588, %v3077, 0
        %v3133 = vsel %vm588, %v3078, 0
        %v3136 = vsel %vm588, %v3079, 0
        %v3139 = vsel %vm588, %v3080, 0
        %v3142 = vsel %vm588, %v3081, 0
        %v3145 = vsel %vm588, %v3082, 0
        %v3148 = vsel %vm588, %v3083, 0
        %v3151 = vsel %vm588, %v3084, 0
        %v3154 = vsel %vm588, %v3085, 0
        %v3157 = vsel %vm588, %v3086, 0
        %v3160 = vsel %vm588, %v3087, 0
        %v3163 = vsel %vm588, %v3088, 0
        %v3166 = vsel %vm588, %v3089, 0
        %v3169 = vsel %vm588, %v3090, 0
        %v3172 = vsel %vm588, %v3091, 0
        %v3175 = vsel %vm588, %v3092, 0
        %v3178 = vsel %vm588, %v3093, 0
        %v3181 = vsel %vm588, %v3094, 0
        %v3184 = vsel %vm588, %v3095, 0
        %v3187 = vsel %vm588, %v3096, 0
        %v3190 = vsel %vm588, %v3097, 0
        %v3193 = vsel %vm588, %v3098, 0
        %v3196 = vsel %vm588, %v3099, 0
        %v3199 = vsel %vm588, %v3100, 0
        %v3202 = vsel %vm588, %v3101, 0
        %v3205 = vsel %vm588, %v3102, 0
        %v3208 = vsel %vm588, %v3103, 0
        %v3211 = vsel %vm588, %v3104, 0
        %v3214 = vsel %vm588, %v3105, 0
        %v3217 = vsel %vm588, %v3106, 0
        %3219 = vmatpush.msra.mxu0 0.0
        %3220 = vmatpush.msra.mxu0 0.0
        %3221 = vmatpush.msra.mxu0 0.0
        %3222 = vmatpush.msra.mxu0 0.0
        %3223 = vmatpush.msra.mxu0 0.0
        %3224 = vmatpush.msra.mxu0 0.0
        %3225 = vmatpush.msra.mxu0 0.0
        %3226 = vmatpush.msra.mxu0 0.0
        %3227 = vmatpush.msra.mxu0 %v3122
        %3228 = vmatpush.msra.mxu0 %v3121
        %3229 = vmatpush.msra.mxu0 %v3120
        %3230 = vmatpush.msra.mxu0 %v3119
        %3231 = vmatpush.msra.mxu0 %v3118
        %3232 = vmatpush.msra.mxu0 %v3117
        %3233 = vmatpush.msra.mxu0 %v3116
        %3234 = vmatpush.msra.mxu0 %v3115
        %3235 = vmatmul.f32.gmra.mxu0 %v3124
        %v3236 = vpop.f32.mrf.mxu0
        %v3237 = vadd.f32 0.0, %v3236
        %3238 = vmatmul.f32.gmra.mxu0 %v3127
        %v3239 = vpop.f32.mrf.mxu0
        %v3240 = vadd.f32 0.0, %v3239
        %3241 = vmatmul.f32.gmra.mxu0 %v3130
        %v3242 = vpop.f32.mrf.mxu0
        %v3243 = vadd.f32 0.0, %v3242
        %3244 = vmatmul.f32.gmra.mxu0 %v3133
        %v3245 = vpop.f32.mrf.mxu0
        %v3246 = vadd.f32 0.0, %v3245
        %3247 = vmatmul.f32.gmra.mxu0 %v3136
        %v3248 = vpop.f32.mrf.mxu0
        %v3249 = vadd.f32 0.0, %v3248
        %3250 = vmatmul.f32.gmra.mxu0 %v3139
        %v3251 = vpop.f32.mrf.mxu0
        %v3252 = vadd.f32 0.0, %v3251
        %3253 = vmatmul.f32.gmra.mxu0 %v3142
        %v3254 = vpop.f32.mrf.mxu0
        %v3255 = vadd.f32 0.0, %v3254
        %3256 = vmatmul.f32.gmra.mxu0 %v3145
        %v3257 = vpop.f32.mrf.mxu0
        %v3258 = vadd.f32 0.0, %v3257
        %3259 = vmatmul.f32.gmra.mxu0 %v3148
        %v3260 = vpop.f32.mrf.mxu0
        %v3261 = vadd.f32 0.0, %v3260
        %3262 = vmatmul.f32.gmra.mxu0 %v3151
        %v3263 = vpop.f32.mrf.mxu0
        %v3264 = vadd.f32 0.0, %v3263
        %3265 = vmatmul.f32.gmra.mxu0 %v3154
        %v3266 = vpop.f32.mrf.mxu0
        %v3267 = vadd.f32 0.0, %v3266
        %3268 = vmatmul.f32.gmra.mxu0 %v3157
        %v3269 = vpop.f32.mrf.mxu0
        %v3270 = vadd.f32 0.0, %v3269
        %3271 = vmatmul.f32.gmra.mxu0 %v3160
        %v3272 = vpop.f32.mrf.mxu0
        %v3273 = vadd.f32 0.0, %v3272
        %3274 = vmatmul.f32.gmra.mxu0 %v3163
        %v3275 = vpop.f32.mrf.mxu0
        %v3276 = vadd.f32 0.0, %v3275
        %3277 = vmatmul.f32.gmra.mxu0 %v3166
        %v3278 = vpop.f32.mrf.mxu0
        %v3279 = vadd.f32 0.0, %v3278
        %3280 = vmatmul.f32.gmra.mxu0 %v3169
        %v3281 = vpop.f32.mrf.mxu0
        %v3282 = vadd.f32 0.0, %v3281
        %3283 = vmatmul.f32.gmra.mxu0 %v3172
        %v3284 = vpop.f32.mrf.mxu0
        %v3285 = vadd.f32 0.0, %v3284
        %3286 = vmatmul.f32.gmra.mxu0 %v3175
        %v3287 = vpop.f32.mrf.mxu0
        %v3288 = vadd.f32 0.0, %v3287
        %3289 = vmatmul.f32.gmra.mxu0 %v3178
        %v3290 = vpop.f32.mrf.mxu0
        %v3291 = vadd.f32 0.0, %v3290
        %3292 = vmatmul.f32.gmra.mxu0 %v3181
        %v3293 = vpop.f32.mrf.mxu0
        %v3294 = vadd.f32 0.0, %v3293
        %3295 = vmatmul.f32.gmra.mxu0 %v3184
        %v3296 = vpop.f32.mrf.mxu0
        %v3297 = vadd.f32 0.0, %v3296
        %3298 = vmatmul.f32.gmra.mxu0 %v3187
        %v3299 = vpop.f32.mrf.mxu0
        %v3300 = vadd.f32 0.0, %v3299
        %3301 = vmatmul.f32.gmra.mxu0 %v3190
        %v3302 = vpop.f32.mrf.mxu0
        %v3303 = vadd.f32 0.0, %v3302
        %3304 = vmatmul.f32.gmra.mxu0 %v3193
        %v3305 = vpop.f32.mrf.mxu0
        %v3306 = vadd.f32 0.0, %v3305
        %3307 = vmatmul.f32.gmra.mxu0 %v3196
        %v3308 = vpop.f32.mrf.mxu0
        %v3309 = vadd.f32 0.0, %v3308
        %3310 = vmatmul.f32.gmra.mxu0 %v3199
        %v3311 = vpop.f32.mrf.mxu0
        %v3312 = vadd.f32 0.0, %v3311
        %3313 = vmatmul.f32.gmra.mxu0 %v3202
        %v3314 = vpop.f32.mrf.mxu0
        %v3315 = vadd.f32 0.0, %v3314
        %3316 = vmatmul.f32.gmra.mxu0 %v3205
        %v3317 = vpop.f32.mrf.mxu0
        %v3318 = vadd.f32 0.0, %v3317
        %3319 = vmatmul.f32.gmra.mxu0 %v3208
        %v3320 = vpop.f32.mrf.mxu0
        %v3321 = vadd.f32 0.0, %v3320
        %3322 = vmatmul.f32.gmra.mxu0 %v3211
        %v3323 = vpop.f32.mrf.mxu0
        %v3324 = vadd.f32 0.0, %v3323
        %3325 = vmatmul.f32.gmra.mxu0 %v3214
        %v3326 = vpop.f32.mrf.mxu0
        %v3327 = vadd.f32 0.0, %v3326
        %3328 = vmatmul.f32.gmra.mxu0 %v3217
        %v3329 = vpop.f32.mrf.mxu0
        %v3330 = vadd.f32 0.0, %v3329
        %3331 = vdwg.mxu0
        %v3332 = vld [vmem:[#allocation4 + $0x228] sm:$0xf]
        %v3333 = vld [vmem:[#allocation4 + $0x22c] sm:$0xf]
        %v3334 = vld [vmem:[#allocation4 + $0x230] sm:$0xf]
        %v3335 = vld [vmem:[#allocation4 + $0x234] sm:$0xf]
        %v3336 = vld [vmem:[#allocation4 + $0x238] sm:$0xf]
        %v3337 = vld [vmem:[#allocation4 + $0x23c] sm:$0xf]
        %v3338 = vld [vmem:[#allocation4 + $0x240] sm:$0xf]
        %v3339 = vld [vmem:[#allocation4 + $0x244] sm:$0xf]
        %v3340 = vld [vmem:[#allocation4 + $0x248] sm:$0xf]
        %v3341 = vld [vmem:[#allocation4 + $0x24c] sm:$0xf]
        %v3342 = vld [vmem:[#allocation4 + $0x250] sm:$0xf]
        %v3343 = vld [vmem:[#allocation4 + $0x254] sm:$0xf]
        %v3344 = vld [vmem:[#allocation4 + $0x258] sm:$0xf]
        %v3345 = vld [vmem:[#allocation4 + $0x25c] sm:$0xf]
        %v3346 = vld [vmem:[#allocation4 + $0x260] sm:$0xf]
        %v3347 = vld [vmem:[#allocation4 + $0x264] sm:$0xf]
        %v3348 = vunpack.c.l.bf16 %v3332
        %v3349 = vunpack.c.l.bf16 %v3333
        %v3350 = vunpack.c.l.bf16 %v3334
        %v3351 = vunpack.c.l.bf16 %v3335
        %v3352 = vunpack.c.l.bf16 %v3336
        %v3353 = vunpack.c.l.bf16 %v3337
        %v3354 = vunpack.c.l.bf16 %v3338
        %v3355 = vunpack.c.l.bf16 %v3339
        %v3356 = vunpack.c.l.bf16 %v3340
        %v3357 = vunpack.c.l.bf16 %v3341
        %v3358 = vunpack.c.l.bf16 %v3342
        %v3359 = vunpack.c.l.bf16 %v3343
        %v3360 = vunpack.c.l.bf16 %v3344
        %v3361 = vunpack.c.l.bf16 %v3345
        %v3362 = vunpack.c.l.bf16 %v3346
        %v3363 = vunpack.c.l.bf16 %v3347
        %3364 = vmatpush.msra.mxu0 %v3363
        %3365 = vmatpush.msra.mxu0 %v3362
        %3366 = vmatpush.msra.mxu0 %v3361
        %3367 = vmatpush.msra.mxu0 %v3360
        %3368 = vmatpush.msra.mxu0 %v3359
        %3369 = vmatpush.msra.mxu0 %v3358
        %3370 = vmatpush.msra.mxu0 %v3357
        %3371 = vmatpush.msra.mxu0 %v3356
        %3372 = vmatpush.msra.mxu0 %v3355
        %3373 = vmatpush.msra.mxu0 %v3354
        %3374 = vmatpush.msra.mxu0 %v3353
        %3375 = vmatpush.msra.mxu0 %v3352
        %3376 = vmatpush.msra.mxu0 %v3351
        %3377 = vmatpush.msra.mxu0 %v3350
        %3378 = vmatpush.msra.mxu0 %v3349
        %3379 = vmatpush.msra.mxu0 %v3348
        %3380 = vmatmul.f32.gmra.mxu0 %v655
        %v3381 = vpop.f32.mrf.mxu0
        %v3382 = vadd.f32 0.0, %v3381
        %3383 = vmatmul.f32.gmra.mxu0 %v658
        %v3384 = vpop.f32.mrf.mxu0
        %v3385 = vadd.f32 0.0, %v3384
        %3386 = vmatmul.f32.gmra.mxu0 %v661
        %v3387 = vpop.f32.mrf.mxu0
        %v3388 = vadd.f32 0.0, %v3387
        %3389 = vmatmul.f32.gmra.mxu0 %v664
        %v3390 = vpop.f32.mrf.mxu0
        %v3391 = vadd.f32 0.0, %v3390
        %3392 = vmatmul.f32.gmra.mxu0 %v667
        %v3393 = vpop.f32.mrf.mxu0
        %v3394 = vadd.f32 0.0, %v3393
        %3395 = vmatmul.f32.gmra.mxu0 %v670
        %v3396 = vpop.f32.mrf.mxu0
        %v3397 = vadd.f32 0.0, %v3396
        %3398 = vmatmul.f32.gmra.mxu0 %v673
        %v3399 = vpop.f32.mrf.mxu0
        %v3400 = vadd.f32 0.0, %v3399
        %3401 = vmatmul.f32.gmra.mxu0 %v676
        %v3402 = vpop.f32.mrf.mxu0
        %v3403 = vadd.f32 0.0, %v3402
        %3404 = vmatmul.f32.gmra.mxu0 %v679
        %v3405 = vpop.f32.mrf.mxu0
        %v3406 = vadd.f32 0.0, %v3405
        %3407 = vmatmul.f32.gmra.mxu0 %v682
        %v3408 = vpop.f32.mrf.mxu0
        %v3409 = vadd.f32 0.0, %v3408
        %3410 = vmatmul.f32.gmra.mxu0 %v685
        %v3411 = vpop.f32.mrf.mxu0
        %v3412 = vadd.f32 0.0, %v3411
        %3413 = vmatmul.f32.gmra.mxu0 %v688
        %v3414 = vpop.f32.mrf.mxu0
        %v3415 = vadd.f32 0.0, %v3414
        %3416 = vmatmul.f32.gmra.mxu0 %v691
        %v3417 = vpop.f32.mrf.mxu0
        %v3418 = vadd.f32 0.0, %v3417
        %3419 = vmatmul.f32.gmra.mxu0 %v694
        %v3420 = vpop.f32.mrf.mxu0
        %v3421 = vadd.f32 0.0, %v3420
        %3422 = vmatmul.f32.gmra.mxu0 %v697
        %v3423 = vpop.f32.mrf.mxu0
        %v3424 = vadd.f32 0.0, %v3423
        %3425 = vmatmul.f32.gmra.mxu0 %v700
        %v3426 = vpop.f32.mrf.mxu0
        %v3427 = vadd.f32 0.0, %v3426
        %3428 = vdwg.mxu0
        %v3429 = vpack.c.bf16 %v3385, %v3382
        %v3430 = vpack.c.bf16 %v3391, %v3388
        %v3431 = vpack.c.bf16 %v3397, %v3394
        %v3432 = vpack.c.bf16 %v3403, %v3400
        %v3433 = vpack.c.bf16 %v3409, %v3406
        %v3434 = vpack.c.bf16 %v3415, %v3412
        %v3435 = vpack.c.bf16 %v3421, %v3418
        %v3436 = vpack.c.bf16 %v3427, %v3424
        %v3437 = vpack.c.bf16 %v3240, %v3237
        %v3438 = vpack.c.bf16 %v3246, %v3243
        %v3439 = vpack.c.bf16 %v3252, %v3249
        %v3440 = vpack.c.bf16 %v3258, %v3255
        %v3441 = vpack.c.bf16 %v3264, %v3261
        %v3442 = vpack.c.bf16 %v3270, %v3267
        %v3443 = vpack.c.bf16 %v3276, %v3273
        %v3444 = vpack.c.bf16 %v3282, %v3279
        %v3445 = vpack.c.bf16 %v3288, %v3285
        %v3446 = vpack.c.bf16 %v3294, %v3291
        %v3447 = vpack.c.bf16 %v3300, %v3297
        %v3448 = vpack.c.bf16 %v3306, %v3303
        %v3449 = vpack.c.bf16 %v3312, %v3309
        %v3450 = vpack.c.bf16 %v3318, %v3315
        %v3451 = vpack.c.bf16 %v3324, %v3321
        %v3452 = vpack.c.bf16 %v3330, %v3327
        %3453 = vmatpush.bf16.xpose.msra.mxu0 %v3436
        %3454 = vmatpush.bf16.xpose.msra.mxu0 %v3435
        %3455 = vmatpush.bf16.xpose.msra.mxu0 %v3434
        %3456 = vmatpush.bf16.xpose.msra.mxu0 %v3433
        %3457 = vmatpush.bf16.xpose.msra.mxu0 %v3432
        %3458 = vmatpush.bf16.xpose.msra.mxu0 %v3431
        %3459 = vmatpush.bf16.xpose.msra.mxu0 %v3430
        %3460 = vmatpush.bf16.xpose.msra.mxu0 %v3429
        %3461 = vmatmul.bf16.gmra.mxu0 %v3437
        %v3462 = vpop.f32.mrf.mxu0
        %v3463 = vadd.f32 0.0, %v3462
        %v3464 = vpop.f32.mrf.mxu0
        %v3465 = vadd.f32 0.0, %v3464
        %3466 = vmatmul.bf16.gmra.mxu0 %v3438
        %v3467 = vpop.f32.mrf.mxu0
        %v3468 = vadd.f32 0.0, %v3467
        %v3469 = vpop.f32.mrf.mxu0
        %v3470 = vadd.f32 0.0, %v3469
        %3471 = vmatmul.bf16.gmra.mxu0 %v3439
        %v3472 = vpop.f32.mrf.mxu0
        %v3473 = vadd.f32 0.0, %v3472
        %v3474 = vpop.f32.mrf.mxu0
        %v3475 = vadd.f32 0.0, %v3474
        %3476 = vmatmul.bf16.gmra.mxu0 %v3440
        %v3477 = vpop.f32.mrf.mxu0
        %v3478 = vadd.f32 0.0, %v3477
        %v3479 = vpop.f32.mrf.mxu0
        %v3480 = vadd.f32 0.0, %v3479
        %3481 = vmatmul.bf16.gmra.mxu0 %v3441
        %v3482 = vpop.f32.mrf.mxu0
        %v3483 = vadd.f32 0.0, %v3482
        %v3484 = vpop.f32.mrf.mxu0
        %v3485 = vadd.f32 0.0, %v3484
        %3486 = vmatmul.bf16.gmra.mxu0 %v3442
        %v3487 = vpop.f32.mrf.mxu0
        %v3488 = vadd.f32 0.0, %v3487
        %v3489 = vpop.f32.mrf.mxu0
        %v3490 = vadd.f32 0.0, %v3489
        %3491 = vmatmul.bf16.gmra.mxu0 %v3443
        %v3492 = vpop.f32.mrf.mxu0
        %v3493 = vadd.f32 0.0, %v3492
        %v3494 = vpop.f32.mrf.mxu0
        %v3495 = vadd.f32 0.0, %v3494
        %3496 = vmatmul.bf16.gmra.mxu0 %v3444
        %v3497 = vpop.f32.mrf.mxu0
        %v3498 = vadd.f32 0.0, %v3497
        %v3499 = vpop.f32.mrf.mxu0
        %v3500 = vadd.f32 0.0, %v3499
        %3501 = vmatmul.bf16.gmra.mxu0 %v3445
        %v3502 = vpop.f32.mrf.mxu0
        %v3503 = vadd.f32 0.0, %v3502
        %v3504 = vpop.f32.mrf.mxu0
        %v3505 = vadd.f32 0.0, %v3504
        %3506 = vmatmul.bf16.gmra.mxu0 %v3446
        %v3507 = vpop.f32.mrf.mxu0
        %v3508 = vadd.f32 0.0, %v3507
        %v3509 = vpop.f32.mrf.mxu0
        %v3510 = vadd.f32 0.0, %v3509
        %3511 = vmatmul.bf16.gmra.mxu0 %v3447
        %v3512 = vpop.f32.mrf.mxu0
        %v3513 = vadd.f32 0.0, %v3512
        %v3514 = vpop.f32.mrf.mxu0
        %v3515 = vadd.f32 0.0, %v3514
        %3516 = vmatmul.bf16.gmra.mxu0 %v3448
        %v3517 = vpop.f32.mrf.mxu0
        %v3518 = vadd.f32 0.0, %v3517
        %v3519 = vpop.f32.mrf.mxu0
        %v3520 = vadd.f32 0.0, %v3519
        %3521 = vmatmul.bf16.gmra.mxu0 %v3449
        %v3522 = vpop.f32.mrf.mxu0
        %v3523 = vadd.f32 0.0, %v3522
        %v3524 = vpop.f32.mrf.mxu0
        %v3525 = vadd.f32 0.0, %v3524
        %3526 = vmatmul.bf16.gmra.mxu0 %v3450
        %v3527 = vpop.f32.mrf.mxu0
        %v3528 = vadd.f32 0.0, %v3527
        %v3529 = vpop.f32.mrf.mxu0
        %v3530 = vadd.f32 0.0, %v3529
        %3531 = vmatmul.bf16.gmra.mxu0 %v3451
        %v3532 = vpop.f32.mrf.mxu0
        %v3533 = vadd.f32 0.0, %v3532
        %v3534 = vpop.f32.mrf.mxu0
        %v3535 = vadd.f32 0.0, %v3534
        %3536 = vmatmul.bf16.gmra.mxu0 %v3452
        %v3537 = vpop.f32.mrf.mxu0
        %v3538 = vadd.f32 0.0, %v3537
        %v3539 = vpop.f32.mrf.mxu0
        %v3540 = vadd.f32 0.0, %v3539
        %3541 = vdwg.mxu0
        %3542 = vmax.xlane.f32.xlu0 %v3463
        %v3543 = vpop.xlane.xlu0 %3542
        %3544 = vmax.xlane.f32.xlu0 %v3465
        %v3545 = vpop.xlane.xlu0 %3544
        %3546 = vmax.xlane.f32.xlu0 %v3468
        %v3547 = vpop.xlane.xlu0 %3546
        %3548 = vmax.xlane.f32.xlu0 %v3470
        %v3549 = vpop.xlane.xlu0 %3548
        %3550 = vmax.xlane.f32.xlu0 %v3473
        %v3551 = vpop.xlane.xlu0 %3550
        %3552 = vmax.xlane.f32.xlu0 %v3475
        %v3553 = vpop.xlane.xlu0 %3552
        %3554 = vmax.xlane.f32.xlu0 %v3478
        %v3555 = vpop.xlane.xlu0 %3554
        %3556 = vmax.xlane.f32.xlu0 %v3480
        %v3557 = vpop.xlane.xlu0 %3556
        %3558 = vmax.xlane.f32.xlu0 %v3483
        %v3559 = vpop.xlane.xlu0 %3558
        %3560 = vmax.xlane.f32.xlu0 %v3485
        %v3561 = vpop.xlane.xlu0 %3560
        %3562 = vmax.xlane.f32.xlu0 %v3488
        %v3563 = vpop.xlane.xlu0 %3562
        %3564 = vmax.xlane.f32.xlu0 %v3490
        %v3565 = vpop.xlane.xlu0 %3564
        %3566 = vmax.xlane.f32.xlu0 %v3493
        %v3567 = vpop.xlane.xlu0 %3566
        %3568 = vmax.xlane.f32.xlu0 %v3495
        %v3569 = vpop.xlane.xlu0 %3568
        %3570 = vmax.xlane.f32.xlu0 %v3498
        %v3571 = vpop.xlane.xlu0 %3570
        %3572 = vmax.xlane.f32.xlu0 %v3500
        %v3573 = vpop.xlane.xlu0 %3572
        %3574 = vmax.xlane.f32.xlu0 %v3503
        %v3575 = vpop.xlane.xlu0 %3574
        %3576 = vmax.xlane.f32.xlu0 %v3505
        %v3577 = vpop.xlane.xlu0 %3576
        %3578 = vmax.xlane.f32.xlu0 %v3508
        %v3579 = vpop.xlane.xlu0 %3578
        %3580 = vmax.xlane.f32.xlu0 %v3510
        %v3581 = vpop.xlane.xlu0 %3580
        %3582 = vmax.xlane.f32.xlu0 %v3513
        %v3583 = vpop.xlane.xlu0 %3582
        %3584 = vmax.xlane.f32.xlu0 %v3515
        %v3585 = vpop.xlane.xlu0 %3584
        %3586 = vmax.xlane.f32.xlu0 %v3518
        %v3587 = vpop.xlane.xlu0 %3586
        %3588 = vmax.xlane.f32.xlu0 %v3520
        %v3589 = vpop.xlane.xlu0 %3588
        %3590 = vmax.xlane.f32.xlu0 %v3523
        %v3591 = vpop.xlane.xlu0 %3590
        %3592 = vmax.xlane.f32.xlu0 %v3525
        %v3593 = vpop.xlane.xlu0 %3592
        %3594 = vmax.xlane.f32.xlu0 %v3528
        %v3595 = vpop.xlane.xlu0 %3594
        %3596 = vmax.xlane.f32.xlu0 %v3530
        %v3597 = vpop.xlane.xlu0 %3596
        %3598 = vmax.xlane.f32.xlu0 %v3533
        %v3599 = vpop.xlane.xlu0 %3598
        %3600 = vmax.xlane.f32.xlu0 %v3535
        %v3601 = vpop.xlane.xlu0 %3600
        %3602 = vmax.xlane.f32.xlu0 %v3538
        %v3603 = vpop.xlane.xlu0 %3602
        %3604 = vmax.xlane.f32.xlu0 %v3540
        %v3605 = vpop.xlane.xlu0 %3604
        %v3606 = vsub.f32 %v3463, %v3543
        %v3607 = vsub.f32 %v3465, %v3545
        %v3608 = vsub.f32 %v3468, %v3547
        %v3609 = vsub.f32 %v3470, %v3549
        %v3610 = vsub.f32 %v3473, %v3551
        %v3611 = vsub.f32 %v3475, %v3553
        %v3612 = vsub.f32 %v3478, %v3555
        %v3613 = vsub.f32 %v3480, %v3557
        %v3614 = vsub.f32 %v3483, %v3559
        %v3615 = vsub.f32 %v3485, %v3561
        %v3616 = vsub.f32 %v3488, %v3563
        %v3617 = vsub.f32 %v3490, %v3565
        %v3618 = vsub.f32 %v3493, %v3567
        %v3619 = vsub.f32 %v3495, %v3569
        %v3620 = vsub.f32 %v3498, %v3571
        %v3621 = vsub.f32 %v3500, %v3573
        %v3622 = vsub.f32 %v3503, %v3575
        %v3623 = vsub.f32 %v3505, %v3577
        %v3624 = vsub.f32 %v3508, %v3579
        %v3625 = vsub.f32 %v3510, %v3581
        %v3626 = vsub.f32 %v3513, %v3583
        %v3627 = vsub.f32 %v3515, %v3585
        %v3628 = vsub.f32 %v3518, %v3587
        %v3629 = vsub.f32 %v3520, %v3589
        %v3630 = vsub.f32 %v3523, %v3591
        %v3631 = vsub.f32 %v3525, %v3593
        %v3632 = vsub.f32 %v3528, %v3595
        %v3633 = vsub.f32 %v3530, %v3597
        %v3634 = vsub.f32 %v3533, %v3599
        %v3635 = vsub.f32 %v3535, %v3601
        %v3636 = vsub.f32 %v3538, %v3603
        %v3637 = vsub.f32 %v3540, %v3605
        %v3638 = vmul.f32 %v3606, 1.442695
        %v3639 = vpow.pop %v3638
        %v3640 = vmul.f32 %v3607, 1.442695
        %v3641 = vpow.pop %v3640
        %v3642 = vmul.f32 %v3608, 1.442695
        %v3643 = vpow.pop %v3642
        %v3644 = vmul.f32 %v3609, 1.442695
        %v3645 = vpow.pop %v3644
        %v3646 = vmul.f32 %v3610, 1.442695
        %v3647 = vpow.pop %v3646
        %v3648 = vmul.f32 %v3611, 1.442695
        %v3649 = vpow.pop %v3648
        %v3650 = vmul.f32 %v3612, 1.442695
        %v3651 = vpow.pop %v3650
        %v3652 = vmul.f32 %v3613, 1.442695
        %v3653 = vpow.pop %v3652
        %v3654 = vmul.f32 %v3614, 1.442695
        %v3655 = vpow.pop %v3654
        %v3656 = vmul.f32 %v3615, 1.442695
        %v3657 = vpow.pop %v3656
        %v3658 = vmul.f32 %v3616, 1.442695
        %v3659 = vpow.pop %v3658
        %v3660 = vmul.f32 %v3617, 1.442695
        %v3661 = vpow.pop %v3660
        %v3662 = vmul.f32 %v3618, 1.442695
        %v3663 = vpow.pop %v3662
        %v3664 = vmul.f32 %v3619, 1.442695
        %v3665 = vpow.pop %v3664
        %v3666 = vmul.f32 %v3620, 1.442695
        %v3667 = vpow.pop %v3666
        %v3668 = vmul.f32 %v3621, 1.442695
        %v3669 = vpow.pop %v3668
        %v3670 = vmul.f32 %v3622, 1.442695
        %v3671 = vpow.pop %v3670
        %v3672 = vmul.f32 %v3623, 1.442695
        %v3673 = vpow.pop %v3672
        %v3674 = vmul.f32 %v3624, 1.442695
        %v3675 = vpow.pop %v3674
        %v3676 = vmul.f32 %v3625, 1.442695
        %v3677 = vpow.pop %v3676
        %v3678 = vmul.f32 %v3626, 1.442695
        %v3679 = vpow.pop %v3678
        %v3680 = vmul.f32 %v3627, 1.442695
        %v3681 = vpow.pop %v3680
        %v3682 = vmul.f32 %v3628, 1.442695
        %v3683 = vpow.pop %v3682
        %v3684 = vmul.f32 %v3629, 1.442695
        %v3685 = vpow.pop %v3684
        %v3686 = vmul.f32 %v3630, 1.442695
        %v3687 = vpow.pop %v3686
        %v3688 = vmul.f32 %v3631, 1.442695
        %v3689 = vpow.pop %v3688
        %v3690 = vmul.f32 %v3632, 1.442695
        %v3691 = vpow.pop %v3690
        %v3692 = vmul.f32 %v3633, 1.442695
        %v3693 = vpow.pop %v3692
        %v3694 = vmul.f32 %v3634, 1.442695
        %v3695 = vpow.pop %v3694
        %v3696 = vmul.f32 %v3635, 1.442695
        %v3697 = vpow.pop %v3696
        %v3698 = vmul.f32 %v3636, 1.442695
        %v3699 = vpow.pop %v3698
        %v3700 = vmul.f32 %v3637, 1.442695
        %v3701 = vpow.pop %v3700
        %3702 = vadd.xlane.f32.xlu0 %v3639
        %v3703 = vpop.xlane.xlu0 %3702
        %3704 = vadd.xlane.f32.xlu0 %v3641
        %v3705 = vpop.xlane.xlu0 %3704
        %3706 = vadd.xlane.f32.xlu0 %v3643
        %v3707 = vpop.xlane.xlu0 %3706
        %3708 = vadd.xlane.f32.xlu0 %v3645
        %v3709 = vpop.xlane.xlu0 %3708
        %3710 = vadd.xlane.f32.xlu0 %v3647
        %v3711 = vpop.xlane.xlu0 %3710
        %3712 = vadd.xlane.f32.xlu0 %v3649
        %v3713 = vpop.xlane.xlu0 %3712
        %3714 = vadd.xlane.f32.xlu0 %v3651
        %v3715 = vpop.xlane.xlu0 %3714
        %3716 = vadd.xlane.f32.xlu0 %v3653
        %v3717 = vpop.xlane.xlu0 %3716
        %3718 = vadd.xlane.f32.xlu0 %v3655
        %v3719 = vpop.xlane.xlu0 %3718
        %3720 = vadd.xlane.f32.xlu0 %v3657
        %v3721 = vpop.xlane.xlu0 %3720
        %3722 = vadd.xlane.f32.xlu0 %v3659
        %v3723 = vpop.xlane.xlu0 %3722
        %3724 = vadd.xlane.f32.xlu0 %v3661
        %v3725 = vpop.xlane.xlu0 %3724
        %3726 = vadd.xlane.f32.xlu0 %v3663
        %v3727 = vpop.xlane.xlu0 %3726
        %3728 = vadd.xlane.f32.xlu0 %v3665
        %v3729 = vpop.xlane.xlu0 %3728
        %3730 = vadd.xlane.f32.xlu0 %v3667
        %v3731 = vpop.xlane.xlu0 %3730
        %3732 = vadd.xlane.f32.xlu0 %v3669
        %v3733 = vpop.xlane.xlu0 %3732
        %3734 = vadd.xlane.f32.xlu0 %v3671
        %v3735 = vpop.xlane.xlu0 %3734
        %3736 = vadd.xlane.f32.xlu0 %v3673
        %v3737 = vpop.xlane.xlu0 %3736
        %3738 = vadd.xlane.f32.xlu0 %v3675
        %v3739 = vpop.xlane.xlu0 %3738
        %3740 = vadd.xlane.f32.xlu0 %v3677
        %v3741 = vpop.xlane.xlu0 %3740
        %3742 = vadd.xlane.f32.xlu0 %v3679
        %v3743 = vpop.xlane.xlu0 %3742
        %3744 = vadd.xlane.f32.xlu0 %v3681
        %v3745 = vpop.xlane.xlu0 %3744
        %3746 = vadd.xlane.f32.xlu0 %v3683
        %v3747 = vpop.xlane.xlu0 %3746
        %3748 = vadd.xlane.f32.xlu0 %v3685
        %v3749 = vpop.xlane.xlu0 %3748
        %3750 = vadd.xlane.f32.xlu0 %v3687
        %v3751 = vpop.xlane.xlu0 %3750
        %3752 = vadd.xlane.f32.xlu0 %v3689
        %v3753 = vpop.xlane.xlu0 %3752
        %3754 = vadd.xlane.f32.xlu0 %v3691
        %v3755 = vpop.xlane.xlu0 %3754
        %3756 = vadd.xlane.f32.xlu0 %v3693
        %v3757 = vpop.xlane.xlu0 %3756
        %3758 = vadd.xlane.f32.xlu0 %v3695
        %v3759 = vpop.xlane.xlu0 %3758
        %3760 = vadd.xlane.f32.xlu0 %v3697
        %v3761 = vpop.xlane.xlu0 %3760
        %3762 = vadd.xlane.f32.xlu0 %v3699
        %v3763 = vpop.xlane.xlu0 %3762
        %3764 = vadd.xlane.f32.xlu0 %v3701
        %v3765 = vpop.xlane.xlu0 %3764
        %v3766 = vrcp.pop %v3703
        %v3767 = vrcp.pop %v3705
        %v3768 = vrcp.pop %v3707
        %v3769 = vrcp.pop %v3709
        %v3770 = vrcp.pop %v3711
        %v3771 = vrcp.pop %v3713
        %v3772 = vrcp.pop %v3715
        %v3773 = vrcp.pop %v3717
        %v3774 = vrcp.pop %v3719
        %v3775 = vrcp.pop %v3721
        %v3776 = vrcp.pop %v3723
        %v3777 = vrcp.pop %v3725
        %v3778 = vrcp.pop %v3727
        %v3779 = vrcp.pop %v3729
        %v3780 = vrcp.pop %v3731
        %v3781 = vrcp.pop %v3733
        %v3782 = vrcp.pop %v3735
        %v3783 = vrcp.pop %v3737
        %v3784 = vrcp.pop %v3739
        %v3785 = vrcp.pop %v3741
        %v3786 = vrcp.pop %v3743
        %v3787 = vrcp.pop %v3745
        %v3788 = vrcp.pop %v3747
        %v3789 = vrcp.pop %v3749
        %v3790 = vrcp.pop %v3751
        %v3791 = vrcp.pop %v3753
        %v3792 = vrcp.pop %v3755
        %v3793 = vrcp.pop %v3757
        %v3794 = vrcp.pop %v3759
        %v3795 = vrcp.pop %v3761
        %v3796 = vrcp.pop %v3763
        %v3797 = vrcp.pop %v3765
        %v3798 = vmul.f32 %v3639, %v3766
        %v3799 = vmul.f32 %v3641, %v3767
        %v3800 = vmul.f32 %v3643, %v3768
        %v3801 = vmul.f32 %v3645, %v3769
        %v3802 = vmul.f32 %v3647, %v3770
        %v3803 = vmul.f32 %v3649, %v3771
        %v3804 = vmul.f32 %v3651, %v3772
        %v3805 = vmul.f32 %v3653, %v3773
        %v3806 = vmul.f32 %v3655, %v3774
        %v3807 = vmul.f32 %v3657, %v3775
        %v3808 = vmul.f32 %v3659, %v3776
        %v3809 = vmul.f32 %v3661, %v3777
        %v3810 = vmul.f32 %v3663, %v3778
        %v3811 = vmul.f32 %v3665, %v3779
        %v3812 = vmul.f32 %v3667, %v3780
        %v3813 = vmul.f32 %v3669, %v3781
        %v3814 = vmul.f32 %v3671, %v3782
        %v3815 = vmul.f32 %v3673, %v3783
        %v3816 = vmul.f32 %v3675, %v3784
        %v3817 = vmul.f32 %v3677, %v3785
        %v3818 = vmul.f32 %v3679, %v3786
        %v3819 = vmul.f32 %v3681, %v3787
        %v3820 = vmul.f32 %v3683, %v3788
        %v3821 = vmul.f32 %v3685, %v3789
        %v3822 = vmul.f32 %v3687, %v3790
        %v3823 = vmul.f32 %v3689, %v3791
        %v3824 = vmul.f32 %v3691, %v3792
        %v3825 = vmul.f32 %v3693, %v3793
        %v3826 = vmul.f32 %v3695, %v3794
        %v3827 = vmul.f32 %v3697, %v3795
        %v3828 = vmul.f32 %v3699, %v3796
        %v3829 = vmul.f32 %v3701, %v3797
        %v3830 = vpack.c.bf16 %v3799, %v3798
        %v3831 = vpack.c.bf16 %v3801, %v3800
        %v3832 = vpack.c.bf16 %v3803, %v3802
        %v3833 = vpack.c.bf16 %v3805, %v3804
        %v3834 = vpack.c.bf16 %v3807, %v3806
        %v3835 = vpack.c.bf16 %v3809, %v3808
        %v3836 = vpack.c.bf16 %v3811, %v3810
        %v3837 = vpack.c.bf16 %v3813, %v3812
        %v3838 = vpack.c.bf16 %v3815, %v3814
        %v3839 = vpack.c.bf16 %v3817, %v3816
        %v3840 = vpack.c.bf16 %v3819, %v3818
        %v3841 = vpack.c.bf16 %v3821, %v3820
        %v3842 = vpack.c.bf16 %v3823, %v3822
        %v3843 = vpack.c.bf16 %v3825, %v3824
        %v3844 = vpack.c.bf16 %v3827, %v3826
        %v3845 = vpack.c.bf16 %v3829, %v3828
        %3846 = vmatpush.bf16.msra.mxu0 %v3436
        %3847 = vmatpush.bf16.msra.mxu0 %v3435
        %3848 = vmatpush.bf16.msra.mxu0 %v3434
        %3849 = vmatpush.bf16.msra.mxu0 %v3433
        %3850 = vmatpush.bf16.msra.mxu0 %v3432
        %3851 = vmatpush.bf16.msra.mxu0 %v3431
        %3852 = vmatpush.bf16.msra.mxu0 %v3430
        %3853 = vmatpush.bf16.msra.mxu0 %v3429
        %3854 = vmatmul.bf16.gmra.mxu0 %v3830
        %v3855 = vpop.f32.mrf.mxu0
        %v3856 = vadd.f32 0.0, %v3855
        %v3857 = vpop.f32.mrf.mxu0
        %v3858 = vadd.f32 0.0, %v3857
        %3859 = vmatmul.bf16.gmra.mxu0 %v3831
        %v3860 = vpop.f32.mrf.mxu0
        %v3861 = vadd.f32 0.0, %v3860
        %v3862 = vpop.f32.mrf.mxu0
        %v3863 = vadd.f32 0.0, %v3862
        %3864 = vmatmul.bf16.gmra.mxu0 %v3832
        %v3865 = vpop.f32.mrf.mxu0
        %v3866 = vadd.f32 0.0, %v3865
        %v3867 = vpop.f32.mrf.mxu0
        %v3868 = vadd.f32 0.0, %v3867
        %3869 = vmatmul.bf16.gmra.mxu0 %v3833
        %v3870 = vpop.f32.mrf.mxu0
        %v3871 = vadd.f32 0.0, %v3870
        %v3872 = vpop.f32.mrf.mxu0
        %v3873 = vadd.f32 0.0, %v3872
        %3874 = vmatmul.bf16.gmra.mxu0 %v3834
        %v3875 = vpop.f32.mrf.mxu0
        %v3876 = vadd.f32 0.0, %v3875
        %v3877 = vpop.f32.mrf.mxu0
        %v3878 = vadd.f32 0.0, %v3877
        %3879 = vmatmul.bf16.gmra.mxu0 %v3835
        %v3880 = vpop.f32.mrf.mxu0
        %v3881 = vadd.f32 0.0, %v3880
        %v3882 = vpop.f32.mrf.mxu0
        %v3883 = vadd.f32 0.0, %v3882
        %3884 = vmatmul.bf16.gmra.mxu0 %v3836
        %v3885 = vpop.f32.mrf.mxu0
        %v3886 = vadd.f32 0.0, %v3885
        %v3887 = vpop.f32.mrf.mxu0
        %v3888 = vadd.f32 0.0, %v3887
        %3889 = vmatmul.bf16.gmra.mxu0 %v3837
        %v3890 = vpop.f32.mrf.mxu0
        %v3891 = vadd.f32 0.0, %v3890
        %v3892 = vpop.f32.mrf.mxu0
        %v3893 = vadd.f32 0.0, %v3892
        %3894 = vmatmul.bf16.gmra.mxu0 %v3838
        %v3895 = vpop.f32.mrf.mxu0
        %v3896 = vadd.f32 0.0, %v3895
        %v3897 = vpop.f32.mrf.mxu0
        %v3898 = vadd.f32 0.0, %v3897
        %3899 = vmatmul.bf16.gmra.mxu0 %v3839
        %v3900 = vpop.f32.mrf.mxu0
        %v3901 = vadd.f32 0.0, %v3900
        %v3902 = vpop.f32.mrf.mxu0
        %v3903 = vadd.f32 0.0, %v3902
        %3904 = vmatmul.bf16.gmra.mxu0 %v3840
        %v3905 = vpop.f32.mrf.mxu0
        %v3906 = vadd.f32 0.0, %v3905
        %v3907 = vpop.f32.mrf.mxu0
        %v3908 = vadd.f32 0.0, %v3907
        %3909 = vmatmul.bf16.gmra.mxu0 %v3841
        %v3910 = vpop.f32.mrf.mxu0
        %v3911 = vadd.f32 0.0, %v3910
        %v3912 = vpop.f32.mrf.mxu0
        %v3913 = vadd.f32 0.0, %v3912
        %3914 = vmatmul.bf16.gmra.mxu0 %v3842
        %v3915 = vpop.f32.mrf.mxu0
        %v3916 = vadd.f32 0.0, %v3915
        %v3917 = vpop.f32.mrf.mxu0
        %v3918 = vadd.f32 0.0, %v3917
        %3919 = vmatmul.bf16.gmra.mxu0 %v3843
        %v3920 = vpop.f32.mrf.mxu0
        %v3921 = vadd.f32 0.0, %v3920
        %v3922 = vpop.f32.mrf.mxu0
        %v3923 = vadd.f32 0.0, %v3922
        %3924 = vmatmul.bf16.gmra.mxu0 %v3844
        %v3925 = vpop.f32.mrf.mxu0
        %v3926 = vadd.f32 0.0, %v3925
        %v3927 = vpop.f32.mrf.mxu0
        %v3928 = vadd.f32 0.0, %v3927
        %3929 = vmatmul.bf16.gmra.mxu0 %v3845
        %v3930 = vpop.f32.mrf.mxu0
        %v3931 = vadd.f32 0.0, %v3930
        %v3932 = vpop.f32.mrf.mxu0
        %v3933 = vadd.f32 0.0, %v3932
        %3934 = vdwg.mxu0
        %v3935 = vld [vmem:[#allocation4 + $0x268] sm:$0xf]
        %v3936 = vld [vmem:[#allocation4 + $0x26c] sm:$0xf]
        %v3937 = vld [vmem:[#allocation4 + $0x270] sm:$0xf]
        %v3938 = vld [vmem:[#allocation4 + $0x274] sm:$0xf]
        %v3939 = vld [vmem:[#allocation4 + $0x278] sm:$0xf]
        %v3940 = vld [vmem:[#allocation4 + $0x27c] sm:$0xf]
        %v3941 = vld [vmem:[#allocation4 + $0x280] sm:$0xf]
        %v3942 = vld [vmem:[#allocation4 + $0x284] sm:$0xf]
        %v3943 = vunpack.c.l.bf16 %v3935
        %v3944 = vunpack.c.l.bf16 %v3936
        %v3945 = vunpack.c.l.bf16 %v3937
        %v3946 = vunpack.c.l.bf16 %v3938
        %v3947 = vunpack.c.l.bf16 %v3939
        %v3948 = vunpack.c.l.bf16 %v3940
        %v3949 = vunpack.c.l.bf16 %v3941
        %v3950 = vunpack.c.l.bf16 %v3942
        %v3951 = vld [vmem:[#allocation4 + $0x288] sm:$0xf]
        %v3952 = vld [vmem:[#allocation4 + $0x28c] sm:$0xf]
        %v3953 = vld [vmem:[#allocation4 + $0x290] sm:$0xf]
        %v3954 = vld [vmem:[#allocation4 + $0x294] sm:$0xf]
        %v3955 = vld [vmem:[#allocation4 + $0x298] sm:$0xf]
        %v3956 = vld [vmem:[#allocation4 + $0x29c] sm:$0xf]
        %v3957 = vld [vmem:[#allocation4 + $0x2a0] sm:$0xf]
        %v3958 = vld [vmem:[#allocation4 + $0x2a4] sm:$0xf]
        %v3959 = vld [vmem:[#allocation4 + $0x2a8] sm:$0xf]
        %v3960 = vld [vmem:[#allocation4 + $0x2ac] sm:$0xf]
        %v3961 = vld [vmem:[#allocation4 + $0x2b0] sm:$0xf]
        %v3962 = vld [vmem:[#allocation4 + $0x2b4] sm:$0xf]
        %v3963 = vld [vmem:[#allocation4 + $0x2b8] sm:$0xf]
        %v3964 = vld [vmem:[#allocation4 + $0x2bc] sm:$0xf]
        %v3965 = vld [vmem:[#allocation4 + $0x2c0] sm:$0xf]
        %v3966 = vld [vmem:[#allocation4 + $0x2c4] sm:$0xf]
        %v3967 = vunpack.c.l.bf16 %v3951
        %v3968 = vunpack.c.l.bf16 %v3952
        %v3969 = vunpack.c.l.bf16 %v3953
        %v3970 = vunpack.c.l.bf16 %v3954
        %v3971 = vunpack.c.l.bf16 %v3955
        %v3972 = vunpack.c.l.bf16 %v3956
        %v3973 = vunpack.c.l.bf16 %v3957
        %v3974 = vunpack.c.l.bf16 %v3958
        %v3975 = vunpack.c.l.bf16 %v3959
        %v3976 = vunpack.c.l.bf16 %v3960
        %v3977 = vunpack.c.l.bf16 %v3961
        %v3978 = vunpack.c.l.bf16 %v3962
        %v3979 = vunpack.c.l.bf16 %v3963
        %v3980 = vunpack.c.l.bf16 %v3964
        %v3981 = vunpack.c.l.bf16 %v3965
        %v3982 = vunpack.c.l.bf16 %v3966
        %3983 = vmatpush.msra.mxu0 %v3982
        %3984 = vmatpush.msra.mxu0 %v3981
        %3985 = vmatpush.msra.mxu0 %v3980
        %3986 = vmatpush.msra.mxu0 %v3979
        %3987 = vmatpush.msra.mxu0 %v3978
        %3988 = vmatpush.msra.mxu0 %v3977
        %3989 = vmatpush.msra.mxu0 %v3976
        %3990 = vmatpush.msra.mxu0 %v3975
        %3991 = vmatpush.msra.mxu0 %v3974
        %3992 = vmatpush.msra.mxu0 %v3973
        %3993 = vmatpush.msra.mxu0 %v3972
        %3994 = vmatpush.msra.mxu0 %v3971
        %3995 = vmatpush.msra.mxu0 %v3970
        %3996 = vmatpush.msra.mxu0 %v3969
        %3997 = vmatpush.msra.mxu0 %v3968
        %3998 = vmatpush.msra.mxu0 %v3967
        %3999 = vmatmul.f32.gmra.mxu0 %v3856
        %v4000 = vpop.f32.mrf.mxu0
        %v4001 = vadd.f32 0.0, %v4000
        %4002 = vmatmul.f32.gmra.mxu0 %v3858
        %v4003 = vpop.f32.mrf.mxu0
        %v4004 = vadd.f32 0.0, %v4003
        %4005 = vmatmul.f32.gmra.mxu0 %v3861
        %v4006 = vpop.f32.mrf.mxu0
        %v4007 = vadd.f32 0.0, %v4006
        %4008 = vmatmul.f32.gmra.mxu0 %v3863
        %v4009 = vpop.f32.mrf.mxu0
        %v4010 = vadd.f32 0.0, %v4009
        %4011 = vmatmul.f32.gmra.mxu0 %v3866
        %v4012 = vpop.f32.mrf.mxu0
        %v4013 = vadd.f32 0.0, %v4012
        %4014 = vmatmul.f32.gmra.mxu0 %v3868
        %v4015 = vpop.f32.mrf.mxu0
        %v4016 = vadd.f32 0.0, %v4015
        %4017 = vmatmul.f32.gmra.mxu0 %v3871
        %v4018 = vpop.f32.mrf.mxu0
        %v4019 = vadd.f32 0.0, %v4018
        %4020 = vmatmul.f32.gmra.mxu0 %v3873
        %v4021 = vpop.f32.mrf.mxu0
        %v4022 = vadd.f32 0.0, %v4021
        %4023 = vmatmul.f32.gmra.mxu0 %v3876
        %v4024 = vpop.f32.mrf.mxu0
        %v4025 = vadd.f32 0.0, %v4024
        %4026 = vmatmul.f32.gmra.mxu0 %v3878
        %v4027 = vpop.f32.mrf.mxu0
        %v4028 = vadd.f32 0.0, %v4027
        %4029 = vmatmul.f32.gmra.mxu0 %v3881
        %v4030 = vpop.f32.mrf.mxu0
        %v4031 = vadd.f32 0.0, %v4030
        %4032 = vmatmul.f32.gmra.mxu0 %v3883
        %v4033 = vpop.f32.mrf.mxu0
        %v4034 = vadd.f32 0.0, %v4033
        %4035 = vmatmul.f32.gmra.mxu0 %v3886
        %v4036 = vpop.f32.mrf.mxu0
        %v4037 = vadd.f32 0.0, %v4036
        %4038 = vmatmul.f32.gmra.mxu0 %v3888
        %v4039 = vpop.f32.mrf.mxu0
        %v4040 = vadd.f32 0.0, %v4039
        %4041 = vmatmul.f32.gmra.mxu0 %v3891
        %v4042 = vpop.f32.mrf.mxu0
        %v4043 = vadd.f32 0.0, %v4042
        %4044 = vmatmul.f32.gmra.mxu0 %v3893
        %v4045 = vpop.f32.mrf.mxu0
        %v4046 = vadd.f32 0.0, %v4045
        %4047 = vmatmul.f32.gmra.mxu0 %v3896
        %v4048 = vpop.f32.mrf.mxu0
        %v4049 = vadd.f32 0.0, %v4048
        %4050 = vmatmul.f32.gmra.mxu0 %v3898
        %v4051 = vpop.f32.mrf.mxu0
        %v4052 = vadd.f32 0.0, %v4051
        %4053 = vmatmul.f32.gmra.mxu0 %v3901
        %v4054 = vpop.f32.mrf.mxu0
        %v4055 = vadd.f32 0.0, %v4054
        %4056 = vmatmul.f32.gmra.mxu0 %v3903
        %v4057 = vpop.f32.mrf.mxu0
        %v4058 = vadd.f32 0.0, %v4057
        %4059 = vmatmul.f32.gmra.mxu0 %v3906
        %v4060 = vpop.f32.mrf.mxu0
        %v4061 = vadd.f32 0.0, %v4060
        %4062 = vmatmul.f32.gmra.mxu0 %v3908
        %v4063 = vpop.f32.mrf.mxu0
        %v4064 = vadd.f32 0.0, %v4063
        %4065 = vmatmul.f32.gmra.mxu0 %v3911
        %v4066 = vpop.f32.mrf.mxu0
        %v4067 = vadd.f32 0.0, %v4066
        %4068 = vmatmul.f32.gmra.mxu0 %v3913
        %v4069 = vpop.f32.mrf.mxu0
        %v4070 = vadd.f32 0.0, %v4069
        %4071 = vmatmul.f32.gmra.mxu0 %v3916
        %v4072 = vpop.f32.mrf.mxu0
        %v4073 = vadd.f32 0.0, %v4072
        %4074 = vmatmul.f32.gmra.mxu0 %v3918
        %v4075 = vpop.f32.mrf.mxu0
        %v4076 = vadd.f32 0.0, %v4075
        %4077 = vmatmul.f32.gmra.mxu0 %v3921
        %v4078 = vpop.f32.mrf.mxu0
        %v4079 = vadd.f32 0.0, %v4078
        %4080 = vmatmul.f32.gmra.mxu0 %v3923
        %v4081 = vpop.f32.mrf.mxu0
        %v4082 = vadd.f32 0.0, %v4081
        %4083 = vmatmul.f32.gmra.mxu0 %v3926
        %v4084 = vpop.f32.mrf.mxu0
        %v4085 = vadd.f32 0.0, %v4084
        %4086 = vmatmul.f32.gmra.mxu0 %v3928
        %v4087 = vpop.f32.mrf.mxu0
        %v4088 = vadd.f32 0.0, %v4087
        %4089 = vmatmul.f32.gmra.mxu0 %v3931
        %v4090 = vpop.f32.mrf.mxu0
        %v4091 = vadd.f32 0.0, %v4090
        %4092 = vmatmul.f32.gmra.mxu0 %v3933
        %v4093 = vpop.f32.mrf.mxu0
        %v4094 = vadd.f32 0.0, %v4093
        %4095 = vdwg.mxu0
        %4096 = vmatpush.msra.mxu0 0.0
        %4097 = vmatpush.msra.mxu0 0.0
        %4098 = vmatpush.msra.mxu0 0.0
        %4099 = vmatpush.msra.mxu0 0.0
        %4100 = vmatpush.msra.mxu0 0.0
        %4101 = vmatpush.msra.mxu0 0.0
        %4102 = vmatpush.msra.mxu0 0.0
        %4103 = vmatpush.msra.mxu0 0.0
        %4104 = vmatpush.msra.mxu0 %v3950
        %4105 = vmatpush.msra.mxu0 %v3949
        %4106 = vmatpush.msra.mxu0 %v3948
        %4107 = vmatpush.msra.mxu0 %v3947
        %4108 = vmatpush.msra.mxu0 %v3946
        %4109 = vmatpush.msra.mxu0 %v3945
        %4110 = vmatpush.msra.mxu0 %v3944
        %4111 = vmatpush.msra.mxu0 %v3943
        %4112 = vmatmul.f32.gmra.mxu0 %v3124
        %v4113 = vpop.f32.mrf.mxu0
        %v4114 = vadd.f32 %v4001, %v4113
        %4115 = vmatmul.f32.gmra.mxu0 %v3127
        %v4116 = vpop.f32.mrf.mxu0
        %v4117 = vadd.f32 %v4004, %v4116
        %4118 = vmatmul.f32.gmra.mxu0 %v3130
        %v4119 = vpop.f32.mrf.mxu0
        %v4120 = vadd.f32 %v4007, %v4119
        %4121 = vmatmul.f32.gmra.mxu0 %v3133
        %v4122 = vpop.f32.mrf.mxu0
        %v4123 = vadd.f32 %v4010, %v4122
        %4124 = vmatmul.f32.gmra.mxu0 %v3136
        %v4125 = vpop.f32.mrf.mxu0
        %v4126 = vadd.f32 %v4013, %v4125
        %4127 = vmatmul.f32.gmra.mxu0 %v3139
        %v4128 = vpop.f32.mrf.mxu0
        %v4129 = vadd.f32 %v4016, %v4128
        %4130 = vmatmul.f32.gmra.mxu0 %v3142
        %v4131 = vpop.f32.mrf.mxu0
        %v4132 = vadd.f32 %v4019, %v4131
        %4133 = vmatmul.f32.gmra.mxu0 %v3145
        %v4134 = vpop.f32.mrf.mxu0
        %v4135 = vadd.f32 %v4022, %v4134
        %4136 = vmatmul.f32.gmra.mxu0 %v3148
        %v4137 = vpop.f32.mrf.mxu0
        %v4138 = vadd.f32 %v4025, %v4137
        %4139 = vmatmul.f32.gmra.mxu0 %v3151
        %v4140 = vpop.f32.mrf.mxu0
        %v4141 = vadd.f32 %v4028, %v4140
        %4142 = vmatmul.f32.gmra.mxu0 %v3154
        %v4143 = vpop.f32.mrf.mxu0
        %v4144 = vadd.f32 %v4031, %v4143
        %4145 = vmatmul.f32.gmra.mxu0 %v3157
        %v4146 = vpop.f32.mrf.mxu0
        %v4147 = vadd.f32 %v4034, %v4146
        %4148 = vmatmul.f32.gmra.mxu0 %v3160
        %v4149 = vpop.f32.mrf.mxu0
        %v4150 = vadd.f32 %v4037, %v4149
        %4151 = vmatmul.f32.gmra.mxu0 %v3163
        %v4152 = vpop.f32.mrf.mxu0
        %v4153 = vadd.f32 %v4040, %v4152
        %4154 = vmatmul.f32.gmra.mxu0 %v3166
        %v4155 = vpop.f32.mrf.mxu0
        %v4156 = vadd.f32 %v4043, %v4155
        %4157 = vmatmul.f32.gmra.mxu0 %v3169
        %v4158 = vpop.f32.mrf.mxu0
        %v4159 = vadd.f32 %v4046, %v4158
        %4160 = vmatmul.f32.gmra.mxu0 %v3172
        %v4161 = vpop.f32.mrf.mxu0
        %v4162 = vadd.f32 %v4049, %v4161
        %4163 = vmatmul.f32.gmra.mxu0 %v3175
        %v4164 = vpop.f32.mrf.mxu0
        %v4165 = vadd.f32 %v4052, %v4164
        %4166 = vmatmul.f32.gmra.mxu0 %v3178
        %v4167 = vpop.f32.mrf.mxu0
        %v4168 = vadd.f32 %v4055, %v4167
        %4169 = vmatmul.f32.gmra.mxu0 %v3181
        %v4170 = vpop.f32.mrf.mxu0
        %v4171 = vadd.f32 %v4058, %v4170
        %4172 = vmatmul.f32.gmra.mxu0 %v3184
        %v4173 = vpop.f32.mrf.mxu0
        %v4174 = vadd.f32 %v4061, %v4173
        %4175 = vmatmul.f32.gmra.mxu0 %v3187
        %v4176 = vpop.f32.mrf.mxu0
        %v4177 = vadd.f32 %v4064, %v4176
        %4178 = vmatmul.f32.gmra.mxu0 %v3190
        %v4179 = vpop.f32.mrf.mxu0
        %v4180 = vadd.f32 %v4067, %v4179
        %4181 = vmatmul.f32.gmra.mxu0 %v3193
        %v4182 = vpop.f32.mrf.mxu0
        %v4183 = vadd.f32 %v4070, %v4182
        %4184 = vmatmul.f32.gmra.mxu0 %v3196
        %v4185 = vpop.f32.mrf.mxu0
        %v4186 = vadd.f32 %v4073, %v4185
        %4187 = vmatmul.f32.gmra.mxu0 %v3199
        %v4188 = vpop.f32.mrf.mxu0
        %v4189 = vadd.f32 %v4076, %v4188
        %4190 = vmatmul.f32.gmra.mxu0 %v3202
        %v4191 = vpop.f32.mrf.mxu0
        %v4192 = vadd.f32 %v4079, %v4191
        %4193 = vmatmul.f32.gmra.mxu0 %v3205
        %v4194 = vpop.f32.mrf.mxu0
        %v4195 = vadd.f32 %v4082, %v4194
        %4196 = vmatmul.f32.gmra.mxu0 %v3208
        %v4197 = vpop.f32.mrf.mxu0
        %v4198 = vadd.f32 %v4085, %v4197
        %4199 = vmatmul.f32.gmra.mxu0 %v3211
        %v4200 = vpop.f32.mrf.mxu0
        %v4201 = vadd.f32 %v4088, %v4200
        %4202 = vmatmul.f32.gmra.mxu0 %v3214
        %v4203 = vpop.f32.mrf.mxu0
        %v4204 = vadd.f32 %v4091, %v4203
        %4205 = vmatmul.f32.gmra.mxu0 %v3217
        %v4206 = vpop.f32.mrf.mxu0
        %v4207 = vadd.f32 %v4094, %v4206
        %4208 = vdwg.mxu0
        %v4209 = vld [vmem:[#allocation4 + $0x2c8] sm:$0x1]
        %v4210 = vunpack.c.l.bf16 %v4209
        %v4211 = vperm.slane %v4210, 0
        %v4212 = vadd.f32 %v4114, %v4211
        %v4213 = vadd.f32 %v4117, %v4211
        %v4214 = vadd.f32 %v4120, %v4211
        %v4215 = vadd.f32 %v4123, %v4211
        %v4216 = vadd.f32 %v4126, %v4211
        %v4217 = vadd.f32 %v4129, %v4211
        %v4218 = vadd.f32 %v4132, %v4211
        %v4219 = vadd.f32 %v4135, %v4211
        %v4220 = vadd.f32 %v4138, %v4211
        %v4221 = vadd.f32 %v4141, %v4211
        %v4222 = vadd.f32 %v4144, %v4211
        %v4223 = vadd.f32 %v4147, %v4211
        %v4224 = vadd.f32 %v4150, %v4211
        %v4225 = vadd.f32 %v4153, %v4211
        %v4226 = vadd.f32 %v4156, %v4211
        %v4227 = vadd.f32 %v4159, %v4211
        %v4228 = vadd.f32 %v4162, %v4211
        %v4229 = vadd.f32 %v4165, %v4211
        %v4230 = vadd.f32 %v4168, %v4211
        %v4231 = vadd.f32 %v4171, %v4211
        %v4232 = vadd.f32 %v4174, %v4211
        %v4233 = vadd.f32 %v4177, %v4211
        %v4234 = vadd.f32 %v4180, %v4211
        %v4235 = vadd.f32 %v4183, %v4211
        %v4236 = vadd.f32 %v4186, %v4211
        %v4237 = vadd.f32 %v4189, %v4211
        %v4238 = vadd.f32 %v4192, %v4211
        %v4239 = vadd.f32 %v4195, %v4211
        %v4240 = vadd.f32 %v4198, %v4211
        %v4241 = vadd.f32 %v4201, %v4211
        %v4242 = vadd.f32 %v4204, %v4211
        %v4243 = vadd.f32 %v4207, %v4211
        %v4244 = vtanh.pop %v4212
        %v4245 = vtanh.pop %v4213
        %v4246 = vtanh.pop %v4214
        %v4247 = vtanh.pop %v4215
        %v4248 = vtanh.pop %v4216
        %v4249 = vtanh.pop %v4217
        %v4250 = vtanh.pop %v4218
        %v4251 = vtanh.pop %v4219
        %v4252 = vtanh.pop %v4220
        %v4253 = vtanh.pop %v4221
        %v4254 = vtanh.pop %v4222
        %v4255 = vtanh.pop %v4223
        %v4256 = vtanh.pop %v4224
        %v4257 = vtanh.pop %v4225
        %v4258 = vtanh.pop %v4226
        %v4259 = vtanh.pop %v4227
        %v4260 = vtanh.pop %v4228
        %v4261 = vtanh.pop %v4229
        %v4262 = vtanh.pop %v4230
        %v4263 = vtanh.pop %v4231
        %v4264 = vtanh.pop %v4232
        %v4265 = vtanh.pop %v4233
        %v4266 = vtanh.pop %v4234
        %v4267 = vtanh.pop %v4235
        %v4268 = vtanh.pop %v4236
        %v4269 = vtanh.pop %v4237
        %v4270 = vtanh.pop %v4238
        %v4271 = vtanh.pop %v4239
        %v4272 = vtanh.pop %v4240
        %v4273 = vtanh.pop %v4241
        %v4274 = vtanh.pop %v4242
        %v4275 = vtanh.pop %v4243
        %v4276 = vld [vmem:[#allocation4 + $0x2cc] sm:$0xf]
        %v4277 = vld [vmem:[#allocation4 + $0x2d0] sm:$0xf]
        %v4278 = vld [vmem:[#allocation4 + $0x2d4] sm:$0xf]
        %v4279 = vld [vmem:[#allocation4 + $0x2d8] sm:$0xf]
        %v4280 = vld [vmem:[#allocation4 + $0x2dc] sm:$0xf]
        %v4281 = vld [vmem:[#allocation4 + $0x2e0] sm:$0xf]
        %v4282 = vld [vmem:[#allocation4 + $0x2e4] sm:$0xf]
        %v4283 = vld [vmem:[#allocation4 + $0x2e8] sm:$0xf]
        %v4284 = vunpack.c.l.bf16 %v4276
        %v4285 = vunpack.c.l.bf16 %v4277
        %v4286 = vunpack.c.l.bf16 %v4278
        %v4287 = vunpack.c.l.bf16 %v4279
        %v4288 = vunpack.c.l.bf16 %v4280
        %v4289 = vunpack.c.l.bf16 %v4281
        %v4290 = vunpack.c.l.bf16 %v4282
        %v4291 = vunpack.c.l.bf16 %v4283
        %v4292 = vld [vmem:[#allocation4 + $0x2ec] sm:$0x1]
        %v4293 = vunpack.c.l.bf16 %v4292
        %v4294 = vperm.slane %v4293, 0
        %v4296 = vsel %vm588, %v4244, 0
        %v4299 = vsel %vm588, %v4245, 0
        %v4302 = vsel %vm588, %v4246, 0
        %v4305 = vsel %vm588, %v4247, 0
        %v4308 = vsel %vm588, %v4248, 0
        %v4311 = vsel %vm588, %v4249, 0
        %v4314 = vsel %vm588, %v4250, 0
        %v4317 = vsel %vm588, %v4251, 0
        %v4320 = vsel %vm588, %v4252, 0
        %v4323 = vsel %vm588, %v4253, 0
        %v4326 = vsel %vm588, %v4254, 0
        %v4329 = vsel %vm588, %v4255, 0
        %v4332 = vsel %vm588, %v4256, 0
        %v4335 = vsel %vm588, %v4257, 0
        %v4338 = vsel %vm588, %v4258, 0
        %v4341 = vsel %vm588, %v4259, 0
        %v4344 = vsel %vm588, %v4260, 0
        %v4347 = vsel %vm588, %v4261, 0
        %v4350 = vsel %vm588, %v4262, 0
        %v4353 = vsel %vm588, %v4263, 0
        %v4356 = vsel %vm588, %v4264, 0
        %v4359 = vsel %vm588, %v4265, 0
        %v4362 = vsel %vm588, %v4266, 0
        %v4365 = vsel %vm588, %v4267, 0
        %v4368 = vsel %vm588, %v4268, 0
        %v4371 = vsel %vm588, %v4269, 0
        %v4374 = vsel %vm588, %v4270, 0
        %v4377 = vsel %vm588, %v4271, 0
        %v4380 = vsel %vm588, %v4272, 0
        %v4383 = vsel %vm588, %v4273, 0
        %v4386 = vsel %vm588, %v4274, 0
        %v4389 = vsel %vm588, %v4275, 0
        %4391 = vmatpush.msra.mxu0 0.0
        %4392 = vmatpush.msra.mxu0 0.0
        %4393 = vmatpush.msra.mxu0 0.0
        %4394 = vmatpush.msra.mxu0 0.0
        %4395 = vmatpush.msra.mxu0 0.0
        %4396 = vmatpush.msra.mxu0 0.0
        %4397 = vmatpush.msra.mxu0 0.0
        %4398 = vmatpush.msra.mxu0 0.0
        %4399 = vmatpush.msra.mxu0 %v4291
        %4400 = vmatpush.msra.mxu0 %v4290
        %4401 = vmatpush.msra.mxu0 %v4289
        %4402 = vmatpush.msra.mxu0 %v4288
        %4403 = vmatpush.msra.mxu0 %v4287
        %4404 = vmatpush.msra.mxu0 %v4286
        %4405 = vmatpush.msra.mxu0 %v4285
        %4406 = vmatpush.msra.mxu0 %v4284
        %4407 = vmatmul.f32.gmra.mxu0 %v4296
        %v4408 = vpop.f32.mrf.mxu0
        %v4409 = vadd.f32 %v4294, %v4408
        %4410 = vmatmul.f32.gmra.mxu0 %v4299
        %v4411 = vpop.f32.mrf.mxu0
        %v4412 = vadd.f32 %v4294, %v4411
        %4413 = vmatmul.f32.gmra.mxu0 %v4302
        %v4414 = vpop.f32.mrf.mxu0
        %v4415 = vadd.f32 %v4294, %v4414
        %4416 = vmatmul.f32.gmra.mxu0 %v4305
        %v4417 = vpop.f32.mrf.mxu0
        %v4418 = vadd.f32 %v4294, %v4417
        %4419 = vmatmul.f32.gmra.mxu0 %v4308
        %v4420 = vpop.f32.mrf.mxu0
        %v4421 = vadd.f32 %v4294, %v4420
        %4422 = vmatmul.f32.gmra.mxu0 %v4311
        %v4423 = vpop.f32.mrf.mxu0
        %v4424 = vadd.f32 %v4294, %v4423
        %4425 = vmatmul.f32.gmra.mxu0 %v4314
        %v4426 = vpop.f32.mrf.mxu0
        %v4427 = vadd.f32 %v4294, %v4426
        %4428 = vmatmul.f32.gmra.mxu0 %v4317
        %v4429 = vpop.f32.mrf.mxu0
        %v4430 = vadd.f32 %v4294, %v4429
        %4431 = vmatmul.f32.gmra.mxu0 %v4320
        %v4432 = vpop.f32.mrf.mxu0
        %v4433 = vadd.f32 %v4294, %v4432
        %4434 = vmatmul.f32.gmra.mxu0 %v4323
        %v4435 = vpop.f32.mrf.mxu0
        %v4436 = vadd.f32 %v4294, %v4435
        %4437 = vmatmul.f32.gmra.mxu0 %v4326
        %v4438 = vpop.f32.mrf.mxu0
        %v4439 = vadd.f32 %v4294, %v4438
        %4440 = vmatmul.f32.gmra.mxu0 %v4329
        %v4441 = vpop.f32.mrf.mxu0
        %v4442 = vadd.f32 %v4294, %v4441
        %4443 = vmatmul.f32.gmra.mxu0 %v4332
        %v4444 = vpop.f32.mrf.mxu0
        %v4445 = vadd.f32 %v4294, %v4444
        %4446 = vmatmul.f32.gmra.mxu0 %v4335
        %v4447 = vpop.f32.mrf.mxu0
        %v4448 = vadd.f32 %v4294, %v4447
        %4449 = vmatmul.f32.gmra.mxu0 %v4338
        %v4450 = vpop.f32.mrf.mxu0
        %v4451 = vadd.f32 %v4294, %v4450
        %4452 = vmatmul.f32.gmra.mxu0 %v4341
        %v4453 = vpop.f32.mrf.mxu0
        %v4454 = vadd.f32 %v4294, %v4453
        %4455 = vmatmul.f32.gmra.mxu0 %v4344
        %v4456 = vpop.f32.mrf.mxu0
        %v4457 = vadd.f32 %v4294, %v4456
        %4458 = vmatmul.f32.gmra.mxu0 %v4347
        %v4459 = vpop.f32.mrf.mxu0
        %v4460 = vadd.f32 %v4294, %v4459
        %4461 = vmatmul.f32.gmra.mxu0 %v4350
        %v4462 = vpop.f32.mrf.mxu0
        %v4463 = vadd.f32 %v4294, %v4462
        %4464 = vmatmul.f32.gmra.mxu0 %v4353
        %v4465 = vpop.f32.mrf.mxu0
        %v4466 = vadd.f32 %v4294, %v4465
        %4467 = vmatmul.f32.gmra.mxu0 %v4356
        %v4468 = vpop.f32.mrf.mxu0
        %v4469 = vadd.f32 %v4294, %v4468
        %4470 = vmatmul.f32.gmra.mxu0 %v4359
        %v4471 = vpop.f32.mrf.mxu0
        %v4472 = vadd.f32 %v4294, %v4471
        %4473 = vmatmul.f32.gmra.mxu0 %v4362
        %v4474 = vpop.f32.mrf.mxu0
        %v4475 = vadd.f32 %v4294, %v4474
        %4476 = vmatmul.f32.gmra.mxu0 %v4365
        %v4477 = vpop.f32.mrf.mxu0
        %v4478 = vadd.f32 %v4294, %v4477
        %4479 = vmatmul.f32.gmra.mxu0 %v4368
        %v4480 = vpop.f32.mrf.mxu0
        %v4481 = vadd.f32 %v4294, %v4480
        %4482 = vmatmul.f32.gmra.mxu0 %v4371
        %v4483 = vpop.f32.mrf.mxu0
        %v4484 = vadd.f32 %v4294, %v4483
        %4485 = vmatmul.f32.gmra.mxu0 %v4374
        %v4486 = vpop.f32.mrf.mxu0
        %v4487 = vadd.f32 %v4294, %v4486
        %4488 = vmatmul.f32.gmra.mxu0 %v4377
        %v4489 = vpop.f32.mrf.mxu0
        %v4490 = vadd.f32 %v4294, %v4489
        %4491 = vmatmul.f32.gmra.mxu0 %v4380
        %v4492 = vpop.f32.mrf.mxu0
        %v4493 = vadd.f32 %v4294, %v4492
        %4494 = vmatmul.f32.gmra.mxu0 %v4383
        %v4495 = vpop.f32.mrf.mxu0
        %v4496 = vadd.f32 %v4294, %v4495
        %4497 = vmatmul.f32.gmra.mxu0 %v4386
        %v4498 = vpop.f32.mrf.mxu0
        %v4499 = vadd.f32 %v4294, %v4498
        %4500 = vmatmul.f32.gmra.mxu0 %v4389
        %v4501 = vpop.f32.mrf.mxu0
        %v4502 = vadd.f32 %v4294, %v4501
        %4503 = vdwg.mxu0
        %v4504 = vadd.f32 %v2655, %v4409
        %v4505 = vadd.f32 %v2656, %v4412
        %v4506 = vadd.f32 %v2657, %v4415
        %v4507 = vadd.f32 %v2658, %v4418
        %v4508 = vadd.f32 %v2659, %v4421
        %v4509 = vadd.f32 %v2660, %v4424
        %v4510 = vadd.f32 %v2661, %v4427
        %v4511 = vadd.f32 %v2662, %v4430
        %v4512 = vadd.f32 %v2663, %v4433
        %v4513 = vadd.f32 %v2664, %v4436
        %v4514 = vadd.f32 %v2665, %v4439
        %v4515 = vadd.f32 %v2666, %v4442
        %v4516 = vadd.f32 %v2667, %v4445
        %v4517 = vadd.f32 %v2668, %v4448
        %v4518 = vadd.f32 %v2669, %v4451
        %v4519 = vadd.f32 %v2670, %v4454
        %v4520 = vadd.f32 %v2671, %v4457
        %v4521 = vadd.f32 %v2672, %v4460
        %v4522 = vadd.f32 %v2673, %v4463
        %v4523 = vadd.f32 %v2674, %v4466
        %v4524 = vadd.f32 %v2675, %v4469
        %v4525 = vadd.f32 %v2676, %v4472
        %v4526 = vadd.f32 %v2677, %v4475
        %v4527 = vadd.f32 %v2678, %v4478
        %v4528 = vadd.f32 %v2679, %v4481
        %v4529 = vadd.f32 %v2680, %v4484
        %v4530 = vadd.f32 %v2681, %v4487
        %v4531 = vadd.f32 %v2682, %v4490
        %v4532 = vadd.f32 %v2683, %v4493
        %v4533 = vadd.f32 %v2684, %v4496
        %v4534 = vadd.f32 %v2685, %v4499
        %v4535 = vadd.f32 %v2686, %v4502
        %v4536 = vld [vmem:[#allocation4 + $0x2f0] sm:$0xf]
        %v4537 = vunpack.c.l.bf16 %v4536
        %v4538 = vld [vmem:[#allocation4 + $0x2f4] sm:$0x1]
        %v4539 = vunpack.c.l.bf16 %v4538
        %v4540 = vperm.slane %v4539, 0
        %v4542 = vsel %vm758, %v4504, 0
        %v4545 = vsel %vm758, %v4505, 0
        %v4548 = vsel %vm758, %v4506, 0
        %v4551 = vsel %vm758, %v4507, 0
        %v4554 = vsel %vm758, %v4508, 0
        %v4557 = vsel %vm758, %v4509, 0
        %v4560 = vsel %vm758, %v4510, 0
        %v4563 = vsel %vm758, %v4511, 0
        %v4566 = vsel %vm758, %v4512, 0
        %v4569 = vsel %vm758, %v4513, 0
        %v4572 = vsel %vm758, %v4514, 0
        %v4575 = vsel %vm758, %v4515, 0
        %v4578 = vsel %vm758, %v4516, 0
        %v4581 = vsel %vm758, %v4517, 0
        %v4584 = vsel %vm758, %v4518, 0
        %v4587 = vsel %vm758, %v4519, 0
        %v4590 = vsel %vm758, %v4520, 0
        %v4593 = vsel %vm758, %v4521, 0
        %v4596 = vsel %vm758, %v4522, 0
        %v4599 = vsel %vm758, %v4523, 0
        %v4602 = vsel %vm758, %v4524, 0
        %v4605 = vsel %vm758, %v4525, 0
        %v4608 = vsel %vm758, %v4526, 0
        %v4611 = vsel %vm758, %v4527, 0
        %v4614 = vsel %vm758, %v4528, 0
        %v4617 = vsel %vm758, %v4529, 0
        %v4620 = vsel %vm758, %v4530, 0
        %v4623 = vsel %vm758, %v4531, 0
        %v4626 = vsel %vm758, %v4532, 0
        %v4629 = vsel %vm758, %v4533, 0
        %v4632 = vsel %vm758, %v4534, 0
        %v4635 = vsel %vm758, %v4535, 0
        %4637 = vmatpush.msra.mxu0 0.0
        %4638 = vmatpush.msra.mxu0 0.0
        %4639 = vmatpush.msra.mxu0 0.0
        %4640 = vmatpush.msra.mxu0 0.0
        %4641 = vmatpush.msra.mxu0 0.0
        %4642 = vmatpush.msra.mxu0 0.0
        %4643 = vmatpush.msra.mxu0 0.0
        %4644 = vmatpush.msra.mxu0 0.0
        %4645 = vmatpush.msra.mxu0 0.0
        %4646 = vmatpush.msra.mxu0 0.0
        %4647 = vmatpush.msra.mxu0 0.0
        %4648 = vmatpush.msra.mxu0 0.0
        %4649 = vmatpush.msra.mxu0 0.0
        %4650 = vmatpush.msra.mxu0 0.0
        %4651 = vmatpush.msra.mxu0 0.0
        %4652 = vmatpush.msra.mxu0 %v4537
        %4653 = vmatmul.f32.gmra.mxu0 %v4542
        %v4654 = vpop.f32.mrf.mxu0
        %v4655 = vadd.f32 %v4540, %v4654
        %4656 = vmatmul.f32.gmra.mxu0 %v4545
        %v4657 = vpop.f32.mrf.mxu0
        %v4658 = vadd.f32 %v4540, %v4657
        %4659 = vmatmul.f32.gmra.mxu0 %v4548
        %v4660 = vpop.f32.mrf.mxu0
        %v4661 = vadd.f32 %v4540, %v4660
        %4662 = vmatmul.f32.gmra.mxu0 %v4551
        %v4663 = vpop.f32.mrf.mxu0
        %v4664 = vadd.f32 %v4540, %v4663
        %4665 = vmatmul.f32.gmra.mxu0 %v4554
        %v4666 = vpop.f32.mrf.mxu0
        %v4667 = vadd.f32 %v4540, %v4666
        %4668 = vmatmul.f32.gmra.mxu0 %v4557
        %v4669 = vpop.f32.mrf.mxu0
        %v4670 = vadd.f32 %v4540, %v4669
        %4671 = vmatmul.f32.gmra.mxu0 %v4560
        %v4672 = vpop.f32.mrf.mxu0
        %v4673 = vadd.f32 %v4540, %v4672
        %4674 = vmatmul.f32.gmra.mxu0 %v4563
        %v4675 = vpop.f32.mrf.mxu0
        %v4676 = vadd.f32 %v4540, %v4675
        %4677 = vmatmul.f32.gmra.mxu0 %v4566
        %v4678 = vpop.f32.mrf.mxu0
        %v4679 = vadd.f32 %v4540, %v4678
        %4680 = vmatmul.f32.gmra.mxu0 %v4569
        %v4681 = vpop.f32.mrf.mxu0
        %v4682 = vadd.f32 %v4540, %v4681
        %4683 = vmatmul.f32.gmra.mxu0 %v4572
        %v4684 = vpop.f32.mrf.mxu0
        %v4685 = vadd.f32 %v4540, %v4684
        %4686 = vmatmul.f32.gmra.mxu0 %v4575
        %v4687 = vpop.f32.mrf.mxu0
        %v4688 = vadd.f32 %v4540, %v4687
        %4689 = vmatmul.f32.gmra.mxu0 %v4578
        %v4690 = vpop.f32.mrf.mxu0
        %v4691 = vadd.f32 %v4540, %v4690
        %4692 = vmatmul.f32.gmra.mxu0 %v4581
        %v4693 = vpop.f32.mrf.mxu0
        %v4694 = vadd.f32 %v4540, %v4693
        %4695 = vmatmul.f32.gmra.mxu0 %v4584
        %v4696 = vpop.f32.mrf.mxu0
        %v4697 = vadd.f32 %v4540, %v4696
        %4698 = vmatmul.f32.gmra.mxu0 %v4587
        %v4699 = vpop.f32.mrf.mxu0
        %v4700 = vadd.f32 %v4540, %v4699
        %4701 = vmatmul.f32.gmra.mxu0 %v4590
        %v4702 = vpop.f32.mrf.mxu0
        %v4703 = vadd.f32 %v4540, %v4702
        %4704 = vmatmul.f32.gmra.mxu0 %v4593
        %v4705 = vpop.f32.mrf.mxu0
        %v4706 = vadd.f32 %v4540, %v4705
        %4707 = vmatmul.f32.gmra.mxu0 %v4596
        %v4708 = vpop.f32.mrf.mxu0
        %v4709 = vadd.f32 %v4540, %v4708
        %4710 = vmatmul.f32.gmra.mxu0 %v4599
        %v4711 = vpop.f32.mrf.mxu0
        %v4712 = vadd.f32 %v4540, %v4711
        %4713 = vmatmul.f32.gmra.mxu0 %v4602
        %v4714 = vpop.f32.mrf.mxu0
        %v4715 = vadd.f32 %v4540, %v4714
        %4716 = vmatmul.f32.gmra.mxu0 %v4605
        %v4717 = vpop.f32.mrf.mxu0
        %v4718 = vadd.f32 %v4540, %v4717
        %4719 = vmatmul.f32.gmra.mxu0 %v4608
        %v4720 = vpop.f32.mrf.mxu0
        %v4721 = vadd.f32 %v4540, %v4720
        %4722 = vmatmul.f32.gmra.mxu0 %v4611
        %v4723 = vpop.f32.mrf.mxu0
        %v4724 = vadd.f32 %v4540, %v4723
        %4725 = vmatmul.f32.gmra.mxu0 %v4614
        %v4726 = vpop.f32.mrf.mxu0
        %v4727 = vadd.f32 %v4540, %v4726
        %4728 = vmatmul.f32.gmra.mxu0 %v4617
        %v4729 = vpop.f32.mrf.mxu0
        %v4730 = vadd.f32 %v4540, %v4729
        %4731 = vmatmul.f32.gmra.mxu0 %v4620
        %v4732 = vpop.f32.mrf.mxu0
        %v4733 = vadd.f32 %v4540, %v4732
        %4734 = vmatmul.f32.gmra.mxu0 %v4623
        %v4735 = vpop.f32.mrf.mxu0
        %v4736 = vadd.f32 %v4540, %v4735
        %4737 = vmatmul.f32.gmra.mxu0 %v4626
        %v4738 = vpop.f32.mrf.mxu0
        %v4739 = vadd.f32 %v4540, %v4738
        %4740 = vmatmul.f32.gmra.mxu0 %v4629
        %v4741 = vpop.f32.mrf.mxu0
        %v4742 = vadd.f32 %v4540, %v4741
        %4743 = vmatmul.f32.gmra.mxu0 %v4632
        %v4744 = vpop.f32.mrf.mxu0
        %v4745 = vadd.f32 %v4540, %v4744
        %4746 = vmatmul.f32.gmra.mxu0 %v4635
        %v4747 = vpop.f32.mrf.mxu0
        %v4748 = vadd.f32 %v4540, %v4747
        %4749 = vdwg.mxu0
        %v4750 = vmax.f32 %v4655, 0.0
        %v4751 = vmax.f32 %v4658, 0.0
        %v4752 = vmax.f32 %v4661, 0.0
        %v4753 = vmax.f32 %v4664, 0.0
        %v4754 = vmax.f32 %v4667, 0.0
        %v4755 = vmax.f32 %v4670, 0.0
        %v4756 = vmax.f32 %v4673, 0.0
        %v4757 = vmax.f32 %v4676, 0.0
        %v4758 = vmax.f32 %v4679, 0.0
        %v4759 = vmax.f32 %v4682, 0.0
        %v4760 = vmax.f32 %v4685, 0.0
        %v4761 = vmax.f32 %v4688, 0.0
        %v4762 = vmax.f32 %v4691, 0.0
        %v4763 = vmax.f32 %v4694, 0.0
        %v4764 = vmax.f32 %v4697, 0.0
        %v4765 = vmax.f32 %v4700, 0.0
        %v4766 = vmax.f32 %v4703, 0.0
        %v4767 = vmax.f32 %v4706, 0.0
        %v4768 = vmax.f32 %v4709, 0.0
        %v4769 = vmax.f32 %v4712, 0.0
        %v4770 = vmax.f32 %v4715, 0.0
        %v4771 = vmax.f32 %v4718, 0.0
        %v4772 = vmax.f32 %v4721, 0.0
        %v4773 = vmax.f32 %v4724, 0.0
        %v4774 = vmax.f32 %v4727, 0.0
        %v4775 = vmax.f32 %v4730, 0.0
        %v4776 = vmax.f32 %v4733, 0.0
        %v4777 = vmax.f32 %v4736, 0.0
        %v4778 = vmax.f32 %v4739, 0.0
        %v4779 = vmax.f32 %v4742, 0.0
        %v4780 = vmax.f32 %v4745, 0.0
        %v4781 = vmax.f32 %v4748, 0.0
        %v4782 = vld [vmem:[#allocation4 + $0x2f8] sm:$0xf]
        %v4783 = vld [vmem:[#allocation4 + $0x2fc] sm:$0xf]
        %v4784 = vld [vmem:[#allocation4 + $0x300] sm:$0xf]
        %v4785 = vld [vmem:[#allocation4 + $0x304] sm:$0xf]
        %v4786 = vld [vmem:[#allocation4 + $0x308] sm:$0xf]
        %v4787 = vld [vmem:[#allocation4 + $0x30c] sm:$0xf]
        %v4788 = vld [vmem:[#allocation4 + $0x310] sm:$0xf]
        %v4789 = vld [vmem:[#allocation4 + $0x314] sm:$0xf]
        %v4790 = vld [vmem:[#allocation4 + $0x318] sm:$0xf]
        %v4791 = vld [vmem:[#allocation4 + $0x31c] sm:$0xf]
        %v4792 = vld [vmem:[#allocation4 + $0x320] sm:$0xf]
        %v4793 = vld [vmem:[#allocation4 + $0x324] sm:$0xf]
        %v4794 = vld [vmem:[#allocation4 + $0x328] sm:$0xf]
        %v4795 = vld [vmem:[#allocation4 + $0x32c] sm:$0xf]
        %v4796 = vld [vmem:[#allocation4 + $0x330] sm:$0xf]
        %v4797 = vld [vmem:[#allocation4 + $0x334] sm:$0xf]
        %v4798 = vunpack.c.l.bf16 %v4782
        %v4799 = vunpack.c.l.bf16 %v4783
        %v4800 = vunpack.c.l.bf16 %v4784
        %v4801 = vunpack.c.l.bf16 %v4785
        %v4802 = vunpack.c.l.bf16 %v4786
        %v4803 = vunpack.c.l.bf16 %v4787
        %v4804 = vunpack.c.l.bf16 %v4788
        %v4805 = vunpack.c.l.bf16 %v4789
        %v4806 = vunpack.c.l.bf16 %v4790
        %v4807 = vunpack.c.l.bf16 %v4791
        %v4808 = vunpack.c.l.bf16 %v4792
        %v4809 = vunpack.c.l.bf16 %v4793
        %v4810 = vunpack.c.l.bf16 %v4794
        %v4811 = vunpack.c.l.bf16 %v4795
        %v4812 = vunpack.c.l.bf16 %v4796
        %v4813 = vunpack.c.l.bf16 %v4797
        %v4814 = vld [vmem:[#allocation4 + $0x338] sm:$0x1]
        %v4815 = vunpack.c.l.bf16 %v4814
        %4816 = vmatpush.msra.mxu0 %v4813
        %4817 = vmatpush.msra.mxu0 %v4812
        %4818 = vmatpush.msra.mxu0 %v4811
        %4819 = vmatpush.msra.mxu0 %v4810
        %4820 = vmatpush.msra.mxu0 %v4809
        %4821 = vmatpush.msra.mxu0 %v4808
        %4822 = vmatpush.msra.mxu0 %v4807
        %4823 = vmatpush.msra.mxu0 %v4806
        %4824 = vmatpush.msra.mxu0 %v4805
        %4825 = vmatpush.msra.mxu0 %v4804
        %4826 = vmatpush.msra.mxu0 %v4803
        %4827 = vmatpush.msra.mxu0 %v4802
        %4828 = vmatpush.msra.mxu0 %v4801
        %4829 = vmatpush.msra.mxu0 %v4800
        %4830 = vmatpush.msra.mxu0 %v4799
        %4831 = vmatpush.msra.mxu0 %v4798
        %4832 = vmatmul.f32.gmra.mxu0 %v805
        %v4833 = vpop.f32.mrf.mxu0
        %v4834 = vadd.f32 %v4815, %v4833
        %4835 = vdwg.mxu0
        %v4836 = vld [vmem:[#allocation4 + $0x33c] sm:$0xf]
        %v4837 = vld [vmem:[#allocation4 + $0x340] sm:$0xf]
        %v4838 = vld [vmem:[#allocation4 + $0x344] sm:$0xf]
        %v4839 = vld [vmem:[#allocation4 + $0x348] sm:$0xf]
        %v4840 = vld [vmem:[#allocation4 + $0x34c] sm:$0xf]
        %v4841 = vld [vmem:[#allocation4 + $0x350] sm:$0xf]
        %v4842 = vld [vmem:[#allocation4 + $0x354] sm:$0xf]
        %v4843 = vld [vmem:[#allocation4 + $0x358] sm:$0xf]
        %v4844 = vld [vmem:[#allocation4 + $0x35c] sm:$0xf]
        %v4845 = vld [vmem:[#allocation4 + $0x360] sm:$0xf]
        %v4846 = vld [vmem:[#allocation4 + $0x364] sm:$0xf]
        %v4847 = vld [vmem:[#allocation4 + $0x368] sm:$0xf]
        %v4848 = vld [vmem:[#allocation4 + $0x36c] sm:$0xf]
        %v4849 = vld [vmem:[#allocation4 + $0x370] sm:$0xf]
        %v4850 = vld [vmem:[#allocation4 + $0x374] sm:$0xf]
        %v4851 = vld [vmem:[#allocation4 + $0x378] sm:$0xf]
        %v4852 = vunpack.c.l.bf16 %v4836
        %v4853 = vunpack.c.l.bf16 %v4837
        %v4854 = vunpack.c.l.bf16 %v4838
        %v4855 = vunpack.c.l.bf16 %v4839
        %v4856 = vunpack.c.l.bf16 %v4840
        %v4857 = vunpack.c.l.bf16 %v4841
        %v4858 = vunpack.c.l.bf16 %v4842
        %v4859 = vunpack.c.l.bf16 %v4843
        %v4860 = vunpack.c.l.bf16 %v4844
        %v4861 = vunpack.c.l.bf16 %v4845
        %v4862 = vunpack.c.l.bf16 %v4846
        %v4863 = vunpack.c.l.bf16 %v4847
        %v4864 = vunpack.c.l.bf16 %v4848
        %v4865 = vunpack.c.l.bf16 %v4849
        %v4866 = vunpack.c.l.bf16 %v4850
        %v4867 = vunpack.c.l.bf16 %v4851
        %v4868 = vld [vmem:[#allocation4 + $0x37c] sm:$0x1]
        %v4869 = vunpack.c.l.bf16 %v4868
        %4870 = vmatpush.msra.mxu0 %v4867
        %4871 = vmatpush.msra.mxu0 %v4866
        %4872 = vmatpush.msra.mxu0 %v4865
        %4873 = vmatpush.msra.mxu0 %v4864
        %4874 = vmatpush.msra.mxu0 %v4863
        %4875 = vmatpush.msra.mxu0 %v4862
        %4876 = vmatpush.msra.mxu0 %v4861
        %4877 = vmatpush.msra.mxu0 %v4860
        %4878 = vmatpush.msra.mxu0 %v4859
        %4879 = vmatpush.msra.mxu0 %v4858
        %4880 = vmatpush.msra.mxu0 %v4857
        %4881 = vmatpush.msra.mxu0 %v4856
        %4882 = vmatpush.msra.mxu0 %v4855
        %4883 = vmatpush.msra.mxu0 %v4854
        %4884 = vmatpush.msra.mxu0 %v4853
        %4885 = vmatpush.msra.mxu0 %v4852
        %4886 = vmatmul.f32.gmra.mxu0 %v805
        %v4887 = vpop.f32.mrf.mxu0
        %v4888 = vadd.f32 %v4869, %v4887
        %4889 = vdwg.mxu0
        %v4890 = vperm.slane %v4834, 0
        %v4891 = vmul.f32 %v4750, %v4890
        %v4892 = vmul.f32 %v4751, %v4890
        %v4893 = vmul.f32 %v4752, %v4890
        %v4894 = vmul.f32 %v4753, %v4890
        %v4895 = vmul.f32 %v4754, %v4890
        %v4896 = vmul.f32 %v4755, %v4890
        %v4897 = vmul.f32 %v4756, %v4890
        %v4898 = vmul.f32 %v4757, %v4890
        %v4899 = vmul.f32 %v4758, %v4890
        %v4900 = vmul.f32 %v4759, %v4890
        %v4901 = vmul.f32 %v4760, %v4890
        %v4902 = vmul.f32 %v4761, %v4890
        %v4903 = vmul.f32 %v4762, %v4890
        %v4904 = vmul.f32 %v4763, %v4890
        %v4905 = vmul.f32 %v4764, %v4890
        %v4906 = vmul.f32 %v4765, %v4890
        %v4907 = vmul.f32 %v4766, %v4890
        %v4908 = vmul.f32 %v4767, %v4890
        %v4909 = vmul.f32 %v4768, %v4890
        %v4910 = vmul.f32 %v4769, %v4890
        %v4911 = vmul.f32 %v4770, %v4890
        %v4912 = vmul.f32 %v4771, %v4890
        %v4913 = vmul.f32 %v4772, %v4890
        %v4914 = vmul.f32 %v4773, %v4890
        %v4915 = vmul.f32 %v4774, %v4890
        %v4916 = vmul.f32 %v4775, %v4890
        %v4917 = vmul.f32 %v4776, %v4890
        %v4918 = vmul.f32 %v4777, %v4890
        %v4919 = vmul.f32 %v4778, %v4890
        %v4920 = vmul.f32 %v4779, %v4890
        %v4921 = vmul.f32 %v4780, %v4890
        %v4922 = vmul.f32 %v4781, %v4890
        %v4923 = vperm.slane %v4888, 0
        %v4924 = vadd.f32 %v4891, %v4923
        %v4925 = vadd.f32 %v4892, %v4923
        %v4926 = vadd.f32 %v4893, %v4923
        %v4927 = vadd.f32 %v4894, %v4923
        %v4928 = vadd.f32 %v4895, %v4923
        %v4929 = vadd.f32 %v4896, %v4923
        %v4930 = vadd.f32 %v4897, %v4923
        %v4931 = vadd.f32 %v4898, %v4923
        %v4932 = vadd.f32 %v4899, %v4923
        %v4933 = vadd.f32 %v4900, %v4923
        %v4934 = vadd.f32 %v4901, %v4923
        %v4935 = vadd.f32 %v4902, %v4923
        %v4936 = vadd.f32 %v4903, %v4923
        %v4937 = vadd.f32 %v4904, %v4923
        %v4938 = vadd.f32 %v4905, %v4923
        %v4939 = vadd.f32 %v4906, %v4923
        %v4940 = vadd.f32 %v4907, %v4923
        %v4941 = vadd.f32 %v4908, %v4923
        %v4942 = vadd.f32 %v4909, %v4923
        %v4943 = vadd.f32 %v4910, %v4923
        %v4944 = vadd.f32 %v4911, %v4923
        %v4945 = vadd.f32 %v4912, %v4923
        %v4946 = vadd.f32 %v4913, %v4923
        %v4947 = vadd.f32 %v4914, %v4923
        %v4948 = vadd.f32 %v4915, %v4923
        %v4949 = vadd.f32 %v4916, %v4923
        %v4950 = vadd.f32 %v4917, %v4923
        %v4951 = vadd.f32 %v4918, %v4923
        %v4952 = vadd.f32 %v4919, %v4923
        %v4953 = vadd.f32 %v4920, %v4923
        %v4954 = vadd.f32 %v4921, %v4923
        %v4955 = vadd.f32 %v4922, %v4923
        %v4956 = vld [vmem:[#allocation4 + $0x380] sm:$0xf]
        %v4957 = vld [vmem:[#allocation4 + $0x384] sm:$0xf]
        %v4958 = vld [vmem:[#allocation4 + $0x388] sm:$0xf]
        %v4959 = vld [vmem:[#allocation4 + $0x38c] sm:$0xf]
        %v4960 = vld [vmem:[#allocation4 + $0x390] sm:$0xf]
        %v4961 = vld [vmem:[#allocation4 + $0x394] sm:$0xf]
        %v4962 = vld [vmem:[#allocation4 + $0x398] sm:$0xf]
        %v4963 = vld [vmem:[#allocation4 + $0x39c] sm:$0xf]
        %v4964 = vunpack.c.l.bf16 %v4956
        %v4965 = vunpack.c.l.bf16 %v4957
        %v4966 = vunpack.c.l.bf16 %v4958
        %v4967 = vunpack.c.l.bf16 %v4959
        %v4968 = vunpack.c.l.bf16 %v4960
        %v4969 = vunpack.c.l.bf16 %v4961
        %v4970 = vunpack.c.l.bf16 %v4962
        %v4971 = vunpack.c.l.bf16 %v4963
        %v4973 = vsel %vm588, %v4924, 0
        %v4976 = vsel %vm588, %v4925, 0
        %v4979 = vsel %vm588, %v4926, 0
        %v4982 = vsel %vm588, %v4927, 0
        %v4985 = vsel %vm588, %v4928, 0
        %v4988 = vsel %vm588, %v4929, 0
        %v4991 = vsel %vm588, %v4930, 0
        %v4994 = vsel %vm588, %v4931, 0
        %v4997 = vsel %vm588, %v4932, 0
        %v5000 = vsel %vm588, %v4933, 0
        %v5003 = vsel %vm588, %v4934, 0
        %v5006 = vsel %vm588, %v4935, 0
        %v5009 = vsel %vm588, %v4936, 0
        %v5012 = vsel %vm588, %v4937, 0
        %v5015 = vsel %vm588, %v4938, 0
        %v5018 = vsel %vm588, %v4939, 0
        %v5021 = vsel %vm588, %v4940, 0
        %v5024 = vsel %vm588, %v4941, 0
        %v5027 = vsel %vm588, %v4942, 0
        %v5030 = vsel %vm588, %v4943, 0
        %v5033 = vsel %vm588, %v4944, 0
        %v5036 = vsel %vm588, %v4945, 0
        %v5039 = vsel %vm588, %v4946, 0
        %v5042 = vsel %vm588, %v4947, 0
        %v5045 = vsel %vm588, %v4948, 0
        %v5048 = vsel %vm588, %v4949, 0
        %v5051 = vsel %vm588, %v4950, 0
        %v5054 = vsel %vm588, %v4951, 0
        %v5057 = vsel %vm588, %v4952, 0
        %v5060 = vsel %vm588, %v4953, 0
        %v5063 = vsel %vm588, %v4954, 0
        %v5066 = vsel %vm588, %v4955, 0
        %5068 = vmatpush.msra.mxu0 0.0
        %5069 = vmatpush.msra.mxu0 0.0
        %5070 = vmatpush.msra.mxu0 0.0
        %5071 = vmatpush.msra.mxu0 0.0
        %5072 = vmatpush.msra.mxu0 0.0
        %5073 = vmatpush.msra.mxu0 0.0
        %5074 = vmatpush.msra.mxu0 0.0
        %5075 = vmatpush.msra.mxu0 0.0
        %5076 = vmatpush.msra.mxu0 %v4971
        %5077 = vmatpush.msra.mxu0 %v4970
        %5078 = vmatpush.msra.mxu0 %v4969
        %5079 = vmatpush.msra.mxu0 %v4968
        %5080 = vmatpush.msra.mxu0 %v4967
        %5081 = vmatpush.msra.mxu0 %v4966
        %5082 = vmatpush.msra.mxu0 %v4965
        %5083 = vmatpush.msra.mxu0 %v4964
        %5084 = vmatmul.f32.gmra.mxu0 %v4973
        %v5085 = vpop.f32.mrf.mxu0
        %v5086 = vadd.f32 0.0, %v5085
        %5087 = vmatmul.f32.gmra.mxu0 %v4976
        %v5088 = vpop.f32.mrf.mxu0
        %v5089 = vadd.f32 0.0, %v5088
        %5090 = vmatmul.f32.gmra.mxu0 %v4979
        %v5091 = vpop.f32.mrf.mxu0
        %v5092 = vadd.f32 0.0, %v5091
        %5093 = vmatmul.f32.gmra.mxu0 %v4982
        %v5094 = vpop.f32.mrf.mxu0
        %v5095 = vadd.f32 0.0, %v5094
        %5096 = vmatmul.f32.gmra.mxu0 %v4985
        %v5097 = vpop.f32.mrf.mxu0
        %v5098 = vadd.f32 0.0, %v5097
        %5099 = vmatmul.f32.gmra.mxu0 %v4988
        %v5100 = vpop.f32.mrf.mxu0
        %v5101 = vadd.f32 0.0, %v5100
        %5102 = vmatmul.f32.gmra.mxu0 %v4991
        %v5103 = vpop.f32.mrf.mxu0
        %v5104 = vadd.f32 0.0, %v5103
        %5105 = vmatmul.f32.gmra.mxu0 %v4994
        %v5106 = vpop.f32.mrf.mxu0
        %v5107 = vadd.f32 0.0, %v5106
        %5108 = vmatmul.f32.gmra.mxu0 %v4997
        %v5109 = vpop.f32.mrf.mxu0
        %v5110 = vadd.f32 0.0, %v5109
        %5111 = vmatmul.f32.gmra.mxu0 %v5000
        %v5112 = vpop.f32.mrf.mxu0
        %v5113 = vadd.f32 0.0, %v5112
        %5114 = vmatmul.f32.gmra.mxu0 %v5003
        %v5115 = vpop.f32.mrf.mxu0
        %v5116 = vadd.f32 0.0, %v5115
        %5117 = vmatmul.f32.gmra.mxu0 %v5006
        %v5118 = vpop.f32.mrf.mxu0
        %v5119 = vadd.f32 0.0, %v5118
        %5120 = vmatmul.f32.gmra.mxu0 %v5009
        %v5121 = vpop.f32.mrf.mxu0
        %v5122 = vadd.f32 0.0, %v5121
        %5123 = vmatmul.f32.gmra.mxu0 %v5012
        %v5124 = vpop.f32.mrf.mxu0
        %v5125 = vadd.f32 0.0, %v5124
        %5126 = vmatmul.f32.gmra.mxu0 %v5015
        %v5127 = vpop.f32.mrf.mxu0
        %v5128 = vadd.f32 0.0, %v5127
        %5129 = vmatmul.f32.gmra.mxu0 %v5018
        %v5130 = vpop.f32.mrf.mxu0
        %v5131 = vadd.f32 0.0, %v5130
        %5132 = vmatmul.f32.gmra.mxu0 %v5021
        %v5133 = vpop.f32.mrf.mxu0
        %v5134 = vadd.f32 0.0, %v5133
        %5135 = vmatmul.f32.gmra.mxu0 %v5024
        %v5136 = vpop.f32.mrf.mxu0
        %v5137 = vadd.f32 0.0, %v5136
        %5138 = vmatmul.f32.gmra.mxu0 %v5027
        %v5139 = vpop.f32.mrf.mxu0
        %v5140 = vadd.f32 0.0, %v5139
        %5141 = vmatmul.f32.gmra.mxu0 %v5030
        %v5142 = vpop.f32.mrf.mxu0
        %v5143 = vadd.f32 0.0, %v5142
        %5144 = vmatmul.f32.gmra.mxu0 %v5033
        %v5145 = vpop.f32.mrf.mxu0
        %v5146 = vadd.f32 0.0, %v5145
        %5147 = vmatmul.f32.gmra.mxu0 %v5036
        %v5148 = vpop.f32.mrf.mxu0
        %v5149 = vadd.f32 0.0, %v5148
        %5150 = vmatmul.f32.gmra.mxu0 %v5039
        %v5151 = vpop.f32.mrf.mxu0
        %v5152 = vadd.f32 0.0, %v5151
        %5153 = vmatmul.f32.gmra.mxu0 %v5042
        %v5154 = vpop.f32.mrf.mxu0
        %v5155 = vadd.f32 0.0, %v5154
        %5156 = vmatmul.f32.gmra.mxu0 %v5045
        %v5157 = vpop.f32.mrf.mxu0
        %v5158 = vadd.f32 0.0, %v5157
        %5159 = vmatmul.f32.gmra.mxu0 %v5048
        %v5160 = vpop.f32.mrf.mxu0
        %v5161 = vadd.f32 0.0, %v5160
        %5162 = vmatmul.f32.gmra.mxu0 %v5051
        %v5163 = vpop.f32.mrf.mxu0
        %v5164 = vadd.f32 0.0, %v5163
        %5165 = vmatmul.f32.gmra.mxu0 %v5054
        %v5166 = vpop.f32.mrf.mxu0
        %v5167 = vadd.f32 0.0, %v5166
        %5168 = vmatmul.f32.gmra.mxu0 %v5057
        %v5169 = vpop.f32.mrf.mxu0
        %v5170 = vadd.f32 0.0, %v5169
        %5171 = vmatmul.f32.gmra.mxu0 %v5060
        %v5172 = vpop.f32.mrf.mxu0
        %v5173 = vadd.f32 0.0, %v5172
        %5174 = vmatmul.f32.gmra.mxu0 %v5063
        %v5175 = vpop.f32.mrf.mxu0
        %v5176 = vadd.f32 0.0, %v5175
        %5177 = vmatmul.f32.gmra.mxu0 %v5066
        %v5178 = vpop.f32.mrf.mxu0
        %v5179 = vadd.f32 0.0, %v5178
        %5180 = vdwg.mxu0
        %v5181 = vld [vmem:[#allocation4 + $0x3a0] sm:$0xf]
        %v5182 = vld [vmem:[#allocation4 + $0x3a4] sm:$0xf]
        %v5183 = vld [vmem:[#allocation4 + $0x3a8] sm:$0xf]
        %v5184 = vld [vmem:[#allocation4 + $0x3ac] sm:$0xf]
        %v5185 = vld [vmem:[#allocation4 + $0x3b0] sm:$0xf]
        %v5186 = vld [vmem:[#allocation4 + $0x3b4] sm:$0xf]
        %v5187 = vld [vmem:[#allocation4 + $0x3b8] sm:$0xf]
        %v5188 = vld [vmem:[#allocation4 + $0x3bc] sm:$0xf]
        %v5189 = vld [vmem:[#allocation4 + $0x3c0] sm:$0xf]
        %v5190 = vld [vmem:[#allocation4 + $0x3c4] sm:$0xf]
        %v5191 = vld [vmem:[#allocation4 + $0x3c8] sm:$0xf]
        %v5192 = vld [vmem:[#allocation4 + $0x3cc] sm:$0xf]
        %v5193 = vld [vmem:[#allocation4 + $0x3d0] sm:$0xf]
        %v5194 = vld [vmem:[#allocation4 + $0x3d4] sm:$0xf]
        %v5195 = vld [vmem:[#allocation4 + $0x3d8] sm:$0xf]
        %v5196 = vld [vmem:[#allocation4 + $0x3dc] sm:$0xf]
        %v5197 = vunpack.c.l.bf16 %v5181
        %v5198 = vunpack.c.l.bf16 %v5182
        %v5199 = vunpack.c.l.bf16 %v5183
        %v5200 = vunpack.c.l.bf16 %v5184
        %v5201 = vunpack.c.l.bf16 %v5185
        %v5202 = vunpack.c.l.bf16 %v5186
        %v5203 = vunpack.c.l.bf16 %v5187
        %v5204 = vunpack.c.l.bf16 %v5188
        %v5205 = vunpack.c.l.bf16 %v5189
        %v5206 = vunpack.c.l.bf16 %v5190
        %v5207 = vunpack.c.l.bf16 %v5191
        %v5208 = vunpack.c.l.bf16 %v5192
        %v5209 = vunpack.c.l.bf16 %v5193
        %v5210 = vunpack.c.l.bf16 %v5194
        %v5211 = vunpack.c.l.bf16 %v5195
        %v5212 = vunpack.c.l.bf16 %v5196
        %5213 = vmatpush.msra.mxu0 %v5212
        %5214 = vmatpush.msra.mxu0 %v5211
        %5215 = vmatpush.msra.mxu0 %v5210
        %5216 = vmatpush.msra.mxu0 %v5209
        %5217 = vmatpush.msra.mxu0 %v5208
        %5218 = vmatpush.msra.mxu0 %v5207
        %5219 = vmatpush.msra.mxu0 %v5206
        %5220 = vmatpush.msra.mxu0 %v5205
        %5221 = vmatpush.msra.mxu0 %v5204
        %5222 = vmatpush.msra.mxu0 %v5203
        %5223 = vmatpush.msra.mxu0 %v5202
        %5224 = vmatpush.msra.mxu0 %v5201
        %5225 = vmatpush.msra.mxu0 %v5200
        %5226 = vmatpush.msra.mxu0 %v5199
        %5227 = vmatpush.msra.mxu0 %v5198
        %5228 = vmatpush.msra.mxu0 %v5197
        %5229 = vmatmul.f32.gmra.mxu0 %v655
        %v5230 = vpop.f32.mrf.mxu0
        %v5231 = vadd.f32 0.0, %v5230
        %5232 = vmatmul.f32.gmra.mxu0 %v658
        %v5233 = vpop.f32.mrf.mxu0
        %v5234 = vadd.f32 0.0, %v5233
        %5235 = vmatmul.f32.gmra.mxu0 %v661
        %v5236 = vpop.f32.mrf.mxu0
        %v5237 = vadd.f32 0.0, %v5236
        %5238 = vmatmul.f32.gmra.mxu0 %v664
        %v5239 = vpop.f32.mrf.mxu0
        %v5240 = vadd.f32 0.0, %v5239
        %5241 = vmatmul.f32.gmra.mxu0 %v667
        %v5242 = vpop.f32.mrf.mxu0
        %v5243 = vadd.f32 0.0, %v5242
        %5244 = vmatmul.f32.gmra.mxu0 %v670
        %v5245 = vpop.f32.mrf.mxu0
        %v5246 = vadd.f32 0.0, %v5245
        %5247 = vmatmul.f32.gmra.mxu0 %v673
        %v5248 = vpop.f32.mrf.mxu0
        %v5249 = vadd.f32 0.0, %v5248
        %5250 = vmatmul.f32.gmra.mxu0 %v676
        %v5251 = vpop.f32.mrf.mxu0
        %v5252 = vadd.f32 0.0, %v5251
        %5253 = vmatmul.f32.gmra.mxu0 %v679
        %v5254 = vpop.f32.mrf.mxu0
        %v5255 = vadd.f32 0.0, %v5254
        %5256 = vmatmul.f32.gmra.mxu0 %v682
        %v5257 = vpop.f32.mrf.mxu0
        %v5258 = vadd.f32 0.0, %v5257
        %5259 = vmatmul.f32.gmra.mxu0 %v685
        %v5260 = vpop.f32.mrf.mxu0
        %v5261 = vadd.f32 0.0, %v5260
        %5262 = vmatmul.f32.gmra.mxu0 %v688
        %v5263 = vpop.f32.mrf.mxu0
        %v5264 = vadd.f32 0.0, %v5263
        %5265 = vmatmul.f32.gmra.mxu0 %v691
        %v5266 = vpop.f32.mrf.mxu0
        %v5267 = vadd.f32 0.0, %v5266
        %5268 = vmatmul.f32.gmra.mxu0 %v694
        %v5269 = vpop.f32.mrf.mxu0
        %v5270 = vadd.f32 0.0, %v5269
        %5271 = vmatmul.f32.gmra.mxu0 %v697
        %v5272 = vpop.f32.mrf.mxu0
        %v5273 = vadd.f32 0.0, %v5272
        %5274 = vmatmul.f32.gmra.mxu0 %v700
        %v5275 = vpop.f32.mrf.mxu0
        %v5276 = vadd.f32 0.0, %v5275
        %5277 = vdwg.mxu0
        %v5278 = vpack.c.bf16 %v5234, %v5231
        %v5279 = vpack.c.bf16 %v5240, %v5237
        %v5280 = vpack.c.bf16 %v5246, %v5243
        %v5281 = vpack.c.bf16 %v5252, %v5249
        %v5282 = vpack.c.bf16 %v5258, %v5255
        %v5283 = vpack.c.bf16 %v5264, %v5261
        %v5284 = vpack.c.bf16 %v5270, %v5267
        %v5285 = vpack.c.bf16 %v5276, %v5273
        %v5286 = vpack.c.bf16 %v5089, %v5086
        %v5287 = vpack.c.bf16 %v5095, %v5092
        %v5288 = vpack.c.bf16 %v5101, %v5098
        %v5289 = vpack.c.bf16 %v5107, %v5104
        %v5290 = vpack.c.bf16 %v5113, %v5110
        %v5291 = vpack.c.bf16 %v5119, %v5116
        %v5292 = vpack.c.bf16 %v5125, %v5122
        %v5293 = vpack.c.bf16 %v5131, %v5128
        %v5294 = vpack.c.bf16 %v5137, %v5134
        %v5295 = vpack.c.bf16 %v5143, %v5140
        %v5296 = vpack.c.bf16 %v5149, %v5146
        %v5297 = vpack.c.bf16 %v5155, %v5152
        %v5298 = vpack.c.bf16 %v5161, %v5158
        %v5299 = vpack.c.bf16 %v5167, %v5164
        %v5300 = vpack.c.bf16 %v5173, %v5170
        %v5301 = vpack.c.bf16 %v5179, %v5176
        %5302 = vmatpush.bf16.xpose.msra.mxu0 %v5285
        %5303 = vmatpush.bf16.xpose.msra.mxu0 %v5284
        %5304 = vmatpush.bf16.xpose.msra.mxu0 %v5283
        %5305 = vmatpush.bf16.xpose.msra.mxu0 %v5282
        %5306 = vmatpush.bf16.xpose.msra.mxu0 %v5281
        %5307 = vmatpush.bf16.xpose.msra.mxu0 %v5280
        %5308 = vmatpush.bf16.xpose.msra.mxu0 %v5279
        %5309 = vmatpush.bf16.xpose.msra.mxu0 %v5278
        %5310 = vmatmul.bf16.gmra.mxu0 %v5286
        %v5311 = vpop.f32.mrf.mxu0
        %v5312 = vadd.f32 0.0, %v5311
        %v5313 = vpop.f32.mrf.mxu0
        %v5314 = vadd.f32 0.0, %v5313
        %5315 = vmatmul.bf16.gmra.mxu0 %v5287
        %v5316 = vpop.f32.mrf.mxu0
        %v5317 = vadd.f32 0.0, %v5316
        %v5318 = vpop.f32.mrf.mxu0
        %v5319 = vadd.f32 0.0, %v5318
        %5320 = vmatmul.bf16.gmra.mxu0 %v5288
        %v5321 = vpop.f32.mrf.mxu0
        %v5322 = vadd.f32 0.0, %v5321
        %v5323 = vpop.f32.mrf.mxu0
        %v5324 = vadd.f32 0.0, %v5323
        %5325 = vmatmul.bf16.gmra.mxu0 %v5289
        %v5326 = vpop.f32.mrf.mxu0
        %v5327 = vadd.f32 0.0, %v5326
        %v5328 = vpop.f32.mrf.mxu0
        %v5329 = vadd.f32 0.0, %v5328
        %5330 = vmatmul.bf16.gmra.mxu0 %v5290
        %v5331 = vpop.f32.mrf.mxu0
        %v5332 = vadd.f32 0.0, %v5331
        %v5333 = vpop.f32.mrf.mxu0
        %v5334 = vadd.f32 0.0, %v5333
        %5335 = vmatmul.bf16.gmra.mxu0 %v5291
        %v5336 = vpop.f32.mrf.mxu0
        %v5337 = vadd.f32 0.0, %v5336
        %v5338 = vpop.f32.mrf.mxu0
        %v5339 = vadd.f32 0.0, %v5338
        %5340 = vmatmul.bf16.gmra.mxu0 %v5292
        %v5341 = vpop.f32.mrf.mxu0
        %v5342 = vadd.f32 0.0, %v5341
        %v5343 = vpop.f32.mrf.mxu0
        %v5344 = vadd.f32 0.0, %v5343
        %5345 = vmatmul.bf16.gmra.mxu0 %v5293
        %v5346 = vpop.f32.mrf.mxu0
        %v5347 = vadd.f32 0.0, %v5346
        %v5348 = vpop.f32.mrf.mxu0
        %v5349 = vadd.f32 0.0, %v5348
        %5350 = vmatmul.bf16.gmra.mxu0 %v5294
        %v5351 = vpop.f32.mrf.mxu0
        %v5352 = vadd.f32 0.0, %v5351
        %v5353 = vpop.f32.mrf.mxu0
        %v5354 = vadd.f32 0.0, %v5353
        %5355 = vmatmul.bf16.gmra.mxu0 %v5295
        %v5356 = vpop.f32.mrf.mxu0
        %v5357 = vadd.f32 0.0, %v5356
        %v5358 = vpop.f32.mrf.mxu0
        %v5359 = vadd.f32 0.0, %v5358
        %5360 = vmatmul.bf16.gmra.mxu0 %v5296
        %v5361 = vpop.f32.mrf.mxu0
        %v5362 = vadd.f32 0.0, %v5361
        %v5363 = vpop.f32.mrf.mxu0
        %v5364 = vadd.f32 0.0, %v5363
        %5365 = vmatmul.bf16.gmra.mxu0 %v5297
        %v5366 = vpop.f32.mrf.mxu0
        %v5367 = vadd.f32 0.0, %v5366
        %v5368 = vpop.f32.mrf.mxu0
        %v5369 = vadd.f32 0.0, %v5368
        %5370 = vmatmul.bf16.gmra.mxu0 %v5298
        %v5371 = vpop.f32.mrf.mxu0
        %v5372 = vadd.f32 0.0, %v5371
        %v5373 = vpop.f32.mrf.mxu0
        %v5374 = vadd.f32 0.0, %v5373
        %5375 = vmatmul.bf16.gmra.mxu0 %v5299
        %v5376 = vpop.f32.mrf.mxu0
        %v5377 = vadd.f32 0.0, %v5376
        %v5378 = vpop.f32.mrf.mxu0
        %v5379 = vadd.f32 0.0, %v5378
        %5380 = vmatmul.bf16.gmra.mxu0 %v5300
        %v5381 = vpop.f32.mrf.mxu0
        %v5382 = vadd.f32 0.0, %v5381
        %v5383 = vpop.f32.mrf.mxu0
        %v5384 = vadd.f32 0.0, %v5383
        %5385 = vmatmul.bf16.gmra.mxu0 %v5301
        %v5386 = vpop.f32.mrf.mxu0
        %v5387 = vadd.f32 0.0, %v5386
        %v5388 = vpop.f32.mrf.mxu0
        %v5389 = vadd.f32 0.0, %v5388
        %5390 = vdwg.mxu0
        %5391 = vmax.xlane.f32.xlu0 %v5312
        %v5392 = vpop.xlane.xlu0 %5391
        %5393 = vmax.xlane.f32.xlu0 %v5314
        %v5394 = vpop.xlane.xlu0 %5393
        %5395 = vmax.xlane.f32.xlu0 %v5317
        %v5396 = vpop.xlane.xlu0 %5395
        %5397 = vmax.xlane.f32.xlu0 %v5319
        %v5398 = vpop.xlane.xlu0 %5397
        %5399 = vmax.xlane.f32.xlu0 %v5322
        %v5400 = vpop.xlane.xlu0 %5399
        %5401 = vmax.xlane.f32.xlu0 %v5324
        %v5402 = vpop.xlane.xlu0 %5401
        %5403 = vmax.xlane.f32.xlu0 %v5327
        %v5404 = vpop.xlane.xlu0 %5403
        %5405 = vmax.xlane.f32.xlu0 %v5329
        %v5406 = vpop.xlane.xlu0 %5405
        %5407 = vmax.xlane.f32.xlu0 %v5332
        %v5408 = vpop.xlane.xlu0 %5407
        %5409 = vmax.xlane.f32.xlu0 %v5334
        %v5410 = vpop.xlane.xlu0 %5409
        %5411 = vmax.xlane.f32.xlu0 %v5337
        %v5412 = vpop.xlane.xlu0 %5411
        %5413 = vmax.xlane.f32.xlu0 %v5339
        %v5414 = vpop.xlane.xlu0 %5413
        %5415 = vmax.xlane.f32.xlu0 %v5342
        %v5416 = vpop.xlane.xlu0 %5415
        %5417 = vmax.xlane.f32.xlu0 %v5344
        %v5418 = vpop.xlane.xlu0 %5417
        %5419 = vmax.xlane.f32.xlu0 %v5347
        %v5420 = vpop.xlane.xlu0 %5419
        %5421 = vmax.xlane.f32.xlu0 %v5349
        %v5422 = vpop.xlane.xlu0 %5421
        %5423 = vmax.xlane.f32.xlu0 %v5352
        %v5424 = vpop.xlane.xlu0 %5423
        %5425 = vmax.xlane.f32.xlu0 %v5354
        %v5426 = vpop.xlane.xlu0 %5425
        %5427 = vmax.xlane.f32.xlu0 %v5357
        %v5428 = vpop.xlane.xlu0 %5427
        %5429 = vmax.xlane.f32.xlu0 %v5359
        %v5430 = vpop.xlane.xlu0 %5429
        %5431 = vmax.xlane.f32.xlu0 %v5362
        %v5432 = vpop.xlane.xlu0 %5431
        %5433 = vmax.xlane.f32.xlu0 %v5364
        %v5434 = vpop.xlane.xlu0 %5433
        %5435 = vmax.xlane.f32.xlu0 %v5367
        %v5436 = vpop.xlane.xlu0 %5435
        %5437 = vmax.xlane.f32.xlu0 %v5369
        %v5438 = vpop.xlane.xlu0 %5437
        %5439 = vmax.xlane.f32.xlu0 %v5372
        %v5440 = vpop.xlane.xlu0 %5439
        %5441 = vmax.xlane.f32.xlu0 %v5374
        %v5442 = vpop.xlane.xlu0 %5441
        %5443 = vmax.xlane.f32.xlu0 %v5377
        %v5444 = vpop.xlane.xlu0 %5443
        %5445 = vmax.xlane.f32.xlu0 %v5379
        %v5446 = vpop.xlane.xlu0 %5445
        %5447 = vmax.xlane.f32.xlu0 %v5382
        %v5448 = vpop.xlane.xlu0 %5447
        %5449 = vmax.xlane.f32.xlu0 %v5384
        %v5450 = vpop.xlane.xlu0 %5449
        %5451 = vmax.xlane.f32.xlu0 %v5387
        %v5452 = vpop.xlane.xlu0 %5451
        %5453 = vmax.xlane.f32.xlu0 %v5389
        %v5454 = vpop.xlane.xlu0 %5453
        %v5455 = vsub.f32 %v5312, %v5392
        %v5456 = vsub.f32 %v5314, %v5394
        %v5457 = vsub.f32 %v5317, %v5396
        %v5458 = vsub.f32 %v5319, %v5398
        %v5459 = vsub.f32 %v5322, %v5400
        %v5460 = vsub.f32 %v5324, %v5402
        %v5461 = vsub.f32 %v5327, %v5404
        %v5462 = vsub.f32 %v5329, %v5406
        %v5463 = vsub.f32 %v5332, %v5408
        %v5464 = vsub.f32 %v5334, %v5410
        %v5465 = vsub.f32 %v5337, %v5412
        %v5466 = vsub.f32 %v5339, %v5414
        %v5467 = vsub.f32 %v5342, %v5416
        %v5468 = vsub.f32 %v5344, %v5418
        %v5469 = vsub.f32 %v5347, %v5420
        %v5470 = vsub.f32 %v5349, %v5422
        %v5471 = vsub.f32 %v5352, %v5424
        %v5472 = vsub.f32 %v5354, %v5426
        %v5473 = vsub.f32 %v5357, %v5428
        %v5474 = vsub.f32 %v5359, %v5430
        %v5475 = vsub.f32 %v5362, %v5432
        %v5476 = vsub.f32 %v5364, %v5434
        %v5477 = vsub.f32 %v5367, %v5436
        %v5478 = vsub.f32 %v5369, %v5438
        %v5479 = vsub.f32 %v5372, %v5440
        %v5480 = vsub.f32 %v5374, %v5442
        %v5481 = vsub.f32 %v5377, %v5444
        %v5482 = vsub.f32 %v5379, %v5446
        %v5483 = vsub.f32 %v5382, %v5448
        %v5484 = vsub.f32 %v5384, %v5450
        %v5485 = vsub.f32 %v5387, %v5452
        %v5486 = vsub.f32 %v5389, %v5454
        %v5487 = vmul.f32 %v5455, 1.442695
        %v5488 = vpow.pop %v5487
        %v5489 = vmul.f32 %v5456, 1.442695
        %v5490 = vpow.pop %v5489
        %v5491 = vmul.f32 %v5457, 1.442695
        %v5492 = vpow.pop %v5491
        %v5493 = vmul.f32 %v5458, 1.442695
        %v5494 = vpow.pop %v5493
        %v5495 = vmul.f32 %v5459, 1.442695
        %v5496 = vpow.pop %v5495
        %v5497 = vmul.f32 %v5460, 1.442695
        %v5498 = vpow.pop %v5497
        %v5499 = vmul.f32 %v5461, 1.442695
        %v5500 = vpow.pop %v5499
        %v5501 = vmul.f32 %v5462, 1.442695
        %v5502 = vpow.pop %v5501
        %v5503 = vmul.f32 %v5463, 1.442695
        %v5504 = vpow.pop %v5503
        %v5505 = vmul.f32 %v5464, 1.442695
        %v5506 = vpow.pop %v5505
        %v5507 = vmul.f32 %v5465, 1.442695
        %v5508 = vpow.pop %v5507
        %v5509 = vmul.f32 %v5466, 1.442695
        %v5510 = vpow.pop %v5509
        %v5511 = vmul.f32 %v5467, 1.442695
        %v5512 = vpow.pop %v5511
        %v5513 = vmul.f32 %v5468, 1.442695
        %v5514 = vpow.pop %v5513
        %v5515 = vmul.f32 %v5469, 1.442695
        %v5516 = vpow.pop %v5515
        %v5517 = vmul.f32 %v5470, 1.442695
        %v5518 = vpow.pop %v5517
        %v5519 = vmul.f32 %v5471, 1.442695
        %v5520 = vpow.pop %v5519
        %v5521 = vmul.f32 %v5472, 1.442695
        %v5522 = vpow.pop %v5521
        %v5523 = vmul.f32 %v5473, 1.442695
        %v5524 = vpow.pop %v5523
        %v5525 = vmul.f32 %v5474, 1.442695
        %v5526 = vpow.pop %v5525
        %v5527 = vmul.f32 %v5475, 1.442695
        %v5528 = vpow.pop %v5527
        %v5529 = vmul.f32 %v5476, 1.442695
        %v5530 = vpow.pop %v5529
        %v5531 = vmul.f32 %v5477, 1.442695
        %v5532 = vpow.pop %v5531
        %v5533 = vmul.f32 %v5478, 1.442695
        %v5534 = vpow.pop %v5533
        %v5535 = vmul.f32 %v5479, 1.442695
        %v5536 = vpow.pop %v5535
        %v5537 = vmul.f32 %v5480, 1.442695
        %v5538 = vpow.pop %v5537
        %v5539 = vmul.f32 %v5481, 1.442695
        %v5540 = vpow.pop %v5539
        %v5541 = vmul.f32 %v5482, 1.442695
        %v5542 = vpow.pop %v5541
        %v5543 = vmul.f32 %v5483, 1.442695
        %v5544 = vpow.pop %v5543
        %v5545 = vmul.f32 %v5484, 1.442695
        %v5546 = vpow.pop %v5545
        %v5547 = vmul.f32 %v5485, 1.442695
        %v5548 = vpow.pop %v5547
        %v5549 = vmul.f32 %v5486, 1.442695
        %v5550 = vpow.pop %v5549
        %5551 = vadd.xlane.f32.xlu0 %v5488
        %v5552 = vpop.xlane.xlu0 %5551
        %5553 = vadd.xlane.f32.xlu0 %v5490
        %v5554 = vpop.xlane.xlu0 %5553
        %5555 = vadd.xlane.f32.xlu0 %v5492
        %v5556 = vpop.xlane.xlu0 %5555
        %5557 = vadd.xlane.f32.xlu0 %v5494
        %v5558 = vpop.xlane.xlu0 %5557
        %5559 = vadd.xlane.f32.xlu0 %v5496
        %v5560 = vpop.xlane.xlu0 %5559
        %5561 = vadd.xlane.f32.xlu0 %v5498
        %v5562 = vpop.xlane.xlu0 %5561
        %5563 = vadd.xlane.f32.xlu0 %v5500
        %v5564 = vpop.xlane.xlu0 %5563
        %5565 = vadd.xlane.f32.xlu0 %v5502
        %v5566 = vpop.xlane.xlu0 %5565
        %5567 = vadd.xlane.f32.xlu0 %v5504
        %v5568 = vpop.xlane.xlu0 %5567
        %5569 = vadd.xlane.f32.xlu0 %v5506
        %v5570 = vpop.xlane.xlu0 %5569
        %5571 = vadd.xlane.f32.xlu0 %v5508
        %v5572 = vpop.xlane.xlu0 %5571
        %5573 = vadd.xlane.f32.xlu0 %v5510
        %v5574 = vpop.xlane.xlu0 %5573
        %5575 = vadd.xlane.f32.xlu0 %v5512
        %v5576 = vpop.xlane.xlu0 %5575
        %5577 = vadd.xlane.f32.xlu0 %v5514
        %v5578 = vpop.xlane.xlu0 %5577
        %5579 = vadd.xlane.f32.xlu0 %v5516
        %v5580 = vpop.xlane.xlu0 %5579
        %5581 = vadd.xlane.f32.xlu0 %v5518
        %v5582 = vpop.xlane.xlu0 %5581
        %5583 = vadd.xlane.f32.xlu0 %v5520
        %v5584 = vpop.xlane.xlu0 %5583
        %5585 = vadd.xlane.f32.xlu0 %v5522
        %v5586 = vpop.xlane.xlu0 %5585
        %5587 = vadd.xlane.f32.xlu0 %v5524
        %v5588 = vpop.xlane.xlu0 %5587
        %5589 = vadd.xlane.f32.xlu0 %v5526
        %v5590 = vpop.xlane.xlu0 %5589
        %5591 = vadd.xlane.f32.xlu0 %v5528
        %v5592 = vpop.xlane.xlu0 %5591
        %5593 = vadd.xlane.f32.xlu0 %v5530
        %v5594 = vpop.xlane.xlu0 %5593
        %5595 = vadd.xlane.f32.xlu0 %v5532
        %v5596 = vpop.xlane.xlu0 %5595
        %5597 = vadd.xlane.f32.xlu0 %v5534
        %v5598 = vpop.xlane.xlu0 %5597
        %5599 = vadd.xlane.f32.xlu0 %v5536
        %v5600 = vpop.xlane.xlu0 %5599
        %5601 = vadd.xlane.f32.xlu0 %v5538
        %v5602 = vpop.xlane.xlu0 %5601
        %5603 = vadd.xlane.f32.xlu0 %v5540
        %v5604 = vpop.xlane.xlu0 %5603
        %5605 = vadd.xlane.f32.xlu0 %v5542
        %v5606 = vpop.xlane.xlu0 %5605
        %5607 = vadd.xlane.f32.xlu0 %v5544
        %v5608 = vpop.xlane.xlu0 %5607
        %5609 = vadd.xlane.f32.xlu0 %v5546
        %v5610 = vpop.xlane.xlu0 %5609
        %5611 = vadd.xlane.f32.xlu0 %v5548
        %v5612 = vpop.xlane.xlu0 %5611
        %5613 = vadd.xlane.f32.xlu0 %v5550
        %v5614 = vpop.xlane.xlu0 %5613
        %v5615 = vrcp.pop %v5552
        %v5616 = vrcp.pop %v5554
        %v5617 = vrcp.pop %v5556
        %v5618 = vrcp.pop %v5558
        %v5619 = vrcp.pop %v5560
        %v5620 = vrcp.pop %v5562
        %v5621 = vrcp.pop %v5564
        %v5622 = vrcp.pop %v5566
        %v5623 = vrcp.pop %v5568
        %v5624 = vrcp.pop %v5570
        %v5625 = vrcp.pop %v5572
        %v5626 = vrcp.pop %v5574
        %v5627 = vrcp.pop %v5576
        %v5628 = vrcp.pop %v5578
        %v5629 = vrcp.pop %v5580
        %v5630 = vrcp.pop %v5582
        %v5631 = vrcp.pop %v5584
        %v5632 = vrcp.pop %v5586
        %v5633 = vrcp.pop %v5588
        %v5634 = vrcp.pop %v5590
        %v5635 = vrcp.pop %v5592
        %v5636 = vrcp.pop %v5594
        %v5637 = vrcp.pop %v5596
        %v5638 = vrcp.pop %v5598
        %v5639 = vrcp.pop %v5600
        %v5640 = vrcp.pop %v5602
        %v5641 = vrcp.pop %v5604
        %v5642 = vrcp.pop %v5606
        %v5643 = vrcp.pop %v5608
        %v5644 = vrcp.pop %v5610
        %v5645 = vrcp.pop %v5612
        %v5646 = vrcp.pop %v5614
        %v5647 = vmul.f32 %v5488, %v5615
        %v5648 = vmul.f32 %v5490, %v5616
        %v5649 = vmul.f32 %v5492, %v5617
        %v5650 = vmul.f32 %v5494, %v5618
        %v5651 = vmul.f32 %v5496, %v5619
        %v5652 = vmul.f32 %v5498, %v5620
        %v5653 = vmul.f32 %v5500, %v5621
        %v5654 = vmul.f32 %v5502, %v5622
        %v5655 = vmul.f32 %v5504, %v5623
        %v5656 = vmul.f32 %v5506, %v5624
        %v5657 = vmul.f32 %v5508, %v5625
        %v5658 = vmul.f32 %v5510, %v5626
        %v5659 = vmul.f32 %v5512, %v5627
        %v5660 = vmul.f32 %v5514, %v5628
        %v5661 = vmul.f32 %v5516, %v5629
        %v5662 = vmul.f32 %v5518, %v5630
        %v5663 = vmul.f32 %v5520, %v5631
        %v5664 = vmul.f32 %v5522, %v5632
        %v5665 = vmul.f32 %v5524, %v5633
        %v5666 = vmul.f32 %v5526, %v5634
        %v5667 = vmul.f32 %v5528, %v5635
        %v5668 = vmul.f32 %v5530, %v5636
        %v5669 = vmul.f32 %v5532, %v5637
        %v5670 = vmul.f32 %v5534, %v5638
        %v5671 = vmul.f32 %v5536, %v5639
        %v5672 = vmul.f32 %v5538, %v5640
        %v5673 = vmul.f32 %v5540, %v5641
        %v5674 = vmul.f32 %v5542, %v5642
        %v5675 = vmul.f32 %v5544, %v5643
        %v5676 = vmul.f32 %v5546, %v5644
        %v5677 = vmul.f32 %v5548, %v5645
        %v5678 = vmul.f32 %v5550, %v5646
        %v5679 = vpack.c.bf16 %v5648, %v5647
        %v5680 = vpack.c.bf16 %v5650, %v5649
        %v5681 = vpack.c.bf16 %v5652, %v5651
        %v5682 = vpack.c.bf16 %v5654, %v5653
        %v5683 = vpack.c.bf16 %v5656, %v5655
        %v5684 = vpack.c.bf16 %v5658, %v5657
        %v5685 = vpack.c.bf16 %v5660, %v5659
        %v5686 = vpack.c.bf16 %v5662, %v5661
        %v5687 = vpack.c.bf16 %v5664, %v5663
        %v5688 = vpack.c.bf16 %v5666, %v5665
        %v5689 = vpack.c.bf16 %v5668, %v5667
        %v5690 = vpack.c.bf16 %v5670, %v5669
        %v5691 = vpack.c.bf16 %v5672, %v5671
        %v5692 = vpack.c.bf16 %v5674, %v5673
        %v5693 = vpack.c.bf16 %v5676, %v5675
        %v5694 = vpack.c.bf16 %v5678, %v5677
        %5695 = vmatpush.bf16.msra.mxu0 %v5285
        %5696 = vmatpush.bf16.msra.mxu0 %v5284
        %5697 = vmatpush.bf16.msra.mxu0 %v5283
        %5698 = vmatpush.bf16.msra.mxu0 %v5282
        %5699 = vmatpush.bf16.msra.mxu0 %v5281
        %5700 = vmatpush.bf16.msra.mxu0 %v5280
        %5701 = vmatpush.bf16.msra.mxu0 %v5279
        %5702 = vmatpush.bf16.msra.mxu0 %v5278
        %5703 = vmatmul.bf16.gmra.mxu0 %v5679
        %v5704 = vpop.f32.mrf.mxu0
        %v5705 = vadd.f32 0.0, %v5704
        %v5706 = vpop.f32.mrf.mxu0
        %v5707 = vadd.f32 0.0, %v5706
        %5708 = vmatmul.bf16.gmra.mxu0 %v5680
        %v5709 = vpop.f32.mrf.mxu0
        %v5710 = vadd.f32 0.0, %v5709
        %v5711 = vpop.f32.mrf.mxu0
        %v5712 = vadd.f32 0.0, %v5711
        %5713 = vmatmul.bf16.gmra.mxu0 %v5681
        %v5714 = vpop.f32.mrf.mxu0
        %v5715 = vadd.f32 0.0, %v5714
        %v5716 = vpop.f32.mrf.mxu0
        %v5717 = vadd.f32 0.0, %v5716
        %5718 = vmatmul.bf16.gmra.mxu0 %v5682
        %v5719 = vpop.f32.mrf.mxu0
        %v5720 = vadd.f32 0.0, %v5719
        %v5721 = vpop.f32.mrf.mxu0
        %v5722 = vadd.f32 0.0, %v5721
        %5723 = vmatmul.bf16.gmra.mxu0 %v5683
        %v5724 = vpop.f32.mrf.mxu0
        %v5725 = vadd.f32 0.0, %v5724
        %v5726 = vpop.f32.mrf.mxu0
        %v5727 = vadd.f32 0.0, %v5726
        %5728 = vmatmul.bf16.gmra.mxu0 %v5684
        %v5729 = vpop.f32.mrf.mxu0
        %v5730 = vadd.f32 0.0, %v5729
        %v5731 = vpop.f32.mrf.mxu0
        %v5732 = vadd.f32 0.0, %v5731
        %5733 = vmatmul.bf16.gmra.mxu0 %v5685
        %v5734 = vpop.f32.mrf.mxu0
        %v5735 = vadd.f32 0.0, %v5734
        %v5736 = vpop.f32.mrf.mxu0
        %v5737 = vadd.f32 0.0, %v5736
        %5738 = vmatmul.bf16.gmra.mxu0 %v5686
        %v5739 = vpop.f32.mrf.mxu0
        %v5740 = vadd.f32 0.0, %v5739
        %v5741 = vpop.f32.mrf.mxu0
        %v5742 = vadd.f32 0.0, %v5741
        %5743 = vmatmul.bf16.gmra.mxu0 %v5687
        %v5744 = vpop.f32.mrf.mxu0
        %v5745 = vadd.f32 0.0, %v5744
        %v5746 = vpop.f32.mrf.mxu0
        %v5747 = vadd.f32 0.0, %v5746
        %5748 = vmatmul.bf16.gmra.mxu0 %v5688
        %v5749 = vpop.f32.mrf.mxu0
        %v5750 = vadd.f32 0.0, %v5749
        %v5751 = vpop.f32.mrf.mxu0
        %v5752 = vadd.f32 0.0, %v5751
        %5753 = vmatmul.bf16.gmra.mxu0 %v5689
        %v5754 = vpop.f32.mrf.mxu0
        %v5755 = vadd.f32 0.0, %v5754
        %v5756 = vpop.f32.mrf.mxu0
        %v5757 = vadd.f32 0.0, %v5756
        %5758 = vmatmul.bf16.gmra.mxu0 %v5690
        %v5759 = vpop.f32.mrf.mxu0
        %v5760 = vadd.f32 0.0, %v5759
        %v5761 = vpop.f32.mrf.mxu0
        %v5762 = vadd.f32 0.0, %v5761
        %5763 = vmatmul.bf16.gmra.mxu0 %v5691
        %v5764 = vpop.f32.mrf.mxu0
        %v5765 = vadd.f32 0.0, %v5764
        %v5766 = vpop.f32.mrf.mxu0
        %v5767 = vadd.f32 0.0, %v5766
        %5768 = vmatmul.bf16.gmra.mxu0 %v5692
        %v5769 = vpop.f32.mrf.mxu0
        %v5770 = vadd.f32 0.0, %v5769
        %v5771 = vpop.f32.mrf.mxu0
        %v5772 = vadd.f32 0.0, %v5771
        %5773 = vmatmul.bf16.gmra.mxu0 %v5693
        %v5774 = vpop.f32.mrf.mxu0
        %v5775 = vadd.f32 0.0, %v5774
        %v5776 = vpop.f32.mrf.mxu0
        %v5777 = vadd.f32 0.0, %v5776
        %5778 = vmatmul.bf16.gmra.mxu0 %v5694
        %v5779 = vpop.f32.mrf.mxu0
        %v5780 = vadd.f32 0.0, %v5779
        %v5781 = vpop.f32.mrf.mxu0
        %v5782 = vadd.f32 0.0, %v5781
        %5783 = vdwg.mxu0
        %v5784 = vld [vmem:[#allocation4 + $0x3e0] sm:$0xf]
        %v5785 = vld [vmem:[#allocation4 + $0x3e4] sm:$0xf]
        %v5786 = vld [vmem:[#allocation4 + $0x3e8] sm:$0xf]
        %v5787 = vld [vmem:[#allocation4 + $0x3ec] sm:$0xf]
        %v5788 = vld [vmem:[#allocation4 + $0x3f0] sm:$0xf]
        %v5789 = vld [vmem:[#allocation4 + $0x3f4] sm:$0xf]
        %v5790 = vld [vmem:[#allocation4 + $0x3f8] sm:$0xf]
        %v5791 = vld [vmem:[#allocation4 + $0x3fc] sm:$0xf]
        %v5792 = vunpack.c.l.bf16 %v5784
        %v5793 = vunpack.c.l.bf16 %v5785
        %v5794 = vunpack.c.l.bf16 %v5786
        %v5795 = vunpack.c.l.bf16 %v5787
        %v5796 = vunpack.c.l.bf16 %v5788
        %v5797 = vunpack.c.l.bf16 %v5789
        %v5798 = vunpack.c.l.bf16 %v5790
        %v5799 = vunpack.c.l.bf16 %v5791
        %v5800 = vld [vmem:[#allocation4 + $0x400] sm:$0xf]
        %v5801 = vld [vmem:[#allocation4 + $0x404] sm:$0xf]
        %v5802 = vld [vmem:[#allocation4 + $0x408] sm:$0xf]
        %v5803 = vld [vmem:[#allocation4 + $0x40c] sm:$0xf]
        %v5804 = vld [vmem:[#allocation4 + $0x410] sm:$0xf]
        %v5805 = vld [vmem:[#allocation4 + $0x414] sm:$0xf]
        %v5806 = vld [vmem:[#allocation4 + $0x418] sm:$0xf]
        %v5807 = vld [vmem:[#allocation4 + $0x41c] sm:$0xf]
        %v5808 = vld [vmem:[#allocation4 + $0x420] sm:$0xf]
        %v5809 = vld [vmem:[#allocation4 + $0x424] sm:$0xf]
        %v5810 = vld [vmem:[#allocation4 + $0x428] sm:$0xf]
        %v5811 = vld [vmem:[#allocation4 + $0x42c] sm:$0xf]
        %v5812 = vld [vmem:[#allocation4 + $0x430] sm:$0xf]
        %v5813 = vld [vmem:[#allocation4 + $0x434] sm:$0xf]
        %v5814 = vld [vmem:[#allocation4 + $0x438] sm:$0xf]
        %v5815 = vld [vmem:[#allocation4 + $0x43c] sm:$0xf]
        %v5816 = vunpack.c.l.bf16 %v5800
        %v5817 = vunpack.c.l.bf16 %v5801
        %v5818 = vunpack.c.l.bf16 %v5802
        %v5819 = vunpack.c.l.bf16 %v5803
        %v5820 = vunpack.c.l.bf16 %v5804
        %v5821 = vunpack.c.l.bf16 %v5805
        %v5822 = vunpack.c.l.bf16 %v5806
        %v5823 = vunpack.c.l.bf16 %v5807
        %v5824 = vunpack.c.l.bf16 %v5808
        %v5825 = vunpack.c.l.bf16 %v5809
        %v5826 = vunpack.c.l.bf16 %v5810
        %v5827 = vunpack.c.l.bf16 %v5811
        %v5828 = vunpack.c.l.bf16 %v5812
        %v5829 = vunpack.c.l.bf16 %v5813
        %v5830 = vunpack.c.l.bf16 %v5814
        %v5831 = vunpack.c.l.bf16 %v5815
        %5832 = vmatpush.msra.mxu0 %v5831
        %5833 = vmatpush.msra.mxu0 %v5830
        %5834 = vmatpush.msra.mxu0 %v5829
        %5835 = vmatpush.msra.mxu0 %v5828
        %5836 = vmatpush.msra.mxu0 %v5827
        %5837 = vmatpush.msra.mxu0 %v5826
        %5838 = vmatpush.msra.mxu0 %v5825
        %5839 = vmatpush.msra.mxu0 %v5824
        %5840 = vmatpush.msra.mxu0 %v5823
        %5841 = vmatpush.msra.mxu0 %v5822
        %5842 = vmatpush.msra.mxu0 %v5821
        %5843 = vmatpush.msra.mxu0 %v5820
        %5844 = vmatpush.msra.mxu0 %v5819
        %5845 = vmatpush.msra.mxu0 %v5818
        %5846 = vmatpush.msra.mxu0 %v5817
        %5847 = vmatpush.msra.mxu0 %v5816
        %5848 = vmatmul.f32.gmra.mxu0 %v5705
        %v5849 = vpop.f32.mrf.mxu0
        %v5850 = vadd.f32 0.0, %v5849
        %5851 = vmatmul.f32.gmra.mxu0 %v5707
        %v5852 = vpop.f32.mrf.mxu0
        %v5853 = vadd.f32 0.0, %v5852
        %5854 = vmatmul.f32.gmra.mxu0 %v5710
        %v5855 = vpop.f32.mrf.mxu0
        %v5856 = vadd.f32 0.0, %v5855
        %5857 = vmatmul.f32.gmra.mxu0 %v5712
        %v5858 = vpop.f32.mrf.mxu0
        %v5859 = vadd.f32 0.0, %v5858
        %5860 = vmatmul.f32.gmra.mxu0 %v5715
        %v5861 = vpop.f32.mrf.mxu0
        %v5862 = vadd.f32 0.0, %v5861
        %5863 = vmatmul.f32.gmra.mxu0 %v5717
        %v5864 = vpop.f32.mrf.mxu0
        %v5865 = vadd.f32 0.0, %v5864
        %5866 = vmatmul.f32.gmra.mxu0 %v5720
        %v5867 = vpop.f32.mrf.mxu0
        %v5868 = vadd.f32 0.0, %v5867
        %5869 = vmatmul.f32.gmra.mxu0 %v5722
        %v5870 = vpop.f32.mrf.mxu0
        %v5871 = vadd.f32 0.0, %v5870
        %5872 = vmatmul.f32.gmra.mxu0 %v5725
        %v5873 = vpop.f32.mrf.mxu0
        %v5874 = vadd.f32 0.0, %v5873
        %5875 = vmatmul.f32.gmra.mxu0 %v5727
        %v5876 = vpop.f32.mrf.mxu0
        %v5877 = vadd.f32 0.0, %v5876
        %5878 = vmatmul.f32.gmra.mxu0 %v5730
        %v5879 = vpop.f32.mrf.mxu0
        %v5880 = vadd.f32 0.0, %v5879
        %5881 = vmatmul.f32.gmra.mxu0 %v5732
        %v5882 = vpop.f32.mrf.mxu0
        %v5883 = vadd.f32 0.0, %v5882
        %5884 = vmatmul.f32.gmra.mxu0 %v5735
        %v5885 = vpop.f32.mrf.mxu0
        %v5886 = vadd.f32 0.0, %v5885
        %5887 = vmatmul.f32.gmra.mxu0 %v5737
        %v5888 = vpop.f32.mrf.mxu0
        %v5889 = vadd.f32 0.0, %v5888
        %5890 = vmatmul.f32.gmra.mxu0 %v5740
        %v5891 = vpop.f32.mrf.mxu0
        %v5892 = vadd.f32 0.0, %v5891
        %5893 = vmatmul.f32.gmra.mxu0 %v5742
        %v5894 = vpop.f32.mrf.mxu0
        %v5895 = vadd.f32 0.0, %v5894
        %5896 = vmatmul.f32.gmra.mxu0 %v5745
        %v5897 = vpop.f32.mrf.mxu0
        %v5898 = vadd.f32 0.0, %v5897
        %5899 = vmatmul.f32.gmra.mxu0 %v5747
        %v5900 = vpop.f32.mrf.mxu0
        %v5901 = vadd.f32 0.0, %v5900
        %5902 = vmatmul.f32.gmra.mxu0 %v5750
        %v5903 = vpop.f32.mrf.mxu0
        %v5904 = vadd.f32 0.0, %v5903
        %5905 = vmatmul.f32.gmra.mxu0 %v5752
        %v5906 = vpop.f32.mrf.mxu0
        %v5907 = vadd.f32 0.0, %v5906
        %5908 = vmatmul.f32.gmra.mxu0 %v5755
        %v5909 = vpop.f32.mrf.mxu0
        %v5910 = vadd.f32 0.0, %v5909
        %5911 = vmatmul.f32.gmra.mxu0 %v5757
        %v5912 = vpop.f32.mrf.mxu0
        %v5913 = vadd.f32 0.0, %v5912
        %5914 = vmatmul.f32.gmra.mxu0 %v5760
        %v5915 = vpop.f32.mrf.mxu0
        %v5916 = vadd.f32 0.0, %v5915
        %5917 = vmatmul.f32.gmra.mxu0 %v5762
        %v5918 = vpop.f32.mrf.mxu0
        %v5919 = vadd.f32 0.0, %v5918
        %5920 = vmatmul.f32.gmra.mxu0 %v5765
        %v5921 = vpop.f32.mrf.mxu0
        %v5922 = vadd.f32 0.0, %v5921
        %5923 = vmatmul.f32.gmra.mxu0 %v5767
        %v5924 = vpop.f32.mrf.mxu0
        %v5925 = vadd.f32 0.0, %v5924
        %5926 = vmatmul.f32.gmra.mxu0 %v5770
        %v5927 = vpop.f32.mrf.mxu0
        %v5928 = vadd.f32 0.0, %v5927
        %5929 = vmatmul.f32.gmra.mxu0 %v5772
        %v5930 = vpop.f32.mrf.mxu0
        %v5931 = vadd.f32 0.0, %v5930
        %5932 = vmatmul.f32.gmra.mxu0 %v5775
        %v5933 = vpop.f32.mrf.mxu0
        %v5934 = vadd.f32 0.0, %v5933
        %5935 = vmatmul.f32.gmra.mxu0 %v5777
        %v5936 = vpop.f32.mrf.mxu0
        %v5937 = vadd.f32 0.0, %v5936
        %5938 = vmatmul.f32.gmra.mxu0 %v5780
        %v5939 = vpop.f32.mrf.mxu0
        %v5940 = vadd.f32 0.0, %v5939
        %5941 = vmatmul.f32.gmra.mxu0 %v5782
        %v5942 = vpop.f32.mrf.mxu0
        %v5943 = vadd.f32 0.0, %v5942
        %5944 = vdwg.mxu0
        %5945 = vmatpush.msra.mxu0 0.0
        %5946 = vmatpush.msra.mxu0 0.0
        %5947 = vmatpush.msra.mxu0 0.0
        %5948 = vmatpush.msra.mxu0 0.0
        %5949 = vmatpush.msra.mxu0 0.0
        %5950 = vmatpush.msra.mxu0 0.0
        %5951 = vmatpush.msra.mxu0 0.0
        %5952 = vmatpush.msra.mxu0 0.0
        %5953 = vmatpush.msra.mxu0 %v5799
        %5954 = vmatpush.msra.mxu0 %v5798
        %5955 = vmatpush.msra.mxu0 %v5797
        %5956 = vmatpush.msra.mxu0 %v5796
        %5957 = vmatpush.msra.mxu0 %v5795
        %5958 = vmatpush.msra.mxu0 %v5794
        %5959 = vmatpush.msra.mxu0 %v5793
        %5960 = vmatpush.msra.mxu0 %v5792
        %5961 = vmatmul.f32.gmra.mxu0 %v4973
        %v5962 = vpop.f32.mrf.mxu0
        %v5963 = vadd.f32 %v5850, %v5962
        %5964 = vmatmul.f32.gmra.mxu0 %v4976
        %v5965 = vpop.f32.mrf.mxu0
        %v5966 = vadd.f32 %v5853, %v5965
        %5967 = vmatmul.f32.gmra.mxu0 %v4979
        %v5968 = vpop.f32.mrf.mxu0
        %v5969 = vadd.f32 %v5856, %v5968
        %5970 = vmatmul.f32.gmra.mxu0 %v4982
        %v5971 = vpop.f32.mrf.mxu0
        %v5972 = vadd.f32 %v5859, %v5971
        %5973 = vmatmul.f32.gmra.mxu0 %v4985
        %v5974 = vpop.f32.mrf.mxu0
        %v5975 = vadd.f32 %v5862, %v5974
        %5976 = vmatmul.f32.gmra.mxu0 %v4988
        %v5977 = vpop.f32.mrf.mxu0
        %v5978 = vadd.f32 %v5865, %v5977
        %5979 = vmatmul.f32.gmra.mxu0 %v4991
        %v5980 = vpop.f32.mrf.mxu0
        %v5981 = vadd.f32 %v5868, %v5980
        %5982 = vmatmul.f32.gmra.mxu0 %v4994
        %v5983 = vpop.f32.mrf.mxu0
        %v5984 = vadd.f32 %v5871, %v5983
        %5985 = vmatmul.f32.gmra.mxu0 %v4997
        %v5986 = vpop.f32.mrf.mxu0
        %v5987 = vadd.f32 %v5874, %v5986
        %5988 = vmatmul.f32.gmra.mxu0 %v5000
        %v5989 = vpop.f32.mrf.mxu0
        %v5990 = vadd.f32 %v5877, %v5989
        %5991 = vmatmul.f32.gmra.mxu0 %v5003
        %v5992 = vpop.f32.mrf.mxu0
        %v5993 = vadd.f32 %v5880, %v5992
        %5994 = vmatmul.f32.gmra.mxu0 %v5006
        %v5995 = vpop.f32.mrf.mxu0
        %v5996 = vadd.f32 %v5883, %v5995
        %5997 = vmatmul.f32.gmra.mxu0 %v5009
        %v5998 = vpop.f32.mrf.mxu0
        %v5999 = vadd.f32 %v5886, %v5998
        %6000 = vmatmul.f32.gmra.mxu0 %v5012
        %v6001 = vpop.f32.mrf.mxu0
        %v6002 = vadd.f32 %v5889, %v6001
        %6003 = vmatmul.f32.gmra.mxu0 %v5015
        %v6004 = vpop.f32.mrf.mxu0
        %v6005 = vadd.f32 %v5892, %v6004
        %6006 = vmatmul.f32.gmra.mxu0 %v5018
        %v6007 = vpop.f32.mrf.mxu0
        %v6008 = vadd.f32 %v5895, %v6007
        %6009 = vmatmul.f32.gmra.mxu0 %v5021
        %v6010 = vpop.f32.mrf.mxu0
        %v6011 = vadd.f32 %v5898, %v6010
        %6012 = vmatmul.f32.gmra.mxu0 %v5024
        %v6013 = vpop.f32.mrf.mxu0
        %v6014 = vadd.f32 %v5901, %v6013
        %6015 = vmatmul.f32.gmra.mxu0 %v5027
        %v6016 = vpop.f32.mrf.mxu0
        %v6017 = vadd.f32 %v5904, %v6016
        %6018 = vmatmul.f32.gmra.mxu0 %v5030
        %v6019 = vpop.f32.mrf.mxu0
        %v6020 = vadd.f32 %v5907, %v6019
        %6021 = vmatmul.f32.gmra.mxu0 %v5033
        %v6022 = vpop.f32.mrf.mxu0
        %v6023 = vadd.f32 %v5910, %v6022
        %6024 = vmatmul.f32.gmra.mxu0 %v5036
        %v6025 = vpop.f32.mrf.mxu0
        %v6026 = vadd.f32 %v5913, %v6025
        %6027 = vmatmul.f32.gmra.mxu0 %v5039
        %v6028 = vpop.f32.mrf.mxu0
        %v6029 = vadd.f32 %v5916, %v6028
        %6030 = vmatmul.f32.gmra.mxu0 %v5042
        %v6031 = vpop.f32.mrf.mxu0
        %v6032 = vadd.f32 %v5919, %v6031
        %6033 = vmatmul.f32.gmra.mxu0 %v5045
        %v6034 = vpop.f32.mrf.mxu0
        %v6035 = vadd.f32 %v5922, %v6034
        %6036 = vmatmul.f32.gmra.mxu0 %v5048
        %v6037 = vpop.f32.mrf.mxu0
        %v6038 = vadd.f32 %v5925, %v6037
        %6039 = vmatmul.f32.gmra.mxu0 %v5051
        %v6040 = vpop.f32.mrf.mxu0
        %v6041 = vadd.f32 %v5928, %v6040
        %6042 = vmatmul.f32.gmra.mxu0 %v5054
        %v6043 = vpop.f32.mrf.mxu0
        %v6044 = vadd.f32 %v5931, %v6043
        %6045 = vmatmul.f32.gmra.mxu0 %v5057
        %v6046 = vpop.f32.mrf.mxu0
        %v6047 = vadd.f32 %v5934, %v6046
        %6048 = vmatmul.f32.gmra.mxu0 %v5060
        %v6049 = vpop.f32.mrf.mxu0
        %v6050 = vadd.f32 %v5937, %v6049
        %6051 = vmatmul.f32.gmra.mxu0 %v5063
        %v6052 = vpop.f32.mrf.mxu0
        %v6053 = vadd.f32 %v5940, %v6052
        %6054 = vmatmul.f32.gmra.mxu0 %v5066
        %v6055 = vpop.f32.mrf.mxu0
        %v6056 = vadd.f32 %v5943, %v6055
        %6057 = vdwg.mxu0
        %v6058 = vld [vmem:[#allocation4 + $0x440] sm:$0x1]
        %v6059 = vunpack.c.l.bf16 %v6058
        %v6060 = vperm.slane %v6059, 0
        %v6061 = vadd.f32 %v5963, %v6060
        %v6062 = vadd.f32 %v5966, %v6060
        %v6063 = vadd.f32 %v5969, %v6060
        %v6064 = vadd.f32 %v5972, %v6060
        %v6065 = vadd.f32 %v5975, %v6060
        %v6066 = vadd.f32 %v5978, %v6060
        %v6067 = vadd.f32 %v5981, %v6060
        %v6068 = vadd.f32 %v5984, %v6060
        %v6069 = vadd.f32 %v5987, %v6060
        %v6070 = vadd.f32 %v5990, %v6060
        %v6071 = vadd.f32 %v5993, %v6060
        %v6072 = vadd.f32 %v5996, %v6060
        %v6073 = vadd.f32 %v5999, %v6060
        %v6074 = vadd.f32 %v6002, %v6060
        %v6075 = vadd.f32 %v6005, %v6060
        %v6076 = vadd.f32 %v6008, %v6060
        %v6077 = vadd.f32 %v6011, %v6060
        %v6078 = vadd.f32 %v6014, %v6060
        %v6079 = vadd.f32 %v6017, %v6060
        %v6080 = vadd.f32 %v6020, %v6060
        %v6081 = vadd.f32 %v6023, %v6060
        %v6082 = vadd.f32 %v6026, %v6060
        %v6083 = vadd.f32 %v6029, %v6060
        %v6084 = vadd.f32 %v6032, %v6060
        %v6085 = vadd.f32 %v6035, %v6060
        %v6086 = vadd.f32 %v6038, %v6060
        %v6087 = vadd.f32 %v6041, %v6060
        %v6088 = vadd.f32 %v6044, %v6060
        %v6089 = vadd.f32 %v6047, %v6060
        %v6090 = vadd.f32 %v6050, %v6060
        %v6091 = vadd.f32 %v6053, %v6060
        %v6092 = vadd.f32 %v6056, %v6060
        %v6093 = vtanh.pop %v6061
        %v6094 = vtanh.pop %v6062
        %v6095 = vtanh.pop %v6063
        %v6096 = vtanh.pop %v6064
        %v6097 = vtanh.pop %v6065
        %v6098 = vtanh.pop %v6066
        %v6099 = vtanh.pop %v6067
        %v6100 = vtanh.pop %v6068
        %v6101 = vtanh.pop %v6069
        %v6102 = vtanh.pop %v6070
        %v6103 = vtanh.pop %v6071
        %v6104 = vtanh.pop %v6072
        %v6105 = vtanh.pop %v6073
        %v6106 = vtanh.pop %v6074
        %v6107 = vtanh.pop %v6075
        %v6108 = vtanh.pop %v6076
        %v6109 = vtanh.pop %v6077
        %v6110 = vtanh.pop %v6078
        %v6111 = vtanh.pop %v6079
        %v6112 = vtanh.pop %v6080
        %v6113 = vtanh.pop %v6081
        %v6114 = vtanh.pop %v6082
        %v6115 = vtanh.pop %v6083
        %v6116 = vtanh.pop %v6084
        %v6117 = vtanh.pop %v6085
        %v6118 = vtanh.pop %v6086
        %v6119 = vtanh.pop %v6087
        %v6120 = vtanh.pop %v6088
        %v6121 = vtanh.pop %v6089
        %v6122 = vtanh.pop %v6090
        %v6123 = vtanh.pop %v6091
        %v6124 = vtanh.pop %v6092
        %v6125 = vld [vmem:[#allocation4 + $0x444] sm:$0xf]
        %v6126 = vld [vmem:[#allocation4 + $0x448] sm:$0xf]
        %v6127 = vld [vmem:[#allocation4 + $0x44c] sm:$0xf]
        %v6128 = vld [vmem:[#allocation4 + $0x450] sm:$0xf]
        %v6129 = vld [vmem:[#allocation4 + $0x454] sm:$0xf]
        %v6130 = vld [vmem:[#allocation4 + $0x458] sm:$0xf]
        %v6131 = vld [vmem:[#allocation4 + $0x45c] sm:$0xf]
        %v6132 = vld [vmem:[#allocation4 + $0x460] sm:$0xf]
        %v6133 = vunpack.c.l.bf16 %v6125
        %v6134 = vunpack.c.l.bf16 %v6126
        %v6135 = vunpack.c.l.bf16 %v6127
        %v6136 = vunpack.c.l.bf16 %v6128
        %v6137 = vunpack.c.l.bf16 %v6129
        %v6138 = vunpack.c.l.bf16 %v6130
        %v6139 = vunpack.c.l.bf16 %v6131
        %v6140 = vunpack.c.l.bf16 %v6132
        %v6141 = vld [vmem:[#allocation4 + $0x464] sm:$0x1]
        %v6142 = vunpack.c.l.bf16 %v6141
        %v6143 = vperm.slane %v6142, 0
        %v6145 = vsel %vm588, %v6093, 0
        %v6148 = vsel %vm588, %v6094, 0
        %v6151 = vsel %vm588, %v6095, 0
        %v6154 = vsel %vm588, %v6096, 0
        %v6157 = vsel %vm588, %v6097, 0
        %v6160 = vsel %vm588, %v6098, 0
        %v6163 = vsel %vm588, %v6099, 0
        %v6166 = vsel %vm588, %v6100, 0
        %v6169 = vsel %vm588, %v6101, 0
        %v6172 = vsel %vm588, %v6102, 0
        %v6175 = vsel %vm588, %v6103, 0
        %v6178 = vsel %vm588, %v6104, 0
        %v6181 = vsel %vm588, %v6105, 0
        %v6184 = vsel %vm588, %v6106, 0
        %v6187 = vsel %vm588, %v6107, 0
        %v6190 = vsel %vm588, %v6108, 0
        %v6193 = vsel %vm588, %v6109, 0
        %v6196 = vsel %vm588, %v6110, 0
        %v6199 = vsel %vm588, %v6111, 0
        %v6202 = vsel %vm588, %v6112, 0
        %v6205 = vsel %vm588, %v6113, 0
        %v6208 = vsel %vm588, %v6114, 0
        %v6211 = vsel %vm588, %v6115, 0
        %v6214 = vsel %vm588, %v6116, 0
        %v6217 = vsel %vm588, %v6117, 0
        %v6220 = vsel %vm588, %v6118, 0
        %v6223 = vsel %vm588, %v6119, 0
        %v6226 = vsel %vm588, %v6120, 0
        %v6229 = vsel %vm588, %v6121, 0
        %v6232 = vsel %vm588, %v6122, 0
        %v6235 = vsel %vm588, %v6123, 0
        %v6238 = vsel %vm588, %v6124, 0
        %6240 = vmatpush.msra.mxu0 0.0
        %6241 = vmatpush.msra.mxu0 0.0
        %6242 = vmatpush.msra.mxu0 0.0
        %6243 = vmatpush.msra.mxu0 0.0
        %6244 = vmatpush.msra.mxu0 0.0
        %6245 = vmatpush.msra.mxu0 0.0
        %6246 = vmatpush.msra.mxu0 0.0
        %6247 = vmatpush.msra.mxu0 0.0
        %6248 = vmatpush.msra.mxu0 %v6140
        %6249 = vmatpush.msra.mxu0 %v6139
        %6250 = vmatpush.msra.mxu0 %v6138
        %6251 = vmatpush.msra.mxu0 %v6137
        %6252 = vmatpush.msra.mxu0 %v6136
        %6253 = vmatpush.msra.mxu0 %v6135
        %6254 = vmatpush.msra.mxu0 %v6134
        %6255 = vmatpush.msra.mxu0 %v6133
        %6256 = vmatmul.f32.gmra.mxu0 %v6145
        %v6257 = vpop.f32.mrf.mxu0
        %v6258 = vadd.f32 %v6143, %v6257
        %6259 = vmatmul.f32.gmra.mxu0 %v6148
        %v6260 = vpop.f32.mrf.mxu0
        %v6261 = vadd.f32 %v6143, %v6260
        %6262 = vmatmul.f32.gmra.mxu0 %v6151
        %v6263 = vpop.f32.mrf.mxu0
        %v6264 = vadd.f32 %v6143, %v6263
        %6265 = vmatmul.f32.gmra.mxu0 %v6154
        %v6266 = vpop.f32.mrf.mxu0
        %v6267 = vadd.f32 %v6143, %v6266
        %6268 = vmatmul.f32.gmra.mxu0 %v6157
        %v6269 = vpop.f32.mrf.mxu0
        %v6270 = vadd.f32 %v6143, %v6269
        %6271 = vmatmul.f32.gmra.mxu0 %v6160
        %v6272 = vpop.f32.mrf.mxu0
        %v6273 = vadd.f32 %v6143, %v6272
        %6274 = vmatmul.f32.gmra.mxu0 %v6163
        %v6275 = vpop.f32.mrf.mxu0
        %v6276 = vadd.f32 %v6143, %v6275
        %6277 = vmatmul.f32.gmra.mxu0 %v6166
        %v6278 = vpop.f32.mrf.mxu0
        %v6279 = vadd.f32 %v6143, %v6278
        %6280 = vmatmul.f32.gmra.mxu0 %v6169
        %v6281 = vpop.f32.mrf.mxu0
        %v6282 = vadd.f32 %v6143, %v6281
        %6283 = vmatmul.f32.gmra.mxu0 %v6172
        %v6284 = vpop.f32.mrf.mxu0
        %v6285 = vadd.f32 %v6143, %v6284
        %6286 = vmatmul.f32.gmra.mxu0 %v6175
        %v6287 = vpop.f32.mrf.mxu0
        %v6288 = vadd.f32 %v6143, %v6287
        %6289 = vmatmul.f32.gmra.mxu0 %v6178
        %v6290 = vpop.f32.mrf.mxu0
        %v6291 = vadd.f32 %v6143, %v6290
        %6292 = vmatmul.f32.gmra.mxu0 %v6181
        %v6293 = vpop.f32.mrf.mxu0
        %v6294 = vadd.f32 %v6143, %v6293
        %6295 = vmatmul.f32.gmra.mxu0 %v6184
        %v6296 = vpop.f32.mrf.mxu0
        %v6297 = vadd.f32 %v6143, %v6296
        %6298 = vmatmul.f32.gmra.mxu0 %v6187
        %v6299 = vpop.f32.mrf.mxu0
        %v6300 = vadd.f32 %v6143, %v6299
        %6301 = vmatmul.f32.gmra.mxu0 %v6190
        %v6302 = vpop.f32.mrf.mxu0
        %v6303 = vadd.f32 %v6143, %v6302
        %6304 = vmatmul.f32.gmra.mxu0 %v6193
        %v6305 = vpop.f32.mrf.mxu0
        %v6306 = vadd.f32 %v6143, %v6305
        %6307 = vmatmul.f32.gmra.mxu0 %v6196
        %v6308 = vpop.f32.mrf.mxu0
        %v6309 = vadd.f32 %v6143, %v6308
        %6310 = vmatmul.f32.gmra.mxu0 %v6199
        %v6311 = vpop.f32.mrf.mxu0
        %v6312 = vadd.f32 %v6143, %v6311
        %6313 = vmatmul.f32.gmra.mxu0 %v6202
        %v6314 = vpop.f32.mrf.mxu0
        %v6315 = vadd.f32 %v6143, %v6314
        %6316 = vmatmul.f32.gmra.mxu0 %v6205
        %v6317 = vpop.f32.mrf.mxu0
        %v6318 = vadd.f32 %v6143, %v6317
        %6319 = vmatmul.f32.gmra.mxu0 %v6208
        %v6320 = vpop.f32.mrf.mxu0
        %v6321 = vadd.f32 %v6143, %v6320
        %6322 = vmatmul.f32.gmra.mxu0 %v6211
        %v6323 = vpop.f32.mrf.mxu0
        %v6324 = vadd.f32 %v6143, %v6323
        %6325 = vmatmul.f32.gmra.mxu0 %v6214
        %v6326 = vpop.f32.mrf.mxu0
        %v6327 = vadd.f32 %v6143, %v6326
        %6328 = vmatmul.f32.gmra.mxu0 %v6217
        %v6329 = vpop.f32.mrf.mxu0
        %v6330 = vadd.f32 %v6143, %v6329
        %6331 = vmatmul.f32.gmra.mxu0 %v6220
        %v6332 = vpop.f32.mrf.mxu0
        %v6333 = vadd.f32 %v6143, %v6332
        %6334 = vmatmul.f32.gmra.mxu0 %v6223
        %v6335 = vpop.f32.mrf.mxu0
        %v6336 = vadd.f32 %v6143, %v6335
        %6337 = vmatmul.f32.gmra.mxu0 %v6226
        %v6338 = vpop.f32.mrf.mxu0
        %v6339 = vadd.f32 %v6143, %v6338
        %6340 = vmatmul.f32.gmra.mxu0 %v6229
        %v6341 = vpop.f32.mrf.mxu0
        %v6342 = vadd.f32 %v6143, %v6341
        %6343 = vmatmul.f32.gmra.mxu0 %v6232
        %v6344 = vpop.f32.mrf.mxu0
        %v6345 = vadd.f32 %v6143, %v6344
        %6346 = vmatmul.f32.gmra.mxu0 %v6235
        %v6347 = vpop.f32.mrf.mxu0
        %v6348 = vadd.f32 %v6143, %v6347
        %6349 = vmatmul.f32.gmra.mxu0 %v6238
        %v6350 = vpop.f32.mrf.mxu0
        %v6351 = vadd.f32 %v6143, %v6350
        %6352 = vdwg.mxu0
        %v6353 = vadd.f32 %v4504, %v6258
        %v6354 = vadd.f32 %v4505, %v6261
        %v6355 = vadd.f32 %v4506, %v6264
        %v6356 = vadd.f32 %v4507, %v6267
        %v6357 = vadd.f32 %v4508, %v6270
        %v6358 = vadd.f32 %v4509, %v6273
        %v6359 = vadd.f32 %v4510, %v6276
        %v6360 = vadd.f32 %v4511, %v6279
        %v6361 = vadd.f32 %v4512, %v6282
        %v6362 = vadd.f32 %v4513, %v6285
        %v6363 = vadd.f32 %v4514, %v6288
        %v6364 = vadd.f32 %v4515, %v6291
        %v6365 = vadd.f32 %v4516, %v6294
        %v6366 = vadd.f32 %v4517, %v6297
        %v6367 = vadd.f32 %v4518, %v6300
        %v6368 = vadd.f32 %v4519, %v6303
        %v6369 = vadd.f32 %v4520, %v6306
        %v6370 = vadd.f32 %v4521, %v6309
        %v6371 = vadd.f32 %v4522, %v6312
        %v6372 = vadd.f32 %v4523, %v6315
        %v6373 = vadd.f32 %v4524, %v6318
        %v6374 = vadd.f32 %v4525, %v6321
        %v6375 = vadd.f32 %v4526, %v6324
        %v6376 = vadd.f32 %v4527, %v6327
        %v6377 = vadd.f32 %v4528, %v6330
        %v6378 = vadd.f32 %v4529, %v6333
        %v6379 = vadd.f32 %v4530, %v6336
        %v6380 = vadd.f32 %v4531, %v6339
        %v6381 = vadd.f32 %v4532, %v6342
        %v6382 = vadd.f32 %v4533, %v6345
        %v6383 = vadd.f32 %v4534, %v6348
        %v6384 = vadd.f32 %v4535, %v6351
        %v6385 = vlaneseq
        %v6386 = vshrl.u32 %v6385, 7
        %v6387 = vlaneseq
        %v6388 = vand.u32 %v6387, 127
        %vm6389 = vcmp.eq.s32.totalorder %v6386, %v6388
        %v6390 = vsel %vm6389, 1, 0
        %v6391 = vcvt.s32.f32 %v6390
        %v6393 = vsel %vm758, %v6391, 0
        %v6396 = vsel %vm758, %v6353, 0
        %v6399 = vsel %vm758, %v6354, 0
        %v6402 = vsel %vm758, %v6355, 0
        %v6405 = vsel %vm758, %v6356, 0
        %v6408 = vsel %vm758, %v6357, 0
        %v6411 = vsel %vm758, %v6358, 0
        %v6414 = vsel %vm758, %v6359, 0
        %v6417 = vsel %vm758, %v6360, 0
        %v6420 = vsel %vm758, %v6361, 0
        %v6423 = vsel %vm758, %v6362, 0
        %v6426 = vsel %vm758, %v6363, 0
        %v6429 = vsel %vm758, %v6364, 0
        %v6432 = vsel %vm758, %v6365, 0
        %v6435 = vsel %vm758, %v6366, 0
        %v6438 = vsel %vm758, %v6367, 0
        %v6441 = vsel %vm758, %v6368, 0
        %v6444 = vsel %vm758, %v6369, 0
        %v6447 = vsel %vm758, %v6370, 0
        %v6450 = vsel %vm758, %v6371, 0
        %v6453 = vsel %vm758, %v6372, 0
        %v6456 = vsel %vm758, %v6373, 0
        %v6459 = vsel %vm758, %v6374, 0
        %v6462 = vsel %vm758, %v6375, 0
        %v6465 = vsel %vm758, %v6376, 0
        %v6468 = vsel %vm758, %v6377, 0
        %v6471 = vsel %vm758, %v6378, 0
        %v6474 = vsel %vm758, %v6379, 0
        %v6477 = vsel %vm758, %v6380, 0
        %v6480 = vsel %vm758, %v6381, 0
        %v6483 = vsel %vm758, %v6382, 0
        %v6486 = vsel %vm758, %v6383, 0
        %v6489 = vsel %vm758, %v6384, 0
        %6491 = vmatpush.xpose.msra.mxu0 %v6441
        %6492 = vmatpush.xpose.msra.mxu0 %v6438
        %6493 = vmatpush.xpose.msra.mxu0 %v6435
        %6494 = vmatpush.xpose.msra.mxu0 %v6432
        %6495 = vmatpush.xpose.msra.mxu0 %v6429
        %6496 = vmatpush.xpose.msra.mxu0 %v6426
        %6497 = vmatpush.xpose.msra.mxu0 %v6423
        %6498 = vmatpush.xpose.msra.mxu0 %v6420
        %6499 = vmatpush.xpose.msra.mxu0 %v6417
        %6500 = vmatpush.xpose.msra.mxu0 %v6414
        %6501 = vmatpush.xpose.msra.mxu0 %v6411
        %6502 = vmatpush.xpose.msra.mxu0 %v6408
        %6503 = vmatpush.xpose.msra.mxu0 %v6405
        %6504 = vmatpush.xpose.msra.mxu0 %v6402
        %6505 = vmatpush.xpose.msra.mxu0 %v6399
        %6506 = vmatpush.xpose.msra.mxu0 %v6396
        %6507 = vmatmul.f32.gmra.mxu0 %v6393
        %v6508 = vpop.f32.mrf.mxu0
        %v6509 = vadd.f32 0.0, %v6508
        %6510 = vdwg.mxu0
        %6511 = vmatpush.xpose.msra.mxu0 %v6489
        %6512 = vmatpush.xpose.msra.mxu0 %v6486
        %6513 = vmatpush.xpose.msra.mxu0 %v6483
        %6514 = vmatpush.xpose.msra.mxu0 %v6480
        %6515 = vmatpush.xpose.msra.mxu0 %v6477
        %6516 = vmatpush.xpose.msra.mxu0 %v6474
        %6517 = vmatpush.xpose.msra.mxu0 %v6471
        %6518 = vmatpush.xpose.msra.mxu0 %v6468
        %6519 = vmatpush.xpose.msra.mxu0 %v6465
        %6520 = vmatpush.xpose.msra.mxu0 %v6462
        %6521 = vmatpush.xpose.msra.mxu0 %v6459
        %6522 = vmatpush.xpose.msra.mxu0 %v6456
        %6523 = vmatpush.xpose.msra.mxu0 %v6453
        %6524 = vmatpush.xpose.msra.mxu0 %v6450
        %6525 = vmatpush.xpose.msra.mxu0 %v6447
        %6526 = vmatpush.xpose.msra.mxu0 %v6444
        %6527 = vmatmul.f32.gmra.mxu0 %v6393
        %v6528 = vpop.f32.mrf.mxu0
        %v6529 = vadd.f32 0.0, %v6528
        %6530 = vdwg.mxu0
        %v6533 = vrot.slane %v6529, 4
        %vm6534 = vcmask 1043456
        %v6535 = vsel %vm6534, %v6509, %v6533
        %6537 = vst [vmem:[%s272] sm:$0x77] %v6535
        %p6538 = scmp.lt.s32.totalorder %s18, 1
        %s6539 = scalar_select %p6538, %s18, 1
        %s6540 = smul.addr %s6539, 2
        %s6541 = smul.addr %s6540, 4
        %s6542 = scalar_lea.vmem %s5, %s6541
        // Predicated region
        $region49: #{model_step1_forward.1} parent=39 // pred_check
          %p6543 = pneg %p151
        $region50: #{model_step1_forward.1} parent=39 // pred_check_branch
          %6545 = sbr.rel (%p6543) target = $region52
        $region51: #{model_step1_forward.1} parent=39 // pred_region
          _
        $region52: #{model_step1_forward.1} parent=39 // pred_fallthru
          _
      $region40: #{model_step1_forward.1} parent=5 // pred_fallthru
        _
      %p6546 = scmp.le.s32.totalorder 2, %s13
      // Predicated region
      $region53: #{model_step1_forward.1} parent=5 // pred_check
        %p6547 = pneg %p6546
      $region54: #{model_step1_forward.1} parent=5 // pred_check_branch
        %6549 = sbr.rel (%p6547) target = $region56
      $region55: #{model_step1_forward.1} parent=5 // pred_region
        %s6550 = ssub.s32 %s13, 2
        // Predicated region
        $region57: #{model_step1_forward.1} parent=55 // pred_check
          %p6551 = pneg %p157
        $region58: #{model_step1_forward.1} parent=55 // pred_check_branch
          %6553 = sbr.rel (%p6551) target = $region60
        $region59: #{model_step1_forward.1} parent=55 // pred_region
          %p6554 = scmp.lt.s32.totalorder %s19, 1
          %s6555 = scalar_select %p6554, %s19, 1
          %s6556 = smul.addr %s6555, 2
          %s6557 = smul.addr %s6556, 4
          %s6558 = scalar_lea.vmem %s5, %s6557
        $region60: #{model_step1_forward.1} parent=55 // pred_fallthru
          _
      $region56: #{model_step1_forward.1} parent=5 // pred_fallthru
        _
    $region6: #{model_step1_forward.1} parent=1 // loop_footer
      %s17 = sadd.s32 1, %s13
    $region7: #{model_step1_forward.1} parent=1 // loop_footer_branch
      %12 = sbr.rel target = $region3
    $region8: #{model_step1_forward.1} parent=1 // loop_exit
      _
    %6559 = vsyncpa [#allocation3], 1
    %s6560 = scalar_lea.sflag [#allocation3], 1
    %6561 = vsyncpa %s6560, 1
    %6562 = vsyncpa [#allocation5], 1

</llo_original>
